<compile_context>
chip_gen: v7x
topology: tpu7x:2x2x1
jax: 0.10.0
libtpu: 0.0.40
codegen_flags: <defaults>
</compile_context>

<pallas_src>
import jax
import jax.numpy as jnp
import numpy as np
from jax import lax
from jax.experimental import pallas as pl
from jax.experimental.pallas import tpu as pltpu

N = 2
L = 25                       # 400 * L must equal 10000 (fcl1 in_features) -> L = 25
K = 3
CH = [1, 25, 50, 100, 200, 400]
NL = N * L
OUT_F = 20
EPS = 1e-5
NEG_SLOPE = 0.2
BLK = [128 * ((c + 127) // 128) for c in CH[1:]]   # [128, 128, 128, 256, 512]


# ------------------------------- Pallas kernel ------------------------------ #
def decoder_kernel(*refs):
    """refs = [x, mprev, mnext, w1..w5 (tap-stacked), g2,b2,..,g5,b5,
               fc_G, fc_M, fc_P, fc_Sseg, fc_b, out, halo_scratch]."""
    x_ref, mp_ref, mn_ref = refs[0:3]
    w_refs = refs[3:8]                 # layer i: (Cin_i, 3*BLK[i])
    bn_refs = refs[8:16]               # (gamma, beta) for layers 2..5, each (1, Cout)
    g_fc_ref, m_fc_ref, p_fc_ref, sseg_ref, b_fc_ref = refs[16:21]
    out_ref = refs[21]
    pad_ref = refs[22]                 # (NL + 2, 3*BLK[-1]) halo scratch

    mp = mp_ref[...]                   # (NL, 1): 0 where l == 0      (no left neighbour)
    mn = mn_ref[...]                   # (NL, 1): 0 where l == L - 1  (no right neighbour)

    # Zero the scratch once: rows 0 and NL+1 (the halo) stay zero for the whole kernel,
    # rows 1..NL are overwritten every layer.
    pad_ref[...] = jnp.zeros_like(pad_ref)

    def conv(x, w_ref, cout, blk):
        # One matmul evaluates all 3 taps: columns [0:cout]           = x @ W_k1 (center)
        #                                  columns [blk:blk+cout]     = x @ W_k0 (prev tap)
        #                                  columns [2blk:2blk+cout]   = x @ W_k2 (next tap)
        z = jnp.dot(x, w_ref[...], preferred_element_type=jnp.float32)   # (NL, 3*blk)
        pad_ref[pl.ds(1, NL), 0:3 * blk] = z                              # rows 1..NL, halo stays 0
        z_center = z[:, 0:cout]
        z_prev = pad_ref[pl.ds(0, NL), blk:blk + cout]        # (x @ W_k0) shifted: row r <- r-1
        z_next = pad_ref[pl.ds(2, NL), 2 * blk:2 * blk + cout]  # (x @ W_k2) shifted: row r <- r+1
        return z_center + mp * z_prev + mn * z_next

    def batch_norm(x, g_ref, b_ref):
        # BatchNorm1d training mode: stats over batch*length (= all rows), biased variance.
        mu = jnp.mean(x, axis=0, keepdims=True)
        var = jnp.mean(x * x, axis=0, keepdims=True) - mu * mu
        return (x - mu) * (lax.rsqrt(var + EPS) * g_ref[...]) + b_ref[...]

    def lrelu(x):
        return jnp.where(x > 0, x, NEG_SLOPE * x)

    h = lrelu(conv(x_ref[...], w_refs[0], CH[1], BLK[0]))
    for i in range(1, 5):
        h = lrelu(batch_norm(conv(h, w_refs[i], CH[i + 1], BLK[i]),
                             bn_refs[2 * (i - 1)], bn_refs[2 * (i - 1) + 1]))

    # Fused Linear(10000 -> 20) + sigmoid, computed directly in the (NL, 400) row domain.
    t = jnp.dot(h, g_fc_ref[...], preferred_element_type=jnp.float32)               # (NL, L*OUT_F)
    u = jnp.dot(sseg_ref[...], t * m_fc_ref[...], preferred_element_type=jnp.float32)  # (N, L*OUT_F)
    y = jnp.dot(u, p_fc_ref[...], preferred_element_type=jnp.float32) + b_fc_ref[...]  # (N, OUT_F)
    out_ref[...] = 1.0 / (1.0 + jnp.exp(-y))


# --------------------------- host-side preparation -------------------------- #
def prepare_params(params):
    """One-time host prep: stack/permute weights and build the constant masks."""
    prep = {}

    # conv weights: PyTorch (Cout, Cin, 3) -> (Cin, 3*BLK) with blocks [center | prev | next]
    conv_w = []
    for i, w in enumerate(params["conv_w"]):
        w = np.asarray(w)                       # (Cout, Cin, 3)
        cout, cin, _ = w.shape
        blk = BLK[i]
        ws = np.zeros((cin, 3 * blk), np.float32)
        ws[:, 0:cout] = w[:, :, 1].T            # center tap  (x[l])
        ws[:, blk:blk + cout] = w[:, :, 0].T    # prev tap    (x[l-1])
        ws[:, 2 * blk:2 * blk + cout] = w[:, :, 2].T  # next tap (x[l+1])
        conv_w.append(jnp.asarray(ws))
    prep["conv_w"] = conv_w

    bn = []
    for g, b in zip(params["bn_gamma"], params["bn_beta"]):
        bn.append(jnp.asarray(g).reshape(1, -1))
        bn.append(jnp.asarray(b).reshape(1, -1))
    prep["bn"] = bn

    # per-row segment-boundary masks (reproduce Conv1d zero padding per length-L segment)
    rows = np.arange(NL)
    prep["mprev"] = jnp.asarray((rows % L != 0).astype(np.float32).reshape(NL, 1))
    prep["mnext"] = jnp.asarray((rows % L != L - 1).astype(np.float32).reshape(NL, 1))

    # FC: G[c, l*OUT_F + o] = fc_w[o, c*L + l]  (PyTorch flatten order is c*L + l)
    fc_w = np.asarray(params["fc_w"])           # (OUT_F, 10000)
    G = np.transpose(fc_w.reshape(OUT_F, CH[5], L), (1, 2, 0)).reshape(CH[5], L * OUT_F)
    prep["fc_g"] = jnp.asarray(G.astype(np.float32))

    mm = np.zeros((NL, L * OUT_F), np.float32)  # keep only the l' == (row mod L) block
    for nl in range(NL):
        l = nl % L
        mm[nl, l * OUT_F:(l + 1) * OUT_F] = 1.0
    prep["fc_mask"] = jnp.asarray(mm)

    P = np.zeros((L * OUT_F, OUT_F), np.float32)        # fold the L blocks onto the 20 outputs
    P[np.arange(L * OUT_F), np.arange(L * OUT_F) % OUT_F] = 1.0
    prep["fc_p"] = jnp.asarray(P)

    sseg = np.zeros((N, NL), np.float32)                # sum the rows of each sample
    sseg[rows // L, rows] = 1.0
    prep["fc_sseg"] = jnp.asarray(sseg)

    prep["fc_b"] = jnp.asarray(params["fc_b"]).reshape(1, OUT_F)
    return prep


@jax.jit
def decoder_forward(x_ncl, prep):
    """x_ncl: (N, 1, L) float32 in PyTorch NCW layout.  (The module's `epoch` arg is unused.)"""
    x_rows = jnp.transpose(x_ncl, (0, 2, 1)).reshape(NL, CH[0])   # (N*L, Cin)

    vmem = pl.BlockSpec(memory_space=pltpu.MemorySpace.VMEM)
    args = [x_rows, prep["mprev"], prep["mnext"], *prep["conv_w"], *prep["bn"],
            prep["fc_g"], prep["fc_mask"], prep["fc_p"], prep["fc_sseg"], prep["fc_b"]]

    return pl.pallas_call(
        decoder_kernel,
        out_shape=jax.ShapeDtypeStruct((N, OUT_F), jnp.float32),
        in_specs=[vmem] * len(args),
        out_specs=vmem,
        scratch_shapes=[pltpu.VMEM((NL + 2, 3 * BLK[-1]), jnp.float32)],
    )(*args)


# -------------------------- deterministic parameters ------------------------ #
def init_params(key):
    keys = jax.random.split(key, 16)
    ki = 0
    conv_w = []
    for i in range(5):
        cin, cout = CH[i], CH[i + 1]
        conv_w.append(jax.random.normal(keys[ki], (cout, cin, K), jnp.float32)
                      / np.sqrt(cin * K))
        ki += 1
    bn_gamma, bn_beta = [], []
    for i in range(4):
        c = CH[i + 2]
        bn_gamma.append(1.0 + 0.1 * jax.random.normal(keys[ki], (c,), jnp.float32)); ki += 1
        bn_beta.append(0.1 * jax.random.normal(keys[ki], (c,), jnp.float32)); ki += 1
    fc_w = jax.random.normal(keys[ki], (OUT_F, L * CH[5]), jnp.float32) / np.sqrt(L * CH[5]); ki += 1
    fc_b = 0.01 * jax.random.normal(keys[ki], (OUT_F,), jnp.float32)
    return dict(conv_w=conv_w, bn_gamma=bn_gamma, bn_beta=bn_beta, fc_w=fc_w, fc_b=fc_b)


# ------------------------------ pure-JAX reference -------------------------- #
def reference_forward(x, params):
    def conv(h, w):
        return lax.conv_general_dilated(h, w, window_strides=(1,), padding=((1, 1),),
                                        dimension_numbers=("NCH", "OIH", "NCH"))

    def bn(h, g, b):
        mu = jnp.mean(h, axis=(0, 2), keepdims=True)
        var = jnp.mean((h - mu) ** 2, axis=(0, 2), keepdims=True)
        return (h - mu) / jnp.sqrt(var + EPS) * g.reshape(1, -1, 1) + b.reshape(1, -1, 1)

    def lr(h):
        return jnp.where(h > 0, h, NEG_SLOPE * h)

    h = lr(conv(x, params["conv_w"][0]))
    for i in range(1, 5):
        h = lr(bn(conv(h, params["conv_w"][i]),
                  params["bn_gamma"][i - 1], params["bn_beta"][i - 1]))
    flat = h.reshape(x.shape[0], -1)          # PyTorch flatten order: c*L + l
    y = flat @ params["fc_w"].T + params["fc_b"]
    return jax.nn.sigmoid(y)


if __name__ == "__main__":
    key = jax.random.PRNGKey(0)
    kx, kp = jax.random.split(key)
    x = jax.random.normal(kx, (N, 1, L), jnp.float32)   # PyTorch NCW input
    params = init_params(kp)

    prepped = prepare_params(params)                    # one-time host-side weight prep
    out = decoder_forward(x, prepped)                   # `epoch` is unused by the module
    out = jax.block_until_ready(out)

    ref = reference_forward(x, params)
    assert out.shape == (N, OUT_F)
    np.testing.assert_allclose(np.asarray(out), np.asarray(ref), rtol=2e-3, atol=2e-3)
    print("KERNEL_OK")
</pallas_src>

<mosaic_0001>
module attributes {stable_mosaic.version = 11 : i64} {
  func.func @decoder_kernel(%arg0: memref<50x1xf32, #tpu.memory_space<vmem>>, %arg1: memref<50x1xf32, #tpu.memory_space<vmem>>, %arg2: memref<50x1xf32, #tpu.memory_space<vmem>>, %arg3: memref<1x384xf32, #tpu.memory_space<vmem>>, %arg4: memref<25x384xf32, #tpu.memory_space<vmem>>, %arg5: memref<50x384xf32, #tpu.memory_space<vmem>>, %arg6: memref<100x768xf32, #tpu.memory_space<vmem>>, %arg7: memref<200x1536xf32, #tpu.memory_space<vmem>>, %arg8: memref<1x50xf32, #tpu.memory_space<vmem>>, %arg9: memref<1x50xf32, #tpu.memory_space<vmem>>, %arg10: memref<1x100xf32, #tpu.memory_space<vmem>>, %arg11: memref<1x100xf32, #tpu.memory_space<vmem>>, %arg12: memref<1x200xf32, #tpu.memory_space<vmem>>, %arg13: memref<1x200xf32, #tpu.memory_space<vmem>>, %arg14: memref<1x400xf32, #tpu.memory_space<vmem>>, %arg15: memref<1x400xf32, #tpu.memory_space<vmem>>, %arg16: memref<400x500xf32, #tpu.memory_space<vmem>>, %arg17: memref<50x500xf32, #tpu.memory_space<vmem>>, %arg18: memref<500x20xf32, #tpu.memory_space<vmem>>, %arg19: memref<2x50xf32, #tpu.memory_space<vmem>>, %arg20: memref<1x20xf32, #tpu.memory_space<vmem>>, %arg21: memref<2x20xf32, #tpu.memory_space<vmem>>, %arg22: memref<52x1536xf32, #tpu.memory_space<vmem>>) attributes {dimension_semantics = [], scalar_prefetch = 0 : i64, scratch_operands = 1 : i64, tpu.core_type = #tpu.core_type<tc>} {
    %c0 = arith.constant 0 : index
    %c0_0 = arith.constant 0 : index
    %0 = vector.load %arg1[%c0, %c0_0] : memref<50x1xf32, #tpu.memory_space<vmem>>, vector<50x1xf32>
    %c0_1 = arith.constant 0 : index
    %c0_2 = arith.constant 0 : index
    %1 = vector.load %arg2[%c0_1, %c0_2] : memref<50x1xf32, #tpu.memory_space<vmem>>, vector<50x1xf32>
    %cst = arith.constant 0.000000e+00 : f32
    %2 = vector.broadcast %cst : f32 to vector<52x1536xf32>
    %c0_3 = arith.constant 0 : index
    %c0_4 = arith.constant 0 : index
    %3 = vector.load %arg22[%c0_3, %c0_4] : memref<52x1536xf32, #tpu.memory_space<vmem>>, vector<52x1536xf32>
    tpu.vector_store %arg22[%c0_3, %c0_4], %2 {strides = array<i32>} : memref<52x1536xf32, #tpu.memory_space<vmem>>, vector<52x1536xf32>,
    %c0_5 = arith.constant 0 : index
    %c0_6 = arith.constant 0 : index
    %4 = vector.load %arg0[%c0_5, %c0_6] : memref<50x1xf32, #tpu.memory_space<vmem>>, vector<50x1xf32>
    %c0_7 = arith.constant 0 : index
    %c0_8 = arith.constant 0 : index
    %5 = vector.load %arg3[%c0_7, %c0_8] : memref<1x384xf32, #tpu.memory_space<vmem>>, vector<1x384xf32>
    %cst_9 = arith.constant dense<0.000000e+00> : vector<50x384xf32>
    %6 = tpu.matmul %4, %5, %cst_9 {dimension_numbers = #tpu.dot_dimension_numbers<[1], [0], [0], [1], [0, 0, 1, 1], [], []>} : vector<50x1xf32>, vector<1x384xf32>, vector<50x384xf32> -> vector<50x384xf32>
    %c1 = arith.constant 1 : index
    %c0_10 = arith.constant 0 : index
    %7 = vector.load %arg22[%c1, %c0_10] : memref<52x1536xf32, #tpu.memory_space<vmem>>, vector<50x384xf32>
    tpu.vector_store %arg22[%c1, %c0_10], %6 {strides = array<i32>} : memref<52x1536xf32, #tpu.memory_space<vmem>>, vector<50x384xf32>,
    %8 = vector.extract_strided_slice %6 {offsets = [0, 0], sizes = [50, 25], strides = [1, 1]} : vector<50x384xf32> to vector<50x25xf32>
    %c0_11 = arith.constant 0 : index
    %c128 = arith.constant 128 : index
    %9 = vector.load %arg22[%c0_11, %c128] : memref<52x1536xf32, #tpu.memory_space<vmem>>, vector<50x25xf32>
    %c2 = arith.constant 2 : index
    %c256 = arith.constant 256 : index
    %10 = vector.load %arg22[%c2, %c256] : memref<52x1536xf32, #tpu.memory_space<vmem>>, vector<50x25xf32>
    %11 = vector.broadcast %0 : vector<50x1xf32> to vector<50x25xf32>
    %12 = arith.mulf %11, %9 : vector<50x25xf32>
    %13 = arith.addf %8, %12 : vector<50x25xf32>
    %14 = vector.broadcast %1 : vector<50x1xf32> to vector<50x25xf32>
    %15 = arith.mulf %14, %10 : vector<50x25xf32>
    %16 = arith.addf %13, %15 : vector<50x25xf32>
    %cst_12 = arith.constant 0.000000e+00 : f32
    %17 = vector.broadcast %cst_12 : f32 to vector<50x25xf32>
    %18 = arith.cmpf ogt, %16, %17 : vector<50x25xf32>
    %cst_13 = arith.constant 2.000000e-01 : f32
    %19 = vector.broadcast %cst_13 : f32 to vector<50x25xf32>
    %20 = arith.mulf %19, %16 : vector<50x25xf32>
    %21 = arith.select %18, %16, %20 : vector<50x25xi1>, vector<50x25xf32>
    %c0_14 = arith.constant 0 : index
    %c0_15 = arith.constant 0 : index
    %22 = vector.load %arg4[%c0_14, %c0_15] : memref<25x384xf32, #tpu.memory_space<vmem>>, vector<25x384xf32>
    %cst_16 = arith.constant dense<0.000000e+00> : vector<50x384xf32>
    %23 = tpu.matmul %21, %22, %cst_16 {dimension_numbers = #tpu.dot_dimension_numbers<[1], [0], [0], [1], [0, 0, 1, 1], [], []>} : vector<50x25xf32>, vector<25x384xf32>, vector<50x384xf32> -> vector<50x384xf32>
    %c1_17 = arith.constant 1 : index
    %c0_18 = arith.constant 0 : index
    %24 = vector.load %arg22[%c1_17, %c0_18] : memref<52x1536xf32, #tpu.memory_space<vmem>>, vector<50x384xf32>
    tpu.vector_store %arg22[%c1_17, %c0_18], %23 {strides = array<i32>} : memref<52x1536xf32, #tpu.memory_space<vmem>>, vector<50x384xf32>,
    %25 = vector.extract_strided_slice %23 {offsets = [0, 0], sizes = [50, 50], strides = [1, 1]} : vector<50x384xf32> to vector<50x50xf32>
    %c0_19 = arith.constant 0 : index
    %c128_20 = arith.constant 128 : index
    %26 = vector.load %arg22[%c0_19, %c128_20] : memref<52x1536xf32, #tpu.memory_space<vmem>>, vector<50x50xf32>
    %c2_21 = arith.constant 2 : index
    %c256_22 = arith.constant 256 : index
    %27 = vector.load %arg22[%c2_21, %c256_22] : memref<52x1536xf32, #tpu.memory_space<vmem>>, vector<50x50xf32>
    %28 = vector.broadcast %0 : vector<50x1xf32> to vector<50x50xf32>
    %29 = arith.mulf %28, %26 : vector<50x50xf32>
    %30 = arith.addf %25, %29 : vector<50x50xf32>
    %31 = vector.broadcast %1 : vector<50x1xf32> to vector<50x50xf32>
    %32 = arith.mulf %31, %27 : vector<50x50xf32>
    %33 = arith.addf %30, %32 : vector<50x50xf32>
    %cst_23 = arith.constant dense<0.000000e+00> : vector<50xf32>
    %34 = vector.multi_reduction <add>, %33, %cst_23 [0] : vector<50x50xf32> to vector<50xf32>
    %35 = vector.shape_cast %34 : vector<50xf32> to vector<1x50xf32>
    %cst_24 = arith.constant 5.000000e+01 : f32
    %36 = vector.broadcast %cst_24 : f32 to vector<1x50xf32>
    %37 = arith.divf %35, %36 : vector<1x50xf32>
    %38 = arith.mulf %33, %33 : vector<50x50xf32>
    %cst_25 = arith.constant dense<0.000000e+00> : vector<50xf32>
    %39 = vector.multi_reduction <add>, %38, %cst_25 [0] : vector<50x50xf32> to vector<50xf32>
    %40 = vector.shape_cast %39 : vector<50xf32> to vector<1x50xf32>
    %cst_26 = arith.constant 5.000000e+01 : f32
    %41 = vector.broadcast %cst_26 : f32 to vector<1x50xf32>
    %42 = arith.divf %40, %41 : vector<1x50xf32>
    %43 = arith.mulf %37, %37 : vector<1x50xf32>
    %44 = arith.subf %42, %43 : vector<1x50xf32>
    %45 = vector.broadcast %37 : vector<1x50xf32> to vector<50x50xf32>
    %46 = arith.subf %33, %45 : vector<50x50xf32>
    %cst_27 = arith.constant 9.99999974E-6 : f32
    %47 = vector.broadcast %cst_27 : f32 to vector<1x50xf32>
    %48 = arith.addf %44, %47 : vector<1x50xf32>
    %49 = math.rsqrt %48 : vector<1x50xf32>
    %c0_28 = arith.constant 0 : index
    %c0_29 = arith.constant 0 : index
    %50 = vector.load %arg8[%c0_28, %c0_29] : memref<1x50xf32, #tpu.memory_space<vmem>>, vector<1x50xf32>
    %51 = arith.mulf %49, %50 : vector<1x50xf32>
    %52 = vector.broadcast %51 : vector<1x50xf32> to vector<50x50xf32>
    %53 = arith.mulf %46, %52 : vector<50x50xf32>
    %c0_30 = arith.constant 0 : index
    %c0_31 = arith.constant 0 : index
    %54 = vector.load %arg9[%c0_30, %c0_31] : memref<1x50xf32, #tpu.memory_space<vmem>>, vector<1x50xf32>
    %55 = vector.broadcast %54 : vector<1x50xf32> to vector<50x50xf32>
    %56 = arith.addf %53, %55 : vector<50x50xf32>
    %cst_32 = arith.constant 0.000000e+00 : f32
    %57 = vector.broadcast %cst_32 : f32 to vector<50x50xf32>
    %58 = arith.cmpf ogt, %56, %57 : vector<50x50xf32>
    %cst_33 = arith.constant 2.000000e-01 : f32
    %59 = vector.broadcast %cst_33 : f32 to vector<50x50xf32>
    %60 = arith.mulf %59, %56 : vector<50x50xf32>
    %61 = arith.select %58, %56, %60 : vector<50x50xi1>, vector<50x50xf32>
    %c0_34 = arith.constant 0 : index
    %c0_35 = arith.constant 0 : index
    %62 = vector.load %arg5[%c0_34, %c0_35] : memref<50x384xf32, #tpu.memory_space<vmem>>, vector<50x384xf32>
    %cst_36 = arith.constant dense<0.000000e+00> : vector<50x384xf32>
    %63 = tpu.matmul %61, %62, %cst_36 {dimension_numbers = #tpu.dot_dimension_numbers<[1], [0], [0], [1], [0, 0, 1, 1], [], []>} : vector<50x50xf32>, vector<50x384xf32>, vector<50x384xf32> -> vector<50x384xf32>
    %c1_37 = arith.constant 1 : index
    %c0_38 = arith.constant 0 : index
    %64 = vector.load %arg22[%c1_37, %c0_38] : memref<52x1536xf32, #tpu.memory_space<vmem>>, vector<50x384xf32>
    tpu.vector_store %arg22[%c1_37, %c0_38], %63 {strides = array<i32>} : memref<52x1536xf32, #tpu.memory_space<vmem>>, vector<50x384xf32>,
    %65 = vector.extract_strided_slice %63 {offsets = [0, 0], sizes = [50, 100], strides = [1, 1]} : vector<50x384xf32> to vector<50x100xf32>
    %c0_39 = arith.constant 0 : index
    %c128_40 = arith.constant 128 : index
    %66 = vector.load %arg22[%c0_39, %c128_40] : memref<52x1536xf32, #tpu.memory_space<vmem>>, vector<50x100xf32>
    %c2_41 = arith.constant 2 : index
    %c256_42 = arith.constant 256 : index
    %67 = vector.load %arg22[%c2_41, %c256_42] : memref<52x1536xf32, #tpu.memory_space<vmem>>, vector<50x100xf32>
    %68 = vector.broadcast %0 : vector<50x1xf32> to vector<50x100xf32>
    %69 = arith.mulf %68, %66 : vector<50x100xf32>
    %70 = arith.addf %65, %69 : vector<50x100xf32>
    %71 = vector.broadcast %1 : vector<50x1xf32> to vector<50x100xf32>
    %72 = arith.mulf %71, %67 : vector<50x100xf32>
    %73 = arith.addf %70, %72 : vector<50x100xf32>
    %cst_43 = arith.constant dense<0.000000e+00> : vector<100xf32>
    %74 = vector.multi_reduction <add>, %73, %cst_43 [0] : vector<50x100xf32> to vector<100xf32>
    %75 = vector.shape_cast %74 : vector<100xf32> to vector<1x100xf32>
    %cst_44 = arith.constant 5.000000e+01 : f32
    %76 = vector.broadcast %cst_44 : f32 to vector<1x100xf32>
    %77 = arith.divf %75, %76 : vector<1x100xf32>
    %78 = arith.mulf %73, %73 : vector<50x100xf32>
    %cst_45 = arith.constant dense<0.000000e+00> : vector<100xf32>
    %79 = vector.multi_reduction <add>, %78, %cst_45 [0] : vector<50x100xf32> to vector<100xf32>
    %80 = vector.shape_cast %79 : vector<100xf32> to vector<1x100xf32>
    %cst_46 = arith.constant 5.000000e+01 : f32
    %81 = vector.broadcast %cst_46 : f32 to vector<1x100xf32>
    %82 = arith.divf %80, %81 : vector<1x100xf32>
    %83 = arith.mulf %77, %77 : vector<1x100xf32>
    %84 = arith.subf %82, %83 : vector<1x100xf32>
    %85 = vector.broadcast %77 : vector<1x100xf32> to vector<50x100xf32>
    %86 = arith.subf %73, %85 : vector<50x100xf32>
    %cst_47 = arith.constant 9.99999974E-6 : f32
    %87 = vector.broadcast %cst_47 : f32 to vector<1x100xf32>
    %88 = arith.addf %84, %87 : vector<1x100xf32>
    %89 = math.rsqrt %88 : vector<1x100xf32>
    %c0_48 = arith.constant 0 : index
    %c0_49 = arith.constant 0 : index
    %90 = vector.load %arg10[%c0_48, %c0_49] : memref<1x100xf32, #tpu.memory_space<vmem>>, vector<1x100xf32>
    %91 = arith.mulf %89, %90 : vector<1x100xf32>
    %92 = vector.broadcast %91 : vector<1x100xf32> to vector<50x100xf32>
    %93 = arith.mulf %86, %92 : vector<50x100xf32>
    %c0_50 = arith.constant 0 : index
    %c0_51 = arith.constant 0 : index
    %94 = vector.load %arg11[%c0_50, %c0_51] : memref<1x100xf32, #tpu.memory_space<vmem>>, vector<1x100xf32>
    %95 = vector.broadcast %94 : vector<1x100xf32> to vector<50x100xf32>
    %96 = arith.addf %93, %95 : vector<50x100xf32>
    %cst_52 = arith.constant 0.000000e+00 : f32
    %97 = vector.broadcast %cst_52 : f32 to vector<50x100xf32>
    %98 = arith.cmpf ogt, %96, %97 : vector<50x100xf32>
    %cst_53 = arith.constant 2.000000e-01 : f32
    %99 = vector.broadcast %cst_53 : f32 to vector<50x100xf32>
    %100 = arith.mulf %99, %96 : vector<50x100xf32>
    %101 = arith.select %98, %96, %100 : vector<50x100xi1>, vector<50x100xf32>
    %c0_54 = arith.constant 0 : index
    %c0_55 = arith.constant 0 : index
    %102 = vector.load %arg6[%c0_54, %c0_55] : memref<100x768xf32, #tpu.memory_space<vmem>>, vector<100x768xf32>
    %cst_56 = arith.constant dense<0.000000e+00> : vector<50x768xf32>
    %103 = tpu.matmul %101, %102, %cst_56 {dimension_numbers = #tpu.dot_dimension_numbers<[1], [0], [0], [1], [0, 0, 1, 1], [], []>} : vector<50x100xf32>, vector<100x768xf32>, vector<50x768xf32> -> vector<50x768xf32>
    %c1_57 = arith.constant 1 : index
    %c0_58 = arith.constant 0 : index
    %104 = vector.load %arg22[%c1_57, %c0_58] : memref<52x1536xf32, #tpu.memory_space<vmem>>, vector<50x768xf32>
    tpu.vector_store %arg22[%c1_57, %c0_58], %103 {strides = array<i32>} : memref<52x1536xf32, #tpu.memory_space<vmem>>, vector<50x768xf32>,
    %105 = vector.extract_strided_slice %103 {offsets = [0, 0], sizes = [50, 200], strides = [1, 1]} : vector<50x768xf32> to vector<50x200xf32>
    %c0_59 = arith.constant 0 : index
    %c256_60 = arith.constant 256 : index
    %106 = vector.load %arg22[%c0_59, %c256_60] : memref<52x1536xf32, #tpu.memory_space<vmem>>, vector<50x200xf32>
    %c2_61 = arith.constant 2 : index
    %c512 = arith.constant 512 : index
    %107 = vector.load %arg22[%c2_61, %c512] : memref<52x1536xf32, #tpu.memory_space<vmem>>, vector<50x200xf32>
    %108 = vector.broadcast %0 : vector<50x1xf32> to vector<50x200xf32>
    %109 = arith.mulf %108, %106 : vector<50x200xf32>
    %110 = arith.addf %105, %109 : vector<50x200xf32>
    %111 = vector.broadcast %1 : vector<50x1xf32> to vector<50x200xf32>
    %112 = arith.mulf %111, %107 : vector<50x200xf32>
    %113 = arith.addf %110, %112 : vector<50x200xf32>
    %cst_62 = arith.constant dense<0.000000e+00> : vector<200xf32>
    %114 = vector.multi_reduction <add>, %113, %cst_62 [0] : vector<50x200xf32> to vector<200xf32>
    %115 = vector.shape_cast %114 : vector<200xf32> to vector<1x200xf32>
    %cst_63 = arith.constant 5.000000e+01 : f32
    %116 = vector.broadcast %cst_63 : f32 to vector<1x200xf32>
    %117 = arith.divf %115, %116 : vector<1x200xf32>
    %118 = arith.mulf %113, %113 : vector<50x200xf32>
    %cst_64 = arith.constant dense<0.000000e+00> : vector<200xf32>
    %119 = vector.multi_reduction <add>, %118, %cst_64 [0] : vector<50x200xf32> to vector<200xf32>
    %120 = vector.shape_cast %119 : vector<200xf32> to vector<1x200xf32>
    %cst_65 = arith.constant 5.000000e+01 : f32
    %121 = vector.broadcast %cst_65 : f32 to vector<1x200xf32>
    %122 = arith.divf %120, %121 : vector<1x200xf32>
    %123 = arith.mulf %117, %117 : vector<1x200xf32>
    %124 = arith.subf %122, %123 : vector<1x200xf32>
    %125 = vector.broadcast %117 : vector<1x200xf32> to vector<50x200xf32>
    %126 = arith.subf %113, %125 : vector<50x200xf32>
    %cst_66 = arith.constant 9.99999974E-6 : f32
    %127 = vector.broadcast %cst_66 : f32 to vector<1x200xf32>
    %128 = arith.addf %124, %127 : vector<1x200xf32>
    %129 = math.rsqrt %128 : vector<1x200xf32>
    %c0_67 = arith.constant 0 : index
    %c0_68 = arith.constant 0 : index
    %130 = vector.load %arg12[%c0_67, %c0_68] : memref<1x200xf32, #tpu.memory_space<vmem>>, vector<1x200xf32>
    %131 = arith.mulf %129, %130 : vector<1x200xf32>
    %132 = vector.broadcast %131 : vector<1x200xf32> to vector<50x200xf32>
    %133 = arith.mulf %126, %132 : vector<50x200xf32>
    %c0_69 = arith.constant 0 : index
    %c0_70 = arith.constant 0 : index
    %134 = vector.load %arg13[%c0_69, %c0_70] : memref<1x200xf32, #tpu.memory_space<vmem>>, vector<1x200xf32>
    %135 = vector.broadcast %134 : vector<1x200xf32> to vector<50x200xf32>
    %136 = arith.addf %133, %135 : vector<50x200xf32>
    %cst_71 = arith.constant 0.000000e+00 : f32
    %137 = vector.broadcast %cst_71 : f32 to vector<50x200xf32>
    %138 = arith.cmpf ogt, %136, %137 : vector<50x200xf32>
    %cst_72 = arith.constant 2.000000e-01 : f32
    %139 = vector.broadcast %cst_72 : f32 to vector<50x200xf32>
    %140 = arith.mulf %139, %136 : vector<50x200xf32>
    %141 = arith.select %138, %136, %140 : vector<50x200xi1>, vector<50x200xf32>
    %c0_73 = arith.constant 0 : index
    %c0_74 = arith.constant 0 : index
    %142 = vector.load %arg7[%c0_73, %c0_74] : memref<200x1536xf32, #tpu.memory_space<vmem>>, vector<200x1536xf32>
    %cst_75 = arith.constant dense<0.000000e+00> : vector<50x1536xf32>
    %143 = tpu.matmul %141, %142, %cst_75 {dimension_numbers = #tpu.dot_dimension_numbers<[1], [0], [0], [1], [0, 0, 1, 1], [], []>} : vector<50x200xf32>, vector<200x1536xf32>, vector<50x1536xf32> -> vector<50x1536xf32>
    %c1_76 = arith.constant 1 : index
    %c0_77 = arith.constant 0 : index
    %144 = vector.load %arg22[%c1_76, %c0_77] : memref<52x1536xf32, #tpu.memory_space<vmem>>, vector<50x1536xf32>
    tpu.vector_store %arg22[%c1_76, %c0_77], %143 {strides = array<i32>} : memref<52x1536xf32, #tpu.memory_space<vmem>>, vector<50x1536xf32>,
    %145 = vector.extract_strided_slice %143 {offsets = [0, 0], sizes = [50, 400], strides = [1, 1]} : vector<50x1536xf32> to vector<50x400xf32>
    %c0_78 = arith.constant 0 : index
    %c512_79 = arith.constant 512 : index
    %146 = vector.load %arg22[%c0_78, %c512_79] : memref<52x1536xf32, #tpu.memory_space<vmem>>, vector<50x400xf32>
    %c2_80 = arith.constant 2 : index
    %c1024 = arith.constant 1024 : index
    %147 = vector.load %arg22[%c2_80, %c1024] : memref<52x1536xf32, #tpu.memory_space<vmem>>, vector<50x400xf32>
    %148 = vector.broadcast %0 : vector<50x1xf32> to vector<50x400xf32>
    %149 = arith.mulf %148, %146 : vector<50x400xf32>
    %150 = arith.addf %145, %149 : vector<50x400xf32>
    %151 = vector.broadcast %1 : vector<50x1xf32> to vector<50x400xf32>
    %152 = arith.mulf %151, %147 : vector<50x400xf32>
    %153 = arith.addf %150, %152 : vector<50x400xf32>
    %cst_81 = arith.constant dense<0.000000e+00> : vector<400xf32>
    %154 = vector.multi_reduction <add>, %153, %cst_81 [0] : vector<50x400xf32> to vector<400xf32>
    %155 = vector.shape_cast %154 : vector<400xf32> to vector<1x400xf32>
    %cst_82 = arith.constant 5.000000e+01 : f32
    %156 = vector.broadcast %cst_82 : f32 to vector<1x400xf32>
    %157 = arith.divf %155, %156 : vector<1x400xf32>
    %158 = arith.mulf %153, %153 : vector<50x400xf32>
    %cst_83 = arith.constant dense<0.000000e+00> : vector<400xf32>
    %159 = vector.multi_reduction <add>, %158, %cst_83 [0] : vector<50x400xf32> to vector<400xf32>
    %160 = vector.shape_cast %159 : vector<400xf32> to vector<1x400xf32>
    %cst_84 = arith.constant 5.000000e+01 : f32
    %161 = vector.broadcast %cst_84 : f32 to vector<1x400xf32>
    %162 = arith.divf %160, %161 : vector<1x400xf32>
    %163 = arith.mulf %157, %157 : vector<1x400xf32>
    %164 = arith.subf %162, %163 : vector<1x400xf32>
    %165 = vector.broadcast %157 : vector<1x400xf32> to vector<50x400xf32>
    %166 = arith.subf %153, %165 : vector<50x400xf32>
    %cst_85 = arith.constant 9.99999974E-6 : f32
    %167 = vector.broadcast %cst_85 : f32 to vector<1x400xf32>
    %168 = arith.addf %164, %167 : vector<1x400xf32>
    %169 = math.rsqrt %168 : vector<1x400xf32>
    %c0_86 = arith.constant 0 : index
    %c0_87 = arith.constant 0 : index
    %170 = vector.load %arg14[%c0_86, %c0_87] : memref<1x400xf32, #tpu.memory_space<vmem>>, vector<1x400xf32>
    %171 = arith.mulf %169, %170 : vector<1x400xf32>
    %172 = vector.broadcast %171 : vector<1x400xf32> to vector<50x400xf32>
    %173 = arith.mulf %166, %172 : vector<50x400xf32>
    %c0_88 = arith.constant 0 : index
    %c0_89 = arith.constant 0 : index
    %174 = vector.load %arg15[%c0_88, %c0_89] : memref<1x400xf32, #tpu.memory_space<vmem>>, vector<1x400xf32>
    %175 = vector.broadcast %174 : vector<1x400xf32> to vector<50x400xf32>
    %176 = arith.addf %173, %175 : vector<50x400xf32>
    %cst_90 = arith.constant 0.000000e+00 : f32
    %177 = vector.broadcast %cst_90 : f32 to vector<50x400xf32>
    %178 = arith.cmpf ogt, %176, %177 : vector<50x400xf32>
    %cst_91 = arith.constant 2.000000e-01 : f32
    %179 = vector.broadcast %cst_91 : f32 to vector<50x400xf32>
    %180 = arith.mulf %179, %176 : vector<50x400xf32>
    %181 = arith.select %178, %176, %180 : vector<50x400xi1>, vector<50x400xf32>
    %c0_92 = arith.constant 0 : index
    %c0_93 = arith.constant 0 : index
    %182 = vector.load %arg16[%c0_92, %c0_93] : memref<400x500xf32, #tpu.memory_space<vmem>>, vector<400x500xf32>
    %cst_94 = arith.constant dense<0.000000e+00> : vector<50x500xf32>
    %183 = tpu.matmul %181, %182, %cst_94 {dimension_numbers = #tpu.dot_dimension_numbers<[1], [0], [0], [1], [0, 0, 1, 1], [], []>} : vector<50x400xf32>, vector<400x500xf32>, vector<50x500xf32> -> vector<50x500xf32>
    %c0_95 = arith.constant 0 : index
    %c0_96 = arith.constant 0 : index
    %184 = vector.load %arg19[%c0_95, %c0_96] : memref<2x50xf32, #tpu.memory_space<vmem>>, vector<2x50xf32>
    %c0_97 = arith.constant 0 : index
    %c0_98 = arith.constant 0 : index
    %185 = vector.load %arg17[%c0_97, %c0_98] : memref<50x500xf32, #tpu.memory_space<vmem>>, vector<50x500xf32>
    %186 = arith.mulf %183, %185 : vector<50x500xf32>
    %cst_99 = arith.constant dense<0.000000e+00> : vector<2x500xf32>
    %187 = tpu.matmul %184, %186, %cst_99 {dimension_numbers = #tpu.dot_dimension_numbers<[1], [0], [0], [1], [0, 0, 1, 1], [], []>} : vector<2x50xf32>, vector<50x500xf32>, vector<2x500xf32> -> vector<2x500xf32>
    %c0_100 = arith.constant 0 : index
    %c0_101 = arith.constant 0 : index
    %188 = vector.load %arg18[%c0_100, %c0_101] : memref<500x20xf32, #tpu.memory_space<vmem>>, vector<500x20xf32>
    %cst_102 = arith.constant dense<0.000000e+00> : vector<2x20xf32>
    %189 = tpu.matmul %187, %188, %cst_102 {dimension_numbers = #tpu.dot_dimension_numbers<[1], [0], [0], [1], [0, 0, 1, 1], [], []>} : vector<2x500xf32>, vector<500x20xf32>, vector<2x20xf32> -> vector<2x20xf32>
    %c0_103 = arith.constant 0 : index
    %c0_104 = arith.constant 0 : index
    %190 = vector.load %arg20[%c0_103, %c0_104] : memref<1x20xf32, #tpu.memory_space<vmem>>, vector<1x20xf32>
    %191 = vector.broadcast %190 : vector<1x20xf32> to vector<2x20xf32>
    %192 = arith.addf %189, %191 : vector<2x20xf32>
    %cst_105 = arith.constant 0.000000e+00 : f32
    %193 = vector.broadcast %cst_105 : f32 to vector<2x20xf32>
    %194 = arith.subf %193, %192 : vector<2x20xf32>
    %195 = math.exp %194 : vector<2x20xf32>
    %cst_106 = arith.constant 1.000000e+00 : f32
    %196 = vector.broadcast %cst_106 : f32 to vector<2x20xf32>
    %197 = arith.addf %196, %195 : vector<2x20xf32>
    %cst_107 = arith.constant 1.000000e+00 : f32
    %198 = vector.broadcast %cst_107 : f32 to vector<2x20xf32>
    %199 = arith.divf %198, %197 : vector<2x20xf32>
    %c0_108 = arith.constant 0 : index
    %c0_109 = arith.constant 0 : index
    %200 = vector.load %arg21[%c0_108, %c0_109] : memref<2x20xf32, #tpu.memory_space<vmem>>, vector<2x20xf32>
    tpu.vector_store %arg21[%c0_108, %c0_109], %199 {strides = array<i32>} : memref<2x20xf32, #tpu.memory_space<vmem>>, vector<2x20xf32>,
    return
  }
}

</mosaic_0001>

<llo_original>
// kernel: decoder_forward.1
$region0: #{decoder_forward.1}
  #allocation0 [shape = 'u32[]', space=smem, size = 0x4, offset = 0x4, fixed_abs, tag = 'smem constant byte address 0x4 - core index']
  #allocation1 [shape = 'u32[144,128]{1,0:T(1,128)}', space=vmem, size = 0x12000, scoped, tag = 'internal scratch']
  #allocation2 [shape = 'f32[52,1536]{1,0:T(8,128)}', space=vmem, size = 0x54000, scoped, tag = 'scratch operand']
  %s0 = inlined_call_operand.vmem [shape: f32[50,1], index: 0, kind: input, shape index: {}]
  %s1 = inlined_call_operand.vmem [shape: f32[50,1], index: 1, kind: input, shape index: {}]
  %s2 = inlined_call_operand.vmem [shape: f32[50,1], index: 2, kind: input, shape index: {}]
  %s3 = inlined_call_operand.hbm [shape: f32[1,384], index: 3, kind: input, shape index: {}]
  %s4 = inlined_call_operand.hbm [shape: f32[25,384], index: 4, kind: input, shape index: {}]
  %s5 = inlined_call_operand.hbm [shape: f32[50,384], index: 5, kind: input, shape index: {}]
  %s6 = inlined_call_operand.hbm [shape: f32[100,768], index: 6, kind: input, shape index: {}]
  %s7 = inlined_call_operand.hbm [shape: f32[200,1536], index: 7, kind: input, shape index: {}]
  %s8 = inlined_call_operand.hbm [shape: f32[1,50], index: 8, kind: input, shape index: {}]
  %s9 = inlined_call_operand.hbm [shape: f32[1,50], index: 9, kind: input, shape index: {}]
  %s10 = inlined_call_operand.hbm [shape: f32[1,100], index: 10, kind: input, shape index: {}]
  %s11 = inlined_call_operand.hbm [shape: f32[1,100], index: 11, kind: input, shape index: {}]
  %s12 = inlined_call_operand.hbm [shape: f32[1,200], index: 12, kind: input, shape index: {}]
  %s13 = inlined_call_operand.hbm [shape: f32[1,200], index: 13, kind: input, shape index: {}]
  %s14 = inlined_call_operand.hbm [shape: f32[1,400], index: 14, kind: input, shape index: {}]
  %s15 = inlined_call_operand.hbm [shape: f32[1,400], index: 15, kind: input, shape index: {}]
  %s16 = inlined_call_operand.hbm [shape: f32[400,500], index: 16, kind: input, shape index: {}]
  %s17 = inlined_call_operand.hbm [shape: f32[50,500], index: 17, kind: input, shape index: {}]
  %s18 = inlined_call_operand.vmem [shape: f32[500,20], index: 18, kind: input, shape index: {}]
  %s19 = inlined_call_operand.hbm [shape: f32[2,50], index: 19, kind: input, shape index: {}]
  %s20 = inlined_call_operand.hbm [shape: f32[1,20], index: 20, kind: input, shape index: {}]
  %s21 = inlined_call_operand.hbm [shape: f32[2,20], index: 21, kind: output, shape index: {}]
  %s22 = sld [smem:[#allocation0]]
  $region162: #{decoder_forward.1} parent=0
    _
  %s24 = ssub.s32 1, %s22
  %s25 = scalar_select 0, %s24, %s22
  $region1: #{decoder_forward.1} parent=0
    #allocation3 [shape = 'u8[1536]{0}', space=vmem, size = 0x800, scoped, tag = 'input window, operand 3, single buffered']
    #allocation4 [shape = 's32[1]{0}', space=sflag, size = 0x4, scoped, tag = 'scoped memory for decoder_forward.1']
    #allocation5 [shape = 's32[1]{0}', space=sflag, size = 0x4, scoped, tag = 'scoped memory for decoder_forward.1']
    #allocation6 [shape = 'u8[49152]{0}', space=vmem, size = 0xc000, scoped, tag = 'input window, operand 4, single buffered']
    #allocation7 [shape = 's32[1]{0}', space=sflag, size = 0x4, scoped, tag = 'scoped memory for decoder_forward.1']
    #allocation8 [shape = 'u8[86016]{0}', space=vmem, size = 0x15000, scoped, tag = 'input window, operand 5, single buffered']
    #allocation9 [shape = 'u8[319488]{0}', space=vmem, size = 0x4e000, scoped, tag = 'input window, operand 6, single buffered']
    #allocation10 [shape = 's32[1]{0}', space=sflag, size = 0x4, scoped, tag = 'scoped memory for decoder_forward.1']
    #allocation11 [shape = 'u8[1228800]{0}', space=vmem, size = 0x12c000, scoped, tag = 'input window, operand 7, single buffered']
    #allocation12 [shape = 'u8[512]{0}', space=vmem, size = 0x400, scoped, tag = 'input window, operand 8, single buffered']
    #allocation13 [shape = 's32[1]{0}', space=sflag, size = 0x4, scoped, tag = 'scoped memory for decoder_forward.1']
    #allocation14 [shape = 'u8[512]{0}', space=vmem, size = 0x400, scoped, tag = 'input window, operand 9, single buffered']
    #allocation15 [shape = 'u8[512]{0}', space=vmem, size = 0x400, scoped, tag = 'input window, operand 10, single buffered']
    #allocation16 [shape = 's32[1]{0}', space=sflag, size = 0x4, scoped, tag = 'scoped memory for decoder_forward.1']
    #allocation17 [shape = 'u8[512]{0}', space=vmem, size = 0x400, scoped, tag = 'input window, operand 11, single buffered']
    #allocation18 [shape = 'u8[1024]{0}', space=vmem, size = 0x400, scoped, tag = 'input window, operand 12, single buffered']
    #allocation19 [shape = 's32[1]{0}', space=sflag, size = 0x4, scoped, tag = 'scoped memory for decoder_forward.1']
    #allocation20 [shape = 'u8[1024]{0}', space=vmem, size = 0x400, scoped, tag = 'input window, operand 13, single buffered']
    #allocation21 [shape = 'u8[2048]{0}', space=vmem, size = 0x800, scoped, tag = 'input window, operand 14, single buffered']
    #allocation22 [shape = 's32[1]{0}', space=sflag, size = 0x4, scoped, tag = 'scoped memory for decoder_forward.1']
    #allocation23 [shape = 'u8[2048]{0}', space=vmem, size = 0x800, scoped, tag = 'input window, operand 15, single buffered']
    #allocation24 [shape = 'u8[819200]{0}', space=vmem, size = 0xc8000, scoped, tag = 'input window, operand 16, single buffered']
    #allocation25 [shape = 's32[1]{0}', space=sflag, size = 0x4, scoped, tag = 'scoped memory for decoder_forward.1']
    #allocation26 [shape = 'u8[114688]{0}', space=vmem, size = 0x1c000, scoped, tag = 'input window, operand 17, single buffered']
    #allocation27 [shape = 'u8[1024]{0}', space=vmem, size = 0x400, scoped, tag = 'input window, operand 19, single buffered']
    #allocation28 [shape = 's32[1]{0}', space=sflag, size = 0x4, scoped, tag = 'scoped memory for decoder_forward.1']
    #allocation29 [shape = 'u8[512]{0}', space=vmem, size = 0x400, scoped, tag = 'input window, operand 20, single buffered']
    #allocation30 [shape = 'u8[1024]{0}', space=vmem, size = 0x400, scoped, tag = 'output window, operand 0, single buffered']
    %26 = vsyncpa [#allocation4], 0
    %27 = vsyncpa [#allocation7], 0
    %28 = vsyncpa [#allocation10], 0
    %29 = vsyncpa [#allocation13], 0
    %30 = vsyncpa [#allocation16], 0
    %31 = vsyncpa [#allocation19], 0
    %32 = vsyncpa [#allocation22], 0
    %33 = vsyncpa [#allocation25], 0
    %34 = vsyncpa [#allocation28], 0
    %35 = vsyncpa [#allocation5], 0
    // Predicated region
    $region2: #{decoder_forward.1} parent=1 // pred_check
      _
    $region3: #{decoder_forward.1} parent=1 // pred_check_branch
      %37 = sbr.rel (0) target = $region5
    $region4: #{decoder_forward.1} parent=1 // pred_region
      _
    $region5: #{decoder_forward.1} parent=1 // pred_fallthru
      _
    // Predicated region
    $region6: #{decoder_forward.1} parent=1 // pred_check
      _
    $region7: #{decoder_forward.1} parent=1 // pred_check_branch
      %39 = sbr.rel (0) target = $region9
    $region8: #{decoder_forward.1} parent=1 // pred_region
      _
    $region9: #{decoder_forward.1} parent=1 // pred_fallthru
      _
    // Predicated region
    $region10: #{decoder_forward.1} parent=1 // pred_check
      _
    $region11: #{decoder_forward.1} parent=1 // pred_check_branch
      %41 = sbr.rel (0) target = $region13
    $region12: #{decoder_forward.1} parent=1 // pred_region
      _
    $region13: #{decoder_forward.1} parent=1 // pred_fallthru
      _
    // Predicated region
    $region14: #{decoder_forward.1} parent=1 // pred_check
      _
    $region15: #{decoder_forward.1} parent=1 // pred_check_branch
      %43 = sbr.rel (0) target = $region17
    $region16: #{decoder_forward.1} parent=1 // pred_region
      %s45 = ssub.s32 48, 48
      %46 = vsyncadd [#allocation4], %s45
      %s48 = sshll.u32 [#allocation3], 4
      %s49 = int_to_ptr.vmem [resolvable:$true] %s48
      %51 = dma.hbm_to_vmem [thread:$0]  %s3, 48, %s49, [#allocation4]
    $region17: #{decoder_forward.1} parent=1 // pred_fallthru
      _
    // Predicated region
    $region18: #{decoder_forward.1} parent=1 // pred_check
      _
    $region19: #{decoder_forward.1} parent=1 // pred_check_branch
      %53 = sbr.rel (0) target = $region21
    $region20: #{decoder_forward.1} parent=1 // pred_region
      %s55 = ssub.s32 1536, 1536
      %56 = vsyncadd [#allocation7], %s55
      %s57 = sshll.u32 [#allocation6], 4
      %s58 = int_to_ptr.vmem [resolvable:$true] %s57
      %63 = dma.hbm_to_vmem [thread:$0]  %s4, 1536, %s58, [#allocation7], 384, 384, 24
    $region21: #{decoder_forward.1} parent=1 // pred_fallthru
      _
    // Predicated region
    $region22: #{decoder_forward.1} parent=1 // pred_check
      _
    $region23: #{decoder_forward.1} parent=1 // pred_check_branch
      %65 = sbr.rel (0) target = $region25
    $region24: #{decoder_forward.1} parent=1 // pred_region
      %s67 = ssub.s32 2688, 2688
      %68 = vsyncadd [#allocation7], %s67
      %s69 = sshll.u32 [#allocation8], 4
      %s70 = int_to_ptr.vmem [resolvable:$true] %s69
      %75 = dma.hbm_to_vmem [thread:$0]  %s5, 2688, %s70, [#allocation7], 384, 384, 24
    $region25: #{decoder_forward.1} parent=1 // pred_fallthru
      _
    // Predicated region
    $region26: #{decoder_forward.1} parent=1 // pred_check
      _
    $region27: #{decoder_forward.1} parent=1 // pred_check_branch
      %77 = sbr.rel (0) target = $region29
    $region28: #{decoder_forward.1} parent=1 // pred_region
      %s79 = ssub.s32 9984, 9984
      %80 = vsyncadd [#allocation10], %s79
      %s81 = sshll.u32 [#allocation9], 4
      %s82 = int_to_ptr.vmem [resolvable:$true] %s81
      %87 = dma.hbm_to_vmem [thread:$0]  %s6, 9984, %s82, [#allocation10], 768, 768, 48
    $region29: #{decoder_forward.1} parent=1 // pred_fallthru
      _
    // Predicated region
    $region30: #{decoder_forward.1} parent=1 // pred_check
      _
    $region31: #{decoder_forward.1} parent=1 // pred_check_branch
      %89 = sbr.rel (0) target = $region33
    $region32: #{decoder_forward.1} parent=1 // pred_region
      %s91 = ssub.s32 38400, 38400
      %92 = vsyncadd [#allocation10], %s91
      %s93 = sshll.u32 [#allocation11], 4
      %s94 = int_to_ptr.vmem [resolvable:$true] %s93
      %99 = dma.hbm_to_vmem [thread:$0]  %s7, 38400, %s94, [#allocation10], 1536, 1536, 96
    $region33: #{decoder_forward.1} parent=1 // pred_fallthru
      _
    // Predicated region
    $region34: #{decoder_forward.1} parent=1 // pred_check
      _
    $region35: #{decoder_forward.1} parent=1 // pred_check_branch
      %101 = sbr.rel (0) target = $region37
    $region36: #{decoder_forward.1} parent=1 // pred_region
      %s103 = ssub.s32 16, 16
      %104 = vsyncadd [#allocation13], %s103
      %s106 = sshll.u32 [#allocation12], 4
      %s107 = int_to_ptr.vmem [resolvable:$true] %s106
      %109 = dma.hbm_to_vmem [thread:$0]  %s8, 16, %s107, [#allocation13]
    $region37: #{decoder_forward.1} parent=1 // pred_fallthru
      _
    // Predicated region
    $region38: #{decoder_forward.1} parent=1 // pred_check
      _
    $region39: #{decoder_forward.1} parent=1 // pred_check_branch
      %111 = sbr.rel (0) target = $region41
    $region40: #{decoder_forward.1} parent=1 // pred_region
      %s113 = ssub.s32 16, 16
      %114 = vsyncadd [#allocation13], %s113
      %s116 = sshll.u32 [#allocation14], 4
      %s117 = int_to_ptr.vmem [resolvable:$true] %s116
      %119 = dma.hbm_to_vmem [thread:$0]  %s9, 16, %s117, [#allocation13]
    $region41: #{decoder_forward.1} parent=1 // pred_fallthru
      _
    // Predicated region
    $region42: #{decoder_forward.1} parent=1 // pred_check
      _
    $region43: #{decoder_forward.1} parent=1 // pred_check_branch
      %121 = sbr.rel (0) target = $region45
    $region44: #{decoder_forward.1} parent=1 // pred_region
      %s123 = ssub.s32 16, 16
      %124 = vsyncadd [#allocation16], %s123
      %s126 = sshll.u32 [#allocation15], 4
      %s127 = int_to_ptr.vmem [resolvable:$true] %s126
      %129 = dma.hbm_to_vmem [thread:$0]  %s10, 16, %s127, [#allocation16]
    $region45: #{decoder_forward.1} parent=1 // pred_fallthru
      _
    // Predicated region
    $region46: #{decoder_forward.1} parent=1 // pred_check
      _
    $region47: #{decoder_forward.1} parent=1 // pred_check_branch
      %131 = sbr.rel (0) target = $region49
    $region48: #{decoder_forward.1} parent=1 // pred_region
      %s133 = ssub.s32 16, 16
      %134 = vsyncadd [#allocation16], %s133
      %s136 = sshll.u32 [#allocation17], 4
      %s137 = int_to_ptr.vmem [resolvable:$true] %s136
      %139 = dma.hbm_to_vmem [thread:$0]  %s11, 16, %s137, [#allocation16]
    $region49: #{decoder_forward.1} parent=1 // pred_fallthru
      _
    // Predicated region
    $region50: #{decoder_forward.1} parent=1 // pred_check
      _
    $region51: #{decoder_forward.1} parent=1 // pred_check_branch
      %141 = sbr.rel (0) target = $region53
    $region52: #{decoder_forward.1} parent=1 // pred_region
      %s143 = ssub.s32 32, 32
      %144 = vsyncadd [#allocation19], %s143
      %s146 = sshll.u32 [#allocation18], 4
      %s147 = int_to_ptr.vmem [resolvable:$true] %s146
      %149 = dma.hbm_to_vmem [thread:$0]  %s12, 32, %s147, [#allocation19]
    $region53: #{decoder_forward.1} parent=1 // pred_fallthru
      _
    // Predicated region
    $region54: #{decoder_forward.1} parent=1 // pred_check
      _
    $region55: #{decoder_forward.1} parent=1 // pred_check_branch
      %151 = sbr.rel (0) target = $region57
    $region56: #{decoder_forward.1} parent=1 // pred_region
      %s153 = ssub.s32 32, 32
      %154 = vsyncadd [#allocation19], %s153
      %s156 = sshll.u32 [#allocation20], 4
      %s157 = int_to_ptr.vmem [resolvable:$true] %s156
      %159 = dma.hbm_to_vmem [thread:$0]  %s13, 32, %s157, [#allocation19]
    $region57: #{decoder_forward.1} parent=1 // pred_fallthru
      _
    // Predicated region
    $region58: #{decoder_forward.1} parent=1 // pred_check
      _
    $region59: #{decoder_forward.1} parent=1 // pred_check_branch
      %161 = sbr.rel (0) target = $region61
    $region60: #{decoder_forward.1} parent=1 // pred_region
      %s163 = ssub.s32 64, 64
      %164 = vsyncadd [#allocation22], %s163
      %s166 = sshll.u32 [#allocation21], 4
      %s167 = int_to_ptr.vmem [resolvable:$true] %s166
      %169 = dma.hbm_to_vmem [thread:$0]  %s14, 64, %s167, [#allocation22]
    $region61: #{decoder_forward.1} parent=1 // pred_fallthru
      _
    // Predicated region
    $region62: #{decoder_forward.1} parent=1 // pred_check
      _
    $region63: #{decoder_forward.1} parent=1 // pred_check_branch
      %171 = sbr.rel (0) target = $region65
    $region64: #{decoder_forward.1} parent=1 // pred_region
      %s173 = ssub.s32 64, 64
      %174 = vsyncadd [#allocation22], %s173
      %s176 = sshll.u32 [#allocation23], 4
      %s177 = int_to_ptr.vmem [resolvable:$true] %s176
      %179 = dma.hbm_to_vmem [thread:$0]  %s15, 64, %s177, [#allocation22]
    $region65: #{decoder_forward.1} parent=1 // pred_fallthru
      _
    // Predicated region
    $region66: #{decoder_forward.1} parent=1 // pred_check
      _
    $region67: #{decoder_forward.1} parent=1 // pred_check_branch
      %181 = sbr.rel (0) target = $region69
    $region68: #{decoder_forward.1} parent=1 // pred_region
      %s183 = ssub.s32 25600, 25600
      %184 = vsyncadd [#allocation25], %s183
      %s185 = sshll.u32 [#allocation24], 4
      %s186 = int_to_ptr.vmem [resolvable:$true] %s185
      %191 = dma.hbm_to_vmem [thread:$0]  %s16, 25600, %s186, [#allocation25], 512, 512, 32
    $region69: #{decoder_forward.1} parent=1 // pred_fallthru
      _
    // Predicated region
    $region70: #{decoder_forward.1} parent=1 // pred_check
      _
    $region71: #{decoder_forward.1} parent=1 // pred_check_branch
      %193 = sbr.rel (0) target = $region73
    $region72: #{decoder_forward.1} parent=1 // pred_region
      %s195 = ssub.s32 3584, 3584
      %196 = vsyncadd [#allocation25], %s195
      %s197 = sshll.u32 [#allocation26], 4
      %s198 = int_to_ptr.vmem [resolvable:$true] %s197
      %203 = dma.hbm_to_vmem [thread:$0]  %s17, 3584, %s198, [#allocation25], 512, 512, 32
    $region73: #{decoder_forward.1} parent=1 // pred_fallthru
      _
    // Predicated region
    $region74: #{decoder_forward.1} parent=1 // pred_check
      _
    $region75: #{decoder_forward.1} parent=1 // pred_check_branch
      %205 = sbr.rel (0) target = $region77
    $region76: #{decoder_forward.1} parent=1 // pred_region
      _
    $region77: #{decoder_forward.1} parent=1 // pred_fallthru
      _
    // Predicated region
    $region78: #{decoder_forward.1} parent=1 // pred_check
      _
    $region79: #{decoder_forward.1} parent=1 // pred_check_branch
      %207 = sbr.rel (0) target = $region81
    $region80: #{decoder_forward.1} parent=1 // pred_region
      %s209 = ssub.s32 32, 32
      %210 = vsyncadd [#allocation28], %s209
      %s212 = sshll.u32 [#allocation27], 4
      %s213 = int_to_ptr.vmem [resolvable:$true] %s212
      %215 = dma.hbm_to_vmem [thread:$0]  %s19, 32, %s213, [#allocation28]
    $region81: #{decoder_forward.1} parent=1 // pred_fallthru
      _
    // Predicated region
    $region82: #{decoder_forward.1} parent=1 // pred_check
      _
    $region83: #{decoder_forward.1} parent=1 // pred_check_branch
      %217 = sbr.rel (0) target = $region85
    $region84: #{decoder_forward.1} parent=1 // pred_region
      %s219 = ssub.s32 16, 16
      %220 = vsyncadd [#allocation28], %s219
      %s222 = sshll.u32 [#allocation29], 4
      %s223 = int_to_ptr.vmem [resolvable:$true] %s222
      %225 = dma.hbm_to_vmem [thread:$0]  %s20, 16, %s223, [#allocation28]
    $region85: #{decoder_forward.1} parent=1 // pred_fallthru
      _
    // Predicated region
    $region86: #{decoder_forward.1} parent=1 // pred_check
      _
    $region87: #{decoder_forward.1} parent=1 // pred_check_branch
      %227 = sbr.rel (0) target = $region89
    $region88: #{decoder_forward.1} parent=1 // pred_region
      %228 = dma.done [#allocation4], 48
    $region89: #{decoder_forward.1} parent=1 // pred_fallthru
      _
    // Predicated region
    $region90: #{decoder_forward.1} parent=1 // pred_check
      _
    $region91: #{decoder_forward.1} parent=1 // pred_check_branch
      %230 = sbr.rel (0) target = $region93
    $region92: #{decoder_forward.1} parent=1 // pred_region
      %231 = dma.done [#allocation7], 1536
    $region93: #{decoder_forward.1} parent=1 // pred_fallthru
      _
    // Predicated region
    $region94: #{decoder_forward.1} parent=1 // pred_check
      _
    $region95: #{decoder_forward.1} parent=1 // pred_check_branch
      %233 = sbr.rel (0) target = $region97
    $region96: #{decoder_forward.1} parent=1 // pred_region
      %234 = dma.done [#allocation7], 2688
    $region97: #{decoder_forward.1} parent=1 // pred_fallthru
      _
    // Predicated region
    $region98: #{decoder_forward.1} parent=1 // pred_check
      _
    $region99: #{decoder_forward.1} parent=1 // pred_check_branch
      %236 = sbr.rel (0) target = $region101
    $region100: #{decoder_forward.1} parent=1 // pred_region
      %237 = dma.done [#allocation10], 9984
    $region101: #{decoder_forward.1} parent=1 // pred_fallthru
      _
    // Predicated region
    $region102: #{decoder_forward.1} parent=1 // pred_check
      _
    $region103: #{decoder_forward.1} parent=1 // pred_check_branch
      %239 = sbr.rel (0) target = $region105
    $region104: #{decoder_forward.1} parent=1 // pred_region
      %240 = dma.done [#allocation10], 38400
    $region105: #{decoder_forward.1} parent=1 // pred_fallthru
      _
    // Predicated region
    $region106: #{decoder_forward.1} parent=1 // pred_check
      _
    $region107: #{decoder_forward.1} parent=1 // pred_check_branch
      %242 = sbr.rel (0) target = $region109
    $region108: #{decoder_forward.1} parent=1 // pred_region
      %243 = dma.done [#allocation13], 16
    $region109: #{decoder_forward.1} parent=1 // pred_fallthru
      _
    // Predicated region
    $region110: #{decoder_forward.1} parent=1 // pred_check
      _
    $region111: #{decoder_forward.1} parent=1 // pred_check_branch
      %245 = sbr.rel (0) target = $region113
    $region112: #{decoder_forward.1} parent=1 // pred_region
      %246 = dma.done [#allocation13], 16
    $region113: #{decoder_forward.1} parent=1 // pred_fallthru
      _
    // Predicated region
    $region114: #{decoder_forward.1} parent=1 // pred_check
      _
    $region115: #{decoder_forward.1} parent=1 // pred_check_branch
      %248 = sbr.rel (0) target = $region117
    $region116: #{decoder_forward.1} parent=1 // pred_region
      %249 = dma.done [#allocation16], 16
    $region117: #{decoder_forward.1} parent=1 // pred_fallthru
      _
    // Predicated region
    $region118: #{decoder_forward.1} parent=1 // pred_check
      _
    $region119: #{decoder_forward.1} parent=1 // pred_check_branch
      %251 = sbr.rel (0) target = $region121
    $region120: #{decoder_forward.1} parent=1 // pred_region
      %252 = dma.done [#allocation16], 16
    $region121: #{decoder_forward.1} parent=1 // pred_fallthru
      _
    // Predicated region
    $region122: #{decoder_forward.1} parent=1 // pred_check
      _
    $region123: #{decoder_forward.1} parent=1 // pred_check_branch
      %254 = sbr.rel (0) target = $region125
    $region124: #{decoder_forward.1} parent=1 // pred_region
      %255 = dma.done [#allocation19], 32
    $region125: #{decoder_forward.1} parent=1 // pred_fallthru
      _
    // Predicated region
    $region126: #{decoder_forward.1} parent=1 // pred_check
      _
    $region127: #{decoder_forward.1} parent=1 // pred_check_branch
      %257 = sbr.rel (0) target = $region129
    $region128: #{decoder_forward.1} parent=1 // pred_region
      %258 = dma.done [#allocation19], 32
    $region129: #{decoder_forward.1} parent=1 // pred_fallthru
      _
    // Predicated region
    $region130: #{decoder_forward.1} parent=1 // pred_check
      _
    $region131: #{decoder_forward.1} parent=1 // pred_check_branch
      %260 = sbr.rel (0) target = $region133
    $region132: #{decoder_forward.1} parent=1 // pred_region
      %261 = dma.done [#allocation22], 64
    $region133: #{decoder_forward.1} parent=1 // pred_fallthru
      _
    // Predicated region
    $region134: #{decoder_forward.1} parent=1 // pred_check
      _
    $region135: #{decoder_forward.1} parent=1 // pred_check_branch
      %263 = sbr.rel (0) target = $region137
    $region136: #{decoder_forward.1} parent=1 // pred_region
      %264 = dma.done [#allocation22], 64
    $region137: #{decoder_forward.1} parent=1 // pred_fallthru
      _
    // Predicated region
    $region138: #{decoder_forward.1} parent=1 // pred_check
      _
    $region139: #{decoder_forward.1} parent=1 // pred_check_branch
      %266 = sbr.rel (0) target = $region141
    $region140: #{decoder_forward.1} parent=1 // pred_region
      %267 = dma.done [#allocation25], 25600
    $region141: #{decoder_forward.1} parent=1 // pred_fallthru
      _
    // Predicated region
    $region142: #{decoder_forward.1} parent=1 // pred_check
      _
    $region143: #{decoder_forward.1} parent=1 // pred_check_branch
      %269 = sbr.rel (0) target = $region145
    $region144: #{decoder_forward.1} parent=1 // pred_region
      %270 = dma.done [#allocation25], 3584
    $region145: #{decoder_forward.1} parent=1 // pred_fallthru
      _
    // Predicated region
    $region146: #{decoder_forward.1} parent=1 // pred_check
      _
    $region147: #{decoder_forward.1} parent=1 // pred_check_branch
      %272 = sbr.rel (0) target = $region149
    $region148: #{decoder_forward.1} parent=1 // pred_region
      %273 = dma.done [#allocation28], 32
    $region149: #{decoder_forward.1} parent=1 // pred_fallthru
      _
    // Predicated region
    $region150: #{decoder_forward.1} parent=1 // pred_check
      _
    $region151: #{decoder_forward.1} parent=1 // pred_check_branch
      %275 = sbr.rel (0) target = $region153
    $region152: #{decoder_forward.1} parent=1 // pred_region
      %276 = dma.done [#allocation28], 16
    $region153: #{decoder_forward.1} parent=1 // pred_fallthru
      _
    %v277 = vld [vmem:[%s1] sm:$0xff]
    %v278 = vld [vmem:[%s1 + $0x8] sm:$0xff]
    %v279 = vld [vmem:[%s1 + $0x10] sm:$0xff]
    %v280 = vld [vmem:[%s1 + $0x18] sm:$0xff]
    %v281 = vld [vmem:[%s1 + $0x20] sm:$0xff]
    %v282 = vld [vmem:[%s1 + $0x28] sm:$0xff]
    %v283 = vld [vmem:[%s1 + $0x30] sm:$0x3]
    %v284 = vld [vmem:[%s2] sm:$0xff]
    %v285 = vld [vmem:[%s2 + $0x8] sm:$0xff]
    %v286 = vld [vmem:[%s2 + $0x10] sm:$0xff]
    %v287 = vld [vmem:[%s2 + $0x18] sm:$0xff]
    %v288 = vld [vmem:[%s2 + $0x20] sm:$0xff]
    %v289 = vld [vmem:[%s2 + $0x28] sm:$0xff]
    %v290 = vld [vmem:[%s2 + $0x30] sm:$0x3]
    %291 = vst [vmem:[#allocation2] sm:$0xff] 0.0
    %292 = vst [vmem:[#allocation2 + $0x8] sm:$0xff] 0.0
    %293 = vst [vmem:[#allocation2 + $0x10] sm:$0xff] 0.0
    %294 = vst [vmem:[#allocation2 + $0x18] sm:$0xff] 0.0
    %295 = vst [vmem:[#allocation2 + $0x20] sm:$0xff] 0.0
    %296 = vst [vmem:[#allocation2 + $0x28] sm:$0xff] 0.0
    %297 = vst [vmem:[#allocation2 + $0x30] sm:$0xff] 0.0
    %298 = vst [vmem:[#allocation2 + $0x38] sm:$0xff] 0.0
    %299 = vst [vmem:[#allocation2 + $0x40] sm:$0xff] 0.0
    %300 = vst [vmem:[#allocation2 + $0x48] sm:$0xff] 0.0
    %301 = vst [vmem:[#allocation2 + $0x50] sm:$0xff] 0.0
    %302 = vst [vmem:[#allocation2 + $0x58] sm:$0xff] 0.0
    %303 = vst [vmem:[#allocation2 + $0x60] sm:$0xff] 0.0
    %304 = vst [vmem:[#allocation2 + $0x68] sm:$0xff] 0.0
    %305 = vst [vmem:[#allocation2 + $0x70] sm:$0xff] 0.0
    %306 = vst [vmem:[#allocation2 + $0x78] sm:$0xff] 0.0
    %307 = vst [vmem:[#allocation2 + $0x80] sm:$0xff] 0.0
    %308 = vst [vmem:[#allocation2 + $0x88] sm:$0xff] 0.0
    %309 = vst [vmem:[#allocation2 + $0x90] sm:$0xff] 0.0
    %310 = vst [vmem:[#allocation2 + $0x98] sm:$0xff] 0.0
    %311 = vst [vmem:[#allocation2 + $0xa0] sm:$0xff] 0.0
    %312 = vst [vmem:[#allocation2 + $0xa8] sm:$0xff] 0.0
    %313 = vst [vmem:[#allocation2 + $0xb0] sm:$0xff] 0.0
    %314 = vst [vmem:[#allocation2 + $0xb8] sm:$0xff] 0.0
    %315 = vst [vmem:[#allocation2 + $0xc0] sm:$0xff] 0.0
    %316 = vst [vmem:[#allocation2 + $0xc8] sm:$0xff] 0.0
    %317 = vst [vmem:[#allocation2 + $0xd0] sm:$0xff] 0.0
    %318 = vst [vmem:[#allocation2 + $0xd8] sm:$0xff] 0.0
    %319 = vst [vmem:[#allocation2 + $0xe0] sm:$0xff] 0.0
    %320 = vst [vmem:[#allocation2 + $0xe8] sm:$0xff] 0.0
    %321 = vst [vmem:[#allocation2 + $0xf0] sm:$0xff] 0.0
    %322 = vst [vmem:[#allocation2 + $0xf8] sm:$0xff] 0.0
    %323 = vst [vmem:[#allocation2 + $0x100] sm:$0xff] 0.0
    %324 = vst [vmem:[#allocation2 + $0x108] sm:$0xff] 0.0
    %325 = vst [vmem:[#allocation2 + $0x110] sm:$0xff] 0.0
    %326 = vst [vmem:[#allocation2 + $0x118] sm:$0xff] 0.0
    %327 = vst [vmem:[#allocation2 + $0x120] sm:$0xff] 0.0
    %328 = vst [vmem:[#allocation2 + $0x128] sm:$0xff] 0.0
    %329 = vst [vmem:[#allocation2 + $0x130] sm:$0xff] 0.0
    %330 = vst [vmem:[#allocation2 + $0x138] sm:$0xff] 0.0
    %331 = vst [vmem:[#allocation2 + $0x140] sm:$0xff] 0.0
    %332 = vst [vmem:[#allocation2 + $0x148] sm:$0xff] 0.0
    %333 = vst [vmem:[#allocation2 + $0x150] sm:$0xff] 0.0
    %334 = vst [vmem:[#allocation2 + $0x158] sm:$0xff] 0.0
    %335 = vst [vmem:[#allocation2 + $0x160] sm:$0xff] 0.0
    %336 = vst [vmem:[#allocation2 + $0x168] sm:$0xff] 0.0
    %337 = vst [vmem:[#allocation2 + $0x170] sm:$0xff] 0.0
    %338 = vst [vmem:[#allocation2 + $0x178] sm:$0xff] 0.0
    %339 = vst [vmem:[#allocation2 + $0x180] sm:$0xff] 0.0
    %340 = vst [vmem:[#allocation2 + $0x188] sm:$0xff] 0.0
    %341 = vst [vmem:[#allocation2 + $0x190] sm:$0xff] 0.0
    %342 = vst [vmem:[#allocation2 + $0x198] sm:$0xff] 0.0
    %343 = vst [vmem:[#allocation2 + $0x1a0] sm:$0xff] 0.0
    %344 = vst [vmem:[#allocation2 + $0x1a8] sm:$0xff] 0.0
    %345 = vst [vmem:[#allocation2 + $0x1b0] sm:$0xff] 0.0
    %346 = vst [vmem:[#allocation2 + $0x1b8] sm:$0xff] 0.0
    %347 = vst [vmem:[#allocation2 + $0x1c0] sm:$0xff] 0.0
    %348 = vst [vmem:[#allocation2 + $0x1c8] sm:$0xff] 0.0
    %349 = vst [vmem:[#allocation2 + $0x1d0] sm:$0xff] 0.0
    %350 = vst [vmem:[#allocation2 + $0x1d8] sm:$0xff] 0.0
    %351 = vst [vmem:[#allocation2 + $0x1e0] sm:$0xff] 0.0
    %352 = vst [vmem:[#allocation2 + $0x1e8] sm:$0xff] 0.0
    %353 = vst [vmem:[#allocation2 + $0x1f0] sm:$0xff] 0.0
    %354 = vst [vmem:[#allocation2 + $0x1f8] sm:$0xff] 0.0
    %355 = vst [vmem:[#allocation2 + $0x200] sm:$0xff] 0.0
    %356 = vst [vmem:[#allocation2 + $0x208] sm:$0xff] 0.0
    %357 = vst [vmem:[#allocation2 + $0x210] sm:$0xff] 0.0
    %358 = vst [vmem:[#allocation2 + $0x218] sm:$0xff] 0.0
    %359 = vst [vmem:[#allocation2 + $0x220] sm:$0xff] 0.0
    %360 = vst [vmem:[#allocation2 + $0x228] sm:$0xff] 0.0
    %361 = vst [vmem:[#allocation2 + $0x230] sm:$0xff] 0.0
    %362 = vst [vmem:[#allocation2 + $0x238] sm:$0xff] 0.0
    %363 = vst [vmem:[#allocation2 + $0x240] sm:$0xf] 0.0
    %364 = vst [vmem:[#allocation2 + $0x248] sm:$0xf] 0.0
    %365 = vst [vmem:[#allocation2 + $0x250] sm:$0xf] 0.0
    %366 = vst [vmem:[#allocation2 + $0x258] sm:$0xf] 0.0
    %367 = vst [vmem:[#allocation2 + $0x260] sm:$0xf] 0.0
    %368 = vst [vmem:[#allocation2 + $0x268] sm:$0xf] 0.0
    %369 = vst [vmem:[#allocation2 + $0x270] sm:$0xf] 0.0
    %370 = vst [vmem:[#allocation2 + $0x278] sm:$0xf] 0.0
    %371 = vst [vmem:[#allocation2 + $0x280] sm:$0xf] 0.0
    %372 = vst [vmem:[#allocation2 + $0x288] sm:$0xf] 0.0
    %373 = vst [vmem:[#allocation2 + $0x290] sm:$0xf] 0.0
    %374 = vst [vmem:[#allocation2 + $0x298] sm:$0xf] 0.0
    %v375 = vld [vmem:[%s0] sm:$0xff]
    %v376 = vld [vmem:[%s0 + $0x8] sm:$0xff]
    %v377 = vld [vmem:[%s0 + $0x10] sm:$0xff]
    %v378 = vld [vmem:[%s0 + $0x18] sm:$0xff]
    %v379 = vld [vmem:[%s0 + $0x20] sm:$0xff]
    %v380 = vld [vmem:[%s0 + $0x28] sm:$0xff]
    %v381 = vld [vmem:[%s0 + $0x30] sm:$0x3]
    %v382 = vld [vmem:[#allocation3] sm:$0x7]
    %v384 = vlaneseq
    %v385 = vshrl.u32 %v384, 7
    %v386 = vsub.s32 0, %v385
    %v387 = vrot.slane %v382, %v386
    %v388 = vlaneseq
    %v389 = vshrl.u32 %v388, 7
    %v390 = vsub.s32 1, %v389
    %v391 = vrot.slane %v382, %v390
    %v392 = vlaneseq
    %v393 = vshrl.u32 %v392, 7
    %v394 = vsub.s32 2, %v393
    %v395 = vrot.slane %v382, %v394
    %vm396 = vcmask 7168
    %v398 = vsel %vm396, %v375, 0
    %v401 = vsel %vm396, %v376, 0
    %v404 = vsel %vm396, %v377, 0
    %v407 = vsel %vm396, %v378, 0
    %v410 = vsel %vm396, %v379, 0
    %v413 = vsel %vm396, %v380, 0
    %v416 = vsel %vm396, %v381, 0
    %vm418 = vcmask 1040384
    %v419 = vsel %vm418, %v387, 0
    %v421 = vsel %vm418, %v391, 0
    %v423 = vsel %vm418, %v395, 0
    %425 = vmatprep.subr.mxu0 %v421
    %426 = vmatpush1.msra.mxu0 %v419
    %427 = vmatprep.subr.mxu0 0.0
    %428 = vmatpush1.msra.mxu0 0.0
    %429 = vmatprep.subr.mxu0 0.0
    %430 = vmatpush1.msra.mxu0 0.0
    %431 = vmatprep.subr.mxu0 0.0
    %432 = vmatpush1.msra.mxu0 0.0
    %433 = vmatprep.subr.mxu0 0.0
    %434 = vmatpush1.msra.mxu0 0.0
    %435 = vmatprep.subr.mxu0 0.0
    %436 = vmatpush1.msra.mxu0 0.0
    %437 = vmatprep.subr.mxu0 0.0
    %438 = vmatpush1.msra.mxu0 0.0
    %439 = vmatprep.subr.mxu0 0.0
    %440 = vmatpush1.msra.mxu0 0.0
    %441 = vmatprep.subr.mxu0 0.0
    %442 = vmatpush1.msra.mxu0 0.0
    %443 = vmatprep.subr.mxu0 0.0
    %444 = vmatpush1.msra.mxu0 0.0
    %445 = vmatprep.subr.mxu0 0.0
    %446 = vmatpush1.msra.mxu0 0.0
    %447 = vmatprep.subr.mxu0 0.0
    %448 = vmatpush1.msra.mxu0 0.0
    %449 = vmatprep.subr.mxu0 0.0
    %450 = vmatpush1.msra.mxu0 0.0
    %451 = vmatprep.subr.mxu0 0.0
    %452 = vmatpush1.msra.mxu0 0.0
    %453 = vmatprep.subr.mxu0 0.0
    %454 = vmatpush1.msra.mxu0 0.0
    %455 = vmatprep.subr.mxu0 0.0
    %456 = vmatpush1.msra.mxu0 0.0
    %457 = vmatprep.subr.mxu0 0.0
    %458 = vmatpush1.msra.mxu0 0.0
    %459 = vmatprep.subr.mxu0 0.0
    %460 = vmatpush1.msra.mxu0 0.0
    %461 = vmatprep.subr.mxu0 0.0
    %462 = vmatpush1.msra.mxu0 0.0
    %463 = vmatprep.subr.mxu0 0.0
    %464 = vmatpush1.msra.mxu0 0.0
    %465 = vmatprep.subr.mxu0 0.0
    %466 = vmatpush1.msra.mxu0 0.0
    %467 = vmatprep.subr.mxu0 0.0
    %468 = vmatpush1.msra.mxu0 0.0
    %469 = vmatprep.subr.mxu0 0.0
    %470 = vmatpush1.msra.mxu0 0.0
    %471 = vmatprep.subr.mxu0 0.0
    %472 = vmatpush1.msra.mxu0 0.0
    %473 = vmatprep.subr.mxu0 0.0
    %474 = vmatpush1.msra.mxu0 0.0
    %475 = vmatprep.subr.mxu0 0.0
    %476 = vmatpush1.msra.mxu0 0.0
    %477 = vmatprep.subr.mxu0 0.0
    %478 = vmatpush1.msra.mxu0 0.0
    %479 = vmatprep.subr.mxu0 0.0
    %480 = vmatpush1.msra.mxu0 0.0
    %481 = vmatprep.subr.mxu0 0.0
    %482 = vmatpush1.msra.mxu0 0.0
    %483 = vmatprep.subr.mxu0 0.0
    %484 = vmatpush1.msra.mxu0 0.0
    %485 = vmatprep.subr.mxu0 0.0
    %486 = vmatpush1.msra.mxu0 0.0
    %487 = vmatprep.subr.mxu0 0.0
    %488 = vmatpush1.msra.mxu0 0.0
    %489 = vmatprep.mubr.f32.mxu0 0.0
    %490 = vmatmul.mubr.f32.gmra.mrb[0].mxu0 %v398
    %v491 = vpop.f32.mrb[0].mxu0
    %v492 = vadd.f32 0.0, %v491
    %v493 = vpop.f32.mrb[0].mxu0
    %v494 = vadd.f32 0.0, %v493
    %495 = vmatprep.mubr.f32.mxu0 0.0
    %496 = vmatmul.mubr.f32.gmra.mrb[0].mxu0 %v401
    %v497 = vpop.f32.mrb[0].mxu0
    %v498 = vadd.f32 0.0, %v497
    %v499 = vpop.f32.mrb[0].mxu0
    %v500 = vadd.f32 0.0, %v499
    %501 = vmatprep.mubr.f32.mxu0 0.0
    %502 = vmatmul.mubr.f32.gmra.mrb[0].mxu0 %v404
    %v503 = vpop.f32.mrb[0].mxu0
    %v504 = vadd.f32 0.0, %v503
    %v505 = vpop.f32.mrb[0].mxu0
    %v506 = vadd.f32 0.0, %v505
    %507 = vmatprep.mubr.f32.mxu0 0.0
    %508 = vmatmul.mubr.f32.gmra.mrb[0].mxu0 %v407
    %v509 = vpop.f32.mrb[0].mxu0
    %v510 = vadd.f32 0.0, %v509
    %v511 = vpop.f32.mrb[0].mxu0
    %v512 = vadd.f32 0.0, %v511
    %513 = vmatprep.mubr.f32.mxu0 0.0
    %514 = vmatmul.mubr.f32.gmra.mrb[0].mxu0 %v410
    %v515 = vpop.f32.mrb[0].mxu0
    %v516 = vadd.f32 0.0, %v515
    %v517 = vpop.f32.mrb[0].mxu0
    %v518 = vadd.f32 0.0, %v517
    %519 = vmatprep.mubr.f32.mxu0 0.0
    %520 = vmatmul.mubr.f32.gmra.mrb[0].mxu0 %v413
    %v521 = vpop.f32.mrb[0].mxu0
    %v522 = vadd.f32 0.0, %v521
    %v523 = vpop.f32.mrb[0].mxu0
    %v524 = vadd.f32 0.0, %v523
    %525 = vmatprep.mubr.f32.mxu0 0.0
    %526 = vmatmul.mubr.f32.gmra.mrb[0].mxu0 %v416
    %v527 = vpop.f32.mrb[0].mxu0
    %v528 = vadd.f32 0.0, %v527
    %v529 = vpop.f32.mrb[0].mxu0
    %v530 = vadd.f32 0.0, %v529
    %531 = vdwg.mxu0
    %532 = vmatprep.subr.mxu0 0.0
    %533 = vmatpush1.msra.mxu0 %v423
    %534 = vmatprep.subr.mxu0 0.0
    %535 = vmatpush1.msra.mxu0 0.0
    %536 = vmatprep.subr.mxu0 0.0
    %537 = vmatpush1.msra.mxu0 0.0
    %538 = vmatprep.subr.mxu0 0.0
    %539 = vmatpush1.msra.mxu0 0.0
    %540 = vmatprep.subr.mxu0 0.0
    %541 = vmatpush1.msra.mxu0 0.0
    %542 = vmatprep.subr.mxu0 0.0
    %543 = vmatpush1.msra.mxu0 0.0
    %544 = vmatprep.subr.mxu0 0.0
    %545 = vmatpush1.msra.mxu0 0.0
    %546 = vmatprep.subr.mxu0 0.0
    %547 = vmatpush1.msra.mxu0 0.0
    %548 = vmatprep.subr.mxu0 0.0
    %549 = vmatpush1.msra.mxu0 0.0
    %550 = vmatprep.subr.mxu0 0.0
    %551 = vmatpush1.msra.mxu0 0.0
    %552 = vmatprep.subr.mxu0 0.0
    %553 = vmatpush1.msra.mxu0 0.0
    %554 = vmatprep.subr.mxu0 0.0
    %555 = vmatpush1.msra.mxu0 0.0
    %556 = vmatprep.subr.mxu0 0.0
    %557 = vmatpush1.msra.mxu0 0.0
    %558 = vmatprep.subr.mxu0 0.0
    %559 = vmatpush1.msra.mxu0 0.0
    %560 = vmatprep.subr.mxu0 0.0
    %561 = vmatpush1.msra.mxu0 0.0
    %562 = vmatprep.subr.mxu0 0.0
    %563 = vmatpush1.msra.mxu0 0.0
    %564 = vmatprep.subr.mxu0 0.0
    %565 = vmatpush1.msra.mxu0 0.0
    %566 = vmatprep.subr.mxu0 0.0
    %567 = vmatpush1.msra.mxu0 0.0
    %568 = vmatprep.subr.mxu0 0.0
    %569 = vmatpush1.msra.mxu0 0.0
    %570 = vmatprep.subr.mxu0 0.0
    %571 = vmatpush1.msra.mxu0 0.0
    %572 = vmatprep.subr.mxu0 0.0
    %573 = vmatpush1.msra.mxu0 0.0
    %574 = vmatprep.subr.mxu0 0.0
    %575 = vmatpush1.msra.mxu0 0.0
    %576 = vmatprep.subr.mxu0 0.0
    %577 = vmatpush1.msra.mxu0 0.0
    %578 = vmatprep.subr.mxu0 0.0
    %579 = vmatpush1.msra.mxu0 0.0
    %580 = vmatprep.subr.mxu0 0.0
    %581 = vmatpush1.msra.mxu0 0.0
    %582 = vmatprep.subr.mxu0 0.0
    %583 = vmatpush1.msra.mxu0 0.0
    %584 = vmatprep.subr.mxu0 0.0
    %585 = vmatpush1.msra.mxu0 0.0
    %586 = vmatprep.subr.mxu0 0.0
    %587 = vmatpush1.msra.mxu0 0.0
    %588 = vmatprep.subr.mxu0 0.0
    %589 = vmatpush1.msra.mxu0 0.0
    %590 = vmatprep.subr.mxu0 0.0
    %591 = vmatpush1.msra.mxu0 0.0
    %592 = vmatprep.subr.mxu0 0.0
    %593 = vmatpush1.msra.mxu0 0.0
    %594 = vmatprep.subr.mxu0 0.0
    %595 = vmatpush1.msra.mxu0 0.0
    %596 = vmatprep.mubr.f32.mxu0 0.0
    %597 = vmatmul.mubr.f32.gmra.mrb[0].mxu0 %v398
    %v598 = vpop.f32.mrb[0].mxu0
    %v599 = vadd.f32 0.0, %v598
    %v600 = vpop.f32.mrb[0].mxu0
    %601 = vmatprep.mubr.f32.mxu0 0.0
    %602 = vmatmul.mubr.f32.gmra.mrb[0].mxu0 %v401
    %v603 = vpop.f32.mrb[0].mxu0
    %v604 = vadd.f32 0.0, %v603
    %v605 = vpop.f32.mrb[0].mxu0
    %606 = vmatprep.mubr.f32.mxu0 0.0
    %607 = vmatmul.mubr.f32.gmra.mrb[0].mxu0 %v404
    %v608 = vpop.f32.mrb[0].mxu0
    %v609 = vadd.f32 0.0, %v608
    %v610 = vpop.f32.mrb[0].mxu0
    %611 = vmatprep.mubr.f32.mxu0 0.0
    %612 = vmatmul.mubr.f32.gmra.mrb[0].mxu0 %v407
    %v613 = vpop.f32.mrb[0].mxu0
    %v614 = vadd.f32 0.0, %v613
    %v615 = vpop.f32.mrb[0].mxu0
    %616 = vmatprep.mubr.f32.mxu0 0.0
    %617 = vmatmul.mubr.f32.gmra.mrb[0].mxu0 %v410
    %v618 = vpop.f32.mrb[0].mxu0
    %v619 = vadd.f32 0.0, %v618
    %v620 = vpop.f32.mrb[0].mxu0
    %621 = vmatprep.mubr.f32.mxu0 0.0
    %622 = vmatmul.mubr.f32.gmra.mrb[0].mxu0 %v413
    %v623 = vpop.f32.mrb[0].mxu0
    %v624 = vadd.f32 0.0, %v623
    %v625 = vpop.f32.mrb[0].mxu0
    %626 = vmatprep.mubr.f32.mxu0 0.0
    %627 = vmatmul.mubr.f32.gmra.mrb[0].mxu0 %v416
    %v628 = vpop.f32.mrb[0].mxu0
    %v629 = vadd.f32 0.0, %v628
    %v630 = vpop.f32.mrb[0].mxu0
    %631 = vdwg.mxu0
    %v653 = vrot.slane %v492, 7
    %v654 = vrot.slane %v494, 7
    %v655 = vrot.slane %v599, 7
    %v656 = vrot.slane %v498, 7
    %v657 = vsel %vm418, %v653, %v656
    %v658 = vrot.slane %v500, 7
    %v659 = vsel %vm418, %v654, %v658
    %v660 = vrot.slane %v604, 7
    %v661 = vsel %vm418, %v655, %v660
    %v662 = vrot.slane %v504, 7
    %v663 = vsel %vm418, %v656, %v662
    %v664 = vrot.slane %v506, 7
    %v665 = vsel %vm418, %v658, %v664
    %v666 = vrot.slane %v609, 7
    %v667 = vsel %vm418, %v660, %v666
    %v668 = vrot.slane %v510, 7
    %v669 = vsel %vm418, %v662, %v668
    %v670 = vrot.slane %v512, 7
    %v671 = vsel %vm418, %v664, %v670
    %v672 = vrot.slane %v614, 7
    %v673 = vsel %vm418, %v666, %v672
    %v674 = vrot.slane %v516, 7
    %v675 = vsel %vm418, %v668, %v674
    %v676 = vrot.slane %v518, 7
    %v677 = vsel %vm418, %v670, %v676
    %v678 = vrot.slane %v619, 7
    %v679 = vsel %vm418, %v672, %v678
    %v680 = vrot.slane %v522, 7
    %v681 = vsel %vm418, %v674, %v680
    %v682 = vrot.slane %v524, 7
    %v683 = vsel %vm418, %v676, %v682
    %v684 = vrot.slane %v624, 7
    %v685 = vsel %vm418, %v678, %v684
    %v686 = vrot.slane %v528, 7
    %v687 = vsel %vm418, %v680, %v686
    %v688 = vrot.slane %v530, 7
    %v689 = vsel %vm418, %v682, %v688
    %v690 = vrot.slane %v629, 7
    %v691 = vsel %vm418, %v684, %v690
    %713 = vst [vmem:[#allocation2] sm:$0xfe] %v653
    %714 = vst [vmem:[#allocation2 + $0x8] sm:$0xfe] %v654
    %715 = vst [vmem:[#allocation2 + $0x10] sm:$0xfe] %v655
    %716 = vst [vmem:[#allocation2 + $0x60] sm:$0xff] %v657
    %717 = vst [vmem:[#allocation2 + $0x68] sm:$0xff] %v659
    %718 = vst [vmem:[#allocation2 + $0x70] sm:$0xff] %v661
    %719 = vst [vmem:[#allocation2 + $0xc0] sm:$0xff] %v663
    %720 = vst [vmem:[#allocation2 + $0xc8] sm:$0xff] %v665
    %721 = vst [vmem:[#allocation2 + $0xd0] sm:$0xff] %v667
    %722 = vst [vmem:[#allocation2 + $0x120] sm:$0xff] %v669
    %723 = vst [vmem:[#allocation2 + $0x128] sm:$0xff] %v671
    %724 = vst [vmem:[#allocation2 + $0x130] sm:$0xff] %v673
    %725 = vst [vmem:[#allocation2 + $0x180] sm:$0xff] %v675
    %726 = vst [vmem:[#allocation2 + $0x188] sm:$0xff] %v677
    %727 = vst [vmem:[#allocation2 + $0x190] sm:$0xff] %v679
    %728 = vst [vmem:[#allocation2 + $0x1e0] sm:$0xff] %v681
    %729 = vst [vmem:[#allocation2 + $0x1e8] sm:$0xff] %v683
    %730 = vst [vmem:[#allocation2 + $0x1f0] sm:$0xff] %v685
    %731 = vst [vmem:[#allocation2 + $0x240] sm:$0x7] %v687
    %732 = vst [vmem:[#allocation2 + $0x248] sm:$0x7] %v689
    %733 = vst [vmem:[#allocation2 + $0x250] sm:$0x7] %v691
    %v734 = vld [vmem:[#allocation2 + $0x8] sm:$0xff]
    %v735 = vld [vmem:[#allocation2 + $0x68] sm:$0xff]
    %v736 = vld [vmem:[#allocation2 + $0xc8] sm:$0xff]
    %v737 = vld [vmem:[#allocation2 + $0x128] sm:$0xff]
    %v738 = vld [vmem:[#allocation2 + $0x188] sm:$0xff]
    %v739 = vld [vmem:[#allocation2 + $0x1e8] sm:$0xff]
    %v740 = vld [vmem:[#allocation2 + $0x248] sm:$0x3]
    %v741 = vld [vmem:[#allocation2 + $0x10] sm:$0xfc]
    %v742 = vld [vmem:[#allocation2 + $0x70] sm:$0xff]
    %v743 = vld [vmem:[#allocation2 + $0xd0] sm:$0xff]
    %v744 = vld [vmem:[#allocation2 + $0x130] sm:$0xff]
    %v745 = vld [vmem:[#allocation2 + $0x190] sm:$0xff]
    %v746 = vld [vmem:[#allocation2 + $0x1f0] sm:$0xff]
    %v747 = vld [vmem:[#allocation2 + $0x250] sm:$0xf]
    %749 = vset.pattern.permute.xlu0 0
    %750 = vperm.xlu0 %749, %v277
    %v751 = vpop.permute.xlu0 %750
    %754 = vset.pattern.permute.xlu0 0
    %755 = vperm.xlu0 %754, %v278
    %v756 = vpop.permute.xlu0 %755
    %759 = vset.pattern.permute.xlu0 0
    %760 = vperm.xlu0 %759, %v279
    %v761 = vpop.permute.xlu0 %760
    %764 = vset.pattern.permute.xlu0 0
    %765 = vperm.xlu0 %764, %v280
    %v766 = vpop.permute.xlu0 %765
    %769 = vset.pattern.permute.xlu0 0
    %770 = vperm.xlu0 %769, %v281
    %v771 = vpop.permute.xlu0 %770
    %774 = vset.pattern.permute.xlu0 0
    %775 = vperm.xlu0 %774, %v282
    %v776 = vpop.permute.xlu0 %775
    %779 = vset.pattern.permute.xlu0 0
    %780 = vperm.xlu0 %779, %v283
    %v781 = vpop.permute.xlu0 %780
    %v783 = vmul.f32 %v751, %v734
    %v784 = vmul.f32 %v756, %v735
    %v785 = vmul.f32 %v761, %v736
    %v786 = vmul.f32 %v766, %v737
    %v787 = vmul.f32 %v771, %v738
    %v788 = vmul.f32 %v776, %v739
    %v789 = vmul.f32 %v781, %v740
    %v790 = vadd.f32 %v492, %v783
    %v791 = vadd.f32 %v498, %v784
    %v792 = vadd.f32 %v504, %v785
    %v793 = vadd.f32 %v510, %v786
    %v794 = vadd.f32 %v516, %v787
    %v795 = vadd.f32 %v522, %v788
    %v796 = vadd.f32 %v528, %v789
    %798 = vset.pattern.permute.xlu0 0
    %799 = vperm.xlu0 %798, %v284
    %v800 = vpop.permute.xlu0 %799
    %803 = vset.pattern.permute.xlu0 0
    %804 = vperm.xlu0 %803, %v285
    %v805 = vpop.permute.xlu0 %804
    %808 = vset.pattern.permute.xlu0 0
    %809 = vperm.xlu0 %808, %v286
    %v810 = vpop.permute.xlu0 %809
    %813 = vset.pattern.permute.xlu0 0
    %814 = vperm.xlu0 %813, %v287
    %v815 = vpop.permute.xlu0 %814
    %818 = vset.pattern.permute.xlu0 0
    %819 = vperm.xlu0 %818, %v288
    %v820 = vpop.permute.xlu0 %819
    %823 = vset.pattern.permute.xlu0 0
    %824 = vperm.xlu0 %823, %v289
    %v825 = vpop.permute.xlu0 %824
    %828 = vset.pattern.permute.xlu0 0
    %829 = vperm.xlu0 %828, %v290
    %v830 = vpop.permute.xlu0 %829
    %vm839 = vcmask 1045504
    %v840 = vrot.slane %v741, 2
    %v841 = vrot.slane %v742, 2
    %v842 = vsel %vm839, %v840, %v841
    %v843 = vrot.slane %v743, 2
    %v844 = vsel %vm839, %v841, %v843
    %v845 = vrot.slane %v744, 2
    %v846 = vsel %vm839, %v843, %v845
    %v847 = vrot.slane %v745, 2
    %v848 = vsel %vm839, %v845, %v847
    %v849 = vrot.slane %v746, 2
    %v850 = vsel %vm839, %v847, %v849
    %v851 = vrot.slane %v747, 2
    %v852 = vsel %vm839, %v849, %v851
    %v860 = vmul.f32 %v800, %v842
    %v861 = vmul.f32 %v805, %v844
    %v862 = vmul.f32 %v810, %v846
    %v863 = vmul.f32 %v815, %v848
    %v864 = vmul.f32 %v820, %v850
    %v865 = vmul.f32 %v825, %v852
    %v866 = vmul.f32 %v830, %v851
    %v867 = vadd.f32 %v790, %v860
    %v868 = vadd.f32 %v791, %v861
    %v869 = vadd.f32 %v792, %v862
    %v870 = vadd.f32 %v793, %v863
    %v871 = vadd.f32 %v794, %v864
    %v872 = vadd.f32 %v795, %v865
    %v873 = vadd.f32 %v796, %v866
    %vm874 = vcmp.gt.f32.partialorder %v867, 0.0
    %vm875 = vcmp.gt.f32.partialorder %v868, 0.0
    %vm876 = vcmp.gt.f32.partialorder %v869, 0.0
    %vm877 = vcmp.gt.f32.partialorder %v870, 0.0
    %vm878 = vcmp.gt.f32.partialorder %v871, 0.0
    %vm879 = vcmp.gt.f32.partialorder %v872, 0.0
    %vm880 = vcmp.gt.f32.partialorder %v873, 0.0
    %v881 = vmul.f32 %v867, 0.2
    %v882 = vmul.f32 %v868, 0.2
    %v883 = vmul.f32 %v869, 0.2
    %v884 = vmul.f32 %v870, 0.2
    %v885 = vmul.f32 %v871, 0.2
    %v886 = vmul.f32 %v872, 0.2
    %v887 = vmul.f32 %v873, 0.2
    %v888 = vsel %vm874, %v867, %v881
    %v889 = vsel %vm875, %v868, %v882
    %v890 = vsel %vm876, %v869, %v883
    %v891 = vsel %vm877, %v870, %v884
    %v892 = vsel %vm878, %v871, %v885
    %v893 = vsel %vm879, %v872, %v886
    %v894 = vsel %vm880, %v873, %v887
    %v895 = vld [vmem:[#allocation6] sm:$0xff]
    %v896 = vld [vmem:[#allocation6 + $0x8] sm:$0xff]
    %v897 = vld [vmem:[#allocation6 + $0x10] sm:$0xff]
    %v898 = vld [vmem:[#allocation6 + $0x18] sm:$0xff]
    %v899 = vld [vmem:[#allocation6 + $0x20] sm:$0xff]
    %v900 = vld [vmem:[#allocation6 + $0x28] sm:$0xff]
    %v901 = vld [vmem:[#allocation6 + $0x30] sm:$0xff]
    %v902 = vld [vmem:[#allocation6 + $0x38] sm:$0xff]
    %v903 = vld [vmem:[#allocation6 + $0x40] sm:$0xff]
    %v904 = vld [vmem:[#allocation6 + $0x48] sm:$0x1]
    %v905 = vld [vmem:[#allocation6 + $0x50] sm:$0x1]
    %v906 = vld [vmem:[#allocation6 + $0x58] sm:$0x1]
    %vm907 = vcmask 203776
    %v909 = vsel %vm907, %v888, 0
    %v912 = vsel %vm907, %v889, 0
    %v915 = vsel %vm907, %v890, 0
    %v918 = vsel %vm907, %v891, 0
    %v921 = vsel %vm907, %v892, 0
    %v924 = vsel %vm907, %v893, 0
    %v927 = vsel %vm907, %v894, 0
    %v930 = vsel %vm418, %v904, 0
    %v933 = vsel %vm418, %v905, 0
    %v936 = vsel %vm418, %v906, 0
    %938 = vmatprep.subr.mxu0 %v896
    %939 = vmatpush1.msra.mxu0 %v895
    %940 = vmatprep.subr.mxu0 %v899
    %941 = vmatpush1.msra.mxu0 %v898
    %942 = vmatprep.subr.mxu0 %v902
    %943 = vmatpush1.msra.mxu0 %v901
    %944 = vmatprep.subr.mxu0 %v933
    %945 = vmatpush1.msra.mxu0 %v930
    %946 = vmatprep.subr.mxu0 0.0
    %947 = vmatpush1.msra.mxu0 0.0
    %948 = vmatprep.subr.mxu0 0.0
    %949 = vmatpush1.msra.mxu0 0.0
    %950 = vmatprep.subr.mxu0 0.0
    %951 = vmatpush1.msra.mxu0 0.0
    %952 = vmatprep.subr.mxu0 0.0
    %953 = vmatpush1.msra.mxu0 0.0
    %954 = vmatprep.subr.mxu0 0.0
    %955 = vmatpush1.msra.mxu0 0.0
    %956 = vmatprep.subr.mxu0 0.0
    %957 = vmatpush1.msra.mxu0 0.0
    %958 = vmatprep.subr.mxu0 0.0
    %959 = vmatpush1.msra.mxu0 0.0
    %960 = vmatprep.subr.mxu0 0.0
    %961 = vmatpush1.msra.mxu0 0.0
    %962 = vmatprep.subr.mxu0 0.0
    %963 = vmatpush1.msra.mxu0 0.0
    %964 = vmatprep.subr.mxu0 0.0
    %965 = vmatpush1.msra.mxu0 0.0
    %966 = vmatprep.subr.mxu0 0.0
    %967 = vmatpush1.msra.mxu0 0.0
    %968 = vmatprep.subr.mxu0 0.0
    %969 = vmatpush1.msra.mxu0 0.0
    %970 = vmatprep.subr.mxu0 0.0
    %971 = vmatpush1.msra.mxu0 0.0
    %972 = vmatprep.subr.mxu0 0.0
    %973 = vmatpush1.msra.mxu0 0.0
    %974 = vmatprep.subr.mxu0 0.0
    %975 = vmatpush1.msra.mxu0 0.0
    %976 = vmatprep.subr.mxu0 0.0
    %977 = vmatpush1.msra.mxu0 0.0
    %978 = vmatprep.subr.mxu0 0.0
    %979 = vmatpush1.msra.mxu0 0.0
    %980 = vmatprep.subr.mxu0 0.0
    %981 = vmatpush1.msra.mxu0 0.0
    %982 = vmatprep.subr.mxu0 0.0
    %983 = vmatpush1.msra.mxu0 0.0
    %984 = vmatprep.subr.mxu0 0.0
    %985 = vmatpush1.msra.mxu0 0.0
    %986 = vmatprep.subr.mxu0 0.0
    %987 = vmatpush1.msra.mxu0 0.0
    %988 = vmatprep.subr.mxu0 0.0
    %989 = vmatpush1.msra.mxu0 0.0
    %990 = vmatprep.subr.mxu0 0.0
    %991 = vmatpush1.msra.mxu0 0.0
    %992 = vmatprep.subr.mxu0 0.0
    %993 = vmatpush1.msra.mxu0 0.0
    %994 = vmatprep.subr.mxu0 0.0
    %995 = vmatpush1.msra.mxu0 0.0
    %996 = vmatprep.subr.mxu0 0.0
    %997 = vmatpush1.msra.mxu0 0.0
    %998 = vmatprep.subr.mxu0 0.0
    %999 = vmatpush1.msra.mxu0 0.0
    %1000 = vmatprep.subr.mxu0 0.0
    %1001 = vmatpush1.msra.mxu0 0.0
    %1002 = vmatprep.mubr.f32.mxu0 0.0
    %1003 = vmatmul.mubr.f32.gmra.mrb[0].mxu0 %v909
    %v1004 = vpop.f32.mrb[0].mxu0
    %v1005 = vadd.f32 0.0, %v1004
    %v1006 = vpop.f32.mrb[0].mxu0
    %v1007 = vadd.f32 0.0, %v1006
    %1008 = vmatprep.mubr.f32.mxu0 0.0
    %1009 = vmatmul.mubr.f32.gmra.mrb[0].mxu0 %v912
    %v1010 = vpop.f32.mrb[0].mxu0
    %v1011 = vadd.f32 0.0, %v1010
    %v1012 = vpop.f32.mrb[0].mxu0
    %v1013 = vadd.f32 0.0, %v1012
    %1014 = vmatprep.mubr.f32.mxu0 0.0
    %1015 = vmatmul.mubr.f32.gmra.mrb[0].mxu0 %v915
    %v1016 = vpop.f32.mrb[0].mxu0
    %v1017 = vadd.f32 0.0, %v1016
    %v1018 = vpop.f32.mrb[0].mxu0
    %v1019 = vadd.f32 0.0, %v1018
    %1020 = vmatprep.mubr.f32.mxu0 0.0
    %1021 = vmatmul.mubr.f32.gmra.mrb[0].mxu0 %v918
    %v1022 = vpop.f32.mrb[0].mxu0
    %v1023 = vadd.f32 0.0, %v1022
    %v1024 = vpop.f32.mrb[0].mxu0
    %v1025 = vadd.f32 0.0, %v1024
    %1026 = vmatprep.mubr.f32.mxu0 0.0
    %1027 = vmatmul.mubr.f32.gmra.mrb[0].mxu0 %v921
    %v1028 = vpop.f32.mrb[0].mxu0
    %v1029 = vadd.f32 0.0, %v1028
    %v1030 = vpop.f32.mrb[0].mxu0
    %v1031 = vadd.f32 0.0, %v1030
    %1032 = vmatprep.mubr.f32.mxu0 0.0
    %1033 = vmatmul.mubr.f32.gmra.mrb[0].mxu0 %v924
    %v1034 = vpop.f32.mrb[0].mxu0
    %v1035 = vadd.f32 0.0, %v1034
    %v1036 = vpop.f32.mrb[0].mxu0
    %v1037 = vadd.f32 0.0, %v1036
    %1038 = vmatprep.mubr.f32.mxu0 0.0
    %1039 = vmatmul.mubr.f32.gmra.mrb[0].mxu0 %v927
    %v1040 = vpop.f32.mrb[0].mxu0
    %v1041 = vadd.f32 0.0, %v1040
    %v1042 = vpop.f32.mrb[0].mxu0
    %v1043 = vadd.f32 0.0, %v1042
    %1044 = vdwg.mxu0
    %1045 = vmatprep.subr.mxu0 0.0
    %1046 = vmatpush1.msra.mxu0 %v897
    %1047 = vmatprep.subr.mxu0 0.0
    %1048 = vmatpush1.msra.mxu0 %v900
    %1049 = vmatprep.subr.mxu0 0.0
    %1050 = vmatpush1.msra.mxu0 %v903
    %1051 = vmatprep.subr.mxu0 0.0
    %1052 = vmatpush1.msra.mxu0 %v936
    %1053 = vmatprep.subr.mxu0 0.0
    %1054 = vmatpush1.msra.mxu0 0.0
    %1055 = vmatprep.subr.mxu0 0.0
    %1056 = vmatpush1.msra.mxu0 0.0
    %1057 = vmatprep.subr.mxu0 0.0
    %1058 = vmatpush1.msra.mxu0 0.0
    %1059 = vmatprep.subr.mxu0 0.0
    %1060 = vmatpush1.msra.mxu0 0.0
    %1061 = vmatprep.subr.mxu0 0.0
    %1062 = vmatpush1.msra.mxu0 0.0
    %1063 = vmatprep.subr.mxu0 0.0
    %1064 = vmatpush1.msra.mxu0 0.0
    %1065 = vmatprep.subr.mxu0 0.0
    %1066 = vmatpush1.msra.mxu0 0.0
    %1067 = vmatprep.subr.mxu0 0.0
    %1068 = vmatpush1.msra.mxu0 0.0
    %1069 = vmatprep.subr.mxu0 0.0
    %1070 = vmatpush1.msra.mxu0 0.0
    %1071 = vmatprep.subr.mxu0 0.0
    %1072 = vmatpush1.msra.mxu0 0.0
    %1073 = vmatprep.subr.mxu0 0.0
    %1074 = vmatpush1.msra.mxu0 0.0
    %1075 = vmatprep.subr.mxu0 0.0
    %1076 = vmatpush1.msra.mxu0 0.0
    %1077 = vmatprep.subr.mxu0 0.0
    %1078 = vmatpush1.msra.mxu0 0.0
    %1079 = vmatprep.subr.mxu0 0.0
    %1080 = vmatpush1.msra.mxu0 0.0
    %1081 = vmatprep.subr.mxu0 0.0
    %1082 = vmatpush1.msra.mxu0 0.0
    %1083 = vmatprep.subr.mxu0 0.0
    %1084 = vmatpush1.msra.mxu0 0.0
    %1085 = vmatprep.subr.mxu0 0.0
    %1086 = vmatpush1.msra.mxu0 0.0
    %1087 = vmatprep.subr.mxu0 0.0
    %1088 = vmatpush1.msra.mxu0 0.0
    %1089 = vmatprep.subr.mxu0 0.0
    %1090 = vmatpush1.msra.mxu0 0.0
    %1091 = vmatprep.subr.mxu0 0.0
    %1092 = vmatpush1.msra.mxu0 0.0
    %1093 = vmatprep.subr.mxu0 0.0
    %1094 = vmatpush1.msra.mxu0 0.0
    %1095 = vmatprep.subr.mxu0 0.0
    %1096 = vmatpush1.msra.mxu0 0.0
    %1097 = vmatprep.subr.mxu0 0.0
    %1098 = vmatpush1.msra.mxu0 0.0
    %1099 = vmatprep.subr.mxu0 0.0
    %1100 = vmatpush1.msra.mxu0 0.0
    %1101 = vmatprep.subr.mxu0 0.0
    %1102 = vmatpush1.msra.mxu0 0.0
    %1103 = vmatprep.subr.mxu0 0.0
    %1104 = vmatpush1.msra.mxu0 0.0
    %1105 = vmatprep.subr.mxu0 0.0
    %1106 = vmatpush1.msra.mxu0 0.0
    %1107 = vmatprep.subr.mxu0 0.0
    %1108 = vmatpush1.msra.mxu0 0.0
    %1109 = vmatprep.mubr.f32.mxu0 0.0
    %1110 = vmatmul.mubr.f32.gmra.mrb[0].mxu0 %v909
    %v1111 = vpop.f32.mrb[0].mxu0
    %v1112 = vadd.f32 0.0, %v1111
    %v1113 = vpop.f32.mrb[0].mxu0
    %1114 = vmatprep.mubr.f32.mxu0 0.0
    %1115 = vmatmul.mubr.f32.gmra.mrb[0].mxu0 %v912
    %v1116 = vpop.f32.mrb[0].mxu0
    %v1117 = vadd.f32 0.0, %v1116
    %v1118 = vpop.f32.mrb[0].mxu0
    %1119 = vmatprep.mubr.f32.mxu0 0.0
    %1120 = vmatmul.mubr.f32.gmra.mrb[0].mxu0 %v915
    %v1121 = vpop.f32.mrb[0].mxu0
    %v1122 = vadd.f32 0.0, %v1121
    %v1123 = vpop.f32.mrb[0].mxu0
    %1124 = vmatprep.mubr.f32.mxu0 0.0
    %1125 = vmatmul.mubr.f32.gmra.mrb[0].mxu0 %v918
    %v1126 = vpop.f32.mrb[0].mxu0
    %v1127 = vadd.f32 0.0, %v1126
    %v1128 = vpop.f32.mrb[0].mxu0
    %1129 = vmatprep.mubr.f32.mxu0 0.0
    %1130 = vmatmul.mubr.f32.gmra.mrb[0].mxu0 %v921
    %v1131 = vpop.f32.mrb[0].mxu0
    %v1132 = vadd.f32 0.0, %v1131
    %v1133 = vpop.f32.mrb[0].mxu0
    %1134 = vmatprep.mubr.f32.mxu0 0.0
    %1135 = vmatmul.mubr.f32.gmra.mrb[0].mxu0 %v924
    %v1136 = vpop.f32.mrb[0].mxu0
    %v1137 = vadd.f32 0.0, %v1136
    %v1138 = vpop.f32.mrb[0].mxu0
    %1139 = vmatprep.mubr.f32.mxu0 0.0
    %1140 = vmatmul.mubr.f32.gmra.mrb[0].mxu0 %v927
    %v1141 = vpop.f32.mrb[0].mxu0
    %v1142 = vadd.f32 0.0, %v1141
    %v1143 = vpop.f32.mrb[0].mxu0
    %1144 = vdwg.mxu0
    %v1166 = vrot.slane %v1005, 7
    %v1167 = vrot.slane %v1007, 7
    %v1168 = vrot.slane %v1112, 7
    %v1169 = vrot.slane %v1011, 7
    %v1170 = vsel %vm418, %v1166, %v1169
    %v1171 = vrot.slane %v1013, 7
    %v1172 = vsel %vm418, %v1167, %v1171
    %v1173 = vrot.slane %v1117, 7
    %v1174 = vsel %vm418, %v1168, %v1173
    %v1175 = vrot.slane %v1017, 7
    %v1176 = vsel %vm418, %v1169, %v1175
    %v1177 = vrot.slane %v1019, 7
    %v1178 = vsel %vm418, %v1171, %v1177
    %v1179 = vrot.slane %v1122, 7
    %v1180 = vsel %vm418, %v1173, %v1179
    %v1181 = vrot.slane %v1023, 7
    %v1182 = vsel %vm418, %v1175, %v1181
    %v1183 = vrot.slane %v1025, 7
    %v1184 = vsel %vm418, %v1177, %v1183
    %v1185 = vrot.slane %v1127, 7
    %v1186 = vsel %vm418, %v1179, %v1185
    %v1187 = vrot.slane %v1029, 7
    %v1188 = vsel %vm418, %v1181, %v1187
    %v1189 = vrot.slane %v1031, 7
    %v1190 = vsel %vm418, %v1183, %v1189
    %v1191 = vrot.slane %v1132, 7
    %v1192 = vsel %vm418, %v1185, %v1191
    %v1193 = vrot.slane %v1035, 7
    %v1194 = vsel %vm418, %v1187, %v1193
    %v1195 = vrot.slane %v1037, 7
    %v1196 = vsel %vm418, %v1189, %v1195
    %v1197 = vrot.slane %v1137, 7
    %v1198 = vsel %vm418, %v1191, %v1197
    %v1199 = vrot.slane %v1041, 7
    %v1200 = vsel %vm418, %v1193, %v1199
    %v1201 = vrot.slane %v1043, 7
    %v1202 = vsel %vm418, %v1195, %v1201
    %v1203 = vrot.slane %v1142, 7
    %v1204 = vsel %vm418, %v1197, %v1203
    %1226 = vst [vmem:[#allocation2] sm:$0xfe] %v1166
    %1227 = vst [vmem:[#allocation2 + $0x8] sm:$0xfe] %v1167
    %1228 = vst [vmem:[#allocation2 + $0x10] sm:$0xfe] %v1168
    %1229 = vst [vmem:[#allocation2 + $0x60] sm:$0xff] %v1170
    %1230 = vst [vmem:[#allocation2 + $0x68] sm:$0xff] %v1172
    %1231 = vst [vmem:[#allocation2 + $0x70] sm:$0xff] %v1174
    %1232 = vst [vmem:[#allocation2 + $0xc0] sm:$0xff] %v1176
    %1233 = vst [vmem:[#allocation2 + $0xc8] sm:$0xff] %v1178
    %1234 = vst [vmem:[#allocation2 + $0xd0] sm:$0xff] %v1180
    %1235 = vst [vmem:[#allocation2 + $0x120] sm:$0xff] %v1182
    %1236 = vst [vmem:[#allocation2 + $0x128] sm:$0xff] %v1184
    %1237 = vst [vmem:[#allocation2 + $0x130] sm:$0xff] %v1186
    %1238 = vst [vmem:[#allocation2 + $0x180] sm:$0xff] %v1188
    %1239 = vst [vmem:[#allocation2 + $0x188] sm:$0xff] %v1190
    %1240 = vst [vmem:[#allocation2 + $0x190] sm:$0xff] %v1192
    %1241 = vst [vmem:[#allocation2 + $0x1e0] sm:$0xff] %v1194
    %1242 = vst [vmem:[#allocation2 + $0x1e8] sm:$0xff] %v1196
    %1243 = vst [vmem:[#allocation2 + $0x1f0] sm:$0xff] %v1198
    %1244 = vst [vmem:[#allocation2 + $0x240] sm:$0x7] %v1200
    %1245 = vst [vmem:[#allocation2 + $0x248] sm:$0x7] %v1202
    %1246 = vst [vmem:[#allocation2 + $0x250] sm:$0x7] %v1204
    %v1247 = vld [vmem:[#allocation2 + $0x8] sm:$0xff]
    %v1248 = vld [vmem:[#allocation2 + $0x68] sm:$0xff]
    %v1249 = vld [vmem:[#allocation2 + $0xc8] sm:$0xff]
    %v1250 = vld [vmem:[#allocation2 + $0x128] sm:$0xff]
    %v1251 = vld [vmem:[#allocation2 + $0x188] sm:$0xff]
    %v1252 = vld [vmem:[#allocation2 + $0x1e8] sm:$0xff]
    %v1253 = vld [vmem:[#allocation2 + $0x248] sm:$0x3]
    %v1254 = vld [vmem:[#allocation2 + $0x10] sm:$0xfc]
    %v1255 = vld [vmem:[#allocation2 + $0x70] sm:$0xff]
    %v1256 = vld [vmem:[#allocation2 + $0xd0] sm:$0xff]
    %v1257 = vld [vmem:[#allocation2 + $0x130] sm:$0xff]
    %v1258 = vld [vmem:[#allocation2 + $0x190] sm:$0xff]
    %v1259 = vld [vmem:[#allocation2 + $0x1f0] sm:$0xff]
    %v1260 = vld [vmem:[#allocation2 + $0x250] sm:$0xf]
    %v1261 = vmul.f32 %v751, %v1247
    %v1262 = vmul.f32 %v756, %v1248
    %v1263 = vmul.f32 %v761, %v1249
    %v1264 = vmul.f32 %v766, %v1250
    %v1265 = vmul.f32 %v771, %v1251
    %v1266 = vmul.f32 %v776, %v1252
    %v1267 = vmul.f32 %v781, %v1253
    %v1268 = vadd.f32 %v1005, %v1261
    %v1269 = vadd.f32 %v1011, %v1262
    %v1270 = vadd.f32 %v1017, %v1263
    %v1271 = vadd.f32 %v1023, %v1264
    %v1272 = vadd.f32 %v1029, %v1265
    %v1273 = vadd.f32 %v1035, %v1266
    %v1274 = vadd.f32 %v1041, %v1267
    %v1282 = vrot.slane %v1254, 2
    %v1283 = vrot.slane %v1255, 2
    %v1284 = vsel %vm839, %v1282, %v1283
    %v1285 = vrot.slane %v1256, 2
    %v1286 = vsel %vm839, %v1283, %v1285
    %v1287 = vrot.slane %v1257, 2
    %v1288 = vsel %vm839, %v1285, %v1287
    %v1289 = vrot.slane %v1258, 2
    %v1290 = vsel %vm839, %v1287, %v1289
    %v1291 = vrot.slane %v1259, 2
    %v1292 = vsel %vm839, %v1289, %v1291
    %v1293 = vrot.slane %v1260, 2
    %v1294 = vsel %vm839, %v1291, %v1293
    %v1302 = vmul.f32 %v800, %v1284
    %v1303 = vmul.f32 %v805, %v1286
    %v1304 = vmul.f32 %v810, %v1288
    %v1305 = vmul.f32 %v815, %v1290
    %v1306 = vmul.f32 %v820, %v1292
    %v1307 = vmul.f32 %v825, %v1294
    %v1308 = vmul.f32 %v830, %v1293
    %v1309 = vadd.f32 %v1268, %v1302
    %v1310 = vadd.f32 %v1269, %v1303
    %v1311 = vadd.f32 %v1270, %v1304
    %v1312 = vadd.f32 %v1271, %v1305
    %v1313 = vadd.f32 %v1272, %v1306
    %v1314 = vadd.f32 %v1273, %v1307
    %v1315 = vadd.f32 %v1274, %v1308
    %vm1316 = vcmask 408576
    %v1317 = vsel %vm1316, %v1309, 0.0
    %v1318 = vsel %vm1316, %v1310, 0.0
    %v1319 = vadd.f32 %v1317, %v1318
    %v1320 = vsel %vm1316, %v1311, 0.0
    %v1321 = vadd.f32 %v1319, %v1320
    %v1322 = vsel %vm1316, %v1312, 0.0
    %v1323 = vadd.f32 %v1321, %v1322
    %v1324 = vsel %vm1316, %v1313, 0.0
    %v1325 = vadd.f32 %v1323, %v1324
    %v1326 = vsel %vm1316, %v1314, 0.0
    %v1327 = vadd.f32 %v1325, %v1326
    %vm1328 = vcmask 402432
    %v1329 = vsel %vm1328, %v1315, 0.0
    %v1330 = vadd.f32 %v1327, %v1329
    %v1331 = vrot.slane %v1330, 4
    %v1332 = vadd.f32 %v1330, %v1331
    %v1333 = vrot.slane %v1332, 2
    %v1334 = vadd.f32 %v1332, %v1333
    %v1335 = vrot.slane %v1334, 1
    %v1336 = vadd.f32 %v1334, %v1335
    %v1337 = vrcp.pop 50.0
    %v1338 = vmul.f32 %v1336, %v1337
    %v1339 = vmul.f32 %v1309, %v1309
    %v1340 = vmul.f32 %v1310, %v1310
    %v1341 = vmul.f32 %v1311, %v1311
    %v1342 = vmul.f32 %v1312, %v1312
    %v1343 = vmul.f32 %v1313, %v1313
    %v1344 = vmul.f32 %v1314, %v1314
    %v1345 = vmul.f32 %v1315, %v1315
    %v1346 = vsel %vm1316, %v1339, 0.0
    %v1347 = vsel %vm1316, %v1340, 0.0
    %v1348 = vadd.f32 %v1346, %v1347
    %v1349 = vsel %vm1316, %v1341, 0.0
    %v1350 = vadd.f32 %v1348, %v1349
    %v1351 = vsel %vm1316, %v1342, 0.0
    %v1352 = vadd.f32 %v1350, %v1351
    %v1353 = vsel %vm1316, %v1343, 0.0
    %v1354 = vadd.f32 %v1352, %v1353
    %v1355 = vsel %vm1316, %v1344, 0.0
    %v1356 = vadd.f32 %v1354, %v1355
    %v1357 = vsel %vm1328, %v1345, 0.0
    %v1358 = vadd.f32 %v1356, %v1357
    %v1359 = vrot.slane %v1358, 4
    %v1360 = vadd.f32 %v1358, %v1359
    %v1361 = vrot.slane %v1360, 2
    %v1362 = vadd.f32 %v1360, %v1361
    %v1363 = vrot.slane %v1362, 1
    %v1364 = vadd.f32 %v1362, %v1363
    %v1365 = vmul.f32 %v1364, %v1337
    %v1366 = vmul.f32 %v1338, %v1338
    %v1367 = vsub.f32 %v1365, %v1366
    %v1368 = vsub.f32 %v1309, %v1338
    %v1369 = vsub.f32 %v1310, %v1338
    %v1370 = vsub.f32 %v1311, %v1338
    %v1371 = vsub.f32 %v1312, %v1338
    %v1372 = vsub.f32 %v1313, %v1338
    %v1373 = vsub.f32 %v1314, %v1338
    %v1374 = vsub.f32 %v1315, %v1338
    %v1375 = vadd.f32 %v1367, 1e-05
    %v1376 = vrsqrt.pop %v1375
    %v1377 = vld [vmem:[#allocation12] sm:$0x1]
    %v1378 = vmul.f32 %v1376, %v1377
    %v1379 = vlaneseq
    %v1380 = vshrl.u32 %v1379, 7
    %v1381 = vsub.s32 0, %v1380
    %v1382 = vrot.slane %v1378, %v1381
    %v1383 = vmul.f32 %v1368, %v1382
    %v1384 = vmul.f32 %v1369, %v1382
    %v1385 = vmul.f32 %v1370, %v1382
    %v1386 = vmul.f32 %v1371, %v1382
    %v1387 = vmul.f32 %v1372, %v1382
    %v1388 = vmul.f32 %v1373, %v1382
    %v1389 = vmul.f32 %v1374, %v1382
    %v1390 = vld [vmem:[#allocation14] sm:$0x1]
    %v1392 = vlaneseq
    %v1393 = vshrl.u32 %v1392, 7
    %v1394 = vsub.s32 0, %v1393
    %v1395 = vrot.slane %v1390, %v1394
    %v1397 = vadd.f32 %v1383, %v1395
    %v1398 = vadd.f32 %v1384, %v1395
    %v1399 = vadd.f32 %v1385, %v1395
    %v1400 = vadd.f32 %v1386, %v1395
    %v1401 = vadd.f32 %v1387, %v1395
    %v1402 = vadd.f32 %v1388, %v1395
    %v1403 = vadd.f32 %v1389, %v1395
    %vm1404 = vcmp.gt.f32.partialorder %v1397, 0.0
    %vm1405 = vcmp.gt.f32.partialorder %v1398, 0.0
    %vm1406 = vcmp.gt.f32.partialorder %v1399, 0.0
    %vm1407 = vcmp.gt.f32.partialorder %v1400, 0.0
    %vm1408 = vcmp.gt.f32.partialorder %v1401, 0.0
    %vm1409 = vcmp.gt.f32.partialorder %v1402, 0.0
    %vm1410 = vcmp.gt.f32.partialorder %v1403, 0.0
    %v1411 = vmul.f32 %v1397, 0.2
    %v1412 = vmul.f32 %v1398, 0.2
    %v1413 = vmul.f32 %v1399, 0.2
    %v1414 = vmul.f32 %v1400, 0.2
    %v1415 = vmul.f32 %v1401, 0.2
    %v1416 = vmul.f32 %v1402, 0.2
    %v1417 = vmul.f32 %v1403, 0.2
    %v1418 = vsel %vm1404, %v1397, %v1411
    %v1419 = vsel %vm1405, %v1398, %v1412
    %v1420 = vsel %vm1406, %v1399, %v1413
    %v1421 = vsel %vm1407, %v1400, %v1414
    %v1422 = vsel %vm1408, %v1401, %v1415
    %v1423 = vsel %vm1409, %v1402, %v1416
    %v1424 = vsel %vm1410, %v1403, %v1417
    %v1425 = vld [vmem:[#allocation8] sm:$0xff]
    %v1426 = vld [vmem:[#allocation8 + $0x8] sm:$0xff]
    %v1427 = vld [vmem:[#allocation8 + $0x10] sm:$0xff]
    %v1428 = vld [vmem:[#allocation8 + $0x18] sm:$0xff]
    %v1429 = vld [vmem:[#allocation8 + $0x20] sm:$0xff]
    %v1430 = vld [vmem:[#allocation8 + $0x28] sm:$0xff]
    %v1431 = vld [vmem:[#allocation8 + $0x30] sm:$0xff]
    %v1432 = vld [vmem:[#allocation8 + $0x38] sm:$0xff]
    %v1433 = vld [vmem:[#allocation8 + $0x40] sm:$0xff]
    %v1434 = vld [vmem:[#allocation8 + $0x48] sm:$0xff]
    %v1435 = vld [vmem:[#allocation8 + $0x50] sm:$0xff]
    %v1436 = vld [vmem:[#allocation8 + $0x58] sm:$0xff]
    %v1437 = vld [vmem:[#allocation8 + $0x60] sm:$0xff]
    %v1438 = vld [vmem:[#allocation8 + $0x68] sm:$0xff]
    %v1439 = vld [vmem:[#allocation8 + $0x70] sm:$0xff]
    %v1440 = vld [vmem:[#allocation8 + $0x78] sm:$0xff]
    %v1441 = vld [vmem:[#allocation8 + $0x80] sm:$0xff]
    %v1442 = vld [vmem:[#allocation8 + $0x88] sm:$0xff]
    %v1443 = vld [vmem:[#allocation8 + $0x90] sm:$0x3]
    %v1444 = vld [vmem:[#allocation8 + $0x98] sm:$0x3]
    %v1445 = vld [vmem:[#allocation8 + $0xa0] sm:$0x3]
    %v1447 = vsel %vm1316, %v1418, 0
    %v1450 = vsel %vm1316, %v1419, 0
    %v1453 = vsel %vm1316, %v1420, 0
    %v1456 = vsel %vm1316, %v1421, 0
    %v1459 = vsel %vm1316, %v1422, 0
    %v1462 = vsel %vm1316, %v1423, 0
    %v1465 = vsel %vm1316, %v1424, 0
    %vm1467 = vcmask 1041408
    %v1469 = vsel %vm1467, %v1443, 0
    %v1472 = vsel %vm1467, %v1444, 0
    %v1475 = vsel %vm1467, %v1445, 0
    %1477 = vmatprep.subr.mxu0 %v1426
    %1478 = vmatpush1.msra.mxu0 %v1425
    %1479 = vmatprep.subr.mxu0 %v1429
    %1480 = vmatpush1.msra.mxu0 %v1428
    %1481 = vmatprep.subr.mxu0 %v1432
    %1482 = vmatpush1.msra.mxu0 %v1431
    %1483 = vmatprep.subr.mxu0 %v1435
    %1484 = vmatpush1.msra.mxu0 %v1434
    %1485 = vmatprep.subr.mxu0 %v1438
    %1486 = vmatpush1.msra.mxu0 %v1437
    %1487 = vmatprep.subr.mxu0 %v1441
    %1488 = vmatpush1.msra.mxu0 %v1440
    %1489 = vmatprep.subr.mxu0 %v1472
    %1490 = vmatpush1.msra.mxu0 %v1469
    %1491 = vmatprep.subr.mxu0 0.0
    %1492 = vmatpush1.msra.mxu0 0.0
    %1493 = vmatprep.subr.mxu0 0.0
    %1494 = vmatpush1.msra.mxu0 0.0
    %1495 = vmatprep.subr.mxu0 0.0
    %1496 = vmatpush1.msra.mxu0 0.0
    %1497 = vmatprep.subr.mxu0 0.0
    %1498 = vmatpush1.msra.mxu0 0.0
    %1499 = vmatprep.subr.mxu0 0.0
    %1500 = vmatpush1.msra.mxu0 0.0
    %1501 = vmatprep.subr.mxu0 0.0
    %1502 = vmatpush1.msra.mxu0 0.0
    %1503 = vmatprep.subr.mxu0 0.0
    %1504 = vmatpush1.msra.mxu0 0.0
    %1505 = vmatprep.subr.mxu0 0.0
    %1506 = vmatpush1.msra.mxu0 0.0
    %1507 = vmatprep.subr.mxu0 0.0
    %1508 = vmatpush1.msra.mxu0 0.0
    %1509 = vmatprep.subr.mxu0 0.0
    %1510 = vmatpush1.msra.mxu0 0.0
    %1511 = vmatprep.subr.mxu0 0.0
    %1512 = vmatpush1.msra.mxu0 0.0
    %1513 = vmatprep.subr.mxu0 0.0
    %1514 = vmatpush1.msra.mxu0 0.0
    %1515 = vmatprep.subr.mxu0 0.0
    %1516 = vmatpush1.msra.mxu0 0.0
    %1517 = vmatprep.subr.mxu0 0.0
    %1518 = vmatpush1.msra.mxu0 0.0
    %1519 = vmatprep.subr.mxu0 0.0
    %1520 = vmatpush1.msra.mxu0 0.0
    %1521 = vmatprep.subr.mxu0 0.0
    %1522 = vmatpush1.msra.mxu0 0.0
    %1523 = vmatprep.subr.mxu0 0.0
    %1524 = vmatpush1.msra.mxu0 0.0
    %1525 = vmatprep.subr.mxu0 0.0
    %1526 = vmatpush1.msra.mxu0 0.0
    %1527 = vmatprep.subr.mxu0 0.0
    %1528 = vmatpush1.msra.mxu0 0.0
    %1529 = vmatprep.subr.mxu0 0.0
    %1530 = vmatpush1.msra.mxu0 0.0
    %1531 = vmatprep.subr.mxu0 0.0
    %1532 = vmatpush1.msra.mxu0 0.0
    %1533 = vmatprep.subr.mxu0 0.0
    %1534 = vmatpush1.msra.mxu0 0.0
    %1535 = vmatprep.subr.mxu0 0.0
    %1536 = vmatpush1.msra.mxu0 0.0
    %1537 = vmatprep.subr.mxu0 0.0
    %1538 = vmatpush1.msra.mxu0 0.0
    %1539 = vmatprep.subr.mxu0 0.0
    %1540 = vmatpush1.msra.mxu0 0.0
    %1541 = vmatprep.mubr.f32.mxu0 0.0
    %1542 = vmatmul.mubr.f32.gmra.mrb[0].mxu0 %v1447
    %v1543 = vpop.f32.mrb[0].mxu0
    %v1544 = vadd.f32 0.0, %v1543
    %v1545 = vpop.f32.mrb[0].mxu0
    %v1546 = vadd.f32 0.0, %v1545
    %1547 = vmatprep.mubr.f32.mxu0 0.0
    %1548 = vmatmul.mubr.f32.gmra.mrb[0].mxu0 %v1450
    %v1549 = vpop.f32.mrb[0].mxu0
    %v1550 = vadd.f32 0.0, %v1549
    %v1551 = vpop.f32.mrb[0].mxu0
    %v1552 = vadd.f32 0.0, %v1551
    %1553 = vmatprep.mubr.f32.mxu0 0.0
    %1554 = vmatmul.mubr.f32.gmra.mrb[0].mxu0 %v1453
    %v1555 = vpop.f32.mrb[0].mxu0
    %v1556 = vadd.f32 0.0, %v1555
    %v1557 = vpop.f32.mrb[0].mxu0
    %v1558 = vadd.f32 0.0, %v1557
    %1559 = vmatprep.mubr.f32.mxu0 0.0
    %1560 = vmatmul.mubr.f32.gmra.mrb[0].mxu0 %v1456
    %v1561 = vpop.f32.mrb[0].mxu0
    %v1562 = vadd.f32 0.0, %v1561
    %v1563 = vpop.f32.mrb[0].mxu0
    %v1564 = vadd.f32 0.0, %v1563
    %1565 = vmatprep.mubr.f32.mxu0 0.0
    %1566 = vmatmul.mubr.f32.gmra.mrb[0].mxu0 %v1459
    %v1567 = vpop.f32.mrb[0].mxu0
    %v1568 = vadd.f32 0.0, %v1567
    %v1569 = vpop.f32.mrb[0].mxu0
    %v1570 = vadd.f32 0.0, %v1569
    %1571 = vmatprep.mubr.f32.mxu0 0.0
    %1572 = vmatmul.mubr.f32.gmra.mrb[0].mxu0 %v1462
    %v1573 = vpop.f32.mrb[0].mxu0
    %v1574 = vadd.f32 0.0, %v1573
    %v1575 = vpop.f32.mrb[0].mxu0
    %v1576 = vadd.f32 0.0, %v1575
    %1577 = vmatprep.mubr.f32.mxu0 0.0
    %1578 = vmatmul.mubr.f32.gmra.mrb[0].mxu0 %v1465
    %v1579 = vpop.f32.mrb[0].mxu0
    %v1580 = vadd.f32 0.0, %v1579
    %v1581 = vpop.f32.mrb[0].mxu0
    %v1582 = vadd.f32 0.0, %v1581
    %1583 = vdwg.mxu0
    %1584 = vmatprep.subr.mxu0 0.0
    %1585 = vmatpush1.msra.mxu0 %v1427
    %1586 = vmatprep.subr.mxu0 0.0
    %1587 = vmatpush1.msra.mxu0 %v1430
    %1588 = vmatprep.subr.mxu0 0.0
    %1589 = vmatpush1.msra.mxu0 %v1433
    %1590 = vmatprep.subr.mxu0 0.0
    %1591 = vmatpush1.msra.mxu0 %v1436
    %1592 = vmatprep.subr.mxu0 0.0
    %1593 = vmatpush1.msra.mxu0 %v1439
    %1594 = vmatprep.subr.mxu0 0.0
    %1595 = vmatpush1.msra.mxu0 %v1442
    %1596 = vmatprep.subr.mxu0 0.0
    %1597 = vmatpush1.msra.mxu0 %v1475
    %1598 = vmatprep.subr.mxu0 0.0
    %1599 = vmatpush1.msra.mxu0 0.0
    %1600 = vmatprep.subr.mxu0 0.0
    %1601 = vmatpush1.msra.mxu0 0.0
    %1602 = vmatprep.subr.mxu0 0.0
    %1603 = vmatpush1.msra.mxu0 0.0
    %1604 = vmatprep.subr.mxu0 0.0
    %1605 = vmatpush1.msra.mxu0 0.0
    %1606 = vmatprep.subr.mxu0 0.0
    %1607 = vmatpush1.msra.mxu0 0.0
    %1608 = vmatprep.subr.mxu0 0.0
    %1609 = vmatpush1.msra.mxu0 0.0
    %1610 = vmatprep.subr.mxu0 0.0
    %1611 = vmatpush1.msra.mxu0 0.0
    %1612 = vmatprep.subr.mxu0 0.0
    %1613 = vmatpush1.msra.mxu0 0.0
    %1614 = vmatprep.subr.mxu0 0.0
    %1615 = vmatpush1.msra.mxu0 0.0
    %1616 = vmatprep.subr.mxu0 0.0
    %1617 = vmatpush1.msra.mxu0 0.0
    %1618 = vmatprep.subr.mxu0 0.0
    %1619 = vmatpush1.msra.mxu0 0.0
    %1620 = vmatprep.subr.mxu0 0.0
    %1621 = vmatpush1.msra.mxu0 0.0
    %1622 = vmatprep.subr.mxu0 0.0
    %1623 = vmatpush1.msra.mxu0 0.0
    %1624 = vmatprep.subr.mxu0 0.0
    %1625 = vmatpush1.msra.mxu0 0.0
    %1626 = vmatprep.subr.mxu0 0.0
    %1627 = vmatpush1.msra.mxu0 0.0
    %1628 = vmatprep.subr.mxu0 0.0
    %1629 = vmatpush1.msra.mxu0 0.0
    %1630 = vmatprep.subr.mxu0 0.0
    %1631 = vmatpush1.msra.mxu0 0.0
    %1632 = vmatprep.subr.mxu0 0.0
    %1633 = vmatpush1.msra.mxu0 0.0
    %1634 = vmatprep.subr.mxu0 0.0
    %1635 = vmatpush1.msra.mxu0 0.0
    %1636 = vmatprep.subr.mxu0 0.0
    %1637 = vmatpush1.msra.mxu0 0.0
    %1638 = vmatprep.subr.mxu0 0.0
    %1639 = vmatpush1.msra.mxu0 0.0
    %1640 = vmatprep.subr.mxu0 0.0
    %1641 = vmatpush1.msra.mxu0 0.0
    %1642 = vmatprep.subr.mxu0 0.0
    %1643 = vmatpush1.msra.mxu0 0.0
    %1644 = vmatprep.subr.mxu0 0.0
    %1645 = vmatpush1.msra.mxu0 0.0
    %1646 = vmatprep.subr.mxu0 0.0
    %1647 = vmatpush1.msra.mxu0 0.0
    %1648 = vmatprep.mubr.f32.mxu0 0.0
    %1649 = vmatmul.mubr.f32.gmra.mrb[0].mxu0 %v1447
    %v1650 = vpop.f32.mrb[0].mxu0
    %v1651 = vadd.f32 0.0, %v1650
    %v1652 = vpop.f32.mrb[0].mxu0
    %1653 = vmatprep.mubr.f32.mxu0 0.0
    %1654 = vmatmul.mubr.f32.gmra.mrb[0].mxu0 %v1450
    %v1655 = vpop.f32.mrb[0].mxu0
    %v1656 = vadd.f32 0.0, %v1655
    %v1657 = vpop.f32.mrb[0].mxu0
    %1658 = vmatprep.mubr.f32.mxu0 0.0
    %1659 = vmatmul.mubr.f32.gmra.mrb[0].mxu0 %v1453
    %v1660 = vpop.f32.mrb[0].mxu0
    %v1661 = vadd.f32 0.0, %v1660
    %v1662 = vpop.f32.mrb[0].mxu0
    %1663 = vmatprep.mubr.f32.mxu0 0.0
    %1664 = vmatmul.mubr.f32.gmra.mrb[0].mxu0 %v1456
    %v1665 = vpop.f32.mrb[0].mxu0
    %v1666 = vadd.f32 0.0, %v1665
    %v1667 = vpop.f32.mrb[0].mxu0
    %1668 = vmatprep.mubr.f32.mxu0 0.0
    %1669 = vmatmul.mubr.f32.gmra.mrb[0].mxu0 %v1459
    %v1670 = vpop.f32.mrb[0].mxu0
    %v1671 = vadd.f32 0.0, %v1670
    %v1672 = vpop.f32.mrb[0].mxu0
    %1673 = vmatprep.mubr.f32.mxu0 0.0
    %1674 = vmatmul.mubr.f32.gmra.mrb[0].mxu0 %v1462
    %v1675 = vpop.f32.mrb[0].mxu0
    %v1676 = vadd.f32 0.0, %v1675
    %v1677 = vpop.f32.mrb[0].mxu0
    %1678 = vmatprep.mubr.f32.mxu0 0.0
    %1679 = vmatmul.mubr.f32.gmra.mrb[0].mxu0 %v1465
    %v1680 = vpop.f32.mrb[0].mxu0
    %v1681 = vadd.f32 0.0, %v1680
    %v1682 = vpop.f32.mrb[0].mxu0
    %1683 = vdwg.mxu0
    %v1705 = vrot.slane %v1544, 7
    %v1706 = vrot.slane %v1546, 7
    %v1707 = vrot.slane %v1651, 7
    %v1708 = vrot.slane %v1550, 7
    %v1709 = vsel %vm418, %v1705, %v1708
    %v1710 = vrot.slane %v1552, 7
    %v1711 = vsel %vm418, %v1706, %v1710
    %v1712 = vrot.slane %v1656, 7
    %v1713 = vsel %vm418, %v1707, %v1712
    %v1714 = vrot.slane %v1556, 7
    %v1715 = vsel %vm418, %v1708, %v1714
    %v1716 = vrot.slane %v1558, 7
    %v1717 = vsel %vm418, %v1710, %v1716
    %v1718 = vrot.slane %v1661, 7
    %v1719 = vsel %vm418, %v1712, %v1718
    %v1720 = vrot.slane %v1562, 7
    %v1721 = vsel %vm418, %v1714, %v1720
    %v1722 = vrot.slane %v1564, 7
    %v1723 = vsel %vm418, %v1716, %v1722
    %v1724 = vrot.slane %v1666, 7
    %v1725 = vsel %vm418, %v1718, %v1724
    %v1726 = vrot.slane %v1568, 7
    %v1727 = vsel %vm418, %v1720, %v1726
    %v1728 = vrot.slane %v1570, 7
    %v1729 = vsel %vm418, %v1722, %v1728
    %v1730 = vrot.slane %v1671, 7
    %v1731 = vsel %vm418, %v1724, %v1730
    %v1732 = vrot.slane %v1574, 7
    %v1733 = vsel %vm418, %v1726, %v1732
    %v1734 = vrot.slane %v1576, 7
    %v1735 = vsel %vm418, %v1728, %v1734
    %v1736 = vrot.slane %v1676, 7
    %v1737 = vsel %vm418, %v1730, %v1736
    %v1738 = vrot.slane %v1580, 7
    %v1739 = vsel %vm418, %v1732, %v1738
    %v1740 = vrot.slane %v1582, 7
    %v1741 = vsel %vm418, %v1734, %v1740
    %v1742 = vrot.slane %v1681, 7
    %v1743 = vsel %vm418, %v1736, %v1742
    %1765 = vst [vmem:[#allocation2] sm:$0xfe] %v1705
    %1766 = vst [vmem:[#allocation2 + $0x8] sm:$0xfe] %v1706
    %1767 = vst [vmem:[#allocation2 + $0x10] sm:$0xfe] %v1707
    %1768 = vst [vmem:[#allocation2 + $0x60] sm:$0xff] %v1709
    %1769 = vst [vmem:[#allocation2 + $0x68] sm:$0xff] %v1711
    %1770 = vst [vmem:[#allocation2 + $0x70] sm:$0xff] %v1713
    %1771 = vst [vmem:[#allocation2 + $0xc0] sm:$0xff] %v1715
    %1772 = vst [vmem:[#allocation2 + $0xc8] sm:$0xff] %v1717
    %1773 = vst [vmem:[#allocation2 + $0xd0] sm:$0xff] %v1719
    %1774 = vst [vmem:[#allocation2 + $0x120] sm:$0xff] %v1721
    %1775 = vst [vmem:[#allocation2 + $0x128] sm:$0xff] %v1723
    %1776 = vst [vmem:[#allocation2 + $0x130] sm:$0xff] %v1725
    %1777 = vst [vmem:[#allocation2 + $0x180] sm:$0xff] %v1727
    %1778 = vst [vmem:[#allocation2 + $0x188] sm:$0xff] %v1729
    %1779 = vst [vmem:[#allocation2 + $0x190] sm:$0xff] %v1731
    %1780 = vst [vmem:[#allocation2 + $0x1e0] sm:$0xff] %v1733
    %1781 = vst [vmem:[#allocation2 + $0x1e8] sm:$0xff] %v1735
    %1782 = vst [vmem:[#allocation2 + $0x1f0] sm:$0xff] %v1737
    %1783 = vst [vmem:[#allocation2 + $0x240] sm:$0x7] %v1739
    %1784 = vst [vmem:[#allocation2 + $0x248] sm:$0x7] %v1741
    %1785 = vst [vmem:[#allocation2 + $0x250] sm:$0x7] %v1743
    %v1786 = vld [vmem:[#allocation2 + $0x8] sm:$0xff]
    %v1787 = vld [vmem:[#allocation2 + $0x68] sm:$0xff]
    %v1788 = vld [vmem:[#allocation2 + $0xc8] sm:$0xff]
    %v1789 = vld [vmem:[#allocation2 + $0x128] sm:$0xff]
    %v1790 = vld [vmem:[#allocation2 + $0x188] sm:$0xff]
    %v1791 = vld [vmem:[#allocation2 + $0x1e8] sm:$0xff]
    %v1792 = vld [vmem:[#allocation2 + $0x248] sm:$0x3]
    %v1793 = vld [vmem:[#allocation2 + $0x10] sm:$0xfc]
    %v1794 = vld [vmem:[#allocation2 + $0x70] sm:$0xff]
    %v1795 = vld [vmem:[#allocation2 + $0xd0] sm:$0xff]
    %v1796 = vld [vmem:[#allocation2 + $0x130] sm:$0xff]
    %v1797 = vld [vmem:[#allocation2 + $0x190] sm:$0xff]
    %v1798 = vld [vmem:[#allocation2 + $0x1f0] sm:$0xff]
    %v1799 = vld [vmem:[#allocation2 + $0x250] sm:$0xf]
    %v1800 = vmul.f32 %v751, %v1786
    %v1801 = vmul.f32 %v756, %v1787
    %v1802 = vmul.f32 %v761, %v1788
    %v1803 = vmul.f32 %v766, %v1789
    %v1804 = vmul.f32 %v771, %v1790
    %v1805 = vmul.f32 %v776, %v1791
    %v1806 = vmul.f32 %v781, %v1792
    %v1807 = vadd.f32 %v1544, %v1800
    %v1808 = vadd.f32 %v1550, %v1801
    %v1809 = vadd.f32 %v1556, %v1802
    %v1810 = vadd.f32 %v1562, %v1803
    %v1811 = vadd.f32 %v1568, %v1804
    %v1812 = vadd.f32 %v1574, %v1805
    %v1813 = vadd.f32 %v1580, %v1806
    %v1821 = vrot.slane %v1793, 2
    %v1822 = vrot.slane %v1794, 2
    %v1823 = vsel %vm839, %v1821, %v1822
    %v1824 = vrot.slane %v1795, 2
    %v1825 = vsel %vm839, %v1822, %v1824
    %v1826 = vrot.slane %v1796, 2
    %v1827 = vsel %vm839, %v1824, %v1826
    %v1828 = vrot.slane %v1797, 2
    %v1829 = vsel %vm839, %v1826, %v1828
    %v1830 = vrot.slane %v1798, 2
    %v1831 = vsel %vm839, %v1828, %v1830
    %v1832 = vrot.slane %v1799, 2
    %v1833 = vsel %vm839, %v1830, %v1832
    %v1841 = vmul.f32 %v800, %v1823
    %v1842 = vmul.f32 %v805, %v1825
    %v1843 = vmul.f32 %v810, %v1827
    %v1844 = vmul.f32 %v815, %v1829
    %v1845 = vmul.f32 %v820, %v1831
    %v1846 = vmul.f32 %v825, %v1833
    %v1847 = vmul.f32 %v830, %v1832
    %v1848 = vadd.f32 %v1807, %v1841
    %v1849 = vadd.f32 %v1808, %v1842
    %v1850 = vadd.f32 %v1809, %v1843
    %v1851 = vadd.f32 %v1810, %v1844
    %v1852 = vadd.f32 %v1811, %v1845
    %v1853 = vadd.f32 %v1812, %v1846
    %v1854 = vadd.f32 %v1813, %v1847
    %vm1855 = vcmask 818176
    %v1856 = vsel %vm1855, %v1848, 0.0
    %v1857 = vsel %vm1855, %v1849, 0.0
    %v1858 = vadd.f32 %v1856, %v1857
    %v1859 = vsel %vm1855, %v1850, 0.0
    %v1860 = vadd.f32 %v1858, %v1859
    %v1861 = vsel %vm1855, %v1851, 0.0
    %v1862 = vadd.f32 %v1860, %v1861
    %v1863 = vsel %vm1855, %v1852, 0.0
    %v1864 = vadd.f32 %v1862, %v1863
    %v1865 = vsel %vm1855, %v1853, 0.0
    %v1866 = vadd.f32 %v1864, %v1865
    %vm1867 = vcmask 812032
    %v1868 = vsel %vm1867, %v1854, 0.0
    %v1869 = vadd.f32 %v1866, %v1868
    %v1870 = vrot.slane %v1869, 4
    %v1871 = vadd.f32 %v1869, %v1870
    %v1872 = vrot.slane %v1871, 2
    %v1873 = vadd.f32 %v1871, %v1872
    %v1874 = vrot.slane %v1873, 1
    %v1875 = vadd.f32 %v1873, %v1874
    %v1876 = vmul.f32 %v1875, %v1337
    %v1877 = vmul.f32 %v1848, %v1848
    %v1878 = vmul.f32 %v1849, %v1849
    %v1879 = vmul.f32 %v1850, %v1850
    %v1880 = vmul.f32 %v1851, %v1851
    %v1881 = vmul.f32 %v1852, %v1852
    %v1882 = vmul.f32 %v1853, %v1853
    %v1883 = vmul.f32 %v1854, %v1854
    %v1884 = vsel %vm1855, %v1877, 0.0
    %v1885 = vsel %vm1855, %v1878, 0.0
    %v1886 = vadd.f32 %v1884, %v1885
    %v1887 = vsel %vm1855, %v1879, 0.0
    %v1888 = vadd.f32 %v1886, %v1887
    %v1889 = vsel %vm1855, %v1880, 0.0
    %v1890 = vadd.f32 %v1888, %v1889
    %v1891 = vsel %vm1855, %v1881, 0.0
    %v1892 = vadd.f32 %v1890, %v1891
    %v1893 = vsel %vm1855, %v1882, 0.0
    %v1894 = vadd.f32 %v1892, %v1893
    %v1895 = vsel %vm1867, %v1883, 0.0
    %v1896 = vadd.f32 %v1894, %v1895
    %v1897 = vrot.slane %v1896, 4
    %v1898 = vadd.f32 %v1896, %v1897
    %v1899 = vrot.slane %v1898, 2
    %v1900 = vadd.f32 %v1898, %v1899
    %v1901 = vrot.slane %v1900, 1
    %v1902 = vadd.f32 %v1900, %v1901
    %v1903 = vmul.f32 %v1902, %v1337
    %v1904 = vmul.f32 %v1876, %v1876
    %v1905 = vsub.f32 %v1903, %v1904
    %v1906 = vsub.f32 %v1848, %v1876
    %v1907 = vsub.f32 %v1849, %v1876
    %v1908 = vsub.f32 %v1850, %v1876
    %v1909 = vsub.f32 %v1851, %v1876
    %v1910 = vsub.f32 %v1852, %v1876
    %v1911 = vsub.f32 %v1853, %v1876
    %v1912 = vsub.f32 %v1854, %v1876
    %v1913 = vadd.f32 %v1905, 1e-05
    %v1914 = vrsqrt.pop %v1913
    %v1915 = vld [vmem:[#allocation15] sm:$0x1]
    %v1916 = vmul.f32 %v1914, %v1915
    %v1917 = vlaneseq
    %v1918 = vshrl.u32 %v1917, 7
    %v1919 = vsub.s32 0, %v1918
    %v1920 = vrot.slane %v1916, %v1919
    %v1921 = vmul.f32 %v1906, %v1920
    %v1922 = vmul.f32 %v1907, %v1920
    %v1923 = vmul.f32 %v1908, %v1920
    %v1924 = vmul.f32 %v1909, %v1920
    %v1925 = vmul.f32 %v1910, %v1920
    %v1926 = vmul.f32 %v1911, %v1920
    %v1927 = vmul.f32 %v1912, %v1920
    %v1928 = vld [vmem:[#allocation17] sm:$0x1]
    %v1930 = vlaneseq
    %v1931 = vshrl.u32 %v1930, 7
    %v1932 = vsub.s32 0, %v1931
    %v1933 = vrot.slane %v1928, %v1932
    %v1935 = vadd.f32 %v1921, %v1933
    %v1936 = vadd.f32 %v1922, %v1933
    %v1937 = vadd.f32 %v1923, %v1933
    %v1938 = vadd.f32 %v1924, %v1933
    %v1939 = vadd.f32 %v1925, %v1933
    %v1940 = vadd.f32 %v1926, %v1933
    %v1941 = vadd.f32 %v1927, %v1933
    %vm1942 = vcmp.gt.f32.partialorder %v1935, 0.0
    %vm1943 = vcmp.gt.f32.partialorder %v1936, 0.0
    %vm1944 = vcmp.gt.f32.partialorder %v1937, 0.0
    %vm1945 = vcmp.gt.f32.partialorder %v1938, 0.0
    %vm1946 = vcmp.gt.f32.partialorder %v1939, 0.0
    %vm1947 = vcmp.gt.f32.partialorder %v1940, 0.0
    %vm1948 = vcmp.gt.f32.partialorder %v1941, 0.0
    %v1949 = vmul.f32 %v1935, 0.2
    %v1950 = vmul.f32 %v1936, 0.2
    %v1951 = vmul.f32 %v1937, 0.2
    %v1952 = vmul.f32 %v1938, 0.2
    %v1953 = vmul.f32 %v1939, 0.2
    %v1954 = vmul.f32 %v1940, 0.2
    %v1955 = vmul.f32 %v1941, 0.2
    %v1956 = vsel %vm1942, %v1935, %v1949
    %v1957 = vsel %vm1943, %v1936, %v1950
    %v1958 = vsel %vm1944, %v1937, %v1951
    %v1959 = vsel %vm1945, %v1938, %v1952
    %v1960 = vsel %vm1946, %v1939, %v1953
    %v1961 = vsel %vm1947, %v1940, %v1954
    %v1962 = vsel %vm1948, %v1941, %v1955
    %v1963 = vld [vmem:[#allocation9] sm:$0xff]
    %v1964 = vld [vmem:[#allocation9 + $0x8] sm:$0xff]
    %v1965 = vld [vmem:[#allocation9 + $0x10] sm:$0xff]
    %v1966 = vld [vmem:[#allocation9 + $0x18] sm:$0xff]
    %v1967 = vld [vmem:[#allocation9 + $0x20] sm:$0xff]
    %v1968 = vld [vmem:[#allocation9 + $0x28] sm:$0xff]
    %v1969 = vld [vmem:[#allocation9 + $0x30] sm:$0xff]
    %v1970 = vld [vmem:[#allocation9 + $0x38] sm:$0xff]
    %v1971 = vld [vmem:[#allocation9 + $0x40] sm:$0xff]
    %v1972 = vld [vmem:[#allocation9 + $0x48] sm:$0xff]
    %v1973 = vld [vmem:[#allocation9 + $0x50] sm:$0xff]
    %v1974 = vld [vmem:[#allocation9 + $0x58] sm:$0xff]
    %v1975 = vld [vmem:[#allocation9 + $0x60] sm:$0xff]
    %v1976 = vld [vmem:[#allocation9 + $0x68] sm:$0xff]
    %v1977 = vld [vmem:[#allocation9 + $0x70] sm:$0xff]
    %v1978 = vld [vmem:[#allocation9 + $0x78] sm:$0xff]
    %v1979 = vld [vmem:[#allocation9 + $0x80] sm:$0xff]
    %v1980 = vld [vmem:[#allocation9 + $0x88] sm:$0xff]
    %v1981 = vld [vmem:[#allocation9 + $0x90] sm:$0xff]
    %v1982 = vld [vmem:[#allocation9 + $0x98] sm:$0xff]
    %v1983 = vld [vmem:[#allocation9 + $0xa0] sm:$0xff]
    %v1984 = vld [vmem:[#allocation9 + $0xa8] sm:$0xff]
    %v1985 = vld [vmem:[#allocation9 + $0xb0] sm:$0xff]
    %v1986 = vld [vmem:[#allocation9 + $0xb8] sm:$0xff]
    %v1987 = vld [vmem:[#allocation9 + $0xc0] sm:$0xff]
    %v1988 = vld [vmem:[#allocation9 + $0xc8] sm:$0xff]
    %v1989 = vld [vmem:[#allocation9 + $0xd0] sm:$0xff]
    %v1990 = vld [vmem:[#allocation9 + $0xd8] sm:$0xff]
    %v1991 = vld [vmem:[#allocation9 + $0xe0] sm:$0xff]
    %v1992 = vld [vmem:[#allocation9 + $0xe8] sm:$0xff]
    %v1993 = vld [vmem:[#allocation9 + $0xf0] sm:$0xff]
    %v1994 = vld [vmem:[#allocation9 + $0xf8] sm:$0xff]
    %v1995 = vld [vmem:[#allocation9 + $0x100] sm:$0xff]
    %v1996 = vld [vmem:[#allocation9 + $0x108] sm:$0xff]
    %v1997 = vld [vmem:[#allocation9 + $0x110] sm:$0xff]
    %v1998 = vld [vmem:[#allocation9 + $0x118] sm:$0xff]
    %v1999 = vld [vmem:[#allocation9 + $0x120] sm:$0xff]
    %v2000 = vld [vmem:[#allocation9 + $0x128] sm:$0xff]
    %v2001 = vld [vmem:[#allocation9 + $0x130] sm:$0xff]
    %v2002 = vld [vmem:[#allocation9 + $0x138] sm:$0xff]
    %v2003 = vld [vmem:[#allocation9 + $0x140] sm:$0xff]
    %v2004 = vld [vmem:[#allocation9 + $0x148] sm:$0xff]
    %v2005 = vld [vmem:[#allocation9 + $0x150] sm:$0xff]
    %v2006 = vld [vmem:[#allocation9 + $0x158] sm:$0xff]
    %v2007 = vld [vmem:[#allocation9 + $0x160] sm:$0xff]
    %v2008 = vld [vmem:[#allocation9 + $0x168] sm:$0xff]
    %v2009 = vld [vmem:[#allocation9 + $0x170] sm:$0xff]
    %v2010 = vld [vmem:[#allocation9 + $0x178] sm:$0xff]
    %v2011 = vld [vmem:[#allocation9 + $0x180] sm:$0xff]
    %v2012 = vld [vmem:[#allocation9 + $0x188] sm:$0xff]
    %v2013 = vld [vmem:[#allocation9 + $0x190] sm:$0xff]
    %v2014 = vld [vmem:[#allocation9 + $0x198] sm:$0xff]
    %v2015 = vld [vmem:[#allocation9 + $0x1a0] sm:$0xff]
    %v2016 = vld [vmem:[#allocation9 + $0x1a8] sm:$0xff]
    %v2017 = vld [vmem:[#allocation9 + $0x1b0] sm:$0xff]
    %v2018 = vld [vmem:[#allocation9 + $0x1b8] sm:$0xff]
    %v2019 = vld [vmem:[#allocation9 + $0x1c0] sm:$0xff]
    %v2020 = vld [vmem:[#allocation9 + $0x1c8] sm:$0xff]
    %v2021 = vld [vmem:[#allocation9 + $0x1d0] sm:$0xff]
    %v2022 = vld [vmem:[#allocation9 + $0x1d8] sm:$0xff]
    %v2023 = vld [vmem:[#allocation9 + $0x1e0] sm:$0xff]
    %v2024 = vld [vmem:[#allocation9 + $0x1e8] sm:$0xff]
    %v2025 = vld [vmem:[#allocation9 + $0x1f0] sm:$0xff]
    %v2026 = vld [vmem:[#allocation9 + $0x1f8] sm:$0xff]
    %v2027 = vld [vmem:[#allocation9 + $0x200] sm:$0xff]
    %v2028 = vld [vmem:[#allocation9 + $0x208] sm:$0xff]
    %v2029 = vld [vmem:[#allocation9 + $0x210] sm:$0xff]
    %v2030 = vld [vmem:[#allocation9 + $0x218] sm:$0xff]
    %v2031 = vld [vmem:[#allocation9 + $0x220] sm:$0xff]
    %v2032 = vld [vmem:[#allocation9 + $0x228] sm:$0xff]
    %v2033 = vld [vmem:[#allocation9 + $0x230] sm:$0xff]
    %v2034 = vld [vmem:[#allocation9 + $0x238] sm:$0xff]
    %v2035 = vld [vmem:[#allocation9 + $0x240] sm:$0xf]
    %v2036 = vld [vmem:[#allocation9 + $0x248] sm:$0xf]
    %v2037 = vld [vmem:[#allocation9 + $0x250] sm:$0xf]
    %v2038 = vld [vmem:[#allocation9 + $0x258] sm:$0xf]
    %v2039 = vld [vmem:[#allocation9 + $0x260] sm:$0xf]
    %v2040 = vld [vmem:[#allocation9 + $0x268] sm:$0xf]
    %v2042 = vsel %vm1855, %v1956, 0
    %v2045 = vsel %vm1855, %v1957, 0
    %v2048 = vsel %vm1855, %v1958, 0
    %v2051 = vsel %vm1855, %v1959, 0
    %v2054 = vsel %vm1855, %v1960, 0
    %v2057 = vsel %vm1855, %v1961, 0
    %v2060 = vsel %vm1855, %v1962, 0
    %vm2062 = vcmask 1043456
    %v2064 = vsel %vm2062, %v2035, 0
    %v2067 = vsel %vm2062, %v2036, 0
    %v2070 = vsel %vm2062, %v2037, 0
    %v2073 = vsel %vm2062, %v2038, 0
    %v2076 = vsel %vm2062, %v2039, 0
    %v2079 = vsel %vm2062, %v2040, 0
    %2081 = vmatprep.subr.mxu0 %v1964
    %2082 = vmatpush1.msra.mxu0 %v1963
    %2083 = vmatprep.subr.mxu0 %v1970
    %2084 = vmatpush1.msra.mxu0 %v1969
    %2085 = vmatprep.subr.mxu0 %v1976
    %2086 = vmatpush1.msra.mxu0 %v1975
    %2087 = vmatprep.subr.mxu0 %v1982
    %2088 = vmatpush1.msra.mxu0 %v1981
    %2089 = vmatprep.subr.mxu0 %v1988
    %2090 = vmatpush1.msra.mxu0 %v1987
    %2091 = vmatprep.subr.mxu0 %v1994
    %2092 = vmatpush1.msra.mxu0 %v1993
    %2093 = vmatprep.subr.mxu0 %v2000
    %2094 = vmatpush1.msra.mxu0 %v1999
    %2095 = vmatprep.subr.mxu0 %v2006
    %2096 = vmatpush1.msra.mxu0 %v2005
    %2097 = vmatprep.subr.mxu0 %v2012
    %2098 = vmatpush1.msra.mxu0 %v2011
    %2099 = vmatprep.subr.mxu0 %v2018
    %2100 = vmatpush1.msra.mxu0 %v2017
    %2101 = vmatprep.subr.mxu0 %v2024
    %2102 = vmatpush1.msra.mxu0 %v2023
    %2103 = vmatprep.subr.mxu0 %v2030
    %2104 = vmatpush1.msra.mxu0 %v2029
    %2105 = vmatprep.subr.mxu0 %v2067
    %2106 = vmatpush1.msra.mxu0 %v2064
    %2107 = vmatprep.subr.mxu0 0.0
    %2108 = vmatpush1.msra.mxu0 0.0
    %2109 = vmatprep.subr.mxu0 0.0
    %2110 = vmatpush1.msra.mxu0 0.0
    %2111 = vmatprep.subr.mxu0 0.0
    %2112 = vmatpush1.msra.mxu0 0.0
    %2113 = vmatprep.subr.mxu0 0.0
    %2114 = vmatpush1.msra.mxu0 0.0
    %2115 = vmatprep.subr.mxu0 0.0
    %2116 = vmatpush1.msra.mxu0 0.0
    %2117 = vmatprep.subr.mxu0 0.0
    %2118 = vmatpush1.msra.mxu0 0.0
    %2119 = vmatprep.subr.mxu0 0.0
    %2120 = vmatpush1.msra.mxu0 0.0
    %2121 = vmatprep.subr.mxu0 0.0
    %2122 = vmatpush1.msra.mxu0 0.0
    %2123 = vmatprep.subr.mxu0 0.0
    %2124 = vmatpush1.msra.mxu0 0.0
    %2125 = vmatprep.subr.mxu0 0.0
    %2126 = vmatpush1.msra.mxu0 0.0
    %2127 = vmatprep.subr.mxu0 0.0
    %2128 = vmatpush1.msra.mxu0 0.0
    %2129 = vmatprep.subr.mxu0 0.0
    %2130 = vmatpush1.msra.mxu0 0.0
    %2131 = vmatprep.subr.mxu0 0.0
    %2132 = vmatpush1.msra.mxu0 0.0
    %2133 = vmatprep.subr.mxu0 0.0
    %2134 = vmatpush1.msra.mxu0 0.0
    %2135 = vmatprep.subr.mxu0 0.0
    %2136 = vmatpush1.msra.mxu0 0.0
    %2137 = vmatprep.subr.mxu0 0.0
    %2138 = vmatpush1.msra.mxu0 0.0
    %2139 = vmatprep.subr.mxu0 0.0
    %2140 = vmatpush1.msra.mxu0 0.0
    %2141 = vmatprep.subr.mxu0 0.0
    %2142 = vmatpush1.msra.mxu0 0.0
    %2143 = vmatprep.subr.mxu0 0.0
    %2144 = vmatpush1.msra.mxu0 0.0
    %2145 = vmatprep.mubr.f32.mxu0 0.0
    %2146 = vmatmul.mubr.f32.gmra.mrb[0].mxu0 %v2042
    %v2147 = vpop.f32.mrb[0].mxu0
    %v2148 = vadd.f32 0.0, %v2147
    %v2149 = vpop.f32.mrb[0].mxu0
    %v2150 = vadd.f32 0.0, %v2149
    %2151 = vmatprep.mubr.f32.mxu0 0.0
    %2152 = vmatmul.mubr.f32.gmra.mrb[0].mxu0 %v2045
    %v2153 = vpop.f32.mrb[0].mxu0
    %v2154 = vadd.f32 0.0, %v2153
    %v2155 = vpop.f32.mrb[0].mxu0
    %v2156 = vadd.f32 0.0, %v2155
    %2157 = vmatprep.mubr.f32.mxu0 0.0
    %2158 = vmatmul.mubr.f32.gmra.mrb[0].mxu0 %v2048
    %v2159 = vpop.f32.mrb[0].mxu0
    %v2160 = vadd.f32 0.0, %v2159
    %v2161 = vpop.f32.mrb[0].mxu0
    %v2162 = vadd.f32 0.0, %v2161
    %2163 = vmatprep.mubr.f32.mxu0 0.0
    %2164 = vmatmul.mubr.f32.gmra.mrb[0].mxu0 %v2051
    %v2165 = vpop.f32.mrb[0].mxu0
    %v2166 = vadd.f32 0.0, %v2165
    %v2167 = vpop.f32.mrb[0].mxu0
    %v2168 = vadd.f32 0.0, %v2167
    %2169 = vmatprep.mubr.f32.mxu0 0.0
    %2170 = vmatmul.mubr.f32.gmra.mrb[0].mxu0 %v2054
    %v2171 = vpop.f32.mrb[0].mxu0
    %v2172 = vadd.f32 0.0, %v2171
    %v2173 = vpop.f32.mrb[0].mxu0
    %v2174 = vadd.f32 0.0, %v2173
    %2175 = vmatprep.mubr.f32.mxu0 0.0
    %2176 = vmatmul.mubr.f32.gmra.mrb[0].mxu0 %v2057
    %v2177 = vpop.f32.mrb[0].mxu0
    %v2178 = vadd.f32 0.0, %v2177
    %v2179 = vpop.f32.mrb[0].mxu0
    %v2180 = vadd.f32 0.0, %v2179
    %2181 = vmatprep.mubr.f32.mxu0 0.0
    %2182 = vmatmul.mubr.f32.gmra.mrb[0].mxu0 %v2060
    %v2183 = vpop.f32.mrb[0].mxu0
    %v2184 = vadd.f32 0.0, %v2183
    %v2185 = vpop.f32.mrb[0].mxu0
    %v2186 = vadd.f32 0.0, %v2185
    %2187 = vdwg.mxu0
    %2188 = vmatprep.subr.mxu0 %v1966
    %2189 = vmatpush1.msra.mxu0 %v1965
    %2190 = vmatprep.subr.mxu0 %v1972
    %2191 = vmatpush1.msra.mxu0 %v1971
    %2192 = vmatprep.subr.mxu0 %v1978
    %2193 = vmatpush1.msra.mxu0 %v1977
    %2194 = vmatprep.subr.mxu0 %v1984
    %2195 = vmatpush1.msra.mxu0 %v1983
    %2196 = vmatprep.subr.mxu0 %v1990
    %2197 = vmatpush1.msra.mxu0 %v1989
    %2198 = vmatprep.subr.mxu0 %v1996
    %2199 = vmatpush1.msra.mxu0 %v1995
    %2200 = vmatprep.subr.mxu0 %v2002
    %2201 = vmatpush1.msra.mxu0 %v2001
    %2202 = vmatprep.subr.mxu0 %v2008
    %2203 = vmatpush1.msra.mxu0 %v2007
    %2204 = vmatprep.subr.mxu0 %v2014
    %2205 = vmatpush1.msra.mxu0 %v2013
    %2206 = vmatprep.subr.mxu0 %v2020
    %2207 = vmatpush1.msra.mxu0 %v2019
    %2208 = vmatprep.subr.mxu0 %v2026
    %2209 = vmatpush1.msra.mxu0 %v2025
    %2210 = vmatprep.subr.mxu0 %v2032
    %2211 = vmatpush1.msra.mxu0 %v2031
    %2212 = vmatprep.subr.mxu0 %v2073
    %2213 = vmatpush1.msra.mxu0 %v2070
    %2214 = vmatprep.subr.mxu0 0.0
    %2215 = vmatpush1.msra.mxu0 0.0
    %2216 = vmatprep.subr.mxu0 0.0
    %2217 = vmatpush1.msra.mxu0 0.0
    %2218 = vmatprep.subr.mxu0 0.0
    %2219 = vmatpush1.msra.mxu0 0.0
    %2220 = vmatprep.subr.mxu0 0.0
    %2221 = vmatpush1.msra.mxu0 0.0
    %2222 = vmatprep.subr.mxu0 0.0
    %2223 = vmatpush1.msra.mxu0 0.0
    %2224 = vmatprep.subr.mxu0 0.0
    %2225 = vmatpush1.msra.mxu0 0.0
    %2226 = vmatprep.subr.mxu0 0.0
    %2227 = vmatpush1.msra.mxu0 0.0
    %2228 = vmatprep.subr.mxu0 0.0
    %2229 = vmatpush1.msra.mxu0 0.0
    %2230 = vmatprep.subr.mxu0 0.0
    %2231 = vmatpush1.msra.mxu0 0.0
    %2232 = vmatprep.subr.mxu0 0.0
    %2233 = vmatpush1.msra.mxu0 0.0
    %2234 = vmatprep.subr.mxu0 0.0
    %2235 = vmatpush1.msra.mxu0 0.0
    %2236 = vmatprep.subr.mxu0 0.0
    %2237 = vmatpush1.msra.mxu0 0.0
    %2238 = vmatprep.subr.mxu0 0.0
    %2239 = vmatpush1.msra.mxu0 0.0
    %2240 = vmatprep.subr.mxu0 0.0
    %2241 = vmatpush1.msra.mxu0 0.0
    %2242 = vmatprep.subr.mxu0 0.0
    %2243 = vmatpush1.msra.mxu0 0.0
    %2244 = vmatprep.subr.mxu0 0.0
    %2245 = vmatpush1.msra.mxu0 0.0
    %2246 = vmatprep.subr.mxu0 0.0
    %2247 = vmatpush1.msra.mxu0 0.0
    %2248 = vmatprep.subr.mxu0 0.0
    %2249 = vmatpush1.msra.mxu0 0.0
    %2250 = vmatprep.subr.mxu0 0.0
    %2251 = vmatpush1.msra.mxu0 0.0
    %2252 = vmatprep.mubr.f32.mxu0 0.0
    %2253 = vmatmul.mubr.f32.gmra.mrb[0].mxu0 %v2042
    %v2254 = vpop.f32.mrb[0].mxu0
    %v2255 = vadd.f32 0.0, %v2254
    %v2256 = vpop.f32.mrb[0].mxu0
    %v2257 = vadd.f32 0.0, %v2256
    %2258 = vmatprep.mubr.f32.mxu0 0.0
    %2259 = vmatmul.mubr.f32.gmra.mrb[0].mxu0 %v2045
    %v2260 = vpop.f32.mrb[0].mxu0
    %v2261 = vadd.f32 0.0, %v2260
    %v2262 = vpop.f32.mrb[0].mxu0
    %v2263 = vadd.f32 0.0, %v2262
    %2264 = vmatprep.mubr.f32.mxu0 0.0
    %2265 = vmatmul.mubr.f32.gmra.mrb[0].mxu0 %v2048
    %v2266 = vpop.f32.mrb[0].mxu0
    %v2267 = vadd.f32 0.0, %v2266
    %v2268 = vpop.f32.mrb[0].mxu0
    %v2269 = vadd.f32 0.0, %v2268
    %2270 = vmatprep.mubr.f32.mxu0 0.0
    %2271 = vmatmul.mubr.f32.gmra.mrb[0].mxu0 %v2051
    %v2272 = vpop.f32.mrb[0].mxu0
    %v2273 = vadd.f32 0.0, %v2272
    %v2274 = vpop.f32.mrb[0].mxu0
    %v2275 = vadd.f32 0.0, %v2274
    %2276 = vmatprep.mubr.f32.mxu0 0.0
    %2277 = vmatmul.mubr.f32.gmra.mrb[0].mxu0 %v2054
    %v2278 = vpop.f32.mrb[0].mxu0
    %v2279 = vadd.f32 0.0, %v2278
    %v2280 = vpop.f32.mrb[0].mxu0
    %v2281 = vadd.f32 0.0, %v2280
    %2282 = vmatprep.mubr.f32.mxu0 0.0
    %2283 = vmatmul.mubr.f32.gmra.mrb[0].mxu0 %v2057
    %v2284 = vpop.f32.mrb[0].mxu0
    %v2285 = vadd.f32 0.0, %v2284
    %v2286 = vpop.f32.mrb[0].mxu0
    %v2287 = vadd.f32 0.0, %v2286
    %2288 = vmatprep.mubr.f32.mxu0 0.0
    %2289 = vmatmul.mubr.f32.gmra.mrb[0].mxu0 %v2060
    %v2290 = vpop.f32.mrb[0].mxu0
    %v2291 = vadd.f32 0.0, %v2290
    %v2292 = vpop.f32.mrb[0].mxu0
    %v2293 = vadd.f32 0.0, %v2292
    %2294 = vdwg.mxu0
    %2295 = vmatprep.subr.mxu0 %v1968
    %2296 = vmatpush1.msra.mxu0 %v1967
    %2297 = vmatprep.subr.mxu0 %v1974
    %2298 = vmatpush1.msra.mxu0 %v1973
    %2299 = vmatprep.subr.mxu0 %v1980
    %2300 = vmatpush1.msra.mxu0 %v1979
    %2301 = vmatprep.subr.mxu0 %v1986
    %2302 = vmatpush1.msra.mxu0 %v1985
    %2303 = vmatprep.subr.mxu0 %v1992
    %2304 = vmatpush1.msra.mxu0 %v1991
    %2305 = vmatprep.subr.mxu0 %v1998
    %2306 = vmatpush1.msra.mxu0 %v1997
    %2307 = vmatprep.subr.mxu0 %v2004
    %2308 = vmatpush1.msra.mxu0 %v2003
    %2309 = vmatprep.subr.mxu0 %v2010
    %2310 = vmatpush1.msra.mxu0 %v2009
    %2311 = vmatprep.subr.mxu0 %v2016
    %2312 = vmatpush1.msra.mxu0 %v2015
    %2313 = vmatprep.subr.mxu0 %v2022
    %2314 = vmatpush1.msra.mxu0 %v2021
    %2315 = vmatprep.subr.mxu0 %v2028
    %2316 = vmatpush1.msra.mxu0 %v2027
    %2317 = vmatprep.subr.mxu0 %v2034
    %2318 = vmatpush1.msra.mxu0 %v2033
    %2319 = vmatprep.subr.mxu0 %v2079
    %2320 = vmatpush1.msra.mxu0 %v2076
    %2321 = vmatprep.subr.mxu0 0.0
    %2322 = vmatpush1.msra.mxu0 0.0
    %2323 = vmatprep.subr.mxu0 0.0
    %2324 = vmatpush1.msra.mxu0 0.0
    %2325 = vmatprep.subr.mxu0 0.0
    %2326 = vmatpush1.msra.mxu0 0.0
    %2327 = vmatprep.subr.mxu0 0.0
    %2328 = vmatpush1.msra.mxu0 0.0
    %2329 = vmatprep.subr.mxu0 0.0
    %2330 = vmatpush1.msra.mxu0 0.0
    %2331 = vmatprep.subr.mxu0 0.0
    %2332 = vmatpush1.msra.mxu0 0.0
    %2333 = vmatprep.subr.mxu0 0.0
    %2334 = vmatpush1.msra.mxu0 0.0
    %2335 = vmatprep.subr.mxu0 0.0
    %2336 = vmatpush1.msra.mxu0 0.0
    %2337 = vmatprep.subr.mxu0 0.0
    %2338 = vmatpush1.msra.mxu0 0.0
    %2339 = vmatprep.subr.mxu0 0.0
    %2340 = vmatpush1.msra.mxu0 0.0
    %2341 = vmatprep.subr.mxu0 0.0
    %2342 = vmatpush1.msra.mxu0 0.0
    %2343 = vmatprep.subr.mxu0 0.0
    %2344 = vmatpush1.msra.mxu0 0.0
    %2345 = vmatprep.subr.mxu0 0.0
    %2346 = vmatpush1.msra.mxu0 0.0
    %2347 = vmatprep.subr.mxu0 0.0
    %2348 = vmatpush1.msra.mxu0 0.0
    %2349 = vmatprep.subr.mxu0 0.0
    %2350 = vmatpush1.msra.mxu0 0.0
    %2351 = vmatprep.subr.mxu0 0.0
    %2352 = vmatpush1.msra.mxu0 0.0
    %2353 = vmatprep.subr.mxu0 0.0
    %2354 = vmatpush1.msra.mxu0 0.0
    %2355 = vmatprep.subr.mxu0 0.0
    %2356 = vmatpush1.msra.mxu0 0.0
    %2357 = vmatprep.subr.mxu0 0.0
    %2358 = vmatpush1.msra.mxu0 0.0
    %2359 = vmatprep.mubr.f32.mxu0 0.0
    %2360 = vmatmul.mubr.f32.gmra.mrb[0].mxu0 %v2042
    %v2361 = vpop.f32.mrb[0].mxu0
    %v2362 = vadd.f32 0.0, %v2361
    %v2363 = vpop.f32.mrb[0].mxu0
    %v2364 = vadd.f32 0.0, %v2363
    %2365 = vmatprep.mubr.f32.mxu0 0.0
    %2366 = vmatmul.mubr.f32.gmra.mrb[0].mxu0 %v2045
    %v2367 = vpop.f32.mrb[0].mxu0
    %v2368 = vadd.f32 0.0, %v2367
    %v2369 = vpop.f32.mrb[0].mxu0
    %v2370 = vadd.f32 0.0, %v2369
    %2371 = vmatprep.mubr.f32.mxu0 0.0
    %2372 = vmatmul.mubr.f32.gmra.mrb[0].mxu0 %v2048
    %v2373 = vpop.f32.mrb[0].mxu0
    %v2374 = vadd.f32 0.0, %v2373
    %v2375 = vpop.f32.mrb[0].mxu0
    %v2376 = vadd.f32 0.0, %v2375
    %2377 = vmatprep.mubr.f32.mxu0 0.0
    %2378 = vmatmul.mubr.f32.gmra.mrb[0].mxu0 %v2051
    %v2379 = vpop.f32.mrb[0].mxu0
    %v2380 = vadd.f32 0.0, %v2379
    %v2381 = vpop.f32.mrb[0].mxu0
    %v2382 = vadd.f32 0.0, %v2381
    %2383 = vmatprep.mubr.f32.mxu0 0.0
    %2384 = vmatmul.mubr.f32.gmra.mrb[0].mxu0 %v2054
    %v2385 = vpop.f32.mrb[0].mxu0
    %v2386 = vadd.f32 0.0, %v2385
    %v2387 = vpop.f32.mrb[0].mxu0
    %v2388 = vadd.f32 0.0, %v2387
    %2389 = vmatprep.mubr.f32.mxu0 0.0
    %2390 = vmatmul.mubr.f32.gmra.mrb[0].mxu0 %v2057
    %v2391 = vpop.f32.mrb[0].mxu0
    %v2392 = vadd.f32 0.0, %v2391
    %v2393 = vpop.f32.mrb[0].mxu0
    %v2394 = vadd.f32 0.0, %v2393
    %2395 = vmatprep.mubr.f32.mxu0 0.0
    %2396 = vmatmul.mubr.f32.gmra.mrb[0].mxu0 %v2060
    %v2397 = vpop.f32.mrb[0].mxu0
    %v2398 = vadd.f32 0.0, %v2397
    %v2399 = vpop.f32.mrb[0].mxu0
    %v2400 = vadd.f32 0.0, %v2399
    %2401 = vdwg.mxu0
    %v2444 = vrot.slane %v2148, 7
    %v2445 = vrot.slane %v2150, 7
    %v2446 = vrot.slane %v2255, 7
    %v2447 = vrot.slane %v2257, 7
    %v2448 = vrot.slane %v2362, 7
    %v2449 = vrot.slane %v2364, 7
    %v2450 = vrot.slane %v2154, 7
    %v2451 = vsel %vm418, %v2444, %v2450
    %v2452 = vrot.slane %v2156, 7
    %v2453 = vsel %vm418, %v2445, %v2452
    %v2454 = vrot.slane %v2261, 7
    %v2455 = vsel %vm418, %v2446, %v2454
    %v2456 = vrot.slane %v2263, 7
    %v2457 = vsel %vm418, %v2447, %v2456
    %v2458 = vrot.slane %v2368, 7
    %v2459 = vsel %vm418, %v2448, %v2458
    %v2460 = vrot.slane %v2370, 7
    %v2461 = vsel %vm418, %v2449, %v2460
    %v2462 = vrot.slane %v2160, 7
    %v2463 = vsel %vm418, %v2450, %v2462
    %v2464 = vrot.slane %v2162, 7
    %v2465 = vsel %vm418, %v2452, %v2464
    %v2466 = vrot.slane %v2267, 7
    %v2467 = vsel %vm418, %v2454, %v2466
    %v2468 = vrot.slane %v2269, 7
    %v2469 = vsel %vm418, %v2456, %v2468
    %v2470 = vrot.slane %v2374, 7
    %v2471 = vsel %vm418, %v2458, %v2470
    %v2472 = vrot.slane %v2376, 7
    %v2473 = vsel %vm418, %v2460, %v2472
    %v2474 = vrot.slane %v2166, 7
    %v2475 = vsel %vm418, %v2462, %v2474
    %v2476 = vrot.slane %v2168, 7
    %v2477 = vsel %vm418, %v2464, %v2476
    %v2478 = vrot.slane %v2273, 7
    %v2479 = vsel %vm418, %v2466, %v2478
    %v2480 = vrot.slane %v2275, 7
    %v2481 = vsel %vm418, %v2468, %v2480
    %v2482 = vrot.slane %v2380, 7
    %v2483 = vsel %vm418, %v2470, %v2482
    %v2484 = vrot.slane %v2382, 7
    %v2485 = vsel %vm418, %v2472, %v2484
    %v2486 = vrot.slane %v2172, 7
    %v2487 = vsel %vm418, %v2474, %v2486
    %v2488 = vrot.slane %v2174, 7
    %v2489 = vsel %vm418, %v2476, %v2488
    %v2490 = vrot.slane %v2279, 7
    %v2491 = vsel %vm418, %v2478, %v2490
    %v2492 = vrot.slane %v2281, 7
    %v2493 = vsel %vm418, %v2480, %v2492
    %v2494 = vrot.slane %v2386, 7
    %v2495 = vsel %vm418, %v2482, %v2494
    %v2496 = vrot.slane %v2388, 7
    %v2497 = vsel %vm418, %v2484, %v2496
    %v2498 = vrot.slane %v2178, 7
    %v2499 = vsel %vm418, %v2486, %v2498
    %v2500 = vrot.slane %v2180, 7
    %v2501 = vsel %vm418, %v2488, %v2500
    %v2502 = vrot.slane %v2285, 7
    %v2503 = vsel %vm418, %v2490, %v2502
    %v2504 = vrot.slane %v2287, 7
    %v2505 = vsel %vm418, %v2492, %v2504
    %v2506 = vrot.slane %v2392, 7
    %v2507 = vsel %vm418, %v2494, %v2506
    %v2508 = vrot.slane %v2394, 7
    %v2509 = vsel %vm418, %v2496, %v2508
    %v2510 = vrot.slane %v2184, 7
    %v2511 = vsel %vm418, %v2498, %v2510
    %v2512 = vrot.slane %v2186, 7
    %v2513 = vsel %vm418, %v2500, %v2512
    %v2514 = vrot.slane %v2291, 7
    %v2515 = vsel %vm418, %v2502, %v2514
    %v2516 = vrot.slane %v2293, 7
    %v2517 = vsel %vm418, %v2504, %v2516
    %v2518 = vrot.slane %v2398, 7
    %v2519 = vsel %vm418, %v2506, %v2518
    %v2520 = vrot.slane %v2400, 7
    %v2521 = vsel %vm418, %v2508, %v2520
    %2564 = vst [vmem:[#allocation2] sm:$0xfe] %v2444
    %2565 = vst [vmem:[#allocation2 + $0x8] sm:$0xfe] %v2445
    %2566 = vst [vmem:[#allocation2 + $0x10] sm:$0xfe] %v2446
    %2567 = vst [vmem:[#allocation2 + $0x18] sm:$0xfe] %v2447
    %2568 = vst [vmem:[#allocation2 + $0x20] sm:$0xfe] %v2448
    %2569 = vst [vmem:[#allocation2 + $0x28] sm:$0xfe] %v2449
    %2570 = vst [vmem:[#allocation2 + $0x60] sm:$0xff] %v2451
    %2571 = vst [vmem:[#allocation2 + $0x68] sm:$0xff] %v2453
    %2572 = vst [vmem:[#allocation2 + $0x70] sm:$0xff] %v2455
    %2573 = vst [vmem:[#allocation2 + $0x78] sm:$0xff] %v2457
    %2574 = vst [vmem:[#allocation2 + $0x80] sm:$0xff] %v2459
    %2575 = vst [vmem:[#allocation2 + $0x88] sm:$0xff] %v2461
    %2576 = vst [vmem:[#allocation2 + $0xc0] sm:$0xff] %v2463
    %2577 = vst [vmem:[#allocation2 + $0xc8] sm:$0xff] %v2465
    %2578 = vst [vmem:[#allocation2 + $0xd0] sm:$0xff] %v2467
    %2579 = vst [vmem:[#allocation2 + $0xd8] sm:$0xff] %v2469
    %2580 = vst [vmem:[#allocation2 + $0xe0] sm:$0xff] %v2471
    %2581 = vst [vmem:[#allocation2 + $0xe8] sm:$0xff] %v2473
    %2582 = vst [vmem:[#allocation2 + $0x120] sm:$0xff] %v2475
    %2583 = vst [vmem:[#allocation2 + $0x128] sm:$0xff] %v2477
    %2584 = vst [vmem:[#allocation2 + $0x130] sm:$0xff] %v2479
    %2585 = vst [vmem:[#allocation2 + $0x138] sm:$0xff] %v2481
    %2586 = vst [vmem:[#allocation2 + $0x140] sm:$0xff] %v2483
    %2587 = vst [vmem:[#allocation2 + $0x148] sm:$0xff] %v2485
    %2588 = vst [vmem:[#allocation2 + $0x180] sm:$0xff] %v2487
    %2589 = vst [vmem:[#allocation2 + $0x188] sm:$0xff] %v2489
    %2590 = vst [vmem:[#allocation2 + $0x190] sm:$0xff] %v2491
    %2591 = vst [vmem:[#allocation2 + $0x198] sm:$0xff] %v2493
    %2592 = vst [vmem:[#allocation2 + $0x1a0] sm:$0xff] %v2495
    %2593 = vst [vmem:[#allocation2 + $0x1a8] sm:$0xff] %v2497
    %2594 = vst [vmem:[#allocation2 + $0x1e0] sm:$0xff] %v2499
    %2595 = vst [vmem:[#allocation2 + $0x1e8] sm:$0xff] %v2501
    %2596 = vst [vmem:[#allocation2 + $0x1f0] sm:$0xff] %v2503
    %2597 = vst [vmem:[#allocation2 + $0x1f8] sm:$0xff] %v2505
    %2598 = vst [vmem:[#allocation2 + $0x200] sm:$0xff] %v2507
    %2599 = vst [vmem:[#allocation2 + $0x208] sm:$0xff] %v2509
    %2600 = vst [vmem:[#allocation2 + $0x240] sm:$0x7] %v2511
    %2601 = vst [vmem:[#allocation2 + $0x248] sm:$0x7] %v2513
    %2602 = vst [vmem:[#allocation2 + $0x250] sm:$0x7] %v2515
    %2603 = vst [vmem:[#allocation2 + $0x258] sm:$0x7] %v2517
    %2604 = vst [vmem:[#allocation2 + $0x260] sm:$0x7] %v2519
    %2605 = vst [vmem:[#allocation2 + $0x268] sm:$0x7] %v2521
    %v2606 = vld [vmem:[#allocation2 + $0x10] sm:$0xff]
    %v2607 = vld [vmem:[#allocation2 + $0x18] sm:$0xff]
    %v2608 = vld [vmem:[#allocation2 + $0x70] sm:$0xff]
    %v2609 = vld [vmem:[#allocation2 + $0x78] sm:$0xff]
    %v2610 = vld [vmem:[#allocation2 + $0xd0] sm:$0xff]
    %v2611 = vld [vmem:[#allocation2 + $0xd8] sm:$0xff]
    %v2612 = vld [vmem:[#allocation2 + $0x130] sm:$0xff]
    %v2613 = vld [vmem:[#allocation2 + $0x138] sm:$0xff]
    %v2614 = vld [vmem:[#allocation2 + $0x190] sm:$0xff]
    %v2615 = vld [vmem:[#allocation2 + $0x198] sm:$0xff]
    %v2616 = vld [vmem:[#allocation2 + $0x1f0] sm:$0xff]
    %v2617 = vld [vmem:[#allocation2 + $0x1f8] sm:$0xff]
    %v2618 = vld [vmem:[#allocation2 + $0x250] sm:$0x3]
    %v2619 = vld [vmem:[#allocation2 + $0x258] sm:$0x3]
    %v2620 = vld [vmem:[#allocation2 + $0x20] sm:$0xfc]
    %v2621 = vld [vmem:[#allocation2 + $0x28] sm:$0xfc]
    %v2622 = vld [vmem:[#allocation2 + $0x80] sm:$0xff]
    %v2623 = vld [vmem:[#allocation2 + $0x88] sm:$0xff]
    %v2624 = vld [vmem:[#allocation2 + $0xe0] sm:$0xff]
    %v2625 = vld [vmem:[#allocation2 + $0xe8] sm:$0xff]
    %v2626 = vld [vmem:[#allocation2 + $0x140] sm:$0xff]
    %v2627 = vld [vmem:[#allocation2 + $0x148] sm:$0xff]
    %v2628 = vld [vmem:[#allocation2 + $0x1a0] sm:$0xff]
    %v2629 = vld [vmem:[#allocation2 + $0x1a8] sm:$0xff]
    %v2630 = vld [vmem:[#allocation2 + $0x200] sm:$0xff]
    %v2631 = vld [vmem:[#allocation2 + $0x208] sm:$0xff]
    %v2632 = vld [vmem:[#allocation2 + $0x260] sm:$0xf]
    %v2633 = vld [vmem:[#allocation2 + $0x268] sm:$0xf]
    %v2634 = vmul.f32 %v751, %v2606
    %v2635 = vmul.f32 %v751, %v2607
    %v2636 = vmul.f32 %v756, %v2608
    %v2637 = vmul.f32 %v756, %v2609
    %v2638 = vmul.f32 %v761, %v2610
    %v2639 = vmul.f32 %v761, %v2611
    %v2640 = vmul.f32 %v766, %v2612
    %v2641 = vmul.f32 %v766, %v2613
    %v2642 = vmul.f32 %v771, %v2614
    %v2643 = vmul.f32 %v771, %v2615
    %v2644 = vmul.f32 %v776, %v2616
    %v2645 = vmul.f32 %v776, %v2617
    %v2646 = vmul.f32 %v781, %v2618
    %v2647 = vmul.f32 %v781, %v2619
    %v2648 = vadd.f32 %v2148, %v2634
    %v2649 = vadd.f32 %v2150, %v2635
    %v2650 = vadd.f32 %v2154, %v2636
    %v2651 = vadd.f32 %v2156, %v2637
    %v2652 = vadd.f32 %v2160, %v2638
    %v2653 = vadd.f32 %v2162, %v2639
    %v2654 = vadd.f32 %v2166, %v2640
    %v2655 = vadd.f32 %v2168, %v2641
    %v2656 = vadd.f32 %v2172, %v2642
    %v2657 = vadd.f32 %v2174, %v2643
    %v2658 = vadd.f32 %v2178, %v2644
    %v2659 = vadd.f32 %v2180, %v2645
    %v2660 = vadd.f32 %v2184, %v2646
    %v2661 = vadd.f32 %v2186, %v2647
    %v2676 = vrot.slane %v2620, 2
    %v2677 = vrot.slane %v2622, 2
    %v2678 = vsel %vm839, %v2676, %v2677
    %v2679 = vrot.slane %v2621, 2
    %v2680 = vrot.slane %v2623, 2
    %v2681 = vsel %vm839, %v2679, %v2680
    %v2682 = vrot.slane %v2624, 2
    %v2683 = vsel %vm839, %v2677, %v2682
    %v2684 = vrot.slane %v2625, 2
    %v2685 = vsel %vm839, %v2680, %v2684
    %v2686 = vrot.slane %v2626, 2
    %v2687 = vsel %vm839, %v2682, %v2686
    %v2688 = vrot.slane %v2627, 2
    %v2689 = vsel %vm839, %v2684, %v2688
    %v2690 = vrot.slane %v2628, 2
    %v2691 = vsel %vm839, %v2686, %v2690
    %v2692 = vrot.slane %v2629, 2
    %v2693 = vsel %vm839, %v2688, %v2692
    %v2694 = vrot.slane %v2630, 2
    %v2695 = vsel %vm839, %v2690, %v2694
    %v2696 = vrot.slane %v2631, 2
    %v2697 = vsel %vm839, %v2692, %v2696
    %v2698 = vrot.slane %v2632, 2
    %v2699 = vsel %vm839, %v2694, %v2698
    %v2700 = vrot.slane %v2633, 2
    %v2701 = vsel %vm839, %v2696, %v2700
    %v2716 = vmul.f32 %v800, %v2678
    %v2717 = vmul.f32 %v800, %v2681
    %v2718 = vmul.f32 %v805, %v2683
    %v2719 = vmul.f32 %v805, %v2685
    %v2720 = vmul.f32 %v810, %v2687
    %v2721 = vmul.f32 %v810, %v2689
    %v2722 = vmul.f32 %v815, %v2691
    %v2723 = vmul.f32 %v815, %v2693
    %v2724 = vmul.f32 %v820, %v2695
    %v2725 = vmul.f32 %v820, %v2697
    %v2726 = vmul.f32 %v825, %v2699
    %v2727 = vmul.f32 %v825, %v2701
    %v2728 = vmul.f32 %v830, %v2698
    %v2729 = vmul.f32 %v830, %v2700
    %v2730 = vadd.f32 %v2648, %v2716
    %v2731 = vadd.f32 %v2649, %v2717
    %v2732 = vadd.f32 %v2650, %v2718
    %v2733 = vadd.f32 %v2651, %v2719
    %v2734 = vadd.f32 %v2652, %v2720
    %v2735 = vadd.f32 %v2653, %v2721
    %v2736 = vadd.f32 %v2654, %v2722
    %v2737 = vadd.f32 %v2655, %v2723
    %v2738 = vadd.f32 %v2656, %v2724
    %v2739 = vadd.f32 %v2657, %v2725
    %v2740 = vadd.f32 %v2658, %v2726
    %v2741 = vadd.f32 %v2659, %v2727
    %v2742 = vadd.f32 %v2660, %v2728
    %v2743 = vadd.f32 %v2661, %v2729
    %v2744 = vadd.f32 %v2730, %v2732
    %v2745 = vadd.f32 %v2744, %v2734
    %v2746 = vadd.f32 %v2745, %v2736
    %v2747 = vadd.f32 %v2746, %v2738
    %v2748 = vadd.f32 %v2747, %v2740
    %v2749 = vsel %vm1467, %v2742, 0.0
    %v2750 = vadd.f32 %v2748, %v2749
    %v2751 = vrot.slane %v2750, 4
    %v2752 = vadd.f32 %v2750, %v2751
    %v2753 = vrot.slane %v2752, 2
    %v2754 = vadd.f32 %v2752, %v2753
    %v2755 = vrot.slane %v2754, 1
    %v2756 = vadd.f32 %v2754, %v2755
    %vm2757 = vcmask 588800
    %v2758 = vsel %vm2757, %v2731, 0.0
    %v2759 = vsel %vm2757, %v2733, 0.0
    %v2760 = vadd.f32 %v2758, %v2759
    %v2761 = vsel %vm2757, %v2735, 0.0
    %v2762 = vadd.f32 %v2760, %v2761
    %v2763 = vsel %vm2757, %v2737, 0.0
    %v2764 = vadd.f32 %v2762, %v2763
    %v2765 = vsel %vm2757, %v2739, 0.0
    %v2766 = vadd.f32 %v2764, %v2765
    %v2767 = vsel %vm2757, %v2741, 0.0
    %v2768 = vadd.f32 %v2766, %v2767
    %vm2769 = vcmask 582656
    %v2770 = vsel %vm2769, %v2743, 0.0
    %v2771 = vadd.f32 %v2768, %v2770
    %v2772 = vrot.slane %v2771, 4
    %v2773 = vadd.f32 %v2771, %v2772
    %v2774 = vrot.slane %v2773, 2
    %v2775 = vadd.f32 %v2773, %v2774
    %v2776 = vrot.slane %v2775, 1
    %v2777 = vadd.f32 %v2775, %v2776
    %v2778 = vmul.f32 %v2756, %v1337
    %v2779 = vmul.f32 %v2777, %v1337
    %v2780 = vmul.f32 %v2730, %v2730
    %v2781 = vmul.f32 %v2731, %v2731
    %v2782 = vmul.f32 %v2732, %v2732
    %v2783 = vmul.f32 %v2733, %v2733
    %v2784 = vmul.f32 %v2734, %v2734
    %v2785 = vmul.f32 %v2735, %v2735
    %v2786 = vmul.f32 %v2736, %v2736
    %v2787 = vmul.f32 %v2737, %v2737
    %v2788 = vmul.f32 %v2738, %v2738
    %v2789 = vmul.f32 %v2739, %v2739
    %v2790 = vmul.f32 %v2740, %v2740
    %v2791 = vmul.f32 %v2741, %v2741
    %v2792 = vmul.f32 %v2742, %v2742
    %v2793 = vmul.f32 %v2743, %v2743
    %v2794 = vadd.f32 %v2780, %v2782
    %v2795 = vadd.f32 %v2794, %v2784
    %v2796 = vadd.f32 %v2795, %v2786
    %v2797 = vadd.f32 %v2796, %v2788
    %v2798 = vadd.f32 %v2797, %v2790
    %v2799 = vsel %vm1467, %v2792, 0.0
    %v2800 = vadd.f32 %v2798, %v2799
    %v2801 = vrot.slane %v2800, 4
    %v2802 = vadd.f32 %v2800, %v2801
    %v2803 = vrot.slane %v2802, 2
    %v2804 = vadd.f32 %v2802, %v2803
    %v2805 = vrot.slane %v2804, 1
    %v2806 = vadd.f32 %v2804, %v2805
    %v2807 = vsel %vm2757, %v2781, 0.0
    %v2808 = vsel %vm2757, %v2783, 0.0
    %v2809 = vadd.f32 %v2807, %v2808
    %v2810 = vsel %vm2757, %v2785, 0.0
    %v2811 = vadd.f32 %v2809, %v2810
    %v2812 = vsel %vm2757, %v2787, 0.0
    %v2813 = vadd.f32 %v2811, %v2812
    %v2814 = vsel %vm2757, %v2789, 0.0
    %v2815 = vadd.f32 %v2813, %v2814
    %v2816 = vsel %vm2757, %v2791, 0.0
    %v2817 = vadd.f32 %v2815, %v2816
    %v2818 = vsel %vm2769, %v2793, 0.0
    %v2819 = vadd.f32 %v2817, %v2818
    %v2820 = vrot.slane %v2819, 4
    %v2821 = vadd.f32 %v2819, %v2820
    %v2822 = vrot.slane %v2821, 2
    %v2823 = vadd.f32 %v2821, %v2822
    %v2824 = vrot.slane %v2823, 1
    %v2825 = vadd.f32 %v2823, %v2824
    %v2826 = vmul.f32 %v2806, %v1337
    %v2827 = vmul.f32 %v2825, %v1337
    %v2828 = vmul.f32 %v2778, %v2778
    %v2829 = vmul.f32 %v2779, %v2779
    %v2830 = vsub.f32 %v2826, %v2828
    %v2831 = vsub.f32 %v2827, %v2829
    %v2832 = vsub.f32 %v2730, %v2778
    %v2833 = vsub.f32 %v2731, %v2779
    %v2834 = vsub.f32 %v2732, %v2778
    %v2835 = vsub.f32 %v2733, %v2779
    %v2836 = vsub.f32 %v2734, %v2778
    %v2837 = vsub.f32 %v2735, %v2779
    %v2838 = vsub.f32 %v2736, %v2778
    %v2839 = vsub.f32 %v2737, %v2779
    %v2840 = vsub.f32 %v2738, %v2778
    %v2841 = vsub.f32 %v2739, %v2779
    %v2842 = vsub.f32 %v2740, %v2778
    %v2843 = vsub.f32 %v2741, %v2779
    %v2844 = vsub.f32 %v2742, %v2778
    %v2845 = vsub.f32 %v2743, %v2779
    %v2846 = vadd.f32 %v2830, 1e-05
    %v2847 = vadd.f32 %v2831, 1e-05
    %v2848 = vrsqrt.pop %v2846
    %v2849 = vrsqrt.pop %v2847
    %v2850 = vld [vmem:[#allocation18] sm:$0x3]
    %v2852 = vlaneseq
    %v2853 = vshrl.u32 %v2852, 7
    %v2854 = vsub.s32 0, %v2853
    %v2855 = vrot.slane %v2850, %v2854
    %v2856 = vlaneseq
    %v2857 = vshrl.u32 %v2856, 7
    %v2858 = vsub.s32 1, %v2857
    %v2859 = vrot.slane %v2850, %v2858
    %v2862 = vmul.f32 %v2848, %v2855
    %v2863 = vmul.f32 %v2849, %v2859
    %v2864 = vlaneseq
    %v2865 = vshrl.u32 %v2864, 7
    %v2866 = vsub.s32 0, %v2865
    %v2867 = vrot.slane %v2862, %v2866
    %v2868 = vlaneseq
    %v2869 = vshrl.u32 %v2868, 7
    %v2870 = vsub.s32 0, %v2869
    %v2871 = vrot.slane %v2863, %v2870
    %v2872 = vmul.f32 %v2832, %v2867
    %v2873 = vmul.f32 %v2833, %v2871
    %v2874 = vmul.f32 %v2834, %v2867
    %v2875 = vmul.f32 %v2835, %v2871
    %v2876 = vmul.f32 %v2836, %v2867
    %v2877 = vmul.f32 %v2837, %v2871
    %v2878 = vmul.f32 %v2838, %v2867
    %v2879 = vmul.f32 %v2839, %v2871
    %v2880 = vmul.f32 %v2840, %v2867
    %v2881 = vmul.f32 %v2841, %v2871
    %v2882 = vmul.f32 %v2842, %v2867
    %v2883 = vmul.f32 %v2843, %v2871
    %v2884 = vmul.f32 %v2844, %v2867
    %v2885 = vmul.f32 %v2845, %v2871
    %v2886 = vld [vmem:[#allocation20] sm:$0x3]
    %v2888 = vlaneseq
    %v2889 = vshrl.u32 %v2888, 7
    %v2890 = vsub.s32 0, %v2889
    %v2891 = vrot.slane %v2886, %v2890
    %v2892 = vlaneseq
    %v2893 = vshrl.u32 %v2892, 7
    %v2894 = vsub.s32 1, %v2893
    %v2895 = vrot.slane %v2886, %v2894
    %v2898 = vadd.f32 %v2872, %v2891
    %v2899 = vadd.f32 %v2873, %v2895
    %v2900 = vadd.f32 %v2874, %v2891
    %v2901 = vadd.f32 %v2875, %v2895
    %v2902 = vadd.f32 %v2876, %v2891
    %v2903 = vadd.f32 %v2877, %v2895
    %v2904 = vadd.f32 %v2878, %v2891
    %v2905 = vadd.f32 %v2879, %v2895
    %v2906 = vadd.f32 %v2880, %v2891
    %v2907 = vadd.f32 %v2881, %v2895
    %v2908 = vadd.f32 %v2882, %v2891
    %v2909 = vadd.f32 %v2883, %v2895
    %v2910 = vadd.f32 %v2884, %v2891
    %v2911 = vadd.f32 %v2885, %v2895
    %vm2912 = vcmp.gt.f32.partialorder %v2898, 0.0
    %vm2913 = vcmp.gt.f32.partialorder %v2899, 0.0
    %vm2914 = vcmp.gt.f32.partialorder %v2900, 0.0
    %vm2915 = vcmp.gt.f32.partialorder %v2901, 0.0
    %vm2916 = vcmp.gt.f32.partialorder %v2902, 0.0
    %vm2917 = vcmp.gt.f32.partialorder %v2903, 0.0
    %vm2918 = vcmp.gt.f32.partialorder %v2904, 0.0
    %vm2919 = vcmp.gt.f32.partialorder %v2905, 0.0
    %vm2920 = vcmp.gt.f32.partialorder %v2906, 0.0
    %vm2921 = vcmp.gt.f32.partialorder %v2907, 0.0
    %vm2922 = vcmp.gt.f32.partialorder %v2908, 0.0
    %vm2923 = vcmp.gt.f32.partialorder %v2909, 0.0
    %vm2924 = vcmp.gt.f32.partialorder %v2910, 0.0
    %vm2925 = vcmp.gt.f32.partialorder %v2911, 0.0
    %v2926 = vmul.f32 %v2898, 0.2
    %v2927 = vmul.f32 %v2899, 0.2
    %v2928 = vmul.f32 %v2900, 0.2
    %v2929 = vmul.f32 %v2901, 0.2
    %v2930 = vmul.f32 %v2902, 0.2
    %v2931 = vmul.f32 %v2903, 0.2
    %v2932 = vmul.f32 %v2904, 0.2
    %v2933 = vmul.f32 %v2905, 0.2
    %v2934 = vmul.f32 %v2906, 0.2
    %v2935 = vmul.f32 %v2907, 0.2
    %v2936 = vmul.f32 %v2908, 0.2
    %v2937 = vmul.f32 %v2909, 0.2
    %v2938 = vmul.f32 %v2910, 0.2
    %v2939 = vmul.f32 %v2911, 0.2
    %v2940 = vsel %vm2912, %v2898, %v2926
    %v2941 = vsel %vm2913, %v2899, %v2927
    %v2942 = vsel %vm2914, %v2900, %v2928
    %v2943 = vsel %vm2915, %v2901, %v2929
    %v2944 = vsel %vm2916, %v2902, %v2930
    %v2945 = vsel %vm2917, %v2903, %v2931
    %v2946 = vsel %vm2918, %v2904, %v2932
    %v2947 = vsel %vm2919, %v2905, %v2933
    %v2948 = vsel %vm2920, %v2906, %v2934
    %v2949 = vsel %vm2921, %v2907, %v2935
    %v2950 = vsel %vm2922, %v2908, %v2936
    %v2951 = vsel %vm2923, %v2909, %v2937
    %v2952 = vsel %vm2924, %v2910, %v2938
    %v2953 = vsel %vm2925, %v2911, %v2939
    %v2954 = vld [vmem:[#allocation11] sm:$0xff]
    %v2955 = vld [vmem:[#allocation11 + $0x8] sm:$0xff]
    %v2956 = vld [vmem:[#allocation11 + $0x10] sm:$0xff]
    %v2957 = vld [vmem:[#allocation11 + $0x18] sm:$0xff]
    %v2958 = vld [vmem:[#allocation11 + $0x20] sm:$0xff]
    %v2959 = vld [vmem:[#allocation11 + $0x28] sm:$0xff]
    %v2960 = vld [vmem:[#allocation11 + $0x30] sm:$0xff]
    %v2961 = vld [vmem:[#allocation11 + $0x38] sm:$0xff]
    %v2962 = vld [vmem:[#allocation11 + $0x40] sm:$0xff]
    %v2963 = vld [vmem:[#allocation11 + $0x48] sm:$0xff]
    %v2964 = vld [vmem:[#allocation11 + $0x50] sm:$0xff]
    %v2965 = vld [vmem:[#allocation11 + $0x58] sm:$0xff]
    %v2966 = vld [vmem:[#allocation11 + $0x60] sm:$0xff]
    %v2967 = vld [vmem:[#allocation11 + $0x68] sm:$0xff]
    %v2968 = vld [vmem:[#allocation11 + $0x70] sm:$0xff]
    %v2969 = vld [vmem:[#allocation11 + $0x78] sm:$0xff]
    %v2970 = vld [vmem:[#allocation11 + $0x80] sm:$0xff]
    %v2971 = vld [vmem:[#allocation11 + $0x88] sm:$0xff]
    %v2972 = vld [vmem:[#allocation11 + $0x90] sm:$0xff]
    %v2973 = vld [vmem:[#allocation11 + $0x98] sm:$0xff]
    %v2974 = vld [vmem:[#allocation11 + $0xa0] sm:$0xff]
    %v2975 = vld [vmem:[#allocation11 + $0xa8] sm:$0xff]
    %v2976 = vld [vmem:[#allocation11 + $0xb0] sm:$0xff]
    %v2977 = vld [vmem:[#allocation11 + $0xb8] sm:$0xff]
    %v2978 = vld [vmem:[#allocation11 + $0xc0] sm:$0xff]
    %v2979 = vld [vmem:[#allocation11 + $0xc8] sm:$0xff]
    %v2980 = vld [vmem:[#allocation11 + $0xd0] sm:$0xff]
    %v2981 = vld [vmem:[#allocation11 + $0xd8] sm:$0xff]
    %v2982 = vld [vmem:[#allocation11 + $0xe0] sm:$0xff]
    %v2983 = vld [vmem:[#allocation11 + $0xe8] sm:$0xff]
    %v2984 = vld [vmem:[#allocation11 + $0xf0] sm:$0xff]
    %v2985 = vld [vmem:[#allocation11 + $0xf8] sm:$0xff]
    %v2986 = vld [vmem:[#allocation11 + $0x100] sm:$0xff]
    %v2987 = vld [vmem:[#allocation11 + $0x108] sm:$0xff]
    %v2988 = vld [vmem:[#allocation11 + $0x110] sm:$0xff]
    %v2989 = vld [vmem:[#allocation11 + $0x118] sm:$0xff]
    %v2990 = vld [vmem:[#allocation11 + $0x120] sm:$0xff]
    %v2991 = vld [vmem:[#allocation11 + $0x128] sm:$0xff]
    %v2992 = vld [vmem:[#allocation11 + $0x130] sm:$0xff]
    %v2993 = vld [vmem:[#allocation11 + $0x138] sm:$0xff]
    %v2994 = vld [vmem:[#allocation11 + $0x140] sm:$0xff]
    %v2995 = vld [vmem:[#allocation11 + $0x148] sm:$0xff]
    %v2996 = vld [vmem:[#allocation11 + $0x150] sm:$0xff]
    %v2997 = vld [vmem:[#allocation11 + $0x158] sm:$0xff]
    %v2998 = vld [vmem:[#allocation11 + $0x160] sm:$0xff]
    %v2999 = vld [vmem:[#allocation11 + $0x168] sm:$0xff]
    %v3000 = vld [vmem:[#allocation11 + $0x170] sm:$0xff]
    %v3001 = vld [vmem:[#allocation11 + $0x178] sm:$0xff]
    %v3002 = vld [vmem:[#allocation11 + $0x180] sm:$0xff]
    %v3003 = vld [vmem:[#allocation11 + $0x188] sm:$0xff]
    %v3004 = vld [vmem:[#allocation11 + $0x190] sm:$0xff]
    %v3005 = vld [vmem:[#allocation11 + $0x198] sm:$0xff]
    %v3006 = vld [vmem:[#allocation11 + $0x1a0] sm:$0xff]
    %v3007 = vld [vmem:[#allocation11 + $0x1a8] sm:$0xff]
    %v3008 = vld [vmem:[#allocation11 + $0x1b0] sm:$0xff]
    %v3009 = vld [vmem:[#allocation11 + $0x1b8] sm:$0xff]
    %v3010 = vld [vmem:[#allocation11 + $0x1c0] sm:$0xff]
    %v3011 = vld [vmem:[#allocation11 + $0x1c8] sm:$0xff]
    %v3012 = vld [vmem:[#allocation11 + $0x1d0] sm:$0xff]
    %v3013 = vld [vmem:[#allocation11 + $0x1d8] sm:$0xff]
    %v3014 = vld [vmem:[#allocation11 + $0x1e0] sm:$0xff]
    %v3015 = vld [vmem:[#allocation11 + $0x1e8] sm:$0xff]
    %v3016 = vld [vmem:[#allocation11 + $0x1f0] sm:$0xff]
    %v3017 = vld [vmem:[#allocation11 + $0x1f8] sm:$0xff]
    %v3018 = vld [vmem:[#allocation11 + $0x200] sm:$0xff]
    %v3019 = vld [vmem:[#allocation11 + $0x208] sm:$0xff]
    %v3020 = vld [vmem:[#allocation11 + $0x210] sm:$0xff]
    %v3021 = vld [vmem:[#allocation11 + $0x218] sm:$0xff]
    %v3022 = vld [vmem:[#allocation11 + $0x220] sm:$0xff]
    %v3023 = vld [vmem:[#allocation11 + $0x228] sm:$0xff]
    %v3024 = vld [vmem:[#allocation11 + $0x230] sm:$0xff]
    %v3025 = vld [vmem:[#allocation11 + $0x238] sm:$0xff]
    %v3026 = vld [vmem:[#allocation11 + $0x240] sm:$0xff]
    %v3027 = vld [vmem:[#allocation11 + $0x248] sm:$0xff]
    %v3028 = vld [vmem:[#allocation11 + $0x250] sm:$0xff]
    %v3029 = vld [vmem:[#allocation11 + $0x258] sm:$0xff]
    %v3030 = vld [vmem:[#allocation11 + $0x260] sm:$0xff]
    %v3031 = vld [vmem:[#allocation11 + $0x268] sm:$0xff]
    %v3032 = vld [vmem:[#allocation11 + $0x270] sm:$0xff]
    %v3033 = vld [vmem:[#allocation11 + $0x278] sm:$0xff]
    %v3034 = vld [vmem:[#allocation11 + $0x280] sm:$0xff]
    %v3035 = vld [vmem:[#allocation11 + $0x288] sm:$0xff]
    %v3036 = vld [vmem:[#allocation11 + $0x290] sm:$0xff]
    %v3037 = vld [vmem:[#allocation11 + $0x298] sm:$0xff]
    %v3038 = vld [vmem:[#allocation11 + $0x2a0] sm:$0xff]
    %v3039 = vld [vmem:[#allocation11 + $0x2a8] sm:$0xff]
    %v3040 = vld [vmem:[#allocation11 + $0x2b0] sm:$0xff]
    %v3041 = vld [vmem:[#allocation11 + $0x2b8] sm:$0xff]
    %v3042 = vld [vmem:[#allocation11 + $0x2c0] sm:$0xff]
    %v3043 = vld [vmem:[#allocation11 + $0x2c8] sm:$0xff]
    %v3044 = vld [vmem:[#allocation11 + $0x2d0] sm:$0xff]
    %v3045 = vld [vmem:[#allocation11 + $0x2d8] sm:$0xff]
    %v3046 = vld [vmem:[#allocation11 + $0x2e0] sm:$0xff]
    %v3047 = vld [vmem:[#allocation11 + $0x2e8] sm:$0xff]
    %v3048 = vld [vmem:[#allocation11 + $0x2f0] sm:$0xff]
    %v3049 = vld [vmem:[#allocation11 + $0x2f8] sm:$0xff]
    %v3050 = vld [vmem:[#allocation11 + $0x300] sm:$0xff]
    %v3051 = vld [vmem:[#allocation11 + $0x308] sm:$0xff]
    %v3052 = vld [vmem:[#allocation11 + $0x310] sm:$0xff]
    %v3053 = vld [vmem:[#allocation11 + $0x318] sm:$0xff]
    %v3054 = vld [vmem:[#allocation11 + $0x320] sm:$0xff]
    %v3055 = vld [vmem:[#allocation11 + $0x328] sm:$0xff]
    %v3056 = vld [vmem:[#allocation11 + $0x330] sm:$0xff]
    %v3057 = vld [vmem:[#allocation11 + $0x338] sm:$0xff]
    %v3058 = vld [vmem:[#allocation11 + $0x340] sm:$0xff]
    %v3059 = vld [vmem:[#allocation11 + $0x348] sm:$0xff]
    %v3060 = vld [vmem:[#allocation11 + $0x350] sm:$0xff]
    %v3061 = vld [vmem:[#allocation11 + $0x358] sm:$0xff]
    %v3062 = vld [vmem:[#allocation11 + $0x360] sm:$0xff]
    %v3063 = vld [vmem:[#allocation11 + $0x368] sm:$0xff]
    %v3064 = vld [vmem:[#allocation11 + $0x370] sm:$0xff]
    %v3065 = vld [vmem:[#allocation11 + $0x378] sm:$0xff]
    %v3066 = vld [vmem:[#allocation11 + $0x380] sm:$0xff]
    %v3067 = vld [vmem:[#allocation11 + $0x388] sm:$0xff]
    %v3068 = vld [vmem:[#allocation11 + $0x390] sm:$0xff]
    %v3069 = vld [vmem:[#allocation11 + $0x398] sm:$0xff]
    %v3070 = vld [vmem:[#allocation11 + $0x3a0] sm:$0xff]
    %v3071 = vld [vmem:[#allocation11 + $0x3a8] sm:$0xff]
    %v3072 = vld [vmem:[#allocation11 + $0x3b0] sm:$0xff]
    %v3073 = vld [vmem:[#allocation11 + $0x3b8] sm:$0xff]
    %v3074 = vld [vmem:[#allocation11 + $0x3c0] sm:$0xff]
    %v3075 = vld [vmem:[#allocation11 + $0x3c8] sm:$0xff]
    %v3076 = vld [vmem:[#allocation11 + $0x3d0] sm:$0xff]
    %v3077 = vld [vmem:[#allocation11 + $0x3d8] sm:$0xff]
    %v3078 = vld [vmem:[#allocation11 + $0x3e0] sm:$0xff]
    %v3079 = vld [vmem:[#allocation11 + $0x3e8] sm:$0xff]
    %v3080 = vld [vmem:[#allocation11 + $0x3f0] sm:$0xff]
    %v3081 = vld [vmem:[#allocation11 + $0x3f8] sm:$0xff]
    %v3082 = vld [vmem:[#allocation11 + $0x400] sm:$0xff]
    %v3083 = vld [vmem:[#allocation11 + $0x408] sm:$0xff]
    %v3084 = vld [vmem:[#allocation11 + $0x410] sm:$0xff]
    %v3085 = vld [vmem:[#allocation11 + $0x418] sm:$0xff]
    %v3086 = vld [vmem:[#allocation11 + $0x420] sm:$0xff]
    %v3087 = vld [vmem:[#allocation11 + $0x428] sm:$0xff]
    %v3088 = vld [vmem:[#allocation11 + $0x430] sm:$0xff]
    %v3089 = vld [vmem:[#allocation11 + $0x438] sm:$0xff]
    %v3090 = vld [vmem:[#allocation11 + $0x440] sm:$0xff]
    %v3091 = vld [vmem:[#allocation11 + $0x448] sm:$0xff]
    %v3092 = vld [vmem:[#allocation11 + $0x450] sm:$0xff]
    %v3093 = vld [vmem:[#allocation11 + $0x458] sm:$0xff]
    %v3094 = vld [vmem:[#allocation11 + $0x460] sm:$0xff]
    %v3095 = vld [vmem:[#allocation11 + $0x468] sm:$0xff]
    %v3096 = vld [vmem:[#allocation11 + $0x470] sm:$0xff]
    %v3097 = vld [vmem:[#allocation11 + $0x478] sm:$0xff]
    %v3098 = vld [vmem:[#allocation11 + $0x480] sm:$0xff]
    %v3099 = vld [vmem:[#allocation11 + $0x488] sm:$0xff]
    %v3100 = vld [vmem:[#allocation11 + $0x490] sm:$0xff]
    %v3101 = vld [vmem:[#allocation11 + $0x498] sm:$0xff]
    %v3102 = vld [vmem:[#allocation11 + $0x4a0] sm:$0xff]
    %v3103 = vld [vmem:[#allocation11 + $0x4a8] sm:$0xff]
    %v3104 = vld [vmem:[#allocation11 + $0x4b0] sm:$0xff]
    %v3105 = vld [vmem:[#allocation11 + $0x4b8] sm:$0xff]
    %v3106 = vld [vmem:[#allocation11 + $0x4c0] sm:$0xff]
    %v3107 = vld [vmem:[#allocation11 + $0x4c8] sm:$0xff]
    %v3108 = vld [vmem:[#allocation11 + $0x4d0] sm:$0xff]
    %v3109 = vld [vmem:[#allocation11 + $0x4d8] sm:$0xff]
    %v3110 = vld [vmem:[#allocation11 + $0x4e0] sm:$0xff]
    %v3111 = vld [vmem:[#allocation11 + $0x4e8] sm:$0xff]
    %v3112 = vld [vmem:[#allocation11 + $0x4f0] sm:$0xff]
    %v3113 = vld [vmem:[#allocation11 + $0x4f8] sm:$0xff]
    %v3114 = vld [vmem:[#allocation11 + $0x500] sm:$0xff]
    %v3115 = vld [vmem:[#allocation11 + $0x508] sm:$0xff]
    %v3116 = vld [vmem:[#allocation11 + $0x510] sm:$0xff]
    %v3117 = vld [vmem:[#allocation11 + $0x518] sm:$0xff]
    %v3118 = vld [vmem:[#allocation11 + $0x520] sm:$0xff]
    %v3119 = vld [vmem:[#allocation11 + $0x528] sm:$0xff]
    %v3120 = vld [vmem:[#allocation11 + $0x530] sm:$0xff]
    %v3121 = vld [vmem:[#allocation11 + $0x538] sm:$0xff]
    %v3122 = vld [vmem:[#allocation11 + $0x540] sm:$0xff]
    %v3123 = vld [vmem:[#allocation11 + $0x548] sm:$0xff]
    %v3124 = vld [vmem:[#allocation11 + $0x550] sm:$0xff]
    %v3125 = vld [vmem:[#allocation11 + $0x558] sm:$0xff]
    %v3126 = vld [vmem:[#allocation11 + $0x560] sm:$0xff]
    %v3127 = vld [vmem:[#allocation11 + $0x568] sm:$0xff]
    %v3128 = vld [vmem:[#allocation11 + $0x570] sm:$0xff]
    %v3129 = vld [vmem:[#allocation11 + $0x578] sm:$0xff]
    %v3130 = vld [vmem:[#allocation11 + $0x580] sm:$0xff]
    %v3131 = vld [vmem:[#allocation11 + $0x588] sm:$0xff]
    %v3132 = vld [vmem:[#allocation11 + $0x590] sm:$0xff]
    %v3133 = vld [vmem:[#allocation11 + $0x598] sm:$0xff]
    %v3134 = vld [vmem:[#allocation11 + $0x5a0] sm:$0xff]
    %v3135 = vld [vmem:[#allocation11 + $0x5a8] sm:$0xff]
    %v3136 = vld [vmem:[#allocation11 + $0x5b0] sm:$0xff]
    %v3137 = vld [vmem:[#allocation11 + $0x5b8] sm:$0xff]
    %v3138 = vld [vmem:[#allocation11 + $0x5c0] sm:$0xff]
    %v3139 = vld [vmem:[#allocation11 + $0x5c8] sm:$0xff]
    %v3140 = vld [vmem:[#allocation11 + $0x5d0] sm:$0xff]
    %v3141 = vld [vmem:[#allocation11 + $0x5d8] sm:$0xff]
    %v3142 = vld [vmem:[#allocation11 + $0x5e0] sm:$0xff]
    %v3143 = vld [vmem:[#allocation11 + $0x5e8] sm:$0xff]
    %v3144 = vld [vmem:[#allocation11 + $0x5f0] sm:$0xff]
    %v3145 = vld [vmem:[#allocation11 + $0x5f8] sm:$0xff]
    %v3146 = vld [vmem:[#allocation11 + $0x600] sm:$0xff]
    %v3147 = vld [vmem:[#allocation11 + $0x608] sm:$0xff]
    %v3148 = vld [vmem:[#allocation11 + $0x610] sm:$0xff]
    %v3149 = vld [vmem:[#allocation11 + $0x618] sm:$0xff]
    %v3150 = vld [vmem:[#allocation11 + $0x620] sm:$0xff]
    %v3151 = vld [vmem:[#allocation11 + $0x628] sm:$0xff]
    %v3152 = vld [vmem:[#allocation11 + $0x630] sm:$0xff]
    %v3153 = vld [vmem:[#allocation11 + $0x638] sm:$0xff]
    %v3154 = vld [vmem:[#allocation11 + $0x640] sm:$0xff]
    %v3155 = vld [vmem:[#allocation11 + $0x648] sm:$0xff]
    %v3156 = vld [vmem:[#allocation11 + $0x650] sm:$0xff]
    %v3157 = vld [vmem:[#allocation11 + $0x658] sm:$0xff]
    %v3158 = vld [vmem:[#allocation11 + $0x660] sm:$0xff]
    %v3159 = vld [vmem:[#allocation11 + $0x668] sm:$0xff]
    %v3160 = vld [vmem:[#allocation11 + $0x670] sm:$0xff]
    %v3161 = vld [vmem:[#allocation11 + $0x678] sm:$0xff]
    %v3162 = vld [vmem:[#allocation11 + $0x680] sm:$0xff]
    %v3163 = vld [vmem:[#allocation11 + $0x688] sm:$0xff]
    %v3164 = vld [vmem:[#allocation11 + $0x690] sm:$0xff]
    %v3165 = vld [vmem:[#allocation11 + $0x698] sm:$0xff]
    %v3166 = vld [vmem:[#allocation11 + $0x6a0] sm:$0xff]
    %v3167 = vld [vmem:[#allocation11 + $0x6a8] sm:$0xff]
    %v3168 = vld [vmem:[#allocation11 + $0x6b0] sm:$0xff]
    %v3169 = vld [vmem:[#allocation11 + $0x6b8] sm:$0xff]
    %v3170 = vld [vmem:[#allocation11 + $0x6c0] sm:$0xff]
    %v3171 = vld [vmem:[#allocation11 + $0x6c8] sm:$0xff]
    %v3172 = vld [vmem:[#allocation11 + $0x6d0] sm:$0xff]
    %v3173 = vld [vmem:[#allocation11 + $0x6d8] sm:$0xff]
    %v3174 = vld [vmem:[#allocation11 + $0x6e0] sm:$0xff]
    %v3175 = vld [vmem:[#allocation11 + $0x6e8] sm:$0xff]
    %v3176 = vld [vmem:[#allocation11 + $0x6f0] sm:$0xff]
    %v3177 = vld [vmem:[#allocation11 + $0x6f8] sm:$0xff]
    %v3178 = vld [vmem:[#allocation11 + $0x700] sm:$0xff]
    %v3179 = vld [vmem:[#allocation11 + $0x708] sm:$0xff]
    %v3180 = vld [vmem:[#allocation11 + $0x710] sm:$0xff]
    %v3181 = vld [vmem:[#allocation11 + $0x718] sm:$0xff]
    %v3182 = vld [vmem:[#allocation11 + $0x720] sm:$0xff]
    %v3183 = vld [vmem:[#allocation11 + $0x728] sm:$0xff]
    %v3184 = vld [vmem:[#allocation11 + $0x730] sm:$0xff]
    %v3185 = vld [vmem:[#allocation11 + $0x738] sm:$0xff]
    %v3186 = vld [vmem:[#allocation11 + $0x740] sm:$0xff]
    %v3187 = vld [vmem:[#allocation11 + $0x748] sm:$0xff]
    %v3188 = vld [vmem:[#allocation11 + $0x750] sm:$0xff]
    %v3189 = vld [vmem:[#allocation11 + $0x758] sm:$0xff]
    %v3190 = vld [vmem:[#allocation11 + $0x760] sm:$0xff]
    %v3191 = vld [vmem:[#allocation11 + $0x768] sm:$0xff]
    %v3192 = vld [vmem:[#allocation11 + $0x770] sm:$0xff]
    %v3193 = vld [vmem:[#allocation11 + $0x778] sm:$0xff]
    %v3194 = vld [vmem:[#allocation11 + $0x780] sm:$0xff]
    %v3195 = vld [vmem:[#allocation11 + $0x788] sm:$0xff]
    %v3196 = vld [vmem:[#allocation11 + $0x790] sm:$0xff]
    %v3197 = vld [vmem:[#allocation11 + $0x798] sm:$0xff]
    %v3198 = vld [vmem:[#allocation11 + $0x7a0] sm:$0xff]
    %v3199 = vld [vmem:[#allocation11 + $0x7a8] sm:$0xff]
    %v3200 = vld [vmem:[#allocation11 + $0x7b0] sm:$0xff]
    %v3201 = vld [vmem:[#allocation11 + $0x7b8] sm:$0xff]
    %v3202 = vld [vmem:[#allocation11 + $0x7c0] sm:$0xff]
    %v3203 = vld [vmem:[#allocation11 + $0x7c8] sm:$0xff]
    %v3204 = vld [vmem:[#allocation11 + $0x7d0] sm:$0xff]
    %v3205 = vld [vmem:[#allocation11 + $0x7d8] sm:$0xff]
    %v3206 = vld [vmem:[#allocation11 + $0x7e0] sm:$0xff]
    %v3207 = vld [vmem:[#allocation11 + $0x7e8] sm:$0xff]
    %v3208 = vld [vmem:[#allocation11 + $0x7f0] sm:$0xff]
    %v3209 = vld [vmem:[#allocation11 + $0x7f8] sm:$0xff]
    %v3210 = vld [vmem:[#allocation11 + $0x800] sm:$0xff]
    %v3211 = vld [vmem:[#allocation11 + $0x808] sm:$0xff]
    %v3212 = vld [vmem:[#allocation11 + $0x810] sm:$0xff]
    %v3213 = vld [vmem:[#allocation11 + $0x818] sm:$0xff]
    %v3214 = vld [vmem:[#allocation11 + $0x820] sm:$0xff]
    %v3215 = vld [vmem:[#allocation11 + $0x828] sm:$0xff]
    %v3216 = vld [vmem:[#allocation11 + $0x830] sm:$0xff]
    %v3217 = vld [vmem:[#allocation11 + $0x838] sm:$0xff]
    %v3218 = vld [vmem:[#allocation11 + $0x840] sm:$0xff]
    %v3219 = vld [vmem:[#allocation11 + $0x848] sm:$0xff]
    %v3220 = vld [vmem:[#allocation11 + $0x850] sm:$0xff]
    %v3221 = vld [vmem:[#allocation11 + $0x858] sm:$0xff]
    %v3222 = vld [vmem:[#allocation11 + $0x860] sm:$0xff]
    %v3223 = vld [vmem:[#allocation11 + $0x868] sm:$0xff]
    %v3224 = vld [vmem:[#allocation11 + $0x870] sm:$0xff]
    %v3225 = vld [vmem:[#allocation11 + $0x878] sm:$0xff]
    %v3226 = vld [vmem:[#allocation11 + $0x880] sm:$0xff]
    %v3227 = vld [vmem:[#allocation11 + $0x888] sm:$0xff]
    %v3228 = vld [vmem:[#allocation11 + $0x890] sm:$0xff]
    %v3229 = vld [vmem:[#allocation11 + $0x898] sm:$0xff]
    %v3230 = vld [vmem:[#allocation11 + $0x8a0] sm:$0xff]
    %v3231 = vld [vmem:[#allocation11 + $0x8a8] sm:$0xff]
    %v3232 = vld [vmem:[#allocation11 + $0x8b0] sm:$0xff]
    %v3233 = vld [vmem:[#allocation11 + $0x8b8] sm:$0xff]
    %v3234 = vld [vmem:[#allocation11 + $0x8c0] sm:$0xff]
    %v3235 = vld [vmem:[#allocation11 + $0x8c8] sm:$0xff]
    %v3236 = vld [vmem:[#allocation11 + $0x8d0] sm:$0xff]
    %v3237 = vld [vmem:[#allocation11 + $0x8d8] sm:$0xff]
    %v3238 = vld [vmem:[#allocation11 + $0x8e0] sm:$0xff]
    %v3239 = vld [vmem:[#allocation11 + $0x8e8] sm:$0xff]
    %v3240 = vld [vmem:[#allocation11 + $0x8f0] sm:$0xff]
    %v3241 = vld [vmem:[#allocation11 + $0x8f8] sm:$0xff]
    %v3242 = vld [vmem:[#allocation11 + $0x900] sm:$0xff]
    %v3243 = vld [vmem:[#allocation11 + $0x908] sm:$0xff]
    %v3244 = vld [vmem:[#allocation11 + $0x910] sm:$0xff]
    %v3245 = vld [vmem:[#allocation11 + $0x918] sm:$0xff]
    %v3246 = vld [vmem:[#allocation11 + $0x920] sm:$0xff]
    %v3247 = vld [vmem:[#allocation11 + $0x928] sm:$0xff]
    %v3248 = vld [vmem:[#allocation11 + $0x930] sm:$0xff]
    %v3249 = vld [vmem:[#allocation11 + $0x938] sm:$0xff]
    %v3250 = vld [vmem:[#allocation11 + $0x940] sm:$0xff]
    %v3251 = vld [vmem:[#allocation11 + $0x948] sm:$0xff]
    %v3252 = vld [vmem:[#allocation11 + $0x950] sm:$0xff]
    %v3253 = vld [vmem:[#allocation11 + $0x958] sm:$0xff]
    %v3255 = vsel %vm2757, %v2941, 0
    %v3258 = vsel %vm2757, %v2943, 0
    %v3261 = vsel %vm2757, %v2945, 0
    %v3264 = vsel %vm2757, %v2947, 0
    %v3267 = vsel %vm2757, %v2949, 0
    %v3270 = vsel %vm2757, %v2951, 0
    %v3273 = vsel %vm2757, %v2953, 0
    %3275 = vmatprep.subr.mxu0 %v2955
    %3276 = vmatpush1.msra.mxu0 %v2954
    %3277 = vmatprep.subr.mxu0 %v2967
    %3278 = vmatpush1.msra.mxu0 %v2966
    %3279 = vmatprep.subr.mxu0 %v2979
    %3280 = vmatpush1.msra.mxu0 %v2978
    %3281 = vmatprep.subr.mxu0 %v2991
    %3282 = vmatpush1.msra.mxu0 %v2990
    %3283 = vmatprep.subr.mxu0 %v3003
    %3284 = vmatpush1.msra.mxu0 %v3002
    %3285 = vmatprep.subr.mxu0 %v3015
    %3286 = vmatpush1.msra.mxu0 %v3014
    %3287 = vmatprep.subr.mxu0 %v3027
    %3288 = vmatpush1.msra.mxu0 %v3026
    %3289 = vmatprep.subr.mxu0 %v3039
    %3290 = vmatpush1.msra.mxu0 %v3038
    %3291 = vmatprep.subr.mxu0 %v3051
    %3292 = vmatpush1.msra.mxu0 %v3050
    %3293 = vmatprep.subr.mxu0 %v3063
    %3294 = vmatpush1.msra.mxu0 %v3062
    %3295 = vmatprep.subr.mxu0 %v3075
    %3296 = vmatpush1.msra.mxu0 %v3074
    %3297 = vmatprep.subr.mxu0 %v3087
    %3298 = vmatpush1.msra.mxu0 %v3086
    %3299 = vmatprep.subr.mxu0 %v3099
    %3300 = vmatpush1.msra.mxu0 %v3098
    %3301 = vmatprep.subr.mxu0 %v3111
    %3302 = vmatpush1.msra.mxu0 %v3110
    %3303 = vmatprep.subr.mxu0 %v3123
    %3304 = vmatpush1.msra.mxu0 %v3122
    %3305 = vmatprep.subr.mxu0 %v3135
    %3306 = vmatpush1.msra.mxu0 %v3134
    %3307 = vmatprep.subr.mxu0 %v3147
    %3308 = vmatpush1.msra.mxu0 %v3146
    %3309 = vmatprep.subr.mxu0 %v3159
    %3310 = vmatpush1.msra.mxu0 %v3158
    %3311 = vmatprep.subr.mxu0 %v3171
    %3312 = vmatpush1.msra.mxu0 %v3170
    %3313 = vmatprep.subr.mxu0 %v3183
    %3314 = vmatpush1.msra.mxu0 %v3182
    %3315 = vmatprep.subr.mxu0 %v3195
    %3316 = vmatpush1.msra.mxu0 %v3194
    %3317 = vmatprep.subr.mxu0 %v3207
    %3318 = vmatpush1.msra.mxu0 %v3206
    %3319 = vmatprep.subr.mxu0 %v3219
    %3320 = vmatpush1.msra.mxu0 %v3218
    %3321 = vmatprep.subr.mxu0 %v3231
    %3322 = vmatpush1.msra.mxu0 %v3230
    %3323 = vmatprep.subr.mxu0 %v3243
    %3324 = vmatpush1.msra.mxu0 %v3242
    %3325 = vmatprep.subr.mxu0 0.0
    %3326 = vmatpush1.msra.mxu0 0.0
    %3327 = vmatprep.subr.mxu0 0.0
    %3328 = vmatpush1.msra.mxu0 0.0
    %3329 = vmatprep.subr.mxu0 0.0
    %3330 = vmatpush1.msra.mxu0 0.0
    %3331 = vmatprep.subr.mxu0 0.0
    %3332 = vmatpush1.msra.mxu0 0.0
    %3333 = vmatprep.subr.mxu0 0.0
    %3334 = vmatpush1.msra.mxu0 0.0
    %3335 = vmatprep.subr.mxu0 0.0
    %3336 = vmatpush1.msra.mxu0 0.0
    %3337 = vmatprep.subr.mxu0 0.0
    %3338 = vmatpush1.msra.mxu0 0.0
    %3339 = vmatprep.mubr.f32.mxu0 %v3255
    %3340 = vmatmul.mubr.f32.gmra.mrb[0].mxu0 %v2940
    %v3341 = vpop.f32.mrb[0].mxu0
    %v3342 = vadd.f32 0.0, %v3341
    %v3343 = vpop.f32.mrb[0].mxu0
    %v3344 = vadd.f32 0.0, %v3343
    %3345 = vmatprep.mubr.f32.mxu0 %v3258
    %3346 = vmatmul.mubr.f32.gmra.mrb[0].mxu0 %v2942
    %v3347 = vpop.f32.mrb[0].mxu0
    %v3348 = vadd.f32 0.0, %v3347
    %v3349 = vpop.f32.mrb[0].mxu0
    %v3350 = vadd.f32 0.0, %v3349
    %3351 = vmatprep.mubr.f32.mxu0 %v3261
    %3352 = vmatmul.mubr.f32.gmra.mrb[0].mxu0 %v2944
    %v3353 = vpop.f32.mrb[0].mxu0
    %v3354 = vadd.f32 0.0, %v3353
    %v3355 = vpop.f32.mrb[0].mxu0
    %v3356 = vadd.f32 0.0, %v3355
    %3357 = vmatprep.mubr.f32.mxu0 %v3264
    %3358 = vmatmul.mubr.f32.gmra.mrb[0].mxu0 %v2946
    %v3359 = vpop.f32.mrb[0].mxu0
    %v3360 = vadd.f32 0.0, %v3359
    %v3361 = vpop.f32.mrb[0].mxu0
    %v3362 = vadd.f32 0.0, %v3361
    %3363 = vmatprep.mubr.f32.mxu0 %v3267
    %3364 = vmatmul.mubr.f32.gmra.mrb[0].mxu0 %v2948
    %v3365 = vpop.f32.mrb[0].mxu0
    %v3366 = vadd.f32 0.0, %v3365
    %v3367 = vpop.f32.mrb[0].mxu0
    %v3368 = vadd.f32 0.0, %v3367
    %3369 = vmatprep.mubr.f32.mxu0 %v3270
    %3370 = vmatmul.mubr.f32.gmra.mrb[0].mxu0 %v2950
    %v3371 = vpop.f32.mrb[0].mxu0
    %v3372 = vadd.f32 0.0, %v3371
    %v3373 = vpop.f32.mrb[0].mxu0
    %v3374 = vadd.f32 0.0, %v3373
    %3375 = vmatprep.mubr.f32.mxu0 %v3273
    %3376 = vmatmul.mubr.f32.gmra.mrb[0].mxu0 %v2952
    %v3377 = vpop.f32.mrb[0].mxu0
    %v3378 = vadd.f32 0.0, %v3377
    %v3379 = vpop.f32.mrb[0].mxu0
    %v3380 = vadd.f32 0.0, %v3379
    %3381 = vdwg.mxu0
    %3382 = vmatprep.subr.mxu0 %v2957
    %3383 = vmatpush1.msra.mxu0 %v2956
    %3384 = vmatprep.subr.mxu0 %v2969
    %3385 = vmatpush1.msra.mxu0 %v2968
    %3386 = vmatprep.subr.mxu0 %v2981
    %3387 = vmatpush1.msra.mxu0 %v2980
    %3388 = vmatprep.subr.mxu0 %v2993
    %3389 = vmatpush1.msra.mxu0 %v2992
    %3390 = vmatprep.subr.mxu0 %v3005
    %3391 = vmatpush1.msra.mxu0 %v3004
    %3392 = vmatprep.subr.mxu0 %v3017
    %3393 = vmatpush1.msra.mxu0 %v3016
    %3394 = vmatprep.subr.mxu0 %v3029
    %3395 = vmatpush1.msra.mxu0 %v3028
    %3396 = vmatprep.subr.mxu0 %v3041
    %3397 = vmatpush1.msra.mxu0 %v3040
    %3398 = vmatprep.subr.mxu0 %v3053
    %3399 = vmatpush1.msra.mxu0 %v3052
    %3400 = vmatprep.subr.mxu0 %v3065
    %3401 = vmatpush1.msra.mxu0 %v3064
    %3402 = vmatprep.subr.mxu0 %v3077
    %3403 = vmatpush1.msra.mxu0 %v3076
    %3404 = vmatprep.subr.mxu0 %v3089
    %3405 = vmatpush1.msra.mxu0 %v3088
    %3406 = vmatprep.subr.mxu0 %v3101
    %3407 = vmatpush1.msra.mxu0 %v3100
    %3408 = vmatprep.subr.mxu0 %v3113
    %3409 = vmatpush1.msra.mxu0 %v3112
    %3410 = vmatprep.subr.mxu0 %v3125
    %3411 = vmatpush1.msra.mxu0 %v3124
    %3412 = vmatprep.subr.mxu0 %v3137
    %3413 = vmatpush1.msra.mxu0 %v3136
    %3414 = vmatprep.subr.mxu0 %v3149
    %3415 = vmatpush1.msra.mxu0 %v3148
    %3416 = vmatprep.subr.mxu0 %v3161
    %3417 = vmatpush1.msra.mxu0 %v3160
    %3418 = vmatprep.subr.mxu0 %v3173
    %3419 = vmatpush1.msra.mxu0 %v3172
    %3420 = vmatprep.subr.mxu0 %v3185
    %3421 = vmatpush1.msra.mxu0 %v3184
    %3422 = vmatprep.subr.mxu0 %v3197
    %3423 = vmatpush1.msra.mxu0 %v3196
    %3424 = vmatprep.subr.mxu0 %v3209
    %3425 = vmatpush1.msra.mxu0 %v3208
    %3426 = vmatprep.subr.mxu0 %v3221
    %3427 = vmatpush1.msra.mxu0 %v3220
    %3428 = vmatprep.subr.mxu0 %v3233
    %3429 = vmatpush1.msra.mxu0 %v3232
    %3430 = vmatprep.subr.mxu0 %v3245
    %3431 = vmatpush1.msra.mxu0 %v3244
    %3432 = vmatprep.subr.mxu0 0.0
    %3433 = vmatpush1.msra.mxu0 0.0
    %3434 = vmatprep.subr.mxu0 0.0
    %3435 = vmatpush1.msra.mxu0 0.0
    %3436 = vmatprep.subr.mxu0 0.0
    %3437 = vmatpush1.msra.mxu0 0.0
    %3438 = vmatprep.subr.mxu0 0.0
    %3439 = vmatpush1.msra.mxu0 0.0
    %3440 = vmatprep.subr.mxu0 0.0
    %3441 = vmatpush1.msra.mxu0 0.0
    %3442 = vmatprep.subr.mxu0 0.0
    %3443 = vmatpush1.msra.mxu0 0.0
    %3444 = vmatprep.subr.mxu0 0.0
    %3445 = vmatpush1.msra.mxu0 0.0
    %3446 = vmatprep.mubr.f32.mxu0 %v3255
    %3447 = vmatmul.mubr.f32.gmra.mrb[0].mxu0 %v2940
    %v3448 = vpop.f32.mrb[0].mxu0
    %v3449 = vadd.f32 0.0, %v3448
    %v3450 = vpop.f32.mrb[0].mxu0
    %v3451 = vadd.f32 0.0, %v3450
    %3452 = vmatprep.mubr.f32.mxu0 %v3258
    %3453 = vmatmul.mubr.f32.gmra.mrb[0].mxu0 %v2942
    %v3454 = vpop.f32.mrb[0].mxu0
    %v3455 = vadd.f32 0.0, %v3454
    %v3456 = vpop.f32.mrb[0].mxu0
    %v3457 = vadd.f32 0.0, %v3456
    %3458 = vmatprep.mubr.f32.mxu0 %v3261
    %3459 = vmatmul.mubr.f32.gmra.mrb[0].mxu0 %v2944
    %v3460 = vpop.f32.mrb[0].mxu0
    %v3461 = vadd.f32 0.0, %v3460
    %v3462 = vpop.f32.mrb[0].mxu0
    %v3463 = vadd.f32 0.0, %v3462
    %3464 = vmatprep.mubr.f32.mxu0 %v3264
    %3465 = vmatmul.mubr.f32.gmra.mrb[0].mxu0 %v2946
    %v3466 = vpop.f32.mrb[0].mxu0
    %v3467 = vadd.f32 0.0, %v3466
    %v3468 = vpop.f32.mrb[0].mxu0
    %v3469 = vadd.f32 0.0, %v3468
    %3470 = vmatprep.mubr.f32.mxu0 %v3267
    %3471 = vmatmul.mubr.f32.gmra.mrb[0].mxu0 %v2948
    %v3472 = vpop.f32.mrb[0].mxu0
    %v3473 = vadd.f32 0.0, %v3472
    %v3474 = vpop.f32.mrb[0].mxu0
    %v3475 = vadd.f32 0.0, %v3474
    %3476 = vmatprep.mubr.f32.mxu0 %v3270
    %3477 = vmatmul.mubr.f32.gmra.mrb[0].mxu0 %v2950
    %v3478 = vpop.f32.mrb[0].mxu0
    %v3479 = vadd.f32 0.0, %v3478
    %v3480 = vpop.f32.mrb[0].mxu0
    %v3481 = vadd.f32 0.0, %v3480
    %3482 = vmatprep.mubr.f32.mxu0 %v3273
    %3483 = vmatmul.mubr.f32.gmra.mrb[0].mxu0 %v2952
    %v3484 = vpop.f32.mrb[0].mxu0
    %v3485 = vadd.f32 0.0, %v3484
    %v3486 = vpop.f32.mrb[0].mxu0
    %v3487 = vadd.f32 0.0, %v3486
    %3488 = vdwg.mxu0
    %3489 = vmatprep.subr.mxu0 %v2959
    %3490 = vmatpush1.msra.mxu0 %v2958
    %3491 = vmatprep.subr.mxu0 %v2971
    %3492 = vmatpush1.msra.mxu0 %v2970
    %3493 = vmatprep.subr.mxu0 %v2983
    %3494 = vmatpush1.msra.mxu0 %v2982
    %3495 = vmatprep.subr.mxu0 %v2995
    %3496 = vmatpush1.msra.mxu0 %v2994
    %3497 = vmatprep.subr.mxu0 %v3007
    %3498 = vmatpush1.msra.mxu0 %v3006
    %3499 = vmatprep.subr.mxu0 %v3019
    %3500 = vmatpush1.msra.mxu0 %v3018
    %3501 = vmatprep.subr.mxu0 %v3031
    %3502 = vmatpush1.msra.mxu0 %v3030
    %3503 = vmatprep.subr.mxu0 %v3043
    %3504 = vmatpush1.msra.mxu0 %v3042
    %3505 = vmatprep.subr.mxu0 %v3055
    %3506 = vmatpush1.msra.mxu0 %v3054
    %3507 = vmatprep.subr.mxu0 %v3067
    %3508 = vmatpush1.msra.mxu0 %v3066
    %3509 = vmatprep.subr.mxu0 %v3079
    %3510 = vmatpush1.msra.mxu0 %v3078
    %3511 = vmatprep.subr.mxu0 %v3091
    %3512 = vmatpush1.msra.mxu0 %v3090
    %3513 = vmatprep.subr.mxu0 %v3103
    %3514 = vmatpush1.msra.mxu0 %v3102
    %3515 = vmatprep.subr.mxu0 %v3115
    %3516 = vmatpush1.msra.mxu0 %v3114
    %3517 = vmatprep.subr.mxu0 %v3127
    %3518 = vmatpush1.msra.mxu0 %v3126
    %3519 = vmatprep.subr.mxu0 %v3139
    %3520 = vmatpush1.msra.mxu0 %v3138
    %3521 = vmatprep.subr.mxu0 %v3151
    %3522 = vmatpush1.msra.mxu0 %v3150
    %3523 = vmatprep.subr.mxu0 %v3163
    %3524 = vmatpush1.msra.mxu0 %v3162
    %3525 = vmatprep.subr.mxu0 %v3175
    %3526 = vmatpush1.msra.mxu0 %v3174
    %3527 = vmatprep.subr.mxu0 %v3187
    %3528 = vmatpush1.msra.mxu0 %v3186
    %3529 = vmatprep.subr.mxu0 %v3199
    %3530 = vmatpush1.msra.mxu0 %v3198
    %3531 = vmatprep.subr.mxu0 %v3211
    %3532 = vmatpush1.msra.mxu0 %v3210
    %3533 = vmatprep.subr.mxu0 %v3223
    %3534 = vmatpush1.msra.mxu0 %v3222
    %3535 = vmatprep.subr.mxu0 %v3235
    %3536 = vmatpush1.msra.mxu0 %v3234
    %3537 = vmatprep.subr.mxu0 %v3247
    %3538 = vmatpush1.msra.mxu0 %v3246
    %3539 = vmatprep.subr.mxu0 0.0
    %3540 = vmatpush1.msra.mxu0 0.0
    %3541 = vmatprep.subr.mxu0 0.0
    %3542 = vmatpush1.msra.mxu0 0.0
    %3543 = vmatprep.subr.mxu0 0.0
    %3544 = vmatpush1.msra.mxu0 0.0
    %3545 = vmatprep.subr.mxu0 0.0
    %3546 = vmatpush1.msra.mxu0 0.0
    %3547 = vmatprep.subr.mxu0 0.0
    %3548 = vmatpush1.msra.mxu0 0.0
    %3549 = vmatprep.subr.mxu0 0.0
    %3550 = vmatpush1.msra.mxu0 0.0
    %3551 = vmatprep.subr.mxu0 0.0
    %3552 = vmatpush1.msra.mxu0 0.0
    %3553 = vmatprep.mubr.f32.mxu0 %v3255
    %3554 = vmatmul.mubr.f32.gmra.mrb[0].mxu0 %v2940
    %v3555 = vpop.f32.mrb[0].mxu0
    %v3556 = vadd.f32 0.0, %v3555
    %v3557 = vpop.f32.mrb[0].mxu0
    %v3558 = vadd.f32 0.0, %v3557
    %3559 = vmatprep.mubr.f32.mxu0 %v3258
    %3560 = vmatmul.mubr.f32.gmra.mrb[0].mxu0 %v2942
    %v3561 = vpop.f32.mrb[0].mxu0
    %v3562 = vadd.f32 0.0, %v3561
    %v3563 = vpop.f32.mrb[0].mxu0
    %v3564 = vadd.f32 0.0, %v3563
    %3565 = vmatprep.mubr.f32.mxu0 %v3261
    %3566 = vmatmul.mubr.f32.gmra.mrb[0].mxu0 %v2944
    %v3567 = vpop.f32.mrb[0].mxu0
    %v3568 = vadd.f32 0.0, %v3567
    %v3569 = vpop.f32.mrb[0].mxu0
    %v3570 = vadd.f32 0.0, %v3569
    %3571 = vmatprep.mubr.f32.mxu0 %v3264
    %3572 = vmatmul.mubr.f32.gmra.mrb[0].mxu0 %v2946
    %v3573 = vpop.f32.mrb[0].mxu0
    %v3574 = vadd.f32 0.0, %v3573
    %v3575 = vpop.f32.mrb[0].mxu0
    %v3576 = vadd.f32 0.0, %v3575
    %3577 = vmatprep.mubr.f32.mxu0 %v3267
    %3578 = vmatmul.mubr.f32.gmra.mrb[0].mxu0 %v2948
    %v3579 = vpop.f32.mrb[0].mxu0
    %v3580 = vadd.f32 0.0, %v3579
    %v3581 = vpop.f32.mrb[0].mxu0
    %v3582 = vadd.f32 0.0, %v3581
    %3583 = vmatprep.mubr.f32.mxu0 %v3270
    %3584 = vmatmul.mubr.f32.gmra.mrb[0].mxu0 %v2950
    %v3585 = vpop.f32.mrb[0].mxu0
    %v3586 = vadd.f32 0.0, %v3585
    %v3587 = vpop.f32.mrb[0].mxu0
    %v3588 = vadd.f32 0.0, %v3587
    %3589 = vmatprep.mubr.f32.mxu0 %v3273
    %3590 = vmatmul.mubr.f32.gmra.mrb[0].mxu0 %v2952
    %v3591 = vpop.f32.mrb[0].mxu0
    %v3592 = vadd.f32 0.0, %v3591
    %v3593 = vpop.f32.mrb[0].mxu0
    %v3594 = vadd.f32 0.0, %v3593
    %3595 = vdwg.mxu0
    %3596 = vmatprep.subr.mxu0 %v2961
    %3597 = vmatpush1.msra.mxu0 %v2960
    %3598 = vmatprep.subr.mxu0 %v2973
    %3599 = vmatpush1.msra.mxu0 %v2972
    %3600 = vmatprep.subr.mxu0 %v2985
    %3601 = vmatpush1.msra.mxu0 %v2984
    %3602 = vmatprep.subr.mxu0 %v2997
    %3603 = vmatpush1.msra.mxu0 %v2996
    %3604 = vmatprep.subr.mxu0 %v3009
    %3605 = vmatpush1.msra.mxu0 %v3008
    %3606 = vmatprep.subr.mxu0 %v3021
    %3607 = vmatpush1.msra.mxu0 %v3020
    %3608 = vmatprep.subr.mxu0 %v3033
    %3609 = vmatpush1.msra.mxu0 %v3032
    %3610 = vmatprep.subr.mxu0 %v3045
    %3611 = vmatpush1.msra.mxu0 %v3044
    %3612 = vmatprep.subr.mxu0 %v3057
    %3613 = vmatpush1.msra.mxu0 %v3056
    %3614 = vmatprep.subr.mxu0 %v3069
    %3615 = vmatpush1.msra.mxu0 %v3068
    %3616 = vmatprep.subr.mxu0 %v3081
    %3617 = vmatpush1.msra.mxu0 %v3080
    %3618 = vmatprep.subr.mxu0 %v3093
    %3619 = vmatpush1.msra.mxu0 %v3092
    %3620 = vmatprep.subr.mxu0 %v3105
    %3621 = vmatpush1.msra.mxu0 %v3104
    %3622 = vmatprep.subr.mxu0 %v3117
    %3623 = vmatpush1.msra.mxu0 %v3116
    %3624 = vmatprep.subr.mxu0 %v3129
    %3625 = vmatpush1.msra.mxu0 %v3128
    %3626 = vmatprep.subr.mxu0 %v3141
    %3627 = vmatpush1.msra.mxu0 %v3140
    %3628 = vmatprep.subr.mxu0 %v3153
    %3629 = vmatpush1.msra.mxu0 %v3152
    %3630 = vmatprep.subr.mxu0 %v3165
    %3631 = vmatpush1.msra.mxu0 %v3164
    %3632 = vmatprep.subr.mxu0 %v3177
    %3633 = vmatpush1.msra.mxu0 %v3176
    %3634 = vmatprep.subr.mxu0 %v3189
    %3635 = vmatpush1.msra.mxu0 %v3188
    %3636 = vmatprep.subr.mxu0 %v3201
    %3637 = vmatpush1.msra.mxu0 %v3200
    %3638 = vmatprep.subr.mxu0 %v3213
    %3639 = vmatpush1.msra.mxu0 %v3212
    %3640 = vmatprep.subr.mxu0 %v3225
    %3641 = vmatpush1.msra.mxu0 %v3224
    %3642 = vmatprep.subr.mxu0 %v3237
    %3643 = vmatpush1.msra.mxu0 %v3236
    %3644 = vmatprep.subr.mxu0 %v3249
    %3645 = vmatpush1.msra.mxu0 %v3248
    %3646 = vmatprep.subr.mxu0 0.0
    %3647 = vmatpush1.msra.mxu0 0.0
    %3648 = vmatprep.subr.mxu0 0.0
    %3649 = vmatpush1.msra.mxu0 0.0
    %3650 = vmatprep.subr.mxu0 0.0
    %3651 = vmatpush1.msra.mxu0 0.0
    %3652 = vmatprep.subr.mxu0 0.0
    %3653 = vmatpush1.msra.mxu0 0.0
    %3654 = vmatprep.subr.mxu0 0.0
    %3655 = vmatpush1.msra.mxu0 0.0
    %3656 = vmatprep.subr.mxu0 0.0
    %3657 = vmatpush1.msra.mxu0 0.0
    %3658 = vmatprep.subr.mxu0 0.0
    %3659 = vmatpush1.msra.mxu0 0.0
    %3660 = vmatprep.mubr.f32.mxu0 %v3255
    %3661 = vmatmul.mubr.f32.gmra.mrb[0].mxu0 %v2940
    %v3662 = vpop.f32.mrb[0].mxu0
    %v3663 = vadd.f32 0.0, %v3662
    %v3664 = vpop.f32.mrb[0].mxu0
    %v3665 = vadd.f32 0.0, %v3664
    %3666 = vmatprep.mubr.f32.mxu0 %v3258
    %3667 = vmatmul.mubr.f32.gmra.mrb[0].mxu0 %v2942
    %v3668 = vpop.f32.mrb[0].mxu0
    %v3669 = vadd.f32 0.0, %v3668
    %v3670 = vpop.f32.mrb[0].mxu0
    %v3671 = vadd.f32 0.0, %v3670
    %3672 = vmatprep.mubr.f32.mxu0 %v3261
    %3673 = vmatmul.mubr.f32.gmra.mrb[0].mxu0 %v2944
    %v3674 = vpop.f32.mrb[0].mxu0
    %v3675 = vadd.f32 0.0, %v3674
    %v3676 = vpop.f32.mrb[0].mxu0
    %v3677 = vadd.f32 0.0, %v3676
    %3678 = vmatprep.mubr.f32.mxu0 %v3264
    %3679 = vmatmul.mubr.f32.gmra.mrb[0].mxu0 %v2946
    %v3680 = vpop.f32.mrb[0].mxu0
    %v3681 = vadd.f32 0.0, %v3680
    %v3682 = vpop.f32.mrb[0].mxu0
    %v3683 = vadd.f32 0.0, %v3682
    %3684 = vmatprep.mubr.f32.mxu0 %v3267
    %3685 = vmatmul.mubr.f32.gmra.mrb[0].mxu0 %v2948
    %v3686 = vpop.f32.mrb[0].mxu0
    %v3687 = vadd.f32 0.0, %v3686
    %v3688 = vpop.f32.mrb[0].mxu0
    %v3689 = vadd.f32 0.0, %v3688
    %3690 = vmatprep.mubr.f32.mxu0 %v3270
    %3691 = vmatmul.mubr.f32.gmra.mrb[0].mxu0 %v2950
    %v3692 = vpop.f32.mrb[0].mxu0
    %v3693 = vadd.f32 0.0, %v3692
    %v3694 = vpop.f32.mrb[0].mxu0
    %v3695 = vadd.f32 0.0, %v3694
    %3696 = vmatprep.mubr.f32.mxu0 %v3273
    %3697 = vmatmul.mubr.f32.gmra.mrb[0].mxu0 %v2952
    %v3698 = vpop.f32.mrb[0].mxu0
    %v3699 = vadd.f32 0.0, %v3698
    %v3700 = vpop.f32.mrb[0].mxu0
    %v3701 = vadd.f32 0.0, %v3700
    %3702 = vdwg.mxu0
    %3703 = vmatprep.subr.mxu0 %v2963
    %3704 = vmatpush1.msra.mxu0 %v2962
    %3705 = vmatprep.subr.mxu0 %v2975
    %3706 = vmatpush1.msra.mxu0 %v2974
    %3707 = vmatprep.subr.mxu0 %v2987
    %3708 = vmatpush1.msra.mxu0 %v2986
    %3709 = vmatprep.subr.mxu0 %v2999
    %3710 = vmatpush1.msra.mxu0 %v2998
    %3711 = vmatprep.subr.mxu0 %v3011
    %3712 = vmatpush1.msra.mxu0 %v3010
    %3713 = vmatprep.subr.mxu0 %v3023
    %3714 = vmatpush1.msra.mxu0 %v3022
    %3715 = vmatprep.subr.mxu0 %v3035
    %3716 = vmatpush1.msra.mxu0 %v3034
    %3717 = vmatprep.subr.mxu0 %v3047
    %3718 = vmatpush1.msra.mxu0 %v3046
    %3719 = vmatprep.subr.mxu0 %v3059
    %3720 = vmatpush1.msra.mxu0 %v3058
    %3721 = vmatprep.subr.mxu0 %v3071
    %3722 = vmatpush1.msra.mxu0 %v3070
    %3723 = vmatprep.subr.mxu0 %v3083
    %3724 = vmatpush1.msra.mxu0 %v3082
    %3725 = vmatprep.subr.mxu0 %v3095
    %3726 = vmatpush1.msra.mxu0 %v3094
    %3727 = vmatprep.subr.mxu0 %v3107
    %3728 = vmatpush1.msra.mxu0 %v3106
    %3729 = vmatprep.subr.mxu0 %v3119
    %3730 = vmatpush1.msra.mxu0 %v3118
    %3731 = vmatprep.subr.mxu0 %v3131
    %3732 = vmatpush1.msra.mxu0 %v3130
    %3733 = vmatprep.subr.mxu0 %v3143
    %3734 = vmatpush1.msra.mxu0 %v3142
    %3735 = vmatprep.subr.mxu0 %v3155
    %3736 = vmatpush1.msra.mxu0 %v3154
    %3737 = vmatprep.subr.mxu0 %v3167
    %3738 = vmatpush1.msra.mxu0 %v3166
    %3739 = vmatprep.subr.mxu0 %v3179
    %3740 = vmatpush1.msra.mxu0 %v3178
    %3741 = vmatprep.subr.mxu0 %v3191
    %3742 = vmatpush1.msra.mxu0 %v3190
    %3743 = vmatprep.subr.mxu0 %v3203
    %3744 = vmatpush1.msra.mxu0 %v3202
    %3745 = vmatprep.subr.mxu0 %v3215
    %3746 = vmatpush1.msra.mxu0 %v3214
    %3747 = vmatprep.subr.mxu0 %v3227
    %3748 = vmatpush1.msra.mxu0 %v3226
    %3749 = vmatprep.subr.mxu0 %v3239
    %3750 = vmatpush1.msra.mxu0 %v3238
    %3751 = vmatprep.subr.mxu0 %v3251
    %3752 = vmatpush1.msra.mxu0 %v3250
    %3753 = vmatprep.subr.mxu0 0.0
    %3754 = vmatpush1.msra.mxu0 0.0
    %3755 = vmatprep.subr.mxu0 0.0
    %3756 = vmatpush1.msra.mxu0 0.0
    %3757 = vmatprep.subr.mxu0 0.0
    %3758 = vmatpush1.msra.mxu0 0.0
    %3759 = vmatprep.subr.mxu0 0.0
    %3760 = vmatpush1.msra.mxu0 0.0
    %3761 = vmatprep.subr.mxu0 0.0
    %3762 = vmatpush1.msra.mxu0 0.0
    %3763 = vmatprep.subr.mxu0 0.0
    %3764 = vmatpush1.msra.mxu0 0.0
    %3765 = vmatprep.subr.mxu0 0.0
    %3766 = vmatpush1.msra.mxu0 0.0
    %3767 = vmatprep.mubr.f32.mxu0 %v3255
    %3768 = vmatmul.mubr.f32.gmra.mrb[0].mxu0 %v2940
    %v3769 = vpop.f32.mrb[0].mxu0
    %v3770 = vadd.f32 0.0, %v3769
    %v3771 = vpop.f32.mrb[0].mxu0
    %v3772 = vadd.f32 0.0, %v3771
    %3773 = vmatprep.mubr.f32.mxu0 %v3258
    %3774 = vmatmul.mubr.f32.gmra.mrb[0].mxu0 %v2942
    %v3775 = vpop.f32.mrb[0].mxu0
    %v3776 = vadd.f32 0.0, %v3775
    %v3777 = vpop.f32.mrb[0].mxu0
    %v3778 = vadd.f32 0.0, %v3777
    %3779 = vmatprep.mubr.f32.mxu0 %v3261
    %3780 = vmatmul.mubr.f32.gmra.mrb[0].mxu0 %v2944
    %v3781 = vpop.f32.mrb[0].mxu0
    %v3782 = vadd.f32 0.0, %v3781
    %v3783 = vpop.f32.mrb[0].mxu0
    %v3784 = vadd.f32 0.0, %v3783
    %3785 = vmatprep.mubr.f32.mxu0 %v3264
    %3786 = vmatmul.mubr.f32.gmra.mrb[0].mxu0 %v2946
    %v3787 = vpop.f32.mrb[0].mxu0
    %v3788 = vadd.f32 0.0, %v3787
    %v3789 = vpop.f32.mrb[0].mxu0
    %v3790 = vadd.f32 0.0, %v3789
    %3791 = vmatprep.mubr.f32.mxu0 %v3267
    %3792 = vmatmul.mubr.f32.gmra.mrb[0].mxu0 %v2948
    %v3793 = vpop.f32.mrb[0].mxu0
    %v3794 = vadd.f32 0.0, %v3793
    %v3795 = vpop.f32.mrb[0].mxu0
    %v3796 = vadd.f32 0.0, %v3795
    %3797 = vmatprep.mubr.f32.mxu0 %v3270
    %3798 = vmatmul.mubr.f32.gmra.mrb[0].mxu0 %v2950
    %v3799 = vpop.f32.mrb[0].mxu0
    %v3800 = vadd.f32 0.0, %v3799
    %v3801 = vpop.f32.mrb[0].mxu0
    %v3802 = vadd.f32 0.0, %v3801
    %3803 = vmatprep.mubr.f32.mxu0 %v3273
    %3804 = vmatmul.mubr.f32.gmra.mrb[0].mxu0 %v2952
    %v3805 = vpop.f32.mrb[0].mxu0
    %v3806 = vadd.f32 0.0, %v3805
    %v3807 = vpop.f32.mrb[0].mxu0
    %v3808 = vadd.f32 0.0, %v3807
    %3809 = vdwg.mxu0
    %3810 = vmatprep.subr.mxu0 %v2965
    %3811 = vmatpush1.msra.mxu0 %v2964
    %3812 = vmatprep.subr.mxu0 %v2977
    %3813 = vmatpush1.msra.mxu0 %v2976
    %3814 = vmatprep.subr.mxu0 %v2989
    %3815 = vmatpush1.msra.mxu0 %v2988
    %3816 = vmatprep.subr.mxu0 %v3001
    %3817 = vmatpush1.msra.mxu0 %v3000
    %3818 = vmatprep.subr.mxu0 %v3013
    %3819 = vmatpush1.msra.mxu0 %v3012
    %3820 = vmatprep.subr.mxu0 %v3025
    %3821 = vmatpush1.msra.mxu0 %v3024
    %3822 = vmatprep.subr.mxu0 %v3037
    %3823 = vmatpush1.msra.mxu0 %v3036
    %3824 = vmatprep.subr.mxu0 %v3049
    %3825 = vmatpush1.msra.mxu0 %v3048
    %3826 = vmatprep.subr.mxu0 %v3061
    %3827 = vmatpush1.msra.mxu0 %v3060
    %3828 = vmatprep.subr.mxu0 %v3073
    %3829 = vmatpush1.msra.mxu0 %v3072
    %3830 = vmatprep.subr.mxu0 %v3085
    %3831 = vmatpush1.msra.mxu0 %v3084
    %3832 = vmatprep.subr.mxu0 %v3097
    %3833 = vmatpush1.msra.mxu0 %v3096
    %3834 = vmatprep.subr.mxu0 %v3109
    %3835 = vmatpush1.msra.mxu0 %v3108
    %3836 = vmatprep.subr.mxu0 %v3121
    %3837 = vmatpush1.msra.mxu0 %v3120
    %3838 = vmatprep.subr.mxu0 %v3133
    %3839 = vmatpush1.msra.mxu0 %v3132
    %3840 = vmatprep.subr.mxu0 %v3145
    %3841 = vmatpush1.msra.mxu0 %v3144
    %3842 = vmatprep.subr.mxu0 %v3157
    %3843 = vmatpush1.msra.mxu0 %v3156
    %3844 = vmatprep.subr.mxu0 %v3169
    %3845 = vmatpush1.msra.mxu0 %v3168
    %3846 = vmatprep.subr.mxu0 %v3181
    %3847 = vmatpush1.msra.mxu0 %v3180
    %3848 = vmatprep.subr.mxu0 %v3193
    %3849 = vmatpush1.msra.mxu0 %v3192
    %3850 = vmatprep.subr.mxu0 %v3205
    %3851 = vmatpush1.msra.mxu0 %v3204
    %3852 = vmatprep.subr.mxu0 %v3217
    %3853 = vmatpush1.msra.mxu0 %v3216
    %3854 = vmatprep.subr.mxu0 %v3229
    %3855 = vmatpush1.msra.mxu0 %v3228
    %3856 = vmatprep.subr.mxu0 %v3241
    %3857 = vmatpush1.msra.mxu0 %v3240
    %3858 = vmatprep.subr.mxu0 %v3253
    %3859 = vmatpush1.msra.mxu0 %v3252
    %3860 = vmatprep.subr.mxu0 0.0
    %3861 = vmatpush1.msra.mxu0 0.0
    %3862 = vmatprep.subr.mxu0 0.0
    %3863 = vmatpush1.msra.mxu0 0.0
    %3864 = vmatprep.subr.mxu0 0.0
    %3865 = vmatpush1.msra.mxu0 0.0
    %3866 = vmatprep.subr.mxu0 0.0
    %3867 = vmatpush1.msra.mxu0 0.0
    %3868 = vmatprep.subr.mxu0 0.0
    %3869 = vmatpush1.msra.mxu0 0.0
    %3870 = vmatprep.subr.mxu0 0.0
    %3871 = vmatpush1.msra.mxu0 0.0
    %3872 = vmatprep.subr.mxu0 0.0
    %3873 = vmatpush1.msra.mxu0 0.0
    %3874 = vmatprep.mubr.f32.mxu0 %v3255
    %3875 = vmatmul.mubr.f32.gmra.mrb[0].mxu0 %v2940
    %v3876 = vpop.f32.mrb[0].mxu0
    %v3877 = vadd.f32 0.0, %v3876
    %v3878 = vpop.f32.mrb[0].mxu0
    %v3879 = vadd.f32 0.0, %v3878
    %3880 = vmatprep.mubr.f32.mxu0 %v3258
    %3881 = vmatmul.mubr.f32.gmra.mrb[0].mxu0 %v2942
    %v3882 = vpop.f32.mrb[0].mxu0
    %v3883 = vadd.f32 0.0, %v3882
    %v3884 = vpop.f32.mrb[0].mxu0
    %v3885 = vadd.f32 0.0, %v3884
    %3886 = vmatprep.mubr.f32.mxu0 %v3261
    %3887 = vmatmul.mubr.f32.gmra.mrb[0].mxu0 %v2944
    %v3888 = vpop.f32.mrb[0].mxu0
    %v3889 = vadd.f32 0.0, %v3888
    %v3890 = vpop.f32.mrb[0].mxu0
    %v3891 = vadd.f32 0.0, %v3890
    %3892 = vmatprep.mubr.f32.mxu0 %v3264
    %3893 = vmatmul.mubr.f32.gmra.mrb[0].mxu0 %v2946
    %v3894 = vpop.f32.mrb[0].mxu0
    %v3895 = vadd.f32 0.0, %v3894
    %v3896 = vpop.f32.mrb[0].mxu0
    %v3897 = vadd.f32 0.0, %v3896
    %3898 = vmatprep.mubr.f32.mxu0 %v3267
    %3899 = vmatmul.mubr.f32.gmra.mrb[0].mxu0 %v2948
    %v3900 = vpop.f32.mrb[0].mxu0
    %v3901 = vadd.f32 0.0, %v3900
    %v3902 = vpop.f32.mrb[0].mxu0
    %v3903 = vadd.f32 0.0, %v3902
    %3904 = vmatprep.mubr.f32.mxu0 %v3270
    %3905 = vmatmul.mubr.f32.gmra.mrb[0].mxu0 %v2950
    %v3906 = vpop.f32.mrb[0].mxu0
    %v3907 = vadd.f32 0.0, %v3906
    %v3908 = vpop.f32.mrb[0].mxu0
    %v3909 = vadd.f32 0.0, %v3908
    %3910 = vmatprep.mubr.f32.mxu0 %v3273
    %3911 = vmatmul.mubr.f32.gmra.mrb[0].mxu0 %v2952
    %v3912 = vpop.f32.mrb[0].mxu0
    %v3913 = vadd.f32 0.0, %v3912
    %v3914 = vpop.f32.mrb[0].mxu0
    %v3915 = vadd.f32 0.0, %v3914
    %3916 = vdwg.mxu0
    %v4001 = vrot.slane %v3342, 7
    %v4002 = vrot.slane %v3344, 7
    %v4003 = vrot.slane %v3449, 7
    %v4004 = vrot.slane %v3451, 7
    %v4005 = vrot.slane %v3556, 7
    %v4006 = vrot.slane %v3558, 7
    %v4007 = vrot.slane %v3663, 7
    %v4008 = vrot.slane %v3665, 7
    %v4009 = vrot.slane %v3770, 7
    %v4010 = vrot.slane %v3772, 7
    %v4011 = vrot.slane %v3877, 7
    %v4012 = vrot.slane %v3879, 7
    %v4013 = vrot.slane %v3348, 7
    %v4014 = vsel %vm418, %v4001, %v4013
    %v4015 = vrot.slane %v3350, 7
    %v4016 = vsel %vm418, %v4002, %v4015
    %v4017 = vrot.slane %v3455, 7
    %v4018 = vsel %vm418, %v4003, %v4017
    %v4019 = vrot.slane %v3457, 7
    %v4020 = vsel %vm418, %v4004, %v4019
    %v4021 = vrot.slane %v3562, 7
    %v4022 = vsel %vm418, %v4005, %v4021
    %v4023 = vrot.slane %v3564, 7
    %v4024 = vsel %vm418, %v4006, %v4023
    %v4025 = vrot.slane %v3669, 7
    %v4026 = vsel %vm418, %v4007, %v4025
    %v4027 = vrot.slane %v3671, 7
    %v4028 = vsel %vm418, %v4008, %v4027
    %v4029 = vrot.slane %v3776, 7
    %v4030 = vsel %vm418, %v4009, %v4029
    %v4031 = vrot.slane %v3778, 7
    %v4032 = vsel %vm418, %v4010, %v4031
    %v4033 = vrot.slane %v3883, 7
    %v4034 = vsel %vm418, %v4011, %v4033
    %v4035 = vrot.slane %v3885, 7
    %v4036 = vsel %vm418, %v4012, %v4035
    %v4037 = vrot.slane %v3354, 7
    %v4038 = vsel %vm418, %v4013, %v4037
    %v4039 = vrot.slane %v3356, 7
    %v4040 = vsel %vm418, %v4015, %v4039
    %v4041 = vrot.slane %v3461, 7
    %v4042 = vsel %vm418, %v4017, %v4041
    %v4043 = vrot.slane %v3463, 7
    %v4044 = vsel %vm418, %v4019, %v4043
    %v4045 = vrot.slane %v3568, 7
    %v4046 = vsel %vm418, %v4021, %v4045
    %v4047 = vrot.slane %v3570, 7
    %v4048 = vsel %vm418, %v4023, %v4047
    %v4049 = vrot.slane %v3675, 7
    %v4050 = vsel %vm418, %v4025, %v4049
    %v4051 = vrot.slane %v3677, 7
    %v4052 = vsel %vm418, %v4027, %v4051
    %v4053 = vrot.slane %v3782, 7
    %v4054 = vsel %vm418, %v4029, %v4053
    %v4055 = vrot.slane %v3784, 7
    %v4056 = vsel %vm418, %v4031, %v4055
    %v4057 = vrot.slane %v3889, 7
    %v4058 = vsel %vm418, %v4033, %v4057
    %v4059 = vrot.slane %v3891, 7
    %v4060 = vsel %vm418, %v4035, %v4059
    %v4061 = vrot.slane %v3360, 7
    %v4062 = vsel %vm418, %v4037, %v4061
    %v4063 = vrot.slane %v3362, 7
    %v4064 = vsel %vm418, %v4039, %v4063
    %v4065 = vrot.slane %v3467, 7
    %v4066 = vsel %vm418, %v4041, %v4065
    %v4067 = vrot.slane %v3469, 7
    %v4068 = vsel %vm418, %v4043, %v4067
    %v4069 = vrot.slane %v3574, 7
    %v4070 = vsel %vm418, %v4045, %v4069
    %v4071 = vrot.slane %v3576, 7
    %v4072 = vsel %vm418, %v4047, %v4071
    %v4073 = vrot.slane %v3681, 7
    %v4074 = vsel %vm418, %v4049, %v4073
    %v4075 = vrot.slane %v3683, 7
    %v4076 = vsel %vm418, %v4051, %v4075
    %v4077 = vrot.slane %v3788, 7
    %v4078 = vsel %vm418, %v4053, %v4077
    %v4079 = vrot.slane %v3790, 7
    %v4080 = vsel %vm418, %v4055, %v4079
    %v4081 = vrot.slane %v3895, 7
    %v4082 = vsel %vm418, %v4057, %v4081
    %v4083 = vrot.slane %v3897, 7
    %v4084 = vsel %vm418, %v4059, %v4083
    %v4085 = vrot.slane %v3366, 7
    %v4086 = vsel %vm418, %v4061, %v4085
    %v4087 = vrot.slane %v3368, 7
    %v4088 = vsel %vm418, %v4063, %v4087
    %v4089 = vrot.slane %v3473, 7
    %v4090 = vsel %vm418, %v4065, %v4089
    %v4091 = vrot.slane %v3475, 7
    %v4092 = vsel %vm418, %v4067, %v4091
    %v4093 = vrot.slane %v3580, 7
    %v4094 = vsel %vm418, %v4069, %v4093
    %v4095 = vrot.slane %v3582, 7
    %v4096 = vsel %vm418, %v4071, %v4095
    %v4097 = vrot.slane %v3687, 7
    %v4098 = vsel %vm418, %v4073, %v4097
    %v4099 = vrot.slane %v3689, 7
    %v4100 = vsel %vm418, %v4075, %v4099
    %v4101 = vrot.slane %v3794, 7
    %v4102 = vsel %vm418, %v4077, %v4101
    %v4103 = vrot.slane %v3796, 7
    %v4104 = vsel %vm418, %v4079, %v4103
    %v4105 = vrot.slane %v3901, 7
    %v4106 = vsel %vm418, %v4081, %v4105
    %v4107 = vrot.slane %v3903, 7
    %v4108 = vsel %vm418, %v4083, %v4107
    %v4109 = vrot.slane %v3372, 7
    %v4110 = vsel %vm418, %v4085, %v4109
    %v4111 = vrot.slane %v3374, 7
    %v4112 = vsel %vm418, %v4087, %v4111
    %v4113 = vrot.slane %v3479, 7
    %v4114 = vsel %vm418, %v4089, %v4113
    %v4115 = vrot.slane %v3481, 7
    %v4116 = vsel %vm418, %v4091, %v4115
    %v4117 = vrot.slane %v3586, 7
    %v4118 = vsel %vm418, %v4093, %v4117
    %v4119 = vrot.slane %v3588, 7
    %v4120 = vsel %vm418, %v4095, %v4119
    %v4121 = vrot.slane %v3693, 7
    %v4122 = vsel %vm418, %v4097, %v4121
    %v4123 = vrot.slane %v3695, 7
    %v4124 = vsel %vm418, %v4099, %v4123
    %v4125 = vrot.slane %v3800, 7
    %v4126 = vsel %vm418, %v4101, %v4125
    %v4127 = vrot.slane %v3802, 7
    %v4128 = vsel %vm418, %v4103, %v4127
    %v4129 = vrot.slane %v3907, 7
    %v4130 = vsel %vm418, %v4105, %v4129
    %v4131 = vrot.slane %v3909, 7
    %v4132 = vsel %vm418, %v4107, %v4131
    %v4133 = vrot.slane %v3378, 7
    %v4134 = vsel %vm418, %v4109, %v4133
    %v4135 = vrot.slane %v3380, 7
    %v4136 = vsel %vm418, %v4111, %v4135
    %v4137 = vrot.slane %v3485, 7
    %v4138 = vsel %vm418, %v4113, %v4137
    %v4139 = vrot.slane %v3487, 7
    %v4140 = vsel %vm418, %v4115, %v4139
    %v4141 = vrot.slane %v3592, 7
    %v4142 = vsel %vm418, %v4117, %v4141
    %v4143 = vrot.slane %v3594, 7
    %v4144 = vsel %vm418, %v4119, %v4143
    %v4145 = vrot.slane %v3699, 7
    %v4146 = vsel %vm418, %v4121, %v4145
    %v4147 = vrot.slane %v3701, 7
    %v4148 = vsel %vm418, %v4123, %v4147
    %v4149 = vrot.slane %v3806, 7
    %v4150 = vsel %vm418, %v4125, %v4149
    %v4151 = vrot.slane %v3808, 7
    %v4152 = vsel %vm418, %v4127, %v4151
    %v4153 = vrot.slane %v3913, 7
    %v4154 = vsel %vm418, %v4129, %v4153
    %v4155 = vrot.slane %v3915, 7
    %v4156 = vsel %vm418, %v4131, %v4155
    %4241 = vst [vmem:[#allocation2] sm:$0xfe] %v4001
    %4242 = vst [vmem:[#allocation2 + $0x8] sm:$0xfe] %v4002
    %4243 = vst [vmem:[#allocation2 + $0x10] sm:$0xfe] %v4003
    %4244 = vst [vmem:[#allocation2 + $0x18] sm:$0xfe] %v4004
    %4245 = vst [vmem:[#allocation2 + $0x20] sm:$0xfe] %v4005
    %4246 = vst [vmem:[#allocation2 + $0x28] sm:$0xfe] %v4006
    %4247 = vst [vmem:[#allocation2 + $0x30] sm:$0xfe] %v4007
    %4248 = vst [vmem:[#allocation2 + $0x38] sm:$0xfe] %v4008
    %4249 = vst [vmem:[#allocation2 + $0x40] sm:$0xfe] %v4009
    %4250 = vst [vmem:[#allocation2 + $0x48] sm:$0xfe] %v4010
    %4251 = vst [vmem:[#allocation2 + $0x50] sm:$0xfe] %v4011
    %4252 = vst [vmem:[#allocation2 + $0x58] sm:$0xfe] %v4012
    %4253 = vst [vmem:[#allocation2 + $0x60] sm:$0xff] %v4014
    %4254 = vst [vmem:[#allocation2 + $0x68] sm:$0xff] %v4016
    %4255 = vst [vmem:[#allocation2 + $0x70] sm:$0xff] %v4018
    %4256 = vst [vmem:[#allocation2 + $0x78] sm:$0xff] %v4020
    %4257 = vst [vmem:[#allocation2 + $0x80] sm:$0xff] %v4022
    %4258 = vst [vmem:[#allocation2 + $0x88] sm:$0xff] %v4024
    %4259 = vst [vmem:[#allocation2 + $0x90] sm:$0xff] %v4026
    %4260 = vst [vmem:[#allocation2 + $0x98] sm:$0xff] %v4028
    %4261 = vst [vmem:[#allocation2 + $0xa0] sm:$0xff] %v4030
    %4262 = vst [vmem:[#allocation2 + $0xa8] sm:$0xff] %v4032
    %4263 = vst [vmem:[#allocation2 + $0xb0] sm:$0xff] %v4034
    %4264 = vst [vmem:[#allocation2 + $0xb8] sm:$0xff] %v4036
    %4265 = vst [vmem:[#allocation2 + $0xc0] sm:$0xff] %v4038
    %4266 = vst [vmem:[#allocation2 + $0xc8] sm:$0xff] %v4040
    %4267 = vst [vmem:[#allocation2 + $0xd0] sm:$0xff] %v4042
    %4268 = vst [vmem:[#allocation2 + $0xd8] sm:$0xff] %v4044
    %4269 = vst [vmem:[#allocation2 + $0xe0] sm:$0xff] %v4046
    %4270 = vst [vmem:[#allocation2 + $0xe8] sm:$0xff] %v4048
    %4271 = vst [vmem:[#allocation2 + $0xf0] sm:$0xff] %v4050
    %4272 = vst [vmem:[#allocation2 + $0xf8] sm:$0xff] %v4052
    %4273 = vst [vmem:[#allocation2 + $0x100] sm:$0xff] %v4054
    %4274 = vst [vmem:[#allocation2 + $0x108] sm:$0xff] %v4056
    %4275 = vst [vmem:[#allocation2 + $0x110] sm:$0xff] %v4058
    %4276 = vst [vmem:[#allocation2 + $0x118] sm:$0xff] %v4060
    %4277 = vst [vmem:[#allocation2 + $0x120] sm:$0xff] %v4062
    %4278 = vst [vmem:[#allocation2 + $0x128] sm:$0xff] %v4064
    %4279 = vst [vmem:[#allocation2 + $0x130] sm:$0xff] %v4066
    %4280 = vst [vmem:[#allocation2 + $0x138] sm:$0xff] %v4068
    %4281 = vst [vmem:[#allocation2 + $0x140] sm:$0xff] %v4070
    %4282 = vst [vmem:[#allocation2 + $0x148] sm:$0xff] %v4072
    %4283 = vst [vmem:[#allocation2 + $0x150] sm:$0xff] %v4074
    %4284 = vst [vmem:[#allocation2 + $0x158] sm:$0xff] %v4076
    %4285 = vst [vmem:[#allocation2 + $0x160] sm:$0xff] %v4078
    %4286 = vst [vmem:[#allocation2 + $0x168] sm:$0xff] %v4080
    %4287 = vst [vmem:[#allocation2 + $0x170] sm:$0xff] %v4082
    %4288 = vst [vmem:[#allocation2 + $0x178] sm:$0xff] %v4084
    %4289 = vst [vmem:[#allocation2 + $0x180] sm:$0xff] %v4086
    %4290 = vst [vmem:[#allocation2 + $0x188] sm:$0xff] %v4088
    %4291 = vst [vmem:[#allocation2 + $0x190] sm:$0xff] %v4090
    %4292 = vst [vmem:[#allocation2 + $0x198] sm:$0xff] %v4092
    %4293 = vst [vmem:[#allocation2 + $0x1a0] sm:$0xff] %v4094
    %4294 = vst [vmem:[#allocation2 + $0x1a8] sm:$0xff] %v4096
    %4295 = vst [vmem:[#allocation2 + $0x1b0] sm:$0xff] %v4098
    %4296 = vst [vmem:[#allocation2 + $0x1b8] sm:$0xff] %v4100
    %4297 = vst [vmem:[#allocation2 + $0x1c0] sm:$0xff] %v4102
    %4298 = vst [vmem:[#allocation2 + $0x1c8] sm:$0xff] %v4104
    %4299 = vst [vmem:[#allocation2 + $0x1d0] sm:$0xff] %v4106
    %4300 = vst [vmem:[#allocation2 + $0x1d8] sm:$0xff] %v4108
    %4301 = vst [vmem:[#allocation2 + $0x1e0] sm:$0xff] %v4110
    %4302 = vst [vmem:[#allocation2 + $0x1e8] sm:$0xff] %v4112
    %4303 = vst [vmem:[#allocation2 + $0x1f0] sm:$0xff] %v4114
    %4304 = vst [vmem:[#allocation2 + $0x1f8] sm:$0xff] %v4116
    %4305 = vst [vmem:[#allocation2 + $0x200] sm:$0xff] %v4118
    %4306 = vst [vmem:[#allocation2 + $0x208] sm:$0xff] %v4120
    %4307 = vst [vmem:[#allocation2 + $0x210] sm:$0xff] %v4122
    %4308 = vst [vmem:[#allocation2 + $0x218] sm:$0xff] %v4124
    %4309 = vst [vmem:[#allocation2 + $0x220] sm:$0xff] %v4126
    %4310 = vst [vmem:[#allocation2 + $0x228] sm:$0xff] %v4128
    %4311 = vst [vmem:[#allocation2 + $0x230] sm:$0xff] %v4130
    %4312 = vst [vmem:[#allocation2 + $0x238] sm:$0xff] %v4132
    %4313 = vst [vmem:[#allocation2 + $0x240] sm:$0x7] %v4134
    %4314 = vst [vmem:[#allocation2 + $0x248] sm:$0x7] %v4136
    %4315 = vst [vmem:[#allocation2 + $0x250] sm:$0x7] %v4138
    %4316 = vst [vmem:[#allocation2 + $0x258] sm:$0x7] %v4140
    %4317 = vst [vmem:[#allocation2 + $0x260] sm:$0x7] %v4142
    %4318 = vst [vmem:[#allocation2 + $0x268] sm:$0x7] %v4144
    %4319 = vst [vmem:[#allocation2 + $0x270] sm:$0x7] %v4146
    %4320 = vst [vmem:[#allocation2 + $0x278] sm:$0x7] %v4148
    %4321 = vst [vmem:[#allocation2 + $0x280] sm:$0x7] %v4150
    %4322 = vst [vmem:[#allocation2 + $0x288] sm:$0x7] %v4152
    %4323 = vst [vmem:[#allocation2 + $0x290] sm:$0x7] %v4154
    %4324 = vst [vmem:[#allocation2 + $0x298] sm:$0x7] %v4156
    %v4325 = vld [vmem:[#allocation2 + $0x20] sm:$0xff]
    %v4326 = vld [vmem:[#allocation2 + $0x28] sm:$0xff]
    %v4327 = vld [vmem:[#allocation2 + $0x30] sm:$0xff]
    %v4328 = vld [vmem:[#allocation2 + $0x38] sm:$0xff]
    %v4329 = vld [vmem:[#allocation2 + $0x80] sm:$0xff]
    %v4330 = vld [vmem:[#allocation2 + $0x88] sm:$0xff]
    %v4331 = vld [vmem:[#allocation2 + $0x90] sm:$0xff]
    %v4332 = vld [vmem:[#allocation2 + $0x98] sm:$0xff]
    %v4333 = vld [vmem:[#allocation2 + $0xe0] sm:$0xff]
    %v4334 = vld [vmem:[#allocation2 + $0xe8] sm:$0xff]
    %v4335 = vld [vmem:[#allocation2 + $0xf0] sm:$0xff]
    %v4336 = vld [vmem:[#allocation2 + $0xf8] sm:$0xff]
    %v4337 = vld [vmem:[#allocation2 + $0x140] sm:$0xff]
    %v4338 = vld [vmem:[#allocation2 + $0x148] sm:$0xff]
    %v4339 = vld [vmem:[#allocation2 + $0x150] sm:$0xff]
    %v4340 = vld [vmem:[#allocation2 + $0x158] sm:$0xff]
    %v4341 = vld [vmem:[#allocation2 + $0x1a0] sm:$0xff]
    %v4342 = vld [vmem:[#allocation2 + $0x1a8] sm:$0xff]
    %v4343 = vld [vmem:[#allocation2 + $0x1b0] sm:$0xff]
    %v4344 = vld [vmem:[#allocation2 + $0x1b8] sm:$0xff]
    %v4345 = vld [vmem:[#allocation2 + $0x200] sm:$0xff]
    %v4346 = vld [vmem:[#allocation2 + $0x208] sm:$0xff]
    %v4347 = vld [vmem:[#allocation2 + $0x210] sm:$0xff]
    %v4348 = vld [vmem:[#allocation2 + $0x218] sm:$0xff]
    %v4349 = vld [vmem:[#allocation2 + $0x260] sm:$0x3]
    %v4350 = vld [vmem:[#allocation2 + $0x268] sm:$0x3]
    %v4351 = vld [vmem:[#allocation2 + $0x270] sm:$0x3]
    %v4352 = vld [vmem:[#allocation2 + $0x278] sm:$0x3]
    %v4353 = vld [vmem:[#allocation2 + $0x40] sm:$0xfc]
    %v4354 = vld [vmem:[#allocation2 + $0x48] sm:$0xfc]
    %v4355 = vld [vmem:[#allocation2 + $0x50] sm:$0xfc]
    %v4356 = vld [vmem:[#allocation2 + $0x58] sm:$0xfc]
    %v4357 = vld [vmem:[#allocation2 + $0xa0] sm:$0xff]
    %v4358 = vld [vmem:[#allocation2 + $0xa8] sm:$0xff]
    %v4359 = vld [vmem:[#allocation2 + $0xb0] sm:$0xff]
    %v4360 = vld [vmem:[#allocation2 + $0xb8] sm:$0xff]
    %v4361 = vld [vmem:[#allocation2 + $0x100] sm:$0xff]
    %v4362 = vld [vmem:[#allocation2 + $0x108] sm:$0xff]
    %v4363 = vld [vmem:[#allocation2 + $0x110] sm:$0xff]
    %v4364 = vld [vmem:[#allocation2 + $0x118] sm:$0xff]
    %v4365 = vld [vmem:[#allocation2 + $0x160] sm:$0xff]
    %v4366 = vld [vmem:[#allocation2 + $0x168] sm:$0xff]
    %v4367 = vld [vmem:[#allocation2 + $0x170] sm:$0xff]
    %v4368 = vld [vmem:[#allocation2 + $0x178] sm:$0xff]
    %v4369 = vld [vmem:[#allocation2 + $0x1c0] sm:$0xff]
    %v4370 = vld [vmem:[#allocation2 + $0x1c8] sm:$0xff]
    %v4371 = vld [vmem:[#allocation2 + $0x1d0] sm:$0xff]
    %v4372 = vld [vmem:[#allocation2 + $0x1d8] sm:$0xff]
    %v4373 = vld [vmem:[#allocation2 + $0x220] sm:$0xff]
    %v4374 = vld [vmem:[#allocation2 + $0x228] sm:$0xff]
    %v4375 = vld [vmem:[#allocation2 + $0x230] sm:$0xff]
    %v4376 = vld [vmem:[#allocation2 + $0x238] sm:$0xff]
    %v4377 = vld [vmem:[#allocation2 + $0x280] sm:$0xf]
    %v4378 = vld [vmem:[#allocation2 + $0x288] sm:$0xf]
    %v4379 = vld [vmem:[#allocation2 + $0x290] sm:$0xf]
    %v4380 = vld [vmem:[#allocation2 + $0x298] sm:$0xf]
    %v4381 = vmul.f32 %v751, %v4325
    %v4382 = vmul.f32 %v751, %v4326
    %v4383 = vmul.f32 %v751, %v4327
    %v4384 = vmul.f32 %v751, %v4328
    %v4385 = vmul.f32 %v756, %v4329
    %v4386 = vmul.f32 %v756, %v4330
    %v4387 = vmul.f32 %v756, %v4331
    %v4388 = vmul.f32 %v756, %v4332
    %v4389 = vmul.f32 %v761, %v4333
    %v4390 = vmul.f32 %v761, %v4334
    %v4391 = vmul.f32 %v761, %v4335
    %v4392 = vmul.f32 %v761, %v4336
    %v4393 = vmul.f32 %v766, %v4337
    %v4394 = vmul.f32 %v766, %v4338
    %v4395 = vmul.f32 %v766, %v4339
    %v4396 = vmul.f32 %v766, %v4340
    %v4397 = vmul.f32 %v771, %v4341
    %v4398 = vmul.f32 %v771, %v4342
    %v4399 = vmul.f32 %v771, %v4343
    %v4400 = vmul.f32 %v771, %v4344
    %v4401 = vmul.f32 %v776, %v4345
    %v4402 = vmul.f32 %v776, %v4346
    %v4403 = vmul.f32 %v776, %v4347
    %v4404 = vmul.f32 %v776, %v4348
    %v4405 = vmul.f32 %v781, %v4349
    %v4406 = vmul.f32 %v781, %v4350
    %v4407 = vmul.f32 %v781, %v4351
    %v4408 = vmul.f32 %v781, %v4352
    %v4409 = vadd.f32 %v3342, %v4381
    %v4410 = vadd.f32 %v3344, %v4382
    %v4411 = vadd.f32 %v3449, %v4383
    %v4412 = vadd.f32 %v3451, %v4384
    %v4413 = vadd.f32 %v3348, %v4385
    %v4414 = vadd.f32 %v3350, %v4386
    %v4415 = vadd.f32 %v3455, %v4387
    %v4416 = vadd.f32 %v3457, %v4388
    %v4417 = vadd.f32 %v3354, %v4389
    %v4418 = vadd.f32 %v3356, %v4390
    %v4419 = vadd.f32 %v3461, %v4391
    %v4420 = vadd.f32 %v3463, %v4392
    %v4421 = vadd.f32 %v3360, %v4393
    %v4422 = vadd.f32 %v3362, %v4394
    %v4423 = vadd.f32 %v3467, %v4395
    %v4424 = vadd.f32 %v3469, %v4396
    %v4425 = vadd.f32 %v3366, %v4397
    %v4426 = vadd.f32 %v3368, %v4398
    %v4427 = vadd.f32 %v3473, %v4399
    %v4428 = vadd.f32 %v3475, %v4400
    %v4429 = vadd.f32 %v3372, %v4401
    %v4430 = vadd.f32 %v3374, %v4402
    %v4431 = vadd.f32 %v3479, %v4403
    %v4432 = vadd.f32 %v3481, %v4404
    %v4433 = vadd.f32 %v3378, %v4405
    %v4434 = vadd.f32 %v3380, %v4406
    %v4435 = vadd.f32 %v3485, %v4407
    %v4436 = vadd.f32 %v3487, %v4408
    %v4465 = vrot.slane %v4353, 2
    %v4466 = vrot.slane %v4357, 2
    %v4467 = vsel %vm839, %v4465, %v4466
    %v4468 = vrot.slane %v4354, 2
    %v4469 = vrot.slane %v4358, 2
    %v4470 = vsel %vm839, %v4468, %v4469
    %v4471 = vrot.slane %v4355, 2
    %v4472 = vrot.slane %v4359, 2
    %v4473 = vsel %vm839, %v4471, %v4472
    %v4474 = vrot.slane %v4356, 2
    %v4475 = vrot.slane %v4360, 2
    %v4476 = vsel %vm839, %v4474, %v4475
    %v4477 = vrot.slane %v4361, 2
    %v4478 = vsel %vm839, %v4466, %v4477
    %v4479 = vrot.slane %v4362, 2
    %v4480 = vsel %vm839, %v4469, %v4479
    %v4481 = vrot.slane %v4363, 2
    %v4482 = vsel %vm839, %v4472, %v4481
    %v4483 = vrot.slane %v4364, 2
    %v4484 = vsel %vm839, %v4475, %v4483
    %v4485 = vrot.slane %v4365, 2
    %v4486 = vsel %vm839, %v4477, %v4485
    %v4487 = vrot.slane %v4366, 2
    %v4488 = vsel %vm839, %v4479, %v4487
    %v4489 = vrot.slane %v4367, 2
    %v4490 = vsel %vm839, %v4481, %v4489
    %v4491 = vrot.slane %v4368, 2
    %v4492 = vsel %vm839, %v4483, %v4491
    %v4493 = vrot.slane %v4369, 2
    %v4494 = vsel %vm839, %v4485, %v4493
    %v4495 = vrot.slane %v4370, 2
    %v4496 = vsel %vm839, %v4487, %v4495
    %v4497 = vrot.slane %v4371, 2
    %v4498 = vsel %vm839, %v4489, %v4497
    %v4499 = vrot.slane %v4372, 2
    %v4500 = vsel %vm839, %v4491, %v4499
    %v4501 = vrot.slane %v4373, 2
    %v4502 = vsel %vm839, %v4493, %v4501
    %v4503 = vrot.slane %v4374, 2
    %v4504 = vsel %vm839, %v4495, %v4503
    %v4505 = vrot.slane %v4375, 2
    %v4506 = vsel %vm839, %v4497, %v4505
    %v4507 = vrot.slane %v4376, 2
    %v4508 = vsel %vm839, %v4499, %v4507
    %v4509 = vrot.slane %v4377, 2
    %v4510 = vsel %vm839, %v4501, %v4509
    %v4511 = vrot.slane %v4378, 2
    %v4512 = vsel %vm839, %v4503, %v4511
    %v4513 = vrot.slane %v4379, 2
    %v4514 = vsel %vm839, %v4505, %v4513
    %v4515 = vrot.slane %v4380, 2
    %v4516 = vsel %vm839, %v4507, %v4515
    %v4545 = vmul.f32 %v800, %v4467
    %v4546 = vmul.f32 %v800, %v4470
    %v4547 = vmul.f32 %v800, %v4473
    %v4548 = vmul.f32 %v800, %v4476
    %v4549 = vmul.f32 %v805, %v4478
    %v4550 = vmul.f32 %v805, %v4480
    %v4551 = vmul.f32 %v805, %v4482
    %v4552 = vmul.f32 %v805, %v4484
    %v4553 = vmul.f32 %v810, %v4486
    %v4554 = vmul.f32 %v810, %v4488
    %v4555 = vmul.f32 %v810, %v4490
    %v4556 = vmul.f32 %v810, %v4492
    %v4557 = vmul.f32 %v815, %v4494
    %v4558 = vmul.f32 %v815, %v4496
    %v4559 = vmul.f32 %v815, %v4498
    %v4560 = vmul.f32 %v815, %v4500
    %v4561 = vmul.f32 %v820, %v4502
    %v4562 = vmul.f32 %v820, %v4504
    %v4563 = vmul.f32 %v820, %v4506
    %v4564 = vmul.f32 %v820, %v4508
    %v4565 = vmul.f32 %v825, %v4510
    %v4566 = vmul.f32 %v825, %v4512
    %v4567 = vmul.f32 %v825, %v4514
    %v4568 = vmul.f32 %v825, %v4516
    %v4569 = vmul.f32 %v830, %v4509
    %v4570 = vmul.f32 %v830, %v4511
    %v4571 = vmul.f32 %v830, %v4513
    %v4572 = vmul.f32 %v830, %v4515
    %v4573 = vadd.f32 %v4409, %v4545
    %v4574 = vadd.f32 %v4410, %v4546
    %v4575 = vadd.f32 %v4411, %v4547
    %v4576 = vadd.f32 %v4412, %v4548
    %v4577 = vadd.f32 %v4413, %v4549
    %v4578 = vadd.f32 %v4414, %v4550
    %v4579 = vadd.f32 %v4415, %v4551
    %v4580 = vadd.f32 %v4416, %v4552
    %v4581 = vadd.f32 %v4417, %v4553
    %v4582 = vadd.f32 %v4418, %v4554
    %v4583 = vadd.f32 %v4419, %v4555
    %v4584 = vadd.f32 %v4420, %v4556
    %v4585 = vadd.f32 %v4421, %v4557
    %v4586 = vadd.f32 %v4422, %v4558
    %v4587 = vadd.f32 %v4423, %v4559
    %v4588 = vadd.f32 %v4424, %v4560
    %v4589 = vadd.f32 %v4425, %v4561
    %v4590 = vadd.f32 %v4426, %v4562
    %v4591 = vadd.f32 %v4427, %v4563
    %v4592 = vadd.f32 %v4428, %v4564
    %v4593 = vadd.f32 %v4429, %v4565
    %v4594 = vadd.f32 %v4430, %v4566
    %v4595 = vadd.f32 %v4431, %v4567
    %v4596 = vadd.f32 %v4432, %v4568
    %v4597 = vadd.f32 %v4433, %v4569
    %v4598 = vadd.f32 %v4434, %v4570
    %v4599 = vadd.f32 %v4435, %v4571
    %v4600 = vadd.f32 %v4436, %v4572
    %v4601 = vadd.f32 %v4573, %v4577
    %v4602 = vadd.f32 %v4601, %v4581
    %v4603 = vadd.f32 %v4602, %v4585
    %v4604 = vadd.f32 %v4603, %v4589
    %v4605 = vadd.f32 %v4604, %v4593
    %v4606 = vsel %vm1467, %v4597, 0.0
    %v4607 = vadd.f32 %v4605, %v4606
    %v4608 = vrot.slane %v4607, 4
    %v4609 = vadd.f32 %v4607, %v4608
    %v4610 = vrot.slane %v4609, 2
    %v4611 = vadd.f32 %v4609, %v4610
    %v4612 = vrot.slane %v4611, 1
    %v4613 = vadd.f32 %v4611, %v4612
    %v4614 = vadd.f32 %v4574, %v4578
    %v4615 = vadd.f32 %v4614, %v4582
    %v4616 = vadd.f32 %v4615, %v4586
    %v4617 = vadd.f32 %v4616, %v4590
    %v4618 = vadd.f32 %v4617, %v4594
    %v4619 = vsel %vm1467, %v4598, 0.0
    %v4620 = vadd.f32 %v4618, %v4619
    %v4621 = vrot.slane %v4620, 4
    %v4622 = vadd.f32 %v4620, %v4621
    %v4623 = vrot.slane %v4622, 2
    %v4624 = vadd.f32 %v4622, %v4623
    %v4625 = vrot.slane %v4624, 1
    %v4626 = vadd.f32 %v4624, %v4625
    %v4627 = vadd.f32 %v4575, %v4579
    %v4628 = vadd.f32 %v4627, %v4583
    %v4629 = vadd.f32 %v4628, %v4587
    %v4630 = vadd.f32 %v4629, %v4591
    %v4631 = vadd.f32 %v4630, %v4595
    %v4632 = vsel %vm1467, %v4599, 0.0
    %v4633 = vadd.f32 %v4631, %v4632
    %v4634 = vrot.slane %v4633, 4
    %v4635 = vadd.f32 %v4633, %v4634
    %v4636 = vrot.slane %v4635, 2
    %v4637 = vadd.f32 %v4635, %v4636
    %v4638 = vrot.slane %v4637, 1
    %v4639 = vadd.f32 %v4637, %v4638
    %vm4640 = vcmask 130048
    %v4641 = vsel %vm4640, %v4576, 0.0
    %v4642 = vsel %vm4640, %v4580, 0.0
    %v4643 = vadd.f32 %v4641, %v4642
    %v4644 = vsel %vm4640, %v4584, 0.0
    %v4645 = vadd.f32 %v4643, %v4644
    %v4646 = vsel %vm4640, %v4588, 0.0
    %v4647 = vadd.f32 %v4645, %v4646
    %v4648 = vsel %vm4640, %v4592, 0.0
    %v4649 = vadd.f32 %v4647, %v4648
    %v4650 = vsel %vm4640, %v4596, 0.0
    %v4651 = vadd.f32 %v4649, %v4650
    %vm4652 = vcmask 123904
    %v4653 = vsel %vm4652, %v4600, 0.0
    %v4654 = vadd.f32 %v4651, %v4653
    %v4655 = vrot.slane %v4654, 4
    %v4656 = vadd.f32 %v4654, %v4655
    %v4657 = vrot.slane %v4656, 2
    %v4658 = vadd.f32 %v4656, %v4657
    %v4659 = vrot.slane %v4658, 1
    %v4660 = vadd.f32 %v4658, %v4659
    %v4661 = vmul.f32 %v4613, %v1337
    %v4662 = vmul.f32 %v4626, %v1337
    %v4663 = vmul.f32 %v4639, %v1337
    %v4664 = vmul.f32 %v4660, %v1337
    %v4665 = vmul.f32 %v4573, %v4573
    %v4666 = vmul.f32 %v4574, %v4574
    %v4667 = vmul.f32 %v4575, %v4575
    %v4668 = vmul.f32 %v4576, %v4576
    %v4669 = vmul.f32 %v4577, %v4577
    %v4670 = vmul.f32 %v4578, %v4578
    %v4671 = vmul.f32 %v4579, %v4579
    %v4672 = vmul.f32 %v4580, %v4580
    %v4673 = vmul.f32 %v4581, %v4581
    %v4674 = vmul.f32 %v4582, %v4582
    %v4675 = vmul.f32 %v4583, %v4583
    %v4676 = vmul.f32 %v4584, %v4584
    %v4677 = vmul.f32 %v4585, %v4585
    %v4678 = vmul.f32 %v4586, %v4586
    %v4679 = vmul.f32 %v4587, %v4587
    %v4680 = vmul.f32 %v4588, %v4588
    %v4681 = vmul.f32 %v4589, %v4589
    %v4682 = vmul.f32 %v4590, %v4590
    %v4683 = vmul.f32 %v4591, %v4591
    %v4684 = vmul.f32 %v4592, %v4592
    %v4685 = vmul.f32 %v4593, %v4593
    %v4686 = vmul.f32 %v4594, %v4594
    %v4687 = vmul.f32 %v4595, %v4595
    %v4688 = vmul.f32 %v4596, %v4596
    %v4689 = vmul.f32 %v4597, %v4597
    %v4690 = vmul.f32 %v4598, %v4598
    %v4691 = vmul.f32 %v4599, %v4599
    %v4692 = vmul.f32 %v4600, %v4600
    %v4693 = vadd.f32 %v4665, %v4669
    %v4694 = vadd.f32 %v4693, %v4673
    %v4695 = vadd.f32 %v4694, %v4677
    %v4696 = vadd.f32 %v4695, %v4681
    %v4697 = vadd.f32 %v4696, %v4685
    %v4698 = vsel %vm1467, %v4689, 0.0
    %v4699 = vadd.f32 %v4697, %v4698
    %v4700 = vrot.slane %v4699, 4
    %v4701 = vadd.f32 %v4699, %v4700
    %v4702 = vrot.slane %v4701, 2
    %v4703 = vadd.f32 %v4701, %v4702
    %v4704 = vrot.slane %v4703, 1
    %v4705 = vadd.f32 %v4703, %v4704
    %v4706 = vadd.f32 %v4666, %v4670
    %v4707 = vadd.f32 %v4706, %v4674
    %v4708 = vadd.f32 %v4707, %v4678
    %v4709 = vadd.f32 %v4708, %v4682
    %v4710 = vadd.f32 %v4709, %v4686
    %v4711 = vsel %vm1467, %v4690, 0.0
    %v4712 = vadd.f32 %v4710, %v4711
    %v4713 = vrot.slane %v4712, 4
    %v4714 = vadd.f32 %v4712, %v4713
    %v4715 = vrot.slane %v4714, 2
    %v4716 = vadd.f32 %v4714, %v4715
    %v4717 = vrot.slane %v4716, 1
    %v4718 = vadd.f32 %v4716, %v4717
    %v4719 = vadd.f32 %v4667, %v4671
    %v4720 = vadd.f32 %v4719, %v4675
    %v4721 = vadd.f32 %v4720, %v4679
    %v4722 = vadd.f32 %v4721, %v4683
    %v4723 = vadd.f32 %v4722, %v4687
    %v4724 = vsel %vm1467, %v4691, 0.0
    %v4725 = vadd.f32 %v4723, %v4724
    %v4726 = vrot.slane %v4725, 4
    %v4727 = vadd.f32 %v4725, %v4726
    %v4728 = vrot.slane %v4727, 2
    %v4729 = vadd.f32 %v4727, %v4728
    %v4730 = vrot.slane %v4729, 1
    %v4731 = vadd.f32 %v4729, %v4730
    %v4732 = vsel %vm4640, %v4668, 0.0
    %v4733 = vsel %vm4640, %v4672, 0.0
    %v4734 = vadd.f32 %v4732, %v4733
    %v4735 = vsel %vm4640, %v4676, 0.0
    %v4736 = vadd.f32 %v4734, %v4735
    %v4737 = vsel %vm4640, %v4680, 0.0
    %v4738 = vadd.f32 %v4736, %v4737
    %v4739 = vsel %vm4640, %v4684, 0.0
    %v4740 = vadd.f32 %v4738, %v4739
    %v4741 = vsel %vm4640, %v4688, 0.0
    %v4742 = vadd.f32 %v4740, %v4741
    %v4743 = vsel %vm4652, %v4692, 0.0
    %v4744 = vadd.f32 %v4742, %v4743
    %v4745 = vrot.slane %v4744, 4
    %v4746 = vadd.f32 %v4744, %v4745
    %v4747 = vrot.slane %v4746, 2
    %v4748 = vadd.f32 %v4746, %v4747
    %v4749 = vrot.slane %v4748, 1
    %v4750 = vadd.f32 %v4748, %v4749
    %v4751 = vmul.f32 %v4705, %v1337
    %v4752 = vmul.f32 %v4718, %v1337
    %v4753 = vmul.f32 %v4731, %v1337
    %v4754 = vmul.f32 %v4750, %v1337
    %v4755 = vmul.f32 %v4661, %v4661
    %v4756 = vmul.f32 %v4662, %v4662
    %v4757 = vmul.f32 %v4663, %v4663
    %v4758 = vmul.f32 %v4664, %v4664
    %v4759 = vsub.f32 %v4751, %v4755
    %v4760 = vsub.f32 %v4752, %v4756
    %v4761 = vsub.f32 %v4753, %v4757
    %v4762 = vsub.f32 %v4754, %v4758
    %v4763 = vsub.f32 %v4573, %v4661
    %v4764 = vsub.f32 %v4574, %v4662
    %v4765 = vsub.f32 %v4575, %v4663
    %v4766 = vsub.f32 %v4576, %v4664
    %v4767 = vsub.f32 %v4577, %v4661
    %v4768 = vsub.f32 %v4578, %v4662
    %v4769 = vsub.f32 %v4579, %v4663
    %v4770 = vsub.f32 %v4580, %v4664
    %v4771 = vsub.f32 %v4581, %v4661
    %v4772 = vsub.f32 %v4582, %v4662
    %v4773 = vsub.f32 %v4583, %v4663
    %v4774 = vsub.f32 %v4584, %v4664
    %v4775 = vsub.f32 %v4585, %v4661
    %v4776 = vsub.f32 %v4586, %v4662
    %v4777 = vsub.f32 %v4587, %v4663
    %v4778 = vsub.f32 %v4588, %v4664
    %v4779 = vsub.f32 %v4589, %v4661
    %v4780 = vsub.f32 %v4590, %v4662
    %v4781 = vsub.f32 %v4591, %v4663
    %v4782 = vsub.f32 %v4592, %v4664
    %v4783 = vsub.f32 %v4593, %v4661
    %v4784 = vsub.f32 %v4594, %v4662
    %v4785 = vsub.f32 %v4595, %v4663
    %v4786 = vsub.f32 %v4596, %v4664
    %v4787 = vsub.f32 %v4597, %v4661
    %v4788 = vsub.f32 %v4598, %v4662
    %v4789 = vsub.f32 %v4599, %v4663
    %v4790 = vsub.f32 %v4600, %v4664
    %v4791 = vadd.f32 %v4759, 1e-05
    %v4792 = vadd.f32 %v4760, 1e-05
    %v4793 = vadd.f32 %v4761, 1e-05
    %v4794 = vadd.f32 %v4762, 1e-05
    %v4795 = vrsqrt.pop %v4791
    %v4796 = vrsqrt.pop %v4792
    %v4797 = vrsqrt.pop %v4793
    %v4798 = vrsqrt.pop %v4794
    %v4799 = vld [vmem:[#allocation21] sm:$0xf]
    %v4801 = vlaneseq
    %v4802 = vshrl.u32 %v4801, 7
    %v4803 = vsub.s32 0, %v4802
    %v4804 = vrot.slane %v4799, %v4803
    %v4805 = vlaneseq
    %v4806 = vshrl.u32 %v4805, 7
    %v4807 = vsub.s32 1, %v4806
    %v4808 = vrot.slane %v4799, %v4807
    %v4809 = vlaneseq
    %v4810 = vshrl.u32 %v4809, 7
    %v4811 = vsub.s32 2, %v4810
    %v4812 = vrot.slane %v4799, %v4811
    %v4813 = vlaneseq
    %v4814 = vshrl.u32 %v4813, 7
    %v4815 = vsub.s32 3, %v4814
    %v4816 = vrot.slane %v4799, %v4815
    %v4821 = vmul.f32 %v4795, %v4804
    %v4822 = vmul.f32 %v4796, %v4808
    %v4823 = vmul.f32 %v4797, %v4812
    %v4824 = vmul.f32 %v4798, %v4816
    %v4825 = vlaneseq
    %v4826 = vshrl.u32 %v4825, 7
    %v4827 = vsub.s32 0, %v4826
    %v4828 = vrot.slane %v4821, %v4827
    %v4829 = vlaneseq
    %v4830 = vshrl.u32 %v4829, 7
    %v4831 = vsub.s32 0, %v4830
    %v4832 = vrot.slane %v4822, %v4831
    %v4833 = vlaneseq
    %v4834 = vshrl.u32 %v4833, 7
    %v4835 = vsub.s32 0, %v4834
    %v4836 = vrot.slane %v4823, %v4835
    %v4837 = vlaneseq
    %v4838 = vshrl.u32 %v4837, 7
    %v4839 = vsub.s32 0, %v4838
    %v4840 = vrot.slane %v4824, %v4839
    %v4841 = vmul.f32 %v4763, %v4828
    %v4842 = vmul.f32 %v4764, %v4832
    %v4843 = vmul.f32 %v4765, %v4836
    %v4844 = vmul.f32 %v4766, %v4840
    %v4845 = vmul.f32 %v4767, %v4828
    %v4846 = vmul.f32 %v4768, %v4832
    %v4847 = vmul.f32 %v4769, %v4836
    %v4848 = vmul.f32 %v4770, %v4840
    %v4849 = vmul.f32 %v4771, %v4828
    %v4850 = vmul.f32 %v4772, %v4832
    %v4851 = vmul.f32 %v4773, %v4836
    %v4852 = vmul.f32 %v4774, %v4840
    %v4853 = vmul.f32 %v4775, %v4828
    %v4854 = vmul.f32 %v4776, %v4832
    %v4855 = vmul.f32 %v4777, %v4836
    %v4856 = vmul.f32 %v4778, %v4840
    %v4857 = vmul.f32 %v4779, %v4828
    %v4858 = vmul.f32 %v4780, %v4832
    %v4859 = vmul.f32 %v4781, %v4836
    %v4860 = vmul.f32 %v4782, %v4840
    %v4861 = vmul.f32 %v4783, %v4828
    %v4862 = vmul.f32 %v4784, %v4832
    %v4863 = vmul.f32 %v4785, %v4836
    %v4864 = vmul.f32 %v4786, %v4840
    %v4865 = vmul.f32 %v4787, %v4828
    %v4866 = vmul.f32 %v4788, %v4832
    %v4867 = vmul.f32 %v4789, %v4836
    %v4868 = vmul.f32 %v4790, %v4840
    %v4869 = vld [vmem:[#allocation23] sm:$0xf]
    %v4871 = vlaneseq
    %v4872 = vshrl.u32 %v4871, 7
    %v4873 = vsub.s32 0, %v4872
    %v4874 = vrot.slane %v4869, %v4873
    %v4875 = vlaneseq
    %v4876 = vshrl.u32 %v4875, 7
    %v4877 = vsub.s32 1, %v4876
    %v4878 = vrot.slane %v4869, %v4877
    %v4879 = vlaneseq
    %v4880 = vshrl.u32 %v4879, 7
    %v4881 = vsub.s32 2, %v4880
    %v4882 = vrot.slane %v4869, %v4881
    %v4883 = vlaneseq
    %v4884 = vshrl.u32 %v4883, 7
    %v4885 = vsub.s32 3, %v4884
    %v4886 = vrot.slane %v4869, %v4885
    %v4891 = vadd.f32 %v4841, %v4874
    %v4892 = vadd.f32 %v4842, %v4878
    %v4893 = vadd.f32 %v4843, %v4882
    %v4894 = vadd.f32 %v4844, %v4886
    %v4895 = vadd.f32 %v4845, %v4874
    %v4896 = vadd.f32 %v4846, %v4878
    %v4897 = vadd.f32 %v4847, %v4882
    %v4898 = vadd.f32 %v4848, %v4886
    %v4899 = vadd.f32 %v4849, %v4874
    %v4900 = vadd.f32 %v4850, %v4878
    %v4901 = vadd.f32 %v4851, %v4882
    %v4902 = vadd.f32 %v4852, %v4886
    %v4903 = vadd.f32 %v4853, %v4874
    %v4904 = vadd.f32 %v4854, %v4878
    %v4905 = vadd.f32 %v4855, %v4882
    %v4906 = vadd.f32 %v4856, %v4886
    %v4907 = vadd.f32 %v4857, %v4874
    %v4908 = vadd.f32 %v4858, %v4878
    %v4909 = vadd.f32 %v4859, %v4882
    %v4910 = vadd.f32 %v4860, %v4886
    %v4911 = vadd.f32 %v4861, %v4874
    %v4912 = vadd.f32 %v4862, %v4878
    %v4913 = vadd.f32 %v4863, %v4882
    %v4914 = vadd.f32 %v4864, %v4886
    %v4915 = vadd.f32 %v4865, %v4874
    %v4916 = vadd.f32 %v4866, %v4878
    %v4917 = vadd.f32 %v4867, %v4882
    %v4918 = vadd.f32 %v4868, %v4886
    %vm4919 = vcmp.gt.f32.partialorder %v4891, 0.0
    %vm4920 = vcmp.gt.f32.partialorder %v4892, 0.0
    %vm4921 = vcmp.gt.f32.partialorder %v4893, 0.0
    %vm4922 = vcmp.gt.f32.partialorder %v4894, 0.0
    %vm4923 = vcmp.gt.f32.partialorder %v4895, 0.0
    %vm4924 = vcmp.gt.f32.partialorder %v4896, 0.0
    %vm4925 = vcmp.gt.f32.partialorder %v4897, 0.0
    %vm4926 = vcmp.gt.f32.partialorder %v4898, 0.0
    %vm4927 = vcmp.gt.f32.partialorder %v4899, 0.0
    %vm4928 = vcmp.gt.f32.partialorder %v4900, 0.0
    %vm4929 = vcmp.gt.f32.partialorder %v4901, 0.0
    %vm4930 = vcmp.gt.f32.partialorder %v4902, 0.0
    %vm4931 = vcmp.gt.f32.partialorder %v4903, 0.0
    %vm4932 = vcmp.gt.f32.partialorder %v4904, 0.0
    %vm4933 = vcmp.gt.f32.partialorder %v4905, 0.0
    %vm4934 = vcmp.gt.f32.partialorder %v4906, 0.0
    %vm4935 = vcmp.gt.f32.partialorder %v4907, 0.0
    %vm4936 = vcmp.gt.f32.partialorder %v4908, 0.0
    %vm4937 = vcmp.gt.f32.partialorder %v4909, 0.0
    %vm4938 = vcmp.gt.f32.partialorder %v4910, 0.0
    %vm4939 = vcmp.gt.f32.partialorder %v4911, 0.0
    %vm4940 = vcmp.gt.f32.partialorder %v4912, 0.0
    %vm4941 = vcmp.gt.f32.partialorder %v4913, 0.0
    %vm4942 = vcmp.gt.f32.partialorder %v4914, 0.0
    %vm4943 = vcmp.gt.f32.partialorder %v4915, 0.0
    %vm4944 = vcmp.gt.f32.partialorder %v4916, 0.0
    %vm4945 = vcmp.gt.f32.partialorder %v4917, 0.0
    %vm4946 = vcmp.gt.f32.partialorder %v4918, 0.0
    %v4947 = vmul.f32 %v4891, 0.2
    %v4948 = vmul.f32 %v4892, 0.2
    %v4949 = vmul.f32 %v4893, 0.2
    %v4950 = vmul.f32 %v4894, 0.2
    %v4951 = vmul.f32 %v4895, 0.2
    %v4952 = vmul.f32 %v4896, 0.2
    %v4953 = vmul.f32 %v4897, 0.2
    %v4954 = vmul.f32 %v4898, 0.2
    %v4955 = vmul.f32 %v4899, 0.2
    %v4956 = vmul.f32 %v4900, 0.2
    %v4957 = vmul.f32 %v4901, 0.2
    %v4958 = vmul.f32 %v4902, 0.2
    %v4959 = vmul.f32 %v4903, 0.2
    %v4960 = vmul.f32 %v4904, 0.2
    %v4961 = vmul.f32 %v4905, 0.2
    %v4962 = vmul.f32 %v4906, 0.2
    %v4963 = vmul.f32 %v4907, 0.2
    %v4964 = vmul.f32 %v4908, 0.2
    %v4965 = vmul.f32 %v4909, 0.2
    %v4966 = vmul.f32 %v4910, 0.2
    %v4967 = vmul.f32 %v4911, 0.2
    %v4968 = vmul.f32 %v4912, 0.2
    %v4969 = vmul.f32 %v4913, 0.2
    %v4970 = vmul.f32 %v4914, 0.2
    %v4971 = vmul.f32 %v4915, 0.2
    %v4972 = vmul.f32 %v4916, 0.2
    %v4973 = vmul.f32 %v4917, 0.2
    %v4974 = vmul.f32 %v4918, 0.2
    %v4975 = vsel %vm4919, %v4891, %v4947
    %v4976 = vsel %vm4920, %v4892, %v4948
    %v4977 = vsel %vm4921, %v4893, %v4949
    %v4978 = vsel %vm4922, %v4894, %v4950
    %v4979 = vsel %vm4923, %v4895, %v4951
    %v4980 = vsel %vm4924, %v4896, %v4952
    %v4981 = vsel %vm4925, %v4897, %v4953
    %v4982 = vsel %vm4926, %v4898, %v4954
    %v4983 = vsel %vm4927, %v4899, %v4955
    %v4984 = vsel %vm4928, %v4900, %v4956
    %v4985 = vsel %vm4929, %v4901, %v4957
    %v4986 = vsel %vm4930, %v4902, %v4958
    %v4987 = vsel %vm4931, %v4903, %v4959
    %v4988 = vsel %vm4932, %v4904, %v4960
    %v4989 = vsel %vm4933, %v4905, %v4961
    %v4990 = vsel %vm4934, %v4906, %v4962
    %v4991 = vsel %vm4935, %v4907, %v4963
    %v4992 = vsel %vm4936, %v4908, %v4964
    %v4993 = vsel %vm4937, %v4909, %v4965
    %v4994 = vsel %vm4938, %v4910, %v4966
    %v4995 = vsel %vm4939, %v4911, %v4967
    %v4996 = vsel %vm4940, %v4912, %v4968
    %v4997 = vsel %vm4941, %v4913, %v4969
    %v4998 = vsel %vm4942, %v4914, %v4970
    %v4999 = vsel %vm4943, %v4915, %v4971
    %v5000 = vsel %vm4944, %v4916, %v4972
    %v5001 = vsel %vm4945, %v4917, %v4973
    %v5002 = vsel %vm4946, %v4918, %v4974
    %v5003 = vld [vmem:[#allocation24] sm:$0xff]
    %v5004 = vld [vmem:[#allocation24 + $0x8] sm:$0xff]
    %v5005 = vld [vmem:[#allocation24 + $0x10] sm:$0xff]
    %v5006 = vld [vmem:[#allocation24 + $0x18] sm:$0xff]
    %v5007 = vld [vmem:[#allocation24 + $0x20] sm:$0xff]
    %v5008 = vld [vmem:[#allocation24 + $0x28] sm:$0xff]
    %v5009 = vld [vmem:[#allocation24 + $0x30] sm:$0xff]
    %v5010 = vld [vmem:[#allocation24 + $0x38] sm:$0xff]
    %v5011 = vld [vmem:[#allocation24 + $0x40] sm:$0xff]
    %v5012 = vld [vmem:[#allocation24 + $0x48] sm:$0xff]
    %v5013 = vld [vmem:[#allocation24 + $0x50] sm:$0xff]
    %v5014 = vld [vmem:[#allocation24 + $0x58] sm:$0xff]
    %v5015 = vld [vmem:[#allocation24 + $0x60] sm:$0xff]
    %v5016 = vld [vmem:[#allocation24 + $0x68] sm:$0xff]
    %v5017 = vld [vmem:[#allocation24 + $0x70] sm:$0xff]
    %v5018 = vld [vmem:[#allocation24 + $0x78] sm:$0xff]
    %v5019 = vld [vmem:[#allocation24 + $0x80] sm:$0xff]
    %v5020 = vld [vmem:[#allocation24 + $0x88] sm:$0xff]
    %v5021 = vld [vmem:[#allocation24 + $0x90] sm:$0xff]
    %v5022 = vld [vmem:[#allocation24 + $0x98] sm:$0xff]
    %v5023 = vld [vmem:[#allocation24 + $0xa0] sm:$0xff]
    %v5024 = vld [vmem:[#allocation24 + $0xa8] sm:$0xff]
    %v5025 = vld [vmem:[#allocation24 + $0xb0] sm:$0xff]
    %v5026 = vld [vmem:[#allocation24 + $0xb8] sm:$0xff]
    %v5027 = vld [vmem:[#allocation24 + $0xc0] sm:$0xff]
    %v5028 = vld [vmem:[#allocation24 + $0xc8] sm:$0xff]
    %v5029 = vld [vmem:[#allocation24 + $0xd0] sm:$0xff]
    %v5030 = vld [vmem:[#allocation24 + $0xd8] sm:$0xff]
    %v5031 = vld [vmem:[#allocation24 + $0xe0] sm:$0xff]
    %v5032 = vld [vmem:[#allocation24 + $0xe8] sm:$0xff]
    %v5033 = vld [vmem:[#allocation24 + $0xf0] sm:$0xff]
    %v5034 = vld [vmem:[#allocation24 + $0xf8] sm:$0xff]
    %v5035 = vld [vmem:[#allocation24 + $0x100] sm:$0xff]
    %v5036 = vld [vmem:[#allocation24 + $0x108] sm:$0xff]
    %v5037 = vld [vmem:[#allocation24 + $0x110] sm:$0xff]
    %v5038 = vld [vmem:[#allocation24 + $0x118] sm:$0xff]
    %v5039 = vld [vmem:[#allocation24 + $0x120] sm:$0xff]
    %v5040 = vld [vmem:[#allocation24 + $0x128] sm:$0xff]
    %v5041 = vld [vmem:[#allocation24 + $0x130] sm:$0xff]
    %v5042 = vld [vmem:[#allocation24 + $0x138] sm:$0xff]
    %v5043 = vld [vmem:[#allocation24 + $0x140] sm:$0xff]
    %v5044 = vld [vmem:[#allocation24 + $0x148] sm:$0xff]
    %v5045 = vld [vmem:[#allocation24 + $0x150] sm:$0xff]
    %v5046 = vld [vmem:[#allocation24 + $0x158] sm:$0xff]
    %v5047 = vld [vmem:[#allocation24 + $0x160] sm:$0xff]
    %v5048 = vld [vmem:[#allocation24 + $0x168] sm:$0xff]
    %v5049 = vld [vmem:[#allocation24 + $0x170] sm:$0xff]
    %v5050 = vld [vmem:[#allocation24 + $0x178] sm:$0xff]
    %v5051 = vld [vmem:[#allocation24 + $0x180] sm:$0xff]
    %v5052 = vld [vmem:[#allocation24 + $0x188] sm:$0xff]
    %v5053 = vld [vmem:[#allocation24 + $0x190] sm:$0xff]
    %v5054 = vld [vmem:[#allocation24 + $0x198] sm:$0xff]
    %v5055 = vld [vmem:[#allocation24 + $0x1a0] sm:$0xff]
    %v5056 = vld [vmem:[#allocation24 + $0x1a8] sm:$0xff]
    %v5057 = vld [vmem:[#allocation24 + $0x1b0] sm:$0xff]
    %v5058 = vld [vmem:[#allocation24 + $0x1b8] sm:$0xff]
    %v5059 = vld [vmem:[#allocation24 + $0x1c0] sm:$0xff]
    %v5060 = vld [vmem:[#allocation24 + $0x1c8] sm:$0xff]
    %v5061 = vld [vmem:[#allocation24 + $0x1d0] sm:$0xff]
    %v5062 = vld [vmem:[#allocation24 + $0x1d8] sm:$0xff]
    %v5063 = vld [vmem:[#allocation24 + $0x1e0] sm:$0xff]
    %v5064 = vld [vmem:[#allocation24 + $0x1e8] sm:$0xff]
    %v5065 = vld [vmem:[#allocation24 + $0x1f0] sm:$0xff]
    %v5066 = vld [vmem:[#allocation24 + $0x1f8] sm:$0xff]
    %v5067 = vld [vmem:[#allocation24 + $0x200] sm:$0xff]
    %v5068 = vld [vmem:[#allocation24 + $0x208] sm:$0xff]
    %v5069 = vld [vmem:[#allocation24 + $0x210] sm:$0xff]
    %v5070 = vld [vmem:[#allocation24 + $0x218] sm:$0xff]
    %v5071 = vld [vmem:[#allocation24 + $0x220] sm:$0xff]
    %v5072 = vld [vmem:[#allocation24 + $0x228] sm:$0xff]
    %v5073 = vld [vmem:[#allocation24 + $0x230] sm:$0xff]
    %v5074 = vld [vmem:[#allocation24 + $0x238] sm:$0xff]
    %v5075 = vld [vmem:[#allocation24 + $0x240] sm:$0xff]
    %v5076 = vld [vmem:[#allocation24 + $0x248] sm:$0xff]
    %v5077 = vld [vmem:[#allocation24 + $0x250] sm:$0xff]
    %v5078 = vld [vmem:[#allocation24 + $0x258] sm:$0xff]
    %v5079 = vld [vmem:[#allocation24 + $0x260] sm:$0xff]
    %v5080 = vld [vmem:[#allocation24 + $0x268] sm:$0xff]
    %v5081 = vld [vmem:[#allocation24 + $0x270] sm:$0xff]
    %v5082 = vld [vmem:[#allocation24 + $0x278] sm:$0xff]
    %v5083 = vld [vmem:[#allocation24 + $0x280] sm:$0xff]
    %v5084 = vld [vmem:[#allocation24 + $0x288] sm:$0xff]
    %v5085 = vld [vmem:[#allocation24 + $0x290] sm:$0xff]
    %v5086 = vld [vmem:[#allocation24 + $0x298] sm:$0xff]
    %v5087 = vld [vmem:[#allocation24 + $0x2a0] sm:$0xff]
    %v5088 = vld [vmem:[#allocation24 + $0x2a8] sm:$0xff]
    %v5089 = vld [vmem:[#allocation24 + $0x2b0] sm:$0xff]
    %v5090 = vld [vmem:[#allocation24 + $0x2b8] sm:$0xff]
    %v5091 = vld [vmem:[#allocation24 + $0x2c0] sm:$0xff]
    %v5092 = vld [vmem:[#allocation24 + $0x2c8] sm:$0xff]
    %v5093 = vld [vmem:[#allocation24 + $0x2d0] sm:$0xff]
    %v5094 = vld [vmem:[#allocation24 + $0x2d8] sm:$0xff]
    %v5095 = vld [vmem:[#allocation24 + $0x2e0] sm:$0xff]
    %v5096 = vld [vmem:[#allocation24 + $0x2e8] sm:$0xff]
    %v5097 = vld [vmem:[#allocation24 + $0x2f0] sm:$0xff]
    %v5098 = vld [vmem:[#allocation24 + $0x2f8] sm:$0xff]
    %v5099 = vld [vmem:[#allocation24 + $0x300] sm:$0xff]
    %v5100 = vld [vmem:[#allocation24 + $0x308] sm:$0xff]
    %v5101 = vld [vmem:[#allocation24 + $0x310] sm:$0xff]
    %v5102 = vld [vmem:[#allocation24 + $0x318] sm:$0xff]
    %v5103 = vld [vmem:[#allocation24 + $0x320] sm:$0xff]
    %v5104 = vld [vmem:[#allocation24 + $0x328] sm:$0xff]
    %v5105 = vld [vmem:[#allocation24 + $0x330] sm:$0xff]
    %v5106 = vld [vmem:[#allocation24 + $0x338] sm:$0xff]
    %v5107 = vld [vmem:[#allocation24 + $0x340] sm:$0xff]
    %v5108 = vld [vmem:[#allocation24 + $0x348] sm:$0xff]
    %v5109 = vld [vmem:[#allocation24 + $0x350] sm:$0xff]
    %v5110 = vld [vmem:[#allocation24 + $0x358] sm:$0xff]
    %v5111 = vld [vmem:[#allocation24 + $0x360] sm:$0xff]
    %v5112 = vld [vmem:[#allocation24 + $0x368] sm:$0xff]
    %v5113 = vld [vmem:[#allocation24 + $0x370] sm:$0xff]
    %v5114 = vld [vmem:[#allocation24 + $0x378] sm:$0xff]
    %v5115 = vld [vmem:[#allocation24 + $0x380] sm:$0xff]
    %v5116 = vld [vmem:[#allocation24 + $0x388] sm:$0xff]
    %v5117 = vld [vmem:[#allocation24 + $0x390] sm:$0xff]
    %v5118 = vld [vmem:[#allocation24 + $0x398] sm:$0xff]
    %v5119 = vld [vmem:[#allocation24 + $0x3a0] sm:$0xff]
    %v5120 = vld [vmem:[#allocation24 + $0x3a8] sm:$0xff]
    %v5121 = vld [vmem:[#allocation24 + $0x3b0] sm:$0xff]
    %v5122 = vld [vmem:[#allocation24 + $0x3b8] sm:$0xff]
    %v5123 = vld [vmem:[#allocation24 + $0x3c0] sm:$0xff]
    %v5124 = vld [vmem:[#allocation24 + $0x3c8] sm:$0xff]
    %v5125 = vld [vmem:[#allocation24 + $0x3d0] sm:$0xff]
    %v5126 = vld [vmem:[#allocation24 + $0x3d8] sm:$0xff]
    %v5127 = vld [vmem:[#allocation24 + $0x3e0] sm:$0xff]
    %v5128 = vld [vmem:[#allocation24 + $0x3e8] sm:$0xff]
    %v5129 = vld [vmem:[#allocation24 + $0x3f0] sm:$0xff]
    %v5130 = vld [vmem:[#allocation24 + $0x3f8] sm:$0xff]
    %v5131 = vld [vmem:[#allocation24 + $0x400] sm:$0xff]
    %v5132 = vld [vmem:[#allocation24 + $0x408] sm:$0xff]
    %v5133 = vld [vmem:[#allocation24 + $0x410] sm:$0xff]
    %v5134 = vld [vmem:[#allocation24 + $0x418] sm:$0xff]
    %v5135 = vld [vmem:[#allocation24 + $0x420] sm:$0xff]
    %v5136 = vld [vmem:[#allocation24 + $0x428] sm:$0xff]
    %v5137 = vld [vmem:[#allocation24 + $0x430] sm:$0xff]
    %v5138 = vld [vmem:[#allocation24 + $0x438] sm:$0xff]
    %v5139 = vld [vmem:[#allocation24 + $0x440] sm:$0xff]
    %v5140 = vld [vmem:[#allocation24 + $0x448] sm:$0xff]
    %v5141 = vld [vmem:[#allocation24 + $0x450] sm:$0xff]
    %v5142 = vld [vmem:[#allocation24 + $0x458] sm:$0xff]
    %v5143 = vld [vmem:[#allocation24 + $0x460] sm:$0xff]
    %v5144 = vld [vmem:[#allocation24 + $0x468] sm:$0xff]
    %v5145 = vld [vmem:[#allocation24 + $0x470] sm:$0xff]
    %v5146 = vld [vmem:[#allocation24 + $0x478] sm:$0xff]
    %v5147 = vld [vmem:[#allocation24 + $0x480] sm:$0xff]
    %v5148 = vld [vmem:[#allocation24 + $0x488] sm:$0xff]
    %v5149 = vld [vmem:[#allocation24 + $0x490] sm:$0xff]
    %v5150 = vld [vmem:[#allocation24 + $0x498] sm:$0xff]
    %v5151 = vld [vmem:[#allocation24 + $0x4a0] sm:$0xff]
    %v5152 = vld [vmem:[#allocation24 + $0x4a8] sm:$0xff]
    %v5153 = vld [vmem:[#allocation24 + $0x4b0] sm:$0xff]
    %v5154 = vld [vmem:[#allocation24 + $0x4b8] sm:$0xff]
    %v5155 = vld [vmem:[#allocation24 + $0x4c0] sm:$0xff]
    %v5156 = vld [vmem:[#allocation24 + $0x4c8] sm:$0xff]
    %v5157 = vld [vmem:[#allocation24 + $0x4d0] sm:$0xff]
    %v5158 = vld [vmem:[#allocation24 + $0x4d8] sm:$0xff]
    %v5159 = vld [vmem:[#allocation24 + $0x4e0] sm:$0xff]
    %v5160 = vld [vmem:[#allocation24 + $0x4e8] sm:$0xff]
    %v5161 = vld [vmem:[#allocation24 + $0x4f0] sm:$0xff]
    %v5162 = vld [vmem:[#allocation24 + $0x4f8] sm:$0xff]
    %v5163 = vld [vmem:[#allocation24 + $0x500] sm:$0xff]
    %v5164 = vld [vmem:[#allocation24 + $0x508] sm:$0xff]
    %v5165 = vld [vmem:[#allocation24 + $0x510] sm:$0xff]
    %v5166 = vld [vmem:[#allocation24 + $0x518] sm:$0xff]
    %v5167 = vld [vmem:[#allocation24 + $0x520] sm:$0xff]
    %v5168 = vld [vmem:[#allocation24 + $0x528] sm:$0xff]
    %v5169 = vld [vmem:[#allocation24 + $0x530] sm:$0xff]
    %v5170 = vld [vmem:[#allocation24 + $0x538] sm:$0xff]
    %v5171 = vld [vmem:[#allocation24 + $0x540] sm:$0xff]
    %v5172 = vld [vmem:[#allocation24 + $0x548] sm:$0xff]
    %v5173 = vld [vmem:[#allocation24 + $0x550] sm:$0xff]
    %v5174 = vld [vmem:[#allocation24 + $0x558] sm:$0xff]
    %v5175 = vld [vmem:[#allocation24 + $0x560] sm:$0xff]
    %v5176 = vld [vmem:[#allocation24 + $0x568] sm:$0xff]
    %v5177 = vld [vmem:[#allocation24 + $0x570] sm:$0xff]
    %v5178 = vld [vmem:[#allocation24 + $0x578] sm:$0xff]
    %v5179 = vld [vmem:[#allocation24 + $0x580] sm:$0xff]
    %v5180 = vld [vmem:[#allocation24 + $0x588] sm:$0xff]
    %v5181 = vld [vmem:[#allocation24 + $0x590] sm:$0xff]
    %v5182 = vld [vmem:[#allocation24 + $0x598] sm:$0xff]
    %v5183 = vld [vmem:[#allocation24 + $0x5a0] sm:$0xff]
    %v5184 = vld [vmem:[#allocation24 + $0x5a8] sm:$0xff]
    %v5185 = vld [vmem:[#allocation24 + $0x5b0] sm:$0xff]
    %v5186 = vld [vmem:[#allocation24 + $0x5b8] sm:$0xff]
    %v5187 = vld [vmem:[#allocation24 + $0x5c0] sm:$0xff]
    %v5188 = vld [vmem:[#allocation24 + $0x5c8] sm:$0xff]
    %v5189 = vld [vmem:[#allocation24 + $0x5d0] sm:$0xff]
    %v5190 = vld [vmem:[#allocation24 + $0x5d8] sm:$0xff]
    %v5191 = vld [vmem:[#allocation24 + $0x5e0] sm:$0xff]
    %v5192 = vld [vmem:[#allocation24 + $0x5e8] sm:$0xff]
    %v5193 = vld [vmem:[#allocation24 + $0x5f0] sm:$0xff]
    %v5194 = vld [vmem:[#allocation24 + $0x5f8] sm:$0xff]
    %v5195 = vld [vmem:[#allocation24 + $0x600] sm:$0xff]
    %v5196 = vld [vmem:[#allocation24 + $0x608] sm:$0xff]
    %v5197 = vld [vmem:[#allocation24 + $0x610] sm:$0xff]
    %v5198 = vld [vmem:[#allocation24 + $0x618] sm:$0xff]
    %v5199 = vld [vmem:[#allocation24 + $0x620] sm:$0xff]
    %v5200 = vld [vmem:[#allocation24 + $0x628] sm:$0xff]
    %v5201 = vld [vmem:[#allocation24 + $0x630] sm:$0xff]
    %v5202 = vld [vmem:[#allocation24 + $0x638] sm:$0xff]
    %v5204 = vsel %vm4640, %v4978, 0
    %v5207 = vsel %vm4640, %v4982, 0
    %v5210 = vsel %vm4640, %v4986, 0
    %v5213 = vsel %vm4640, %v4990, 0
    %v5216 = vsel %vm4640, %v4994, 0
    %v5219 = vsel %vm4640, %v4998, 0
    %v5222 = vsel %vm4640, %v5002, 0
    %5224 = vmatprep.subr.mxu0 %v5004
    %5225 = vmatpush1.msra.mxu0 %v5003
    %5226 = vmatprep.subr.mxu0 %v5008
    %5227 = vmatpush1.msra.mxu0 %v5007
    %5228 = vmatprep.subr.mxu0 %v5012
    %5229 = vmatpush1.msra.mxu0 %v5011
    %5230 = vmatprep.subr.mxu0 %v5016
    %5231 = vmatpush1.msra.mxu0 %v5015
    %5232 = vmatprep.subr.mxu0 %v5020
    %5233 = vmatpush1.msra.mxu0 %v5019
    %5234 = vmatprep.subr.mxu0 %v5024
    %5235 = vmatpush1.msra.mxu0 %v5023
    %5236 = vmatprep.subr.mxu0 %v5028
    %5237 = vmatpush1.msra.mxu0 %v5027
    %5238 = vmatprep.subr.mxu0 %v5032
    %5239 = vmatpush1.msra.mxu0 %v5031
    %5240 = vmatprep.subr.mxu0 %v5036
    %5241 = vmatpush1.msra.mxu0 %v5035
    %5242 = vmatprep.subr.mxu0 %v5040
    %5243 = vmatpush1.msra.mxu0 %v5039
    %5244 = vmatprep.subr.mxu0 %v5044
    %5245 = vmatpush1.msra.mxu0 %v5043
    %5246 = vmatprep.subr.mxu0 %v5048
    %5247 = vmatpush1.msra.mxu0 %v5047
    %5248 = vmatprep.subr.mxu0 %v5052
    %5249 = vmatpush1.msra.mxu0 %v5051
    %5250 = vmatprep.subr.mxu0 %v5056
    %5251 = vmatpush1.msra.mxu0 %v5055
    %5252 = vmatprep.subr.mxu0 %v5060
    %5253 = vmatpush1.msra.mxu0 %v5059
    %5254 = vmatprep.subr.mxu0 %v5064
    %5255 = vmatpush1.msra.mxu0 %v5063
    %5256 = vmatprep.subr.mxu0 %v5068
    %5257 = vmatpush1.msra.mxu0 %v5067
    %5258 = vmatprep.subr.mxu0 %v5072
    %5259 = vmatpush1.msra.mxu0 %v5071
    %5260 = vmatprep.subr.mxu0 %v5076
    %5261 = vmatpush1.msra.mxu0 %v5075
    %5262 = vmatprep.subr.mxu0 %v5080
    %5263 = vmatpush1.msra.mxu0 %v5079
    %5264 = vmatprep.subr.mxu0 %v5084
    %5265 = vmatpush1.msra.mxu0 %v5083
    %5266 = vmatprep.subr.mxu0 %v5088
    %5267 = vmatpush1.msra.mxu0 %v5087
    %5268 = vmatprep.subr.mxu0 %v5092
    %5269 = vmatpush1.msra.mxu0 %v5091
    %5270 = vmatprep.subr.mxu0 %v5096
    %5271 = vmatpush1.msra.mxu0 %v5095
    %5272 = vmatprep.subr.mxu0 %v5100
    %5273 = vmatpush1.msra.mxu0 %v5099
    %5274 = vmatprep.subr.mxu0 %v5104
    %5275 = vmatpush1.msra.mxu0 %v5103
    %5276 = vmatprep.subr.mxu0 %v5108
    %5277 = vmatpush1.msra.mxu0 %v5107
    %5278 = vmatprep.subr.mxu0 %v5112
    %5279 = vmatpush1.msra.mxu0 %v5111
    %5280 = vmatprep.subr.mxu0 %v5116
    %5281 = vmatpush1.msra.mxu0 %v5115
    %5282 = vmatprep.subr.mxu0 %v5120
    %5283 = vmatpush1.msra.mxu0 %v5119
    %5284 = vmatprep.subr.mxu0 %v5124
    %5285 = vmatpush1.msra.mxu0 %v5123
    %5286 = vmatprep.subr.mxu0 %v5128
    %5287 = vmatpush1.msra.mxu0 %v5127
    %5288 = vmatprep.mubr.f32.mxu0 %v4976
    %5289 = vmatmul.mubr.f32.gmra.mrb[0].mxu0 %v4975
    %v5290 = vpop.f32.mrb[0].mxu0
    %v5291 = vadd.f32 0.0, %v5290
    %v5292 = vpop.f32.mrb[0].mxu0
    %v5293 = vadd.f32 0.0, %v5292
    %5294 = vmatprep.mubr.f32.mxu0 %v4980
    %5295 = vmatmul.mubr.f32.gmra.mrb[0].mxu0 %v4979
    %v5296 = vpop.f32.mrb[0].mxu0
    %v5297 = vadd.f32 0.0, %v5296
    %v5298 = vpop.f32.mrb[0].mxu0
    %v5299 = vadd.f32 0.0, %v5298
    %5300 = vmatprep.mubr.f32.mxu0 %v4984
    %5301 = vmatmul.mubr.f32.gmra.mrb[0].mxu0 %v4983
    %v5302 = vpop.f32.mrb[0].mxu0
    %v5303 = vadd.f32 0.0, %v5302
    %v5304 = vpop.f32.mrb[0].mxu0
    %v5305 = vadd.f32 0.0, %v5304
    %5306 = vmatprep.mubr.f32.mxu0 %v4988
    %5307 = vmatmul.mubr.f32.gmra.mrb[0].mxu0 %v4987
    %v5308 = vpop.f32.mrb[0].mxu0
    %v5309 = vadd.f32 0.0, %v5308
    %v5310 = vpop.f32.mrb[0].mxu0
    %v5311 = vadd.f32 0.0, %v5310
    %5312 = vmatprep.mubr.f32.mxu0 %v4992
    %5313 = vmatmul.mubr.f32.gmra.mrb[0].mxu0 %v4991
    %v5314 = vpop.f32.mrb[0].mxu0
    %v5315 = vadd.f32 0.0, %v5314
    %v5316 = vpop.f32.mrb[0].mxu0
    %v5317 = vadd.f32 0.0, %v5316
    %5318 = vmatprep.mubr.f32.mxu0 %v4996
    %5319 = vmatmul.mubr.f32.gmra.mrb[0].mxu0 %v4995
    %v5320 = vpop.f32.mrb[0].mxu0
    %v5321 = vadd.f32 0.0, %v5320
    %v5322 = vpop.f32.mrb[0].mxu0
    %v5323 = vadd.f32 0.0, %v5322
    %5324 = vmatprep.mubr.f32.mxu0 %v5000
    %5325 = vmatmul.mubr.f32.gmra.mrb[0].mxu0 %v4999
    %v5326 = vpop.f32.mrb[0].mxu0
    %v5327 = vadd.f32 0.0, %v5326
    %v5328 = vpop.f32.mrb[0].mxu0
    %v5329 = vadd.f32 0.0, %v5328
    %5330 = vdwg.mxu0
    %5331 = vmatprep.subr.mxu0 %v5132
    %5332 = vmatpush1.msra.mxu0 %v5131
    %5333 = vmatprep.subr.mxu0 %v5136
    %5334 = vmatpush1.msra.mxu0 %v5135
    %5335 = vmatprep.subr.mxu0 %v5140
    %5336 = vmatpush1.msra.mxu0 %v5139
    %5337 = vmatprep.subr.mxu0 %v5144
    %5338 = vmatpush1.msra.mxu0 %v5143
    %5339 = vmatprep.subr.mxu0 %v5148
    %5340 = vmatpush1.msra.mxu0 %v5147
    %5341 = vmatprep.subr.mxu0 %v5152
    %5342 = vmatpush1.msra.mxu0 %v5151
    %5343 = vmatprep.subr.mxu0 %v5156
    %5344 = vmatpush1.msra.mxu0 %v5155
    %5345 = vmatprep.subr.mxu0 %v5160
    %5346 = vmatpush1.msra.mxu0 %v5159
    %5347 = vmatprep.subr.mxu0 %v5164
    %5348 = vmatpush1.msra.mxu0 %v5163
    %5349 = vmatprep.subr.mxu0 %v5168
    %5350 = vmatpush1.msra.mxu0 %v5167
    %5351 = vmatprep.subr.mxu0 %v5172
    %5352 = vmatpush1.msra.mxu0 %v5171
    %5353 = vmatprep.subr.mxu0 %v5176
    %5354 = vmatpush1.msra.mxu0 %v5175
    %5355 = vmatprep.subr.mxu0 %v5180
    %5356 = vmatpush1.msra.mxu0 %v5179
    %5357 = vmatprep.subr.mxu0 %v5184
    %5358 = vmatpush1.msra.mxu0 %v5183
    %5359 = vmatprep.subr.mxu0 %v5188
    %5360 = vmatpush1.msra.mxu0 %v5187
    %5361 = vmatprep.subr.mxu0 %v5192
    %5362 = vmatpush1.msra.mxu0 %v5191
    %5363 = vmatprep.subr.mxu0 %v5196
    %5364 = vmatpush1.msra.mxu0 %v5195
    %5365 = vmatprep.subr.mxu0 %v5200
    %5366 = vmatpush1.msra.mxu0 %v5199
    %5367 = vmatprep.subr.mxu0 0.0
    %5368 = vmatpush1.msra.mxu0 0.0
    %5369 = vmatprep.subr.mxu0 0.0
    %5370 = vmatpush1.msra.mxu0 0.0
    %5371 = vmatprep.subr.mxu0 0.0
    %5372 = vmatpush1.msra.mxu0 0.0
    %5373 = vmatprep.subr.mxu0 0.0
    %5374 = vmatpush1.msra.mxu0 0.0
    %5375 = vmatprep.subr.mxu0 0.0
    %5376 = vmatpush1.msra.mxu0 0.0
    %5377 = vmatprep.subr.mxu0 0.0
    %5378 = vmatpush1.msra.mxu0 0.0
    %5379 = vmatprep.subr.mxu0 0.0
    %5380 = vmatpush1.msra.mxu0 0.0
    %5381 = vmatprep.subr.mxu0 0.0
    %5382 = vmatpush1.msra.mxu0 0.0
    %5383 = vmatprep.subr.mxu0 0.0
    %5384 = vmatpush1.msra.mxu0 0.0
    %5385 = vmatprep.subr.mxu0 0.0
    %5386 = vmatpush1.msra.mxu0 0.0
    %5387 = vmatprep.subr.mxu0 0.0
    %5388 = vmatpush1.msra.mxu0 0.0
    %5389 = vmatprep.subr.mxu0 0.0
    %5390 = vmatpush1.msra.mxu0 0.0
    %5391 = vmatprep.subr.mxu0 0.0
    %5392 = vmatpush1.msra.mxu0 0.0
    %5393 = vmatprep.subr.mxu0 0.0
    %5394 = vmatpush1.msra.mxu0 0.0
    %5395 = vmatprep.mubr.f32.mxu0 %v5204
    %5396 = vmatmul.mubr.f32.gmra.mrb[0].mxu0 %v4977
    %v5397 = vpop.f32.mrb[0].mxu0
    %v5398 = vadd.f32 %v5291, %v5397
    %v5399 = vpop.f32.mrb[0].mxu0
    %v5400 = vadd.f32 %v5293, %v5399
    %5401 = vmatprep.mubr.f32.mxu0 %v5207
    %5402 = vmatmul.mubr.f32.gmra.mrb[0].mxu0 %v4981
    %v5403 = vpop.f32.mrb[0].mxu0
    %v5404 = vadd.f32 %v5297, %v5403
    %v5405 = vpop.f32.mrb[0].mxu0
    %v5406 = vadd.f32 %v5299, %v5405
    %5407 = vmatprep.mubr.f32.mxu0 %v5210
    %5408 = vmatmul.mubr.f32.gmra.mrb[0].mxu0 %v4985
    %v5409 = vpop.f32.mrb[0].mxu0
    %v5410 = vadd.f32 %v5303, %v5409
    %v5411 = vpop.f32.mrb[0].mxu0
    %v5412 = vadd.f32 %v5305, %v5411
    %5413 = vmatprep.mubr.f32.mxu0 %v5213
    %5414 = vmatmul.mubr.f32.gmra.mrb[0].mxu0 %v4989
    %v5415 = vpop.f32.mrb[0].mxu0
    %v5416 = vadd.f32 %v5309, %v5415
    %v5417 = vpop.f32.mrb[0].mxu0
    %v5418 = vadd.f32 %v5311, %v5417
    %5419 = vmatprep.mubr.f32.mxu0 %v5216
    %5420 = vmatmul.mubr.f32.gmra.mrb[0].mxu0 %v4993
    %v5421 = vpop.f32.mrb[0].mxu0
    %v5422 = vadd.f32 %v5315, %v5421
    %v5423 = vpop.f32.mrb[0].mxu0
    %v5424 = vadd.f32 %v5317, %v5423
    %5425 = vmatprep.mubr.f32.mxu0 %v5219
    %5426 = vmatmul.mubr.f32.gmra.mrb[0].mxu0 %v4997
    %v5427 = vpop.f32.mrb[0].mxu0
    %v5428 = vadd.f32 %v5321, %v5427
    %v5429 = vpop.f32.mrb[0].mxu0
    %v5430 = vadd.f32 %v5323, %v5429
    %5431 = vmatprep.mubr.f32.mxu0 %v5222
    %5432 = vmatmul.mubr.f32.gmra.mrb[0].mxu0 %v5001
    %v5433 = vpop.f32.mrb[0].mxu0
    %v5434 = vadd.f32 %v5327, %v5433
    %v5435 = vpop.f32.mrb[0].mxu0
    %v5436 = vadd.f32 %v5329, %v5435
    %5437 = vdwg.mxu0
    %5438 = vmatprep.subr.mxu0 %v5006
    %5439 = vmatpush1.msra.mxu0 %v5005
    %5440 = vmatprep.subr.mxu0 %v5010
    %5441 = vmatpush1.msra.mxu0 %v5009
    %5442 = vmatprep.subr.mxu0 %v5014
    %5443 = vmatpush1.msra.mxu0 %v5013
    %5444 = vmatprep.subr.mxu0 %v5018
    %5445 = vmatpush1.msra.mxu0 %v5017
    %5446 = vmatprep.subr.mxu0 %v5022
    %5447 = vmatpush1.msra.mxu0 %v5021
    %5448 = vmatprep.subr.mxu0 %v5026
    %5449 = vmatpush1.msra.mxu0 %v5025
    %5450 = vmatprep.subr.mxu0 %v5030
    %5451 = vmatpush1.msra.mxu0 %v5029
    %5452 = vmatprep.subr.mxu0 %v5034
    %5453 = vmatpush1.msra.mxu0 %v5033
    %5454 = vmatprep.subr.mxu0 %v5038
    %5455 = vmatpush1.msra.mxu0 %v5037
    %5456 = vmatprep.subr.mxu0 %v5042
    %5457 = vmatpush1.msra.mxu0 %v5041
    %5458 = vmatprep.subr.mxu0 %v5046
    %5459 = vmatpush1.msra.mxu0 %v5045
    %5460 = vmatprep.subr.mxu0 %v5050
    %5461 = vmatpush1.msra.mxu0 %v5049
    %5462 = vmatprep.subr.mxu0 %v5054
    %5463 = vmatpush1.msra.mxu0 %v5053
    %5464 = vmatprep.subr.mxu0 %v5058
    %5465 = vmatpush1.msra.mxu0 %v5057
    %5466 = vmatprep.subr.mxu0 %v5062
    %5467 = vmatpush1.msra.mxu0 %v5061
    %5468 = vmatprep.subr.mxu0 %v5066
    %5469 = vmatpush1.msra.mxu0 %v5065
    %5470 = vmatprep.subr.mxu0 %v5070
    %5471 = vmatpush1.msra.mxu0 %v5069
    %5472 = vmatprep.subr.mxu0 %v5074
    %5473 = vmatpush1.msra.mxu0 %v5073
    %5474 = vmatprep.subr.mxu0 %v5078
    %5475 = vmatpush1.msra.mxu0 %v5077
    %5476 = vmatprep.subr.mxu0 %v5082
    %5477 = vmatpush1.msra.mxu0 %v5081
    %5478 = vmatprep.subr.mxu0 %v5086
    %5479 = vmatpush1.msra.mxu0 %v5085
    %5480 = vmatprep.subr.mxu0 %v5090
    %5481 = vmatpush1.msra.mxu0 %v5089
    %5482 = vmatprep.subr.mxu0 %v5094
    %5483 = vmatpush1.msra.mxu0 %v5093
    %5484 = vmatprep.subr.mxu0 %v5098
    %5485 = vmatpush1.msra.mxu0 %v5097
    %5486 = vmatprep.subr.mxu0 %v5102
    %5487 = vmatpush1.msra.mxu0 %v5101
    %5488 = vmatprep.subr.mxu0 %v5106
    %5489 = vmatpush1.msra.mxu0 %v5105
    %5490 = vmatprep.subr.mxu0 %v5110
    %5491 = vmatpush1.msra.mxu0 %v5109
    %5492 = vmatprep.subr.mxu0 %v5114
    %5493 = vmatpush1.msra.mxu0 %v5113
    %5494 = vmatprep.subr.mxu0 %v5118
    %5495 = vmatpush1.msra.mxu0 %v5117
    %5496 = vmatprep.subr.mxu0 %v5122
    %5497 = vmatpush1.msra.mxu0 %v5121
    %5498 = vmatprep.subr.mxu0 %v5126
    %5499 = vmatpush1.msra.mxu0 %v5125
    %5500 = vmatprep.subr.mxu0 %v5130
    %5501 = vmatpush1.msra.mxu0 %v5129
    %5502 = vmatprep.mubr.f32.mxu0 %v4976
    %5503 = vmatmul.mubr.f32.gmra.mrb[0].mxu0 %v4975
    %v5504 = vpop.f32.mrb[0].mxu0
    %v5505 = vadd.f32 0.0, %v5504
    %v5506 = vpop.f32.mrb[0].mxu0
    %v5507 = vadd.f32 0.0, %v5506
    %5508 = vmatprep.mubr.f32.mxu0 %v4980
    %5509 = vmatmul.mubr.f32.gmra.mrb[0].mxu0 %v4979
    %v5510 = vpop.f32.mrb[0].mxu0
    %v5511 = vadd.f32 0.0, %v5510
    %v5512 = vpop.f32.mrb[0].mxu0
    %v5513 = vadd.f32 0.0, %v5512
    %5514 = vmatprep.mubr.f32.mxu0 %v4984
    %5515 = vmatmul.mubr.f32.gmra.mrb[0].mxu0 %v4983
    %v5516 = vpop.f32.mrb[0].mxu0
    %v5517 = vadd.f32 0.0, %v5516
    %v5518 = vpop.f32.mrb[0].mxu0
    %v5519 = vadd.f32 0.0, %v5518
    %5520 = vmatprep.mubr.f32.mxu0 %v4988
    %5521 = vmatmul.mubr.f32.gmra.mrb[0].mxu0 %v4987
    %v5522 = vpop.f32.mrb[0].mxu0
    %v5523 = vadd.f32 0.0, %v5522
    %v5524 = vpop.f32.mrb[0].mxu0
    %v5525 = vadd.f32 0.0, %v5524
    %5526 = vmatprep.mubr.f32.mxu0 %v4992
    %5527 = vmatmul.mubr.f32.gmra.mrb[0].mxu0 %v4991
    %v5528 = vpop.f32.mrb[0].mxu0
    %v5529 = vadd.f32 0.0, %v5528
    %v5530 = vpop.f32.mrb[0].mxu0
    %v5531 = vadd.f32 0.0, %v5530
    %5532 = vmatprep.mubr.f32.mxu0 %v4996
    %5533 = vmatmul.mubr.f32.gmra.mrb[0].mxu0 %v4995
    %v5534 = vpop.f32.mrb[0].mxu0
    %v5535 = vadd.f32 0.0, %v5534
    %v5536 = vpop.f32.mrb[0].mxu0
    %v5537 = vadd.f32 0.0, %v5536
    %5538 = vmatprep.mubr.f32.mxu0 %v5000
    %5539 = vmatmul.mubr.f32.gmra.mrb[0].mxu0 %v4999
    %v5540 = vpop.f32.mrb[0].mxu0
    %v5541 = vadd.f32 0.0, %v5540
    %v5542 = vpop.f32.mrb[0].mxu0
    %v5543 = vadd.f32 0.0, %v5542
    %5544 = vdwg.mxu0
    %5545 = vmatprep.subr.mxu0 %v5134
    %5546 = vmatpush1.msra.mxu0 %v5133
    %5547 = vmatprep.subr.mxu0 %v5138
    %5548 = vmatpush1.msra.mxu0 %v5137
    %5549 = vmatprep.subr.mxu0 %v5142
    %5550 = vmatpush1.msra.mxu0 %v5141
    %5551 = vmatprep.subr.mxu0 %v5146
    %5552 = vmatpush1.msra.mxu0 %v5145
    %5553 = vmatprep.subr.mxu0 %v5150
    %5554 = vmatpush1.msra.mxu0 %v5149
    %5555 = vmatprep.subr.mxu0 %v5154
    %5556 = vmatpush1.msra.mxu0 %v5153
    %5557 = vmatprep.subr.mxu0 %v5158
    %5558 = vmatpush1.msra.mxu0 %v5157
    %5559 = vmatprep.subr.mxu0 %v5162
    %5560 = vmatpush1.msra.mxu0 %v5161
    %5561 = vmatprep.subr.mxu0 %v5166
    %5562 = vmatpush1.msra.mxu0 %v5165
    %5563 = vmatprep.subr.mxu0 %v5170
    %5564 = vmatpush1.msra.mxu0 %v5169
    %5565 = vmatprep.subr.mxu0 %v5174
    %5566 = vmatpush1.msra.mxu0 %v5173
    %5567 = vmatprep.subr.mxu0 %v5178
    %5568 = vmatpush1.msra.mxu0 %v5177
    %5569 = vmatprep.subr.mxu0 %v5182
    %5570 = vmatpush1.msra.mxu0 %v5181
    %5571 = vmatprep.subr.mxu0 %v5186
    %5572 = vmatpush1.msra.mxu0 %v5185
    %5573 = vmatprep.subr.mxu0 %v5190
    %5574 = vmatpush1.msra.mxu0 %v5189
    %5575 = vmatprep.subr.mxu0 %v5194
    %5576 = vmatpush1.msra.mxu0 %v5193
    %5577 = vmatprep.subr.mxu0 %v5198
    %5578 = vmatpush1.msra.mxu0 %v5197
    %5579 = vmatprep.subr.mxu0 %v5202
    %5580 = vmatpush1.msra.mxu0 %v5201
    %5581 = vmatprep.subr.mxu0 0.0
    %5582 = vmatpush1.msra.mxu0 0.0
    %5583 = vmatprep.subr.mxu0 0.0
    %5584 = vmatpush1.msra.mxu0 0.0
    %5585 = vmatprep.subr.mxu0 0.0
    %5586 = vmatpush1.msra.mxu0 0.0
    %5587 = vmatprep.subr.mxu0 0.0
    %5588 = vmatpush1.msra.mxu0 0.0
    %5589 = vmatprep.subr.mxu0 0.0
    %5590 = vmatpush1.msra.mxu0 0.0
    %5591 = vmatprep.subr.mxu0 0.0
    %5592 = vmatpush1.msra.mxu0 0.0
    %5593 = vmatprep.subr.mxu0 0.0
    %5594 = vmatpush1.msra.mxu0 0.0
    %5595 = vmatprep.subr.mxu0 0.0
    %5596 = vmatpush1.msra.mxu0 0.0
    %5597 = vmatprep.subr.mxu0 0.0
    %5598 = vmatpush1.msra.mxu0 0.0
    %5599 = vmatprep.subr.mxu0 0.0
    %5600 = vmatpush1.msra.mxu0 0.0
    %5601 = vmatprep.subr.mxu0 0.0
    %5602 = vmatpush1.msra.mxu0 0.0
    %5603 = vmatprep.subr.mxu0 0.0
    %5604 = vmatpush1.msra.mxu0 0.0
    %5605 = vmatprep.subr.mxu0 0.0
    %5606 = vmatpush1.msra.mxu0 0.0
    %5607 = vmatprep.subr.mxu0 0.0
    %5608 = vmatpush1.msra.mxu0 0.0
    %5609 = vmatprep.mubr.f32.mxu0 %v5204
    %5610 = vmatmul.mubr.f32.gmra.mrb[0].mxu0 %v4977
    %v5611 = vpop.f32.mrb[0].mxu0
    %v5612 = vadd.f32 %v5505, %v5611
    %v5613 = vpop.f32.mrb[0].mxu0
    %v5614 = vadd.f32 %v5507, %v5613
    %5615 = vmatprep.mubr.f32.mxu0 %v5207
    %5616 = vmatmul.mubr.f32.gmra.mrb[0].mxu0 %v4981
    %v5617 = vpop.f32.mrb[0].mxu0
    %v5618 = vadd.f32 %v5511, %v5617
    %v5619 = vpop.f32.mrb[0].mxu0
    %v5620 = vadd.f32 %v5513, %v5619
    %5621 = vmatprep.mubr.f32.mxu0 %v5210
    %5622 = vmatmul.mubr.f32.gmra.mrb[0].mxu0 %v4985
    %v5623 = vpop.f32.mrb[0].mxu0
    %v5624 = vadd.f32 %v5517, %v5623
    %v5625 = vpop.f32.mrb[0].mxu0
    %v5626 = vadd.f32 %v5519, %v5625
    %5627 = vmatprep.mubr.f32.mxu0 %v5213
    %5628 = vmatmul.mubr.f32.gmra.mrb[0].mxu0 %v4989
    %v5629 = vpop.f32.mrb[0].mxu0
    %v5630 = vadd.f32 %v5523, %v5629
    %v5631 = vpop.f32.mrb[0].mxu0
    %v5632 = vadd.f32 %v5525, %v5631
    %5633 = vmatprep.mubr.f32.mxu0 %v5216
    %5634 = vmatmul.mubr.f32.gmra.mrb[0].mxu0 %v4993
    %v5635 = vpop.f32.mrb[0].mxu0
    %v5636 = vadd.f32 %v5529, %v5635
    %v5637 = vpop.f32.mrb[0].mxu0
    %v5638 = vadd.f32 %v5531, %v5637
    %5639 = vmatprep.mubr.f32.mxu0 %v5219
    %5640 = vmatmul.mubr.f32.gmra.mrb[0].mxu0 %v4997
    %v5641 = vpop.f32.mrb[0].mxu0
    %v5642 = vadd.f32 %v5535, %v5641
    %v5643 = vpop.f32.mrb[0].mxu0
    %v5644 = vadd.f32 %v5537, %v5643
    %5645 = vmatprep.mubr.f32.mxu0 %v5222
    %5646 = vmatmul.mubr.f32.gmra.mrb[0].mxu0 %v5001
    %v5647 = vpop.f32.mrb[0].mxu0
    %v5648 = vadd.f32 %v5541, %v5647
    %v5649 = vpop.f32.mrb[0].mxu0
    %v5650 = vadd.f32 %v5543, %v5649
    %5651 = vdwg.mxu0
    %v5652 = vld [vmem:[#allocation27] sm:$0x3]
    %v5653 = vld [vmem:[#allocation26] sm:$0xff]
    %v5654 = vld [vmem:[#allocation26 + $0x8] sm:$0xff]
    %v5655 = vld [vmem:[#allocation26 + $0x10] sm:$0xff]
    %v5656 = vld [vmem:[#allocation26 + $0x18] sm:$0xff]
    %v5657 = vld [vmem:[#allocation26 + $0x20] sm:$0xff]
    %v5658 = vld [vmem:[#allocation26 + $0x28] sm:$0xff]
    %v5659 = vld [vmem:[#allocation26 + $0x30] sm:$0xff]
    %v5660 = vld [vmem:[#allocation26 + $0x38] sm:$0xff]
    %v5661 = vld [vmem:[#allocation26 + $0x40] sm:$0xff]
    %v5662 = vld [vmem:[#allocation26 + $0x48] sm:$0xff]
    %v5663 = vld [vmem:[#allocation26 + $0x50] sm:$0xff]
    %v5664 = vld [vmem:[#allocation26 + $0x58] sm:$0xff]
    %v5665 = vld [vmem:[#allocation26 + $0x60] sm:$0xff]
    %v5666 = vld [vmem:[#allocation26 + $0x68] sm:$0xff]
    %v5667 = vld [vmem:[#allocation26 + $0x70] sm:$0xff]
    %v5668 = vld [vmem:[#allocation26 + $0x78] sm:$0xff]
    %v5669 = vld [vmem:[#allocation26 + $0x80] sm:$0xff]
    %v5670 = vld [vmem:[#allocation26 + $0x88] sm:$0xff]
    %v5671 = vld [vmem:[#allocation26 + $0x90] sm:$0xff]
    %v5672 = vld [vmem:[#allocation26 + $0x98] sm:$0xff]
    %v5673 = vld [vmem:[#allocation26 + $0xa0] sm:$0xff]
    %v5674 = vld [vmem:[#allocation26 + $0xa8] sm:$0xff]
    %v5675 = vld [vmem:[#allocation26 + $0xb0] sm:$0xff]
    %v5676 = vld [vmem:[#allocation26 + $0xb8] sm:$0xff]
    %v5677 = vld [vmem:[#allocation26 + $0xc0] sm:$0x3]
    %v5678 = vld [vmem:[#allocation26 + $0xc8] sm:$0x3]
    %v5679 = vld [vmem:[#allocation26 + $0xd0] sm:$0x3]
    %v5680 = vld [vmem:[#allocation26 + $0xd8] sm:$0x3]
    %v5681 = vmul.f32 %v5398, %v5653
    %v5682 = vmul.f32 %v5400, %v5654
    %v5683 = vmul.f32 %v5612, %v5655
    %v5684 = vmul.f32 %v5614, %v5656
    %v5685 = vmul.f32 %v5404, %v5657
    %v5686 = vmul.f32 %v5406, %v5658
    %v5687 = vmul.f32 %v5618, %v5659
    %v5688 = vmul.f32 %v5620, %v5660
    %v5689 = vmul.f32 %v5410, %v5661
    %v5690 = vmul.f32 %v5412, %v5662
    %v5691 = vmul.f32 %v5624, %v5663
    %v5692 = vmul.f32 %v5626, %v5664
    %v5693 = vmul.f32 %v5416, %v5665
    %v5694 = vmul.f32 %v5418, %v5666
    %v5695 = vmul.f32 %v5630, %v5667
    %v5696 = vmul.f32 %v5632, %v5668
    %v5697 = vmul.f32 %v5422, %v5669
    %v5698 = vmul.f32 %v5424, %v5670
    %v5699 = vmul.f32 %v5636, %v5671
    %v5700 = vmul.f32 %v5638, %v5672
    %v5701 = vmul.f32 %v5428, %v5673
    %v5702 = vmul.f32 %v5430, %v5674
    %v5703 = vmul.f32 %v5642, %v5675
    %v5704 = vmul.f32 %v5644, %v5676
    %v5705 = vmul.f32 %v5434, %v5677
    %v5706 = vmul.f32 %v5436, %v5678
    %v5707 = vmul.f32 %v5648, %v5679
    %v5708 = vmul.f32 %v5650, %v5680
    %v5710 = vsel %vm1316, %v5652, 0
    %v5713 = vsel %vm1467, %v5705, 0
    %v5716 = vsel %vm1467, %v5706, 0
    %v5719 = vsel %vm1467, %v5707, 0
    %v5722 = vsel %vm1467, %v5708, 0
    %5724 = vmatprep.subr.mxu0 %v5682
    %5725 = vmatpush1.msra.mxu0 %v5681
    %5726 = vmatprep.subr.mxu0 %v5686
    %5727 = vmatpush1.msra.mxu0 %v5685
    %5728 = vmatprep.subr.mxu0 %v5690
    %5729 = vmatpush1.msra.mxu0 %v5689
    %5730 = vmatprep.subr.mxu0 %v5694
    %5731 = vmatpush1.msra.mxu0 %v5693
    %5732 = vmatprep.subr.mxu0 %v5698
    %5733 = vmatpush1.msra.mxu0 %v5697
    %5734 = vmatprep.subr.mxu0 %v5702
    %5735 = vmatpush1.msra.mxu0 %v5701
    %5736 = vmatprep.subr.mxu0 %v5716
    %5737 = vmatpush1.msra.mxu0 %v5713
    %5738 = vmatprep.subr.mxu0 0.0
    %5739 = vmatpush1.msra.mxu0 0.0
    %5740 = vmatprep.subr.mxu0 0.0
    %5741 = vmatpush1.msra.mxu0 0.0
    %5742 = vmatprep.subr.mxu0 0.0
    %5743 = vmatpush1.msra.mxu0 0.0
    %5744 = vmatprep.subr.mxu0 0.0
    %5745 = vmatpush1.msra.mxu0 0.0
    %5746 = vmatprep.subr.mxu0 0.0
    %5747 = vmatpush1.msra.mxu0 0.0
    %5748 = vmatprep.subr.mxu0 0.0
    %5749 = vmatpush1.msra.mxu0 0.0
    %5750 = vmatprep.subr.mxu0 0.0
    %5751 = vmatpush1.msra.mxu0 0.0
    %5752 = vmatprep.subr.mxu0 0.0
    %5753 = vmatpush1.msra.mxu0 0.0
    %5754 = vmatprep.subr.mxu0 0.0
    %5755 = vmatpush1.msra.mxu0 0.0
    %5756 = vmatprep.subr.mxu0 0.0
    %5757 = vmatpush1.msra.mxu0 0.0
    %5758 = vmatprep.subr.mxu0 0.0
    %5759 = vmatpush1.msra.mxu0 0.0
    %5760 = vmatprep.subr.mxu0 0.0
    %5761 = vmatpush1.msra.mxu0 0.0
    %5762 = vmatprep.subr.mxu0 0.0
    %5763 = vmatpush1.msra.mxu0 0.0
    %5764 = vmatprep.subr.mxu0 0.0
    %5765 = vmatpush1.msra.mxu0 0.0
    %5766 = vmatprep.subr.mxu0 0.0
    %5767 = vmatpush1.msra.mxu0 0.0
    %5768 = vmatprep.subr.mxu0 0.0
    %5769 = vmatpush1.msra.mxu0 0.0
    %5770 = vmatprep.subr.mxu0 0.0
    %5771 = vmatpush1.msra.mxu0 0.0
    %5772 = vmatprep.subr.mxu0 0.0
    %5773 = vmatpush1.msra.mxu0 0.0
    %5774 = vmatprep.subr.mxu0 0.0
    %5775 = vmatpush1.msra.mxu0 0.0
    %5776 = vmatprep.subr.mxu0 0.0
    %5777 = vmatpush1.msra.mxu0 0.0
    %5778 = vmatprep.subr.mxu0 0.0
    %5779 = vmatpush1.msra.mxu0 0.0
    %5780 = vmatprep.subr.mxu0 0.0
    %5781 = vmatpush1.msra.mxu0 0.0
    %5782 = vmatprep.subr.mxu0 0.0
    %5783 = vmatpush1.msra.mxu0 0.0
    %5784 = vmatprep.subr.mxu0 0.0
    %5785 = vmatpush1.msra.mxu0 0.0
    %5786 = vmatprep.subr.mxu0 0.0
    %5787 = vmatpush1.msra.mxu0 0.0
    %5788 = vmatprep.mubr.f32.mxu0 0.0
    %5789 = vmatmul.mubr.f32.gmra.mrb[0].mxu0 %v5710
    %v5790 = vpop.f32.mrb[0].mxu0
    %v5791 = vadd.f32 0.0, %v5790
    %v5792 = vpop.f32.mrb[0].mxu0
    %v5793 = vadd.f32 0.0, %v5792
    %5794 = vdwg.mxu0
    %5795 = vmatprep.subr.mxu0 %v5684
    %5796 = vmatpush1.msra.mxu0 %v5683
    %5797 = vmatprep.subr.mxu0 %v5688
    %5798 = vmatpush1.msra.mxu0 %v5687
    %5799 = vmatprep.subr.mxu0 %v5692
    %5800 = vmatpush1.msra.mxu0 %v5691
    %5801 = vmatprep.subr.mxu0 %v5696
    %5802 = vmatpush1.msra.mxu0 %v5695
    %5803 = vmatprep.subr.mxu0 %v5700
    %5804 = vmatpush1.msra.mxu0 %v5699
    %5805 = vmatprep.subr.mxu0 %v5704
    %5806 = vmatpush1.msra.mxu0 %v5703
    %5807 = vmatprep.subr.mxu0 %v5722
    %5808 = vmatpush1.msra.mxu0 %v5719
    %5809 = vmatprep.subr.mxu0 0.0
    %5810 = vmatpush1.msra.mxu0 0.0
    %5811 = vmatprep.subr.mxu0 0.0
    %5812 = vmatpush1.msra.mxu0 0.0
    %5813 = vmatprep.subr.mxu0 0.0
    %5814 = vmatpush1.msra.mxu0 0.0
    %5815 = vmatprep.subr.mxu0 0.0
    %5816 = vmatpush1.msra.mxu0 0.0
    %5817 = vmatprep.subr.mxu0 0.0
    %5818 = vmatpush1.msra.mxu0 0.0
    %5819 = vmatprep.subr.mxu0 0.0
    %5820 = vmatpush1.msra.mxu0 0.0
    %5821 = vmatprep.subr.mxu0 0.0
    %5822 = vmatpush1.msra.mxu0 0.0
    %5823 = vmatprep.subr.mxu0 0.0
    %5824 = vmatpush1.msra.mxu0 0.0
    %5825 = vmatprep.subr.mxu0 0.0
    %5826 = vmatpush1.msra.mxu0 0.0
    %5827 = vmatprep.subr.mxu0 0.0
    %5828 = vmatpush1.msra.mxu0 0.0
    %5829 = vmatprep.subr.mxu0 0.0
    %5830 = vmatpush1.msra.mxu0 0.0
    %5831 = vmatprep.subr.mxu0 0.0
    %5832 = vmatpush1.msra.mxu0 0.0
    %5833 = vmatprep.subr.mxu0 0.0
    %5834 = vmatpush1.msra.mxu0 0.0
    %5835 = vmatprep.subr.mxu0 0.0
    %5836 = vmatpush1.msra.mxu0 0.0
    %5837 = vmatprep.subr.mxu0 0.0
    %5838 = vmatpush1.msra.mxu0 0.0
    %5839 = vmatprep.subr.mxu0 0.0
    %5840 = vmatpush1.msra.mxu0 0.0
    %5841 = vmatprep.subr.mxu0 0.0
    %5842 = vmatpush1.msra.mxu0 0.0
    %5843 = vmatprep.subr.mxu0 0.0
    %5844 = vmatpush1.msra.mxu0 0.0
    %5845 = vmatprep.subr.mxu0 0.0
    %5846 = vmatpush1.msra.mxu0 0.0
    %5847 = vmatprep.subr.mxu0 0.0
    %5848 = vmatpush1.msra.mxu0 0.0
    %5849 = vmatprep.subr.mxu0 0.0
    %5850 = vmatpush1.msra.mxu0 0.0
    %5851 = vmatprep.subr.mxu0 0.0
    %5852 = vmatpush1.msra.mxu0 0.0
    %5853 = vmatprep.subr.mxu0 0.0
    %5854 = vmatpush1.msra.mxu0 0.0
    %5855 = vmatprep.subr.mxu0 0.0
    %5856 = vmatpush1.msra.mxu0 0.0
    %5857 = vmatprep.subr.mxu0 0.0
    %5858 = vmatpush1.msra.mxu0 0.0
    %5859 = vmatprep.mubr.f32.mxu0 0.0
    %5860 = vmatmul.mubr.f32.gmra.mrb[0].mxu0 %v5710
    %v5861 = vpop.f32.mrb[0].mxu0
    %v5862 = vadd.f32 0.0, %v5861
    %v5863 = vpop.f32.mrb[0].mxu0
    %v5864 = vadd.f32 0.0, %v5863
    %5865 = vdwg.mxu0
    %v5866 = vld [vmem:[%s18] sm:$0xff]
    %v5867 = vld [vmem:[%s18 + $0x8] sm:$0xff]
    %v5868 = vld [vmem:[%s18 + $0x10] sm:$0xff]
    %v5869 = vld [vmem:[%s18 + $0x18] sm:$0xff]
    %v5870 = vld [vmem:[%s18 + $0x20] sm:$0xff]
    %v5871 = vld [vmem:[%s18 + $0x28] sm:$0xff]
    %v5872 = vld [vmem:[%s18 + $0x30] sm:$0xff]
    %v5873 = vld [vmem:[%s18 + $0x38] sm:$0xff]
    %v5874 = vld [vmem:[%s18 + $0x40] sm:$0xff]
    %v5875 = vld [vmem:[%s18 + $0x48] sm:$0xff]
    %v5876 = vld [vmem:[%s18 + $0x50] sm:$0xff]
    %v5877 = vld [vmem:[%s18 + $0x58] sm:$0xff]
    %v5878 = vld [vmem:[%s18 + $0x60] sm:$0xff]
    %v5879 = vld [vmem:[%s18 + $0x68] sm:$0xff]
    %v5880 = vld [vmem:[%s18 + $0x70] sm:$0xff]
    %v5881 = vld [vmem:[%s18 + $0x78] sm:$0xff]
    %v5882 = vld [vmem:[%s18 + $0x80] sm:$0xff]
    %v5883 = vld [vmem:[%s18 + $0x88] sm:$0xff]
    %v5884 = vld [vmem:[%s18 + $0x90] sm:$0xff]
    %v5885 = vld [vmem:[%s18 + $0x98] sm:$0xff]
    %v5886 = vld [vmem:[%s18 + $0xa0] sm:$0xff]
    %v5887 = vld [vmem:[%s18 + $0xa8] sm:$0xff]
    %v5888 = vld [vmem:[%s18 + $0xb0] sm:$0xff]
    %v5889 = vld [vmem:[%s18 + $0xb8] sm:$0xff]
    %v5890 = vld [vmem:[%s18 + $0xc0] sm:$0xff]
    %v5891 = vld [vmem:[%s18 + $0xc8] sm:$0xff]
    %v5892 = vld [vmem:[%s18 + $0xd0] sm:$0xff]
    %v5893 = vld [vmem:[%s18 + $0xd8] sm:$0xff]
    %v5894 = vld [vmem:[%s18 + $0xe0] sm:$0xff]
    %v5895 = vld [vmem:[%s18 + $0xe8] sm:$0xff]
    %v5896 = vld [vmem:[%s18 + $0xf0] sm:$0xff]
    %v5897 = vld [vmem:[%s18 + $0xf8] sm:$0xff]
    %v5898 = vld [vmem:[%s18 + $0x100] sm:$0xff]
    %v5899 = vld [vmem:[%s18 + $0x108] sm:$0xff]
    %v5900 = vld [vmem:[%s18 + $0x110] sm:$0xff]
    %v5901 = vld [vmem:[%s18 + $0x118] sm:$0xff]
    %v5902 = vld [vmem:[%s18 + $0x120] sm:$0xff]
    %v5903 = vld [vmem:[%s18 + $0x128] sm:$0xff]
    %v5904 = vld [vmem:[%s18 + $0x130] sm:$0xff]
    %v5905 = vld [vmem:[%s18 + $0x138] sm:$0xff]
    %v5906 = vld [vmem:[%s18 + $0x140] sm:$0xff]
    %v5907 = vld [vmem:[%s18 + $0x148] sm:$0xff]
    %v5908 = vld [vmem:[%s18 + $0x150] sm:$0xff]
    %v5909 = vld [vmem:[%s18 + $0x158] sm:$0xff]
    %v5910 = vld [vmem:[%s18 + $0x160] sm:$0xff]
    %v5911 = vld [vmem:[%s18 + $0x168] sm:$0xff]
    %v5912 = vld [vmem:[%s18 + $0x170] sm:$0xff]
    %v5913 = vld [vmem:[%s18 + $0x178] sm:$0xff]
    %v5914 = vld [vmem:[%s18 + $0x180] sm:$0xff]
    %v5915 = vld [vmem:[%s18 + $0x188] sm:$0xff]
    %v5916 = vld [vmem:[%s18 + $0x190] sm:$0xff]
    %v5917 = vld [vmem:[%s18 + $0x198] sm:$0xff]
    %v5918 = vld [vmem:[%s18 + $0x1a0] sm:$0xff]
    %v5919 = vld [vmem:[%s18 + $0x1a8] sm:$0xff]
    %v5920 = vld [vmem:[%s18 + $0x1b0] sm:$0xff]
    %v5921 = vld [vmem:[%s18 + $0x1b8] sm:$0xff]
    %v5922 = vld [vmem:[%s18 + $0x1c0] sm:$0xff]
    %v5923 = vld [vmem:[%s18 + $0x1c8] sm:$0xff]
    %v5924 = vld [vmem:[%s18 + $0x1d0] sm:$0xff]
    %v5925 = vld [vmem:[%s18 + $0x1d8] sm:$0xff]
    %v5926 = vld [vmem:[%s18 + $0x1e0] sm:$0xff]
    %v5927 = vld [vmem:[%s18 + $0x1e8] sm:$0xff]
    %v5928 = vld [vmem:[%s18 + $0x1f0] sm:$0xf]
    %v5929 = vld [vmem:[#allocation29] sm:$0x1]
    %v5931 = vlaneseq
    %v5932 = vshrl.u32 %v5931, 7
    %v5933 = vsub.s32 0, %v5932
    %v5934 = vrot.slane %v5929, %v5933
    %vm5936 = vcmask 949248
    %v5938 = vsel %vm5936, %v5864, 0
    %v5941 = vsel %vm2062, %v5928, 0
    %5943 = vmatprep.subr.mxu0 0.0
    %5944 = vmatpush1.msra.mxu0 %v5866
    %5945 = vmatprep.subr.mxu0 0.0
    %5946 = vmatpush1.msra.mxu0 %v5867
    %5947 = vmatprep.subr.mxu0 0.0
    %5948 = vmatpush1.msra.mxu0 %v5868
    %5949 = vmatprep.subr.mxu0 0.0
    %5950 = vmatpush1.msra.mxu0 %v5869
    %5951 = vmatprep.subr.mxu0 0.0
    %5952 = vmatpush1.msra.mxu0 %v5870
    %5953 = vmatprep.subr.mxu0 0.0
    %5954 = vmatpush1.msra.mxu0 %v5871
    %5955 = vmatprep.subr.mxu0 0.0
    %5956 = vmatpush1.msra.mxu0 %v5872
    %5957 = vmatprep.subr.mxu0 0.0
    %5958 = vmatpush1.msra.mxu0 %v5873
    %5959 = vmatprep.subr.mxu0 0.0
    %5960 = vmatpush1.msra.mxu0 %v5874
    %5961 = vmatprep.subr.mxu0 0.0
    %5962 = vmatpush1.msra.mxu0 %v5875
    %5963 = vmatprep.subr.mxu0 0.0
    %5964 = vmatpush1.msra.mxu0 %v5876
    %5965 = vmatprep.subr.mxu0 0.0
    %5966 = vmatpush1.msra.mxu0 %v5877
    %5967 = vmatprep.subr.mxu0 0.0
    %5968 = vmatpush1.msra.mxu0 %v5878
    %5969 = vmatprep.subr.mxu0 0.0
    %5970 = vmatpush1.msra.mxu0 %v5879
    %5971 = vmatprep.subr.mxu0 0.0
    %5972 = vmatpush1.msra.mxu0 %v5880
    %5973 = vmatprep.subr.mxu0 0.0
    %5974 = vmatpush1.msra.mxu0 %v5881
    %5975 = vmatprep.subr.mxu0 0.0
    %5976 = vmatpush1.msra.mxu0 %v5882
    %5977 = vmatprep.subr.mxu0 0.0
    %5978 = vmatpush1.msra.mxu0 %v5883
    %5979 = vmatprep.subr.mxu0 0.0
    %5980 = vmatpush1.msra.mxu0 %v5884
    %5981 = vmatprep.subr.mxu0 0.0
    %5982 = vmatpush1.msra.mxu0 %v5885
    %5983 = vmatprep.subr.mxu0 0.0
    %5984 = vmatpush1.msra.mxu0 %v5886
    %5985 = vmatprep.subr.mxu0 0.0
    %5986 = vmatpush1.msra.mxu0 %v5887
    %5987 = vmatprep.subr.mxu0 0.0
    %5988 = vmatpush1.msra.mxu0 %v5888
    %5989 = vmatprep.subr.mxu0 0.0
    %5990 = vmatpush1.msra.mxu0 %v5889
    %5991 = vmatprep.subr.mxu0 0.0
    %5992 = vmatpush1.msra.mxu0 %v5890
    %5993 = vmatprep.subr.mxu0 0.0
    %5994 = vmatpush1.msra.mxu0 %v5891
    %5995 = vmatprep.subr.mxu0 0.0
    %5996 = vmatpush1.msra.mxu0 %v5892
    %5997 = vmatprep.subr.mxu0 0.0
    %5998 = vmatpush1.msra.mxu0 %v5893
    %5999 = vmatprep.subr.mxu0 0.0
    %6000 = vmatpush1.msra.mxu0 %v5894
    %6001 = vmatprep.subr.mxu0 0.0
    %6002 = vmatpush1.msra.mxu0 %v5895
    %6003 = vmatprep.subr.mxu0 0.0
    %6004 = vmatpush1.msra.mxu0 %v5896
    %6005 = vmatprep.subr.mxu0 0.0
    %6006 = vmatpush1.msra.mxu0 %v5897
    %6007 = vmatprep.mubr.f32.mxu0 %v5793
    %6008 = vmatmul.mubr.f32.gmra.mrb[0].mxu0 %v5791
    %v6009 = vpop.f32.mrb[0].mxu0
    %v6010 = vadd.f32 %v5934, %v6009
    %v6011 = vpop.f32.mrb[0].mxu0
    %6012 = vdwg.mxu0
    %6013 = vmatprep.subr.mxu0 0.0
    %6014 = vmatpush1.msra.mxu0 %v5898
    %6015 = vmatprep.subr.mxu0 0.0
    %6016 = vmatpush1.msra.mxu0 %v5899
    %6017 = vmatprep.subr.mxu0 0.0
    %6018 = vmatpush1.msra.mxu0 %v5900
    %6019 = vmatprep.subr.mxu0 0.0
    %6020 = vmatpush1.msra.mxu0 %v5901
    %6021 = vmatprep.subr.mxu0 0.0
    %6022 = vmatpush1.msra.mxu0 %v5902
    %6023 = vmatprep.subr.mxu0 0.0
    %6024 = vmatpush1.msra.mxu0 %v5903
    %6025 = vmatprep.subr.mxu0 0.0
    %6026 = vmatpush1.msra.mxu0 %v5904
    %6027 = vmatprep.subr.mxu0 0.0
    %6028 = vmatpush1.msra.mxu0 %v5905
    %6029 = vmatprep.subr.mxu0 0.0
    %6030 = vmatpush1.msra.mxu0 %v5906
    %6031 = vmatprep.subr.mxu0 0.0
    %6032 = vmatpush1.msra.mxu0 %v5907
    %6033 = vmatprep.subr.mxu0 0.0
    %6034 = vmatpush1.msra.mxu0 %v5908
    %6035 = vmatprep.subr.mxu0 0.0
    %6036 = vmatpush1.msra.mxu0 %v5909
    %6037 = vmatprep.subr.mxu0 0.0
    %6038 = vmatpush1.msra.mxu0 %v5910
    %6039 = vmatprep.subr.mxu0 0.0
    %6040 = vmatpush1.msra.mxu0 %v5911
    %6041 = vmatprep.subr.mxu0 0.0
    %6042 = vmatpush1.msra.mxu0 %v5912
    %6043 = vmatprep.subr.mxu0 0.0
    %6044 = vmatpush1.msra.mxu0 %v5913
    %6045 = vmatprep.subr.mxu0 0.0
    %6046 = vmatpush1.msra.mxu0 %v5914
    %6047 = vmatprep.subr.mxu0 0.0
    %6048 = vmatpush1.msra.mxu0 %v5915
    %6049 = vmatprep.subr.mxu0 0.0
    %6050 = vmatpush1.msra.mxu0 %v5916
    %6051 = vmatprep.subr.mxu0 0.0
    %6052 = vmatpush1.msra.mxu0 %v5917
    %6053 = vmatprep.subr.mxu0 0.0
    %6054 = vmatpush1.msra.mxu0 %v5918
    %6055 = vmatprep.subr.mxu0 0.0
    %6056 = vmatpush1.msra.mxu0 %v5919
    %6057 = vmatprep.subr.mxu0 0.0
    %6058 = vmatpush1.msra.mxu0 %v5920
    %6059 = vmatprep.subr.mxu0 0.0
    %6060 = vmatpush1.msra.mxu0 %v5921
    %6061 = vmatprep.subr.mxu0 0.0
    %6062 = vmatpush1.msra.mxu0 %v5922
    %6063 = vmatprep.subr.mxu0 0.0
    %6064 = vmatpush1.msra.mxu0 %v5923
    %6065 = vmatprep.subr.mxu0 0.0
    %6066 = vmatpush1.msra.mxu0 %v5924
    %6067 = vmatprep.subr.mxu0 0.0
    %6068 = vmatpush1.msra.mxu0 %v5925
    %6069 = vmatprep.subr.mxu0 0.0
    %6070 = vmatpush1.msra.mxu0 %v5926
    %6071 = vmatprep.subr.mxu0 0.0
    %6072 = vmatpush1.msra.mxu0 %v5927
    %6073 = vmatprep.subr.mxu0 0.0
    %6074 = vmatpush1.msra.mxu0 %v5941
    %6075 = vmatprep.subr.mxu0 0.0
    %6076 = vmatpush1.msra.mxu0 0.0
    %6077 = vmatprep.mubr.f32.mxu0 %v5938
    %6078 = vmatmul.mubr.f32.gmra.mrb[0].mxu0 %v5862
    %v6079 = vpop.f32.mrb[0].mxu0
    %v6080 = vadd.f32 %v6010, %v6079
    %v6081 = vpop.f32.mrb[0].mxu0
    %6082 = vdwg.mxu0
    %v6083 = vsub.f32 0.0, %v6080
    %v6084 = vmul.f32 %v6083, 1.442695
    %v6085 = vpow.pop %v6084
    %v6086 = vadd.f32 %v6085, 1.0
    %v6087 = vrcp.pop %v6086
    %v6088 = vmul.f32 1.0, %v6087
    %vm6089 = vcmask 156672
    %6090 = vst.msk [vmem:[#allocation30] sm:$0x3] %vm6089, %v6088
    // Predicated region
    $region154: #{decoder_forward.1} parent=1 // pred_check
      _
    $region155: #{decoder_forward.1} parent=1 // pred_check_branch
      %6092 = sbr.rel (0) target = $region157
    $region156: #{decoder_forward.1} parent=1 // pred_region
      %s6094 = ssub.s32 32, 32
      %6095 = vsyncadd [#allocation5], %s6094
      %s6097 = sshll.u32 [#allocation30], 4
      %s6098 = int_to_ptr.vmem [resolvable:$true] %s6097
      %6100 = dma.vmem_to_hbm [thread:$0]  %s6098, 32, %s21, [#allocation5]
    $region157: #{decoder_forward.1} parent=1 // pred_fallthru
      _
    // Predicated region
    $region158: #{decoder_forward.1} parent=1 // pred_check
      _
    $region159: #{decoder_forward.1} parent=1 // pred_check_branch
      %6102 = sbr.rel (0) target = $region161
    $region160: #{decoder_forward.1} parent=1 // pred_region
      %6103 = dma.done [#allocation5], 32
    $region161: #{decoder_forward.1} parent=1 // pred_fallthru
      _
    %6104 = vsyncpa [#allocation4], 1
    %6105 = vsyncpa [#allocation7], 1
    %6106 = vsyncpa [#allocation10], 1
    %6107 = vsyncpa [#allocation13], 1
    %6108 = vsyncpa [#allocation16], 1
    %6109 = vsyncpa [#allocation19], 1
    %6110 = vsyncpa [#allocation22], 1
    %6111 = vsyncpa [#allocation25], 1
    %6112 = vsyncpa [#allocation28], 1
    %6113 = vsyncpa [#allocation5], 1

</llo_original>
